<compile_context>
chip_gen: v7x
topology: tpu7x:2x2x1
jax: 0.10.0
libtpu: 0.0.40
codegen_flags: <defaults>
</compile_context>

<pallas_src>
import itertools

import numpy as np

import jax
import jax.numpy as jnp
from jax.experimental import pallas as pl
from jax.experimental.pallas import tpu as pltpu


CH = 32        # hidden channels of the synthetic registration net
OUT_PAD = 8    # velocity channels (3) padded to a full sublane group for MXU


def _vmem_capacity_bytes():
    """Per-core VMEM capacity; conservative 64 MiB (v7x) fallback."""
    try:
        return int(pltpu.get_tpu_info().vmem_capacity_bytes)
    except Exception:
        return 64 * 1024 * 1024


def _pick_tile_and_pad(V, N, vmem_cap):
    """Pick a lane tile TV (multiple of 128) from an explicit VMEM budget."""
    bytes_per_lane = (
        2 * N * 2        # double-buffered bf16 image tiles (all N subjects)
        + 2 * 3 * 4      # double-buffered f32 output tile
        + 2 * CH * 4     # f32 hidden activations h + accumulator acc_h
        + OUT_PAD * 4    # padded matmul result
        + 16             # slack (layout / vreg spill headroom)
    )
    budget = int(0.70 * vmem_cap)            # 44.8 MiB on v7x, ~90 MiB on v5e/v6e
    tv_max = max(128, (budget // bytes_per_lane) // 128 * 128)
    v128 = ((V + 127) // 128) * 128          # volume rounded up to lane multiple
    TV = min(tv_max, v128)
    n_tiles = pl.cdiv(V, TV)
    Vpad = n_tiles * TV
    return TV, Vpad, n_tiles


def hadj_hamou_velocity(images, ages, w1, b1, w2, b2):
    """images: (N, 1, D, H, W) f32, ages: (N,) f32 -> velocity (1, 3, D, H, W) f32.

    NOTE: ages must be concrete (host-visible); the per-pair time scales and
    their signs are folded into the layer-1 weights at trace time, mirroring
    the eager per-pair loop of the original PyTorch module.
    """
    N = images.shape[0]
    D, H, W = images.shape[2:]
    V = D * H * W

    pairs = list(itertools.combinations(range(N), 2))
    if len(pairs) == 0:
        # Fewer than 2 subjects -> denum == 0 -> zeros (module semantics).
        return jnp.zeros((1, 3, D, H, W), jnp.float32)

    # Host-side scalar math (ages are concrete).
    ages_np = np.asarray(jax.device_get(ages), dtype=np.float64)
    times_np = np.array([ages_np[j] - ages_np[i] for i, j in pairs])
    denum = float(np.sum(times_np * times_np))
    if denum == 0.0:
        return jnp.zeros((1, 3, D, H, W), jnp.float32)
    inv_denum = 1.0 / denum
    s_np = times_np * inv_denum                       # s_p = t_p / denum

    # Drop zero-time pairs (contribute nothing); record static signs.
    pairs_used = [pairs[p] for p in range(len(pairs)) if s_np[p] != 0.0]
    signs_used = [1.0 if s_np[p] > 0.0 else -1.0
                  for p in range(len(pairs)) if s_np[p] != 0.0]
    abs_s = np.abs(s_np[s_np != 0.0]).astype(np.float32)     # (Pu,)
    Pu = len(pairs_used)

    # Fold |s_p| into per-pair layer-1 parameters (ReLU positive homogeneity):
    #   s_p * relu(w1.x + b1) = sign(s_p) * relu(|s_p|*w1.x + |s_p|*b1)
    abs_s_j = jnp.asarray(abs_s)                              # (Pu,)
    w1p = abs_s_j[:, None, None] * w1[None]                   # (Pu, CH, 2) f32
    b1p = abs_s_j[:, None, None] * b1[None]                   # (Pu, CH, 1) f32

    # Second layer: one matmul per tile; pad Cout 3 -> 8, bf16 MXU operands.
    w2_pad = jnp.zeros((OUT_PAD, CH), jnp.float32).at[:3].set(w2)
    w2_bf = w2_pad.astype(jnp.bfloat16)                       # (8, CH) bf16
    b_fin = jnp.float32(float(np.sum(times_np)) * inv_denum) * b2   # (3, 1) f32

    # bf16 image storage in HBM; zero-pad the spatial axis to a tile multiple.
    TV, Vpad, n_tiles = _pick_tile_and_pad(V, N, _vmem_capacity_bytes())
    imgs_flat = images.reshape(N, V).astype(jnp.bfloat16)
    if Vpad != V:
        imgs_flat = jnp.pad(imgs_flat, ((0, 0), (0, Vpad - V)))

    def kernel(imgs_ref, w1p_ref, b1p_ref, w2_ref, bfin_ref, out_ref):
        # Accumulate sum_p s_p * h_p on the VPU in float32 (v5e-safe math).
        acc_h = jnp.zeros((CH, TV), jnp.float32)
        for p in range(Pu):                         # unrolled, Pu is static/small
            i, j = pairs_used[p]
            xi = imgs_ref[i:i + 1, :].astype(jnp.float32)    # (1, TV)
            xj = imgs_ref[j:j + 1, :].astype(jnp.float32)    # (1, TV)
            w1a = w1p_ref[p, :, 0:1]                         # (CH, 1)
            w1b = w1p_ref[p, :, 1:2]                         # (CH, 1)
            b1v = b1p_ref[p]                                 # (CH, 1)
            h = jnp.maximum(w1a * xi + w1b * xj + b1v, 0.0)  # (CH, TV)
            if signs_used[p] > 0.0:
                acc_h = acc_h + h
            else:
                acc_h = acc_h - h
        # Single MXU matmul per spatial tile; bf16 operands, f32 accumulation.
        vel = jnp.dot(w2_ref[...], acc_h.astype(jnp.bfloat16),
                      preferred_element_type=jnp.float32)    # (8, TV)
        out_ref[...] = vel[:3, :] + bfin_ref[...]

    vmem_cap = _vmem_capacity_bytes()
    vmem_limit = min(int(0.85 * vmem_cap), 100 * 1024 * 1024)

    out = pl.pallas_call(
        kernel,
        out_shape=jax.ShapeDtypeStruct((3, Vpad), jnp.float32),
        grid=(n_tiles,),
        in_specs=[
            # All N image tiles for this spatial tile -> each image DMA'd once.
            pl.BlockSpec((N, TV), lambda v: (0, v)),
            # Per-pair folded layer-1 weights / bias (tiny, VMEM-resident).
            pl.BlockSpec((Pu, CH, 2), lambda v: (0, 0, 0)),
            pl.BlockSpec((Pu, CH, 1), lambda v: (0, 0, 0)),
            # Second-layer weights (bf16) and final bias.
            pl.BlockSpec((OUT_PAD, CH), lambda v: (0, 0)),
            pl.BlockSpec((3, 1), lambda v: (0, 0)),
        ],
        out_specs=pl.BlockSpec((3, TV), lambda v: (0, v)),
        compiler_params=pltpu.CompilerParams(
            # Spatial tiles are independent -> shard across TCs on v7x.
            dimension_semantics=("parallel",),
            vmem_limit_bytes=vmem_limit,
        ),
    )(imgs_flat, w1p, b1p, w2_bf, b_fin)

    return out[:, :V].reshape(1, 3, D, H, W)


def _reference(images, ages, w1, b1, w2, b2):
    """Pure-JAX reference of the same forward pass (full-precision dots)."""
    N = images.shape[0]
    D, H, W = images.shape[2:]
    V = D * H * W
    hp = jax.lax.Precision.HIGHEST
    imgs = images.reshape(N, 1, V).astype(jnp.float32)
    num = jnp.zeros((1, 3, V), jnp.float32)
    denum = 0.0
    for i, j in itertools.combinations(range(N), 2):
        t_ij = ages[j] - ages[i]
        x = jnp.concatenate([imgs[i], imgs[j]], axis=0)            # (2, V)
        h = jnp.maximum(jnp.dot(w1, x, precision=hp) + b1, 0.0)    # (CH, V)
        v = (jnp.dot(w2, h, precision=hp) + b2)[None]              # (1, 3, V)
        num = num + v * t_ij
        denum = denum + t_ij * t_ij
    vel = jnp.where(denum != 0, num / denum, jnp.zeros_like(num))
    return vel.reshape(1, 3, D, H, W)


if __name__ == "__main__":
    key = jax.random.PRNGKey(0)
    k_img, k_w1, k_b1, k_w2, k_b2 = jax.random.split(key, 5)

    # Small 3D longitudinal dataset: N subjects, single-channel 16^3 volumes.
    N, D, H, W = 4, 16, 16, 16
    images = jax.random.normal(k_img, (N, 1, D, H, W), jnp.float32)
    ages = jnp.array([60.0, 62.5, 65.0, 70.0], jnp.float32)

    # Deterministic synthetic registration-net parameters.
    w1 = jax.random.normal(k_w1, (CH, 2), jnp.float32) * 0.1
    b1 = jax.random.normal(k_b1, (CH, 1), jnp.float32) * 0.1
    w2 = jax.random.normal(k_w2, (3, CH), jnp.float32) * 0.1
    b2 = jax.random.normal(k_b2, (3, 1), jnp.float32) * 0.1

    velocity = hadj_hamou_velocity(images, ages, w1, b1, w2, b2)
    velocity = jax.block_until_ready(velocity)

    ref = _reference(images, ages, w1, b1, w2, b2)
    assert velocity.shape == (1, 3, D, H, W)
    assert jnp.allclose(velocity, ref, atol=2e-3, rtol=2e-3), "mismatch vs reference"

    print("KERNEL_OK")
</pallas_src>

<mosaic_0001>
module attributes {stable_mosaic.version = 11 : i64} {
  func.func @kernel(%arg0: i32, %arg1: memref<4x4096xbf16, #tpu.memory_space<vmem>>, %arg2: memref<6x32x2xf32, #tpu.memory_space<vmem>>, %arg3: memref<6x32x1xf32, #tpu.memory_space<vmem>>, %arg4: memref<8x32xbf16, #tpu.memory_space<vmem>>, %arg5: memref<3x1xf32, #tpu.memory_space<vmem>>, %arg6: memref<3x4096xf32, #tpu.memory_space<vmem>>) attributes {dimension_semantics = [#tpu.dimension_semantics<parallel>], iteration_bounds = array<i64: 1>, scalar_prefetch = 0 : i64, scratch_operands = 0 : i64, tpu.core_type = #tpu.core_type<tc>, window_params = [{transform_indices = @transform_0, window_bounds = array<i64: 4, 4096>}, {pipeline_mode = #tpu.pipeline_mode<synchronous>, transform_indices = @transform_1, window_bounds = array<i64: 6, 32, 2>}, {pipeline_mode = #tpu.pipeline_mode<synchronous>, transform_indices = @transform_2, window_bounds = array<i64: 6, 32, 1>}, {pipeline_mode = #tpu.pipeline_mode<synchronous>, transform_indices = @transform_3, window_bounds = array<i64: 8, 32>}, {pipeline_mode = #tpu.pipeline_mode<synchronous>, transform_indices = @transform_4, window_bounds = array<i64: 3, 1>}, {transform_indices = @transform_5, window_bounds = array<i64: 3, 4096>}]} {
    %cst = arith.constant 0.000000e+00 : f32
    %0 = vector.broadcast %cst : f32 to vector<32x4096xf32>
    %c0 = arith.constant 0 : index
    %c0_0 = arith.constant 0 : index
    %1 = vector.load %arg1[%c0, %c0_0] : memref<4x4096xbf16, #tpu.memory_space<vmem>>, vector<1x4096xbf16>
    %2 = arith.extf %1 : vector<1x4096xbf16> to vector<1x4096xf32>
    %c1 = arith.constant 1 : index
    %c0_1 = arith.constant 0 : index
    %3 = vector.load %arg1[%c1, %c0_1] : memref<4x4096xbf16, #tpu.memory_space<vmem>>, vector<1x4096xbf16>
    %4 = arith.extf %3 : vector<1x4096xbf16> to vector<1x4096xf32>
    %c0_2 = arith.constant 0 : index
    %c0_3 = arith.constant 0 : index
    %c0_4 = arith.constant 0 : index
    %5 = vector.load %arg2[%c0_2, %c0_3, %c0_4] : memref<6x32x2xf32, #tpu.memory_space<vmem>>, vector<1x32x1xf32>
    %6 = vector.shape_cast %5 : vector<1x32x1xf32> to vector<32x1xf32>
    %c0_5 = arith.constant 0 : index
    %c0_6 = arith.constant 0 : index
    %c1_7 = arith.constant 1 : index
    %7 = vector.load %arg2[%c0_5, %c0_6, %c1_7] : memref<6x32x2xf32, #tpu.memory_space<vmem>>, vector<1x32x1xf32>
    %8 = vector.shape_cast %7 : vector<1x32x1xf32> to vector<32x1xf32>
    %c0_8 = arith.constant 0 : index
    %c0_9 = arith.constant 0 : index
    %c0_10 = arith.constant 0 : index
    %9 = vector.load %arg3[%c0_8, %c0_9, %c0_10] : memref<6x32x1xf32, #tpu.memory_space<vmem>>, vector<1x32x1xf32>
    %10 = vector.shape_cast %9 : vector<1x32x1xf32> to vector<32x1xf32>
    %11 = vector.broadcast %6 : vector<32x1xf32> to vector<32x4096xf32>
    %12 = vector.broadcast %2 : vector<1x4096xf32> to vector<32x4096xf32>
    %13 = arith.mulf %11, %12 : vector<32x4096xf32>
    %14 = vector.broadcast %8 : vector<32x1xf32> to vector<32x4096xf32>
    %15 = vector.broadcast %4 : vector<1x4096xf32> to vector<32x4096xf32>
    %16 = arith.mulf %14, %15 : vector<32x4096xf32>
    %17 = arith.addf %13, %16 : vector<32x4096xf32>
    %18 = vector.broadcast %10 : vector<32x1xf32> to vector<32x4096xf32>
    %19 = arith.addf %17, %18 : vector<32x4096xf32>
    %cst_11 = arith.constant 0.000000e+00 : f32
    %20 = vector.broadcast %cst_11 : f32 to vector<32x4096xf32>
    %21 = arith.maximumf %19, %20 : vector<32x4096xf32>
    %22 = arith.addf %0, %21 : vector<32x4096xf32>
    %c0_12 = arith.constant 0 : index
    %c0_13 = arith.constant 0 : index
    %23 = vector.load %arg1[%c0_12, %c0_13] : memref<4x4096xbf16, #tpu.memory_space<vmem>>, vector<1x4096xbf16>
    %24 = arith.extf %23 : vector<1x4096xbf16> to vector<1x4096xf32>
    %c2 = arith.constant 2 : index
    %c0_14 = arith.constant 0 : index
    %25 = vector.load %arg1[%c2, %c0_14] : memref<4x4096xbf16, #tpu.memory_space<vmem>>, vector<1x4096xbf16>
    %26 = arith.extf %25 : vector<1x4096xbf16> to vector<1x4096xf32>
    %c1_15 = arith.constant 1 : index
    %c0_16 = arith.constant 0 : index
    %c0_17 = arith.constant 0 : index
    %27 = vector.load %arg2[%c1_15, %c0_16, %c0_17] : memref<6x32x2xf32, #tpu.memory_space<vmem>>, vector<1x32x1xf32>
    %28 = vector.shape_cast %27 : vector<1x32x1xf32> to vector<32x1xf32>
    %c1_18 = arith.constant 1 : index
    %c0_19 = arith.constant 0 : index
    %c1_20 = arith.constant 1 : index
    %29 = vector.load %arg2[%c1_18, %c0_19, %c1_20] : memref<6x32x2xf32, #tpu.memory_space<vmem>>, vector<1x32x1xf32>
    %30 = vector.shape_cast %29 : vector<1x32x1xf32> to vector<32x1xf32>
    %c1_21 = arith.constant 1 : index
    %c0_22 = arith.constant 0 : index
    %c0_23 = arith.constant 0 : index
    %31 = vector.load %arg3[%c1_21, %c0_22, %c0_23] : memref<6x32x1xf32, #tpu.memory_space<vmem>>, vector<1x32x1xf32>
    %32 = vector.shape_cast %31 : vector<1x32x1xf32> to vector<32x1xf32>
    %33 = vector.broadcast %28 : vector<32x1xf32> to vector<32x4096xf32>
    %34 = vector.broadcast %24 : vector<1x4096xf32> to vector<32x4096xf32>
    %35 = arith.mulf %33, %34 : vector<32x4096xf32>
    %36 = vector.broadcast %30 : vector<32x1xf32> to vector<32x4096xf32>
    %37 = vector.broadcast %26 : vector<1x4096xf32> to vector<32x4096xf32>
    %38 = arith.mulf %36, %37 : vector<32x4096xf32>
    %39 = arith.addf %35, %38 : vector<32x4096xf32>
    %40 = vector.broadcast %32 : vector<32x1xf32> to vector<32x4096xf32>
    %41 = arith.addf %39, %40 : vector<32x4096xf32>
    %cst_24 = arith.constant 0.000000e+00 : f32
    %42 = vector.broadcast %cst_24 : f32 to vector<32x4096xf32>
    %43 = arith.maximumf %41, %42 : vector<32x4096xf32>
    %44 = arith.addf %22, %43 : vector<32x4096xf32>
    %c0_25 = arith.constant 0 : index
    %c0_26 = arith.constant 0 : index
    %45 = vector.load %arg1[%c0_25, %c0_26] : memref<4x4096xbf16, #tpu.memory_space<vmem>>, vector<1x4096xbf16>
    %46 = arith.extf %45 : vector<1x4096xbf16> to vector<1x4096xf32>
    %c3 = arith.constant 3 : index
    %c0_27 = arith.constant 0 : index
    %47 = vector.load %arg1[%c3, %c0_27] : memref<4x4096xbf16, #tpu.memory_space<vmem>>, vector<1x4096xbf16>
    %48 = arith.extf %47 : vector<1x4096xbf16> to vector<1x4096xf32>
    %c2_28 = arith.constant 2 : index
    %c0_29 = arith.constant 0 : index
    %c0_30 = arith.constant 0 : index
    %49 = vector.load %arg2[%c2_28, %c0_29, %c0_30] : memref<6x32x2xf32, #tpu.memory_space<vmem>>, vector<1x32x1xf32>
    %50 = vector.shape_cast %49 : vector<1x32x1xf32> to vector<32x1xf32>
    %c2_31 = arith.constant 2 : index
    %c0_32 = arith.constant 0 : index
    %c1_33 = arith.constant 1 : index
    %51 = vector.load %arg2[%c2_31, %c0_32, %c1_33] : memref<6x32x2xf32, #tpu.memory_space<vmem>>, vector<1x32x1xf32>
    %52 = vector.shape_cast %51 : vector<1x32x1xf32> to vector<32x1xf32>
    %c2_34 = arith.constant 2 : index
    %c0_35 = arith.constant 0 : index
    %c0_36 = arith.constant 0 : index
    %53 = vector.load %arg3[%c2_34, %c0_35, %c0_36] : memref<6x32x1xf32, #tpu.memory_space<vmem>>, vector<1x32x1xf32>
    %54 = vector.shape_cast %53 : vector<1x32x1xf32> to vector<32x1xf32>
    %55 = vector.broadcast %50 : vector<32x1xf32> to vector<32x4096xf32>
    %56 = vector.broadcast %46 : vector<1x4096xf32> to vector<32x4096xf32>
    %57 = arith.mulf %55, %56 : vector<32x4096xf32>
    %58 = vector.broadcast %52 : vector<32x1xf32> to vector<32x4096xf32>
    %59 = vector.broadcast %48 : vector<1x4096xf32> to vector<32x4096xf32>
    %60 = arith.mulf %58, %59 : vector<32x4096xf32>
    %61 = arith.addf %57, %60 : vector<32x4096xf32>
    %62 = vector.broadcast %54 : vector<32x1xf32> to vector<32x4096xf32>
    %63 = arith.addf %61, %62 : vector<32x4096xf32>
    %cst_37 = arith.constant 0.000000e+00 : f32
    %64 = vector.broadcast %cst_37 : f32 to vector<32x4096xf32>
    %65 = arith.maximumf %63, %64 : vector<32x4096xf32>
    %66 = arith.addf %44, %65 : vector<32x4096xf32>
    %c1_38 = arith.constant 1 : index
    %c0_39 = arith.constant 0 : index
    %67 = vector.load %arg1[%c1_38, %c0_39] : memref<4x4096xbf16, #tpu.memory_space<vmem>>, vector<1x4096xbf16>
    %68 = arith.extf %67 : vector<1x4096xbf16> to vector<1x4096xf32>
    %c2_40 = arith.constant 2 : index
    %c0_41 = arith.constant 0 : index
    %69 = vector.load %arg1[%c2_40, %c0_41] : memref<4x4096xbf16, #tpu.memory_space<vmem>>, vector<1x4096xbf16>
    %70 = arith.extf %69 : vector<1x4096xbf16> to vector<1x4096xf32>
    %c3_42 = arith.constant 3 : index
    %c0_43 = arith.constant 0 : index
    %c0_44 = arith.constant 0 : index
    %71 = vector.load %arg2[%c3_42, %c0_43, %c0_44] : memref<6x32x2xf32, #tpu.memory_space<vmem>>, vector<1x32x1xf32>
    %72 = vector.shape_cast %71 : vector<1x32x1xf32> to vector<32x1xf32>
    %c3_45 = arith.constant 3 : index
    %c0_46 = arith.constant 0 : index
    %c1_47 = arith.constant 1 : index
    %73 = vector.load %arg2[%c3_45, %c0_46, %c1_47] : memref<6x32x2xf32, #tpu.memory_space<vmem>>, vector<1x32x1xf32>
    %74 = vector.shape_cast %73 : vector<1x32x1xf32> to vector<32x1xf32>
    %c3_48 = arith.constant 3 : index
    %c0_49 = arith.constant 0 : index
    %c0_50 = arith.constant 0 : index
    %75 = vector.load %arg3[%c3_48, %c0_49, %c0_50] : memref<6x32x1xf32, #tpu.memory_space<vmem>>, vector<1x32x1xf32>
    %76 = vector.shape_cast %75 : vector<1x32x1xf32> to vector<32x1xf32>
    %77 = vector.broadcast %72 : vector<32x1xf32> to vector<32x4096xf32>
    %78 = vector.broadcast %68 : vector<1x4096xf32> to vector<32x4096xf32>
    %79 = arith.mulf %77, %78 : vector<32x4096xf32>
    %80 = vector.broadcast %74 : vector<32x1xf32> to vector<32x4096xf32>
    %81 = vector.broadcast %70 : vector<1x4096xf32> to vector<32x4096xf32>
    %82 = arith.mulf %80, %81 : vector<32x4096xf32>
    %83 = arith.addf %79, %82 : vector<32x4096xf32>
    %84 = vector.broadcast %76 : vector<32x1xf32> to vector<32x4096xf32>
    %85 = arith.addf %83, %84 : vector<32x4096xf32>
    %cst_51 = arith.constant 0.000000e+00 : f32
    %86 = vector.broadcast %cst_51 : f32 to vector<32x4096xf32>
    %87 = arith.maximumf %85, %86 : vector<32x4096xf32>
    %88 = arith.addf %66, %87 : vector<32x4096xf32>
    %c1_52 = arith.constant 1 : index
    %c0_53 = arith.constant 0 : index
    %89 = vector.load %arg1[%c1_52, %c0_53] : memref<4x4096xbf16, #tpu.memory_space<vmem>>, vector<1x4096xbf16>
    %90 = arith.extf %89 : vector<1x4096xbf16> to vector<1x4096xf32>
    %c3_54 = arith.constant 3 : index
    %c0_55 = arith.constant 0 : index
    %91 = vector.load %arg1[%c3_54, %c0_55] : memref<4x4096xbf16, #tpu.memory_space<vmem>>, vector<1x4096xbf16>
    %92 = arith.extf %91 : vector<1x4096xbf16> to vector<1x4096xf32>
    %c4 = arith.constant 4 : index
    %c0_56 = arith.constant 0 : index
    %c0_57 = arith.constant 0 : index
    %93 = vector.load %arg2[%c4, %c0_56, %c0_57] : memref<6x32x2xf32, #tpu.memory_space<vmem>>, vector<1x32x1xf32>
    %94 = vector.shape_cast %93 : vector<1x32x1xf32> to vector<32x1xf32>
    %c4_58 = arith.constant 4 : index
    %c0_59 = arith.constant 0 : index
    %c1_60 = arith.constant 1 : index
    %95 = vector.load %arg2[%c4_58, %c0_59, %c1_60] : memref<6x32x2xf32, #tpu.memory_space<vmem>>, vector<1x32x1xf32>
    %96 = vector.shape_cast %95 : vector<1x32x1xf32> to vector<32x1xf32>
    %c4_61 = arith.constant 4 : index
    %c0_62 = arith.constant 0 : index
    %c0_63 = arith.constant 0 : index
    %97 = vector.load %arg3[%c4_61, %c0_62, %c0_63] : memref<6x32x1xf32, #tpu.memory_space<vmem>>, vector<1x32x1xf32>
    %98 = vector.shape_cast %97 : vector<1x32x1xf32> to vector<32x1xf32>
    %99 = vector.broadcast %94 : vector<32x1xf32> to vector<32x4096xf32>
    %100 = vector.broadcast %90 : vector<1x4096xf32> to vector<32x4096xf32>
    %101 = arith.mulf %99, %100 : vector<32x4096xf32>
    %102 = vector.broadcast %96 : vector<32x1xf32> to vector<32x4096xf32>
    %103 = vector.broadcast %92 : vector<1x4096xf32> to vector<32x4096xf32>
    %104 = arith.mulf %102, %103 : vector<32x4096xf32>
    %105 = arith.addf %101, %104 : vector<32x4096xf32>
    %106 = vector.broadcast %98 : vector<32x1xf32> to vector<32x4096xf32>
    %107 = arith.addf %105, %106 : vector<32x4096xf32>
    %cst_64 = arith.constant 0.000000e+00 : f32
    %108 = vector.broadcast %cst_64 : f32 to vector<32x4096xf32>
    %109 = arith.maximumf %107, %108 : vector<32x4096xf32>
    %110 = arith.addf %88, %109 : vector<32x4096xf32>
    %c2_65 = arith.constant 2 : index
    %c0_66 = arith.constant 0 : index
    %111 = vector.load %arg1[%c2_65, %c0_66] : memref<4x4096xbf16, #tpu.memory_space<vmem>>, vector<1x4096xbf16>
    %112 = arith.extf %111 : vector<1x4096xbf16> to vector<1x4096xf32>
    %c3_67 = arith.constant 3 : index
    %c0_68 = arith.constant 0 : index
    %113 = vector.load %arg1[%c3_67, %c0_68] : memref<4x4096xbf16, #tpu.memory_space<vmem>>, vector<1x4096xbf16>
    %114 = arith.extf %113 : vector<1x4096xbf16> to vector<1x4096xf32>
    %c5 = arith.constant 5 : index
    %c0_69 = arith.constant 0 : index
    %c0_70 = arith.constant 0 : index
    %115 = vector.load %arg2[%c5, %c0_69, %c0_70] : memref<6x32x2xf32, #tpu.memory_space<vmem>>, vector<1x32x1xf32>
    %116 = vector.shape_cast %115 : vector<1x32x1xf32> to vector<32x1xf32>
    %c5_71 = arith.constant 5 : index
    %c0_72 = arith.constant 0 : index
    %c1_73 = arith.constant 1 : index
    %117 = vector.load %arg2[%c5_71, %c0_72, %c1_73] : memref<6x32x2xf32, #tpu.memory_space<vmem>>, vector<1x32x1xf32>
    %118 = vector.shape_cast %117 : vector<1x32x1xf32> to vector<32x1xf32>
    %c5_74 = arith.constant 5 : index
    %c0_75 = arith.constant 0 : index
    %c0_76 = arith.constant 0 : index
    %119 = vector.load %arg3[%c5_74, %c0_75, %c0_76] : memref<6x32x1xf32, #tpu.memory_space<vmem>>, vector<1x32x1xf32>
    %120 = vector.shape_cast %119 : vector<1x32x1xf32> to vector<32x1xf32>
    %121 = vector.broadcast %116 : vector<32x1xf32> to vector<32x4096xf32>
    %122 = vector.broadcast %112 : vector<1x4096xf32> to vector<32x4096xf32>
    %123 = arith.mulf %121, %122 : vector<32x4096xf32>
    %124 = vector.broadcast %118 : vector<32x1xf32> to vector<32x4096xf32>
    %125 = vector.broadcast %114 : vector<1x4096xf32> to vector<32x4096xf32>
    %126 = arith.mulf %124, %125 : vector<32x4096xf32>
    %127 = arith.addf %123, %126 : vector<32x4096xf32>
    %128 = vector.broadcast %120 : vector<32x1xf32> to vector<32x4096xf32>
    %129 = arith.addf %127, %128 : vector<32x4096xf32>
    %cst_77 = arith.constant 0.000000e+00 : f32
    %130 = vector.broadcast %cst_77 : f32 to vector<32x4096xf32>
    %131 = arith.maximumf %129, %130 : vector<32x4096xf32>
    %132 = arith.addf %110, %131 : vector<32x4096xf32>
    %c0_78 = arith.constant 0 : index
    %c0_79 = arith.constant 0 : index
    %133 = vector.load %arg4[%c0_78, %c0_79] : memref<8x32xbf16, #tpu.memory_space<vmem>>, vector<8x32xbf16>
    %134 = arith.truncf %132 : vector<32x4096xf32> to vector<32x4096xbf16>
    %cst_80 = arith.constant dense<0.000000e+00> : vector<8x4096xf32>
    %135 = tpu.matmul %133, %134, %cst_80 {dimension_numbers = #tpu.dot_dimension_numbers<[1], [0], [0], [1], [0, 0, 1, 1], [], []>} : vector<8x32xbf16>, vector<32x4096xbf16>, vector<8x4096xf32> -> vector<8x4096xf32>
    %136 = vector.extract_strided_slice %135 {offsets = [0, 0], sizes = [3, 4096], strides = [1, 1]} : vector<8x4096xf32> to vector<3x4096xf32>
    %c0_81 = arith.constant 0 : index
    %c0_82 = arith.constant 0 : index
    %137 = vector.load %arg5[%c0_81, %c0_82] : memref<3x1xf32, #tpu.memory_space<vmem>>, vector<3x1xf32>
    %138 = vector.broadcast %137 : vector<3x1xf32> to vector<3x4096xf32>
    %139 = arith.addf %136, %138 : vector<3x4096xf32>
    %c0_83 = arith.constant 0 : index
    %c0_84 = arith.constant 0 : index
    %140 = vector.load %arg6[%c0_83, %c0_84] : memref<3x4096xf32, #tpu.memory_space<vmem>>, vector<3x4096xf32>
    tpu.vector_store %arg6[%c0_83, %c0_84], %139 {strides = array<i32>} : memref<3x4096xf32, #tpu.memory_space<vmem>>, vector<3x4096xf32>,
    return
  }
  func.func @transform_0(%arg0: i32) -> (i32, i32) {
    %c0_i32 = arith.constant 0 : i32
    %c0_i32_0 = arith.constant 0 : i32
    return %c0_i32, %arg0 : i32, i32
  }
  func.func @transform_1(%arg0: i32) -> (i32, i32, i32) {
    %c0_i32 = arith.constant 0 : i32
    %c0_i32_0 = arith.constant 0 : i32
    %c0_i32_1 = arith.constant 0 : i32
    %c0_i32_2 = arith.constant 0 : i32
    return %c0_i32, %c0_i32_0, %c0_i32_1 : i32, i32, i32
  }
  func.func @transform_2(%arg0: i32) -> (i32, i32, i32) {
    %c0_i32 = arith.constant 0 : i32
    %c0_i32_0 = arith.constant 0 : i32
    %c0_i32_1 = arith.constant 0 : i32
    %c0_i32_2 = arith.constant 0 : i32
    return %c0_i32, %c0_i32_0, %c0_i32_1 : i32, i32, i32
  }
  func.func @transform_3(%arg0: i32) -> (i32, i32) {
    %c0_i32 = arith.constant 0 : i32
    %c0_i32_0 = arith.constant 0 : i32
    %c0_i32_1 = arith.constant 0 : i32
    return %c0_i32, %c0_i32_0 : i32, i32
  }
  func.func @transform_4(%arg0: i32) -> (i32, i32) {
    %c0_i32 = arith.constant 0 : i32
    %c0_i32_0 = arith.constant 0 : i32
    %c0_i32_1 = arith.constant 0 : i32
    return %c0_i32, %c0_i32_0 : i32, i32
  }
  func.func @transform_5(%arg0: i32) -> (i32, i32) {
    %c0_i32 = arith.constant 0 : i32
    %c0_i32_0 = arith.constant 0 : i32
    return %c0_i32, %arg0 : i32, i32
  }
}

</mosaic_0001>

<llo_original>
// kernel: tpu_custom_call.1
$region0: #{tpu_custom_call.1}
  #allocation0 [shape = 'u32[]', space=smem, size = 0x4, offset = 0x4, fixed_abs, tag = 'smem constant byte address 0x4 - core index']
  #allocation1 [shape = 'u32[144,128]{1,0:T(1,128)}', space=vmem, size = 0x12000, scoped, tag = 'internal scratch']
  %s0 = inlined_call_operand.vmem [shape: bf16[4,4096], index: 0, kind: input, shape index: {}]
  %s1 = inlined_call_operand.vmem [shape: f32[6,32,2], index: 1, kind: input, shape index: {}]
  %s2 = inlined_call_operand.vmem [shape: f32[6,32,1], index: 2, kind: input, shape index: {}]
  %s3 = inlined_call_operand.vmem [shape: bf16[8,32], index: 3, kind: input, shape index: {}]
  %s4 = inlined_call_operand.vmem [shape: f32[3,1], index: 4, kind: input, shape index: {}]
  %s5 = inlined_call_operand.hbm [shape: f32[3,4096], index: 5, kind: output, shape index: {}]
  %s6 = sld [smem:[#allocation0]]
  $region30: #{tpu_custom_call.1} parent=0
    _
  %s8 = ssub.s32 1, %s6
  %s9 = scalar_select 0, %s8, %s6
  $region1: #{tpu_custom_call.1} parent=0
    #allocation2 [shape = 'u8[65536]{0}', space=vmem, size = 0x10000, scoped, tag = 'output window, operand 0, single buffered']
    #allocation3 [shape = 's32[1]{0}', space=sflag, size = 0x4, scoped, tag = 'scoped memory for tpu_custom_call.1']
    %10 = vsyncpa [#allocation3], 0
    // Predicated region
    $region2: #{tpu_custom_call.1} parent=1 // pred_check
      _
    $region3: #{tpu_custom_call.1} parent=1 // pred_check_branch
      %12 = sbr.rel (0) target = $region5
    $region4: #{tpu_custom_call.1} parent=1 // pred_region
      _
    $region5: #{tpu_custom_call.1} parent=1 // pred_fallthru
      _
    // Predicated region
    $region6: #{tpu_custom_call.1} parent=1 // pred_check
      _
    $region7: #{tpu_custom_call.1} parent=1 // pred_check_branch
      %14 = sbr.rel (0) target = $region9
    $region8: #{tpu_custom_call.1} parent=1 // pred_region
      _
    $region9: #{tpu_custom_call.1} parent=1 // pred_fallthru
      _
    // Predicated region
    $region10: #{tpu_custom_call.1} parent=1 // pred_check
      _
    $region11: #{tpu_custom_call.1} parent=1 // pred_check_branch
      %16 = sbr.rel (0) target = $region13
    $region12: #{tpu_custom_call.1} parent=1 // pred_region
      _
    $region13: #{tpu_custom_call.1} parent=1 // pred_fallthru
      _
    // Predicated region
    $region14: #{tpu_custom_call.1} parent=1 // pred_check
      _
    $region15: #{tpu_custom_call.1} parent=1 // pred_check_branch
      %18 = sbr.rel (0) target = $region17
    $region16: #{tpu_custom_call.1} parent=1 // pred_region
      _
    $region17: #{tpu_custom_call.1} parent=1 // pred_fallthru
      _
    // Predicated region
    $region18: #{tpu_custom_call.1} parent=1 // pred_check
      _
    $region19: #{tpu_custom_call.1} parent=1 // pred_check_branch
      %20 = sbr.rel (0) target = $region21
    $region20: #{tpu_custom_call.1} parent=1 // pred_region
      _
    $region21: #{tpu_custom_call.1} parent=1 // pred_fallthru
      _
    %v22 = vld [vmem:[%s0] sm:$0x55]
    %v23 = vld [vmem:[%s0 + $0x8] sm:$0x55]
    %v24 = vld [vmem:[%s0 + $0x10] sm:$0x55]
    %v25 = vld [vmem:[%s0 + $0x18] sm:$0x55]
    %v26 = vld [vmem:[%s0 + $0x20] sm:$0x55]
    %v27 = vld [vmem:[%s0 + $0x28] sm:$0x55]
    %v28 = vld [vmem:[%s0 + $0x30] sm:$0x55]
    %v29 = vld [vmem:[%s0 + $0x38] sm:$0x55]
    %v30 = vunpack.c.l.bf16 %v22
    %v31 = vunpack.c.h.bf16 %v22
    %v32 = vunpack.c.l.bf16 %v23
    %v33 = vunpack.c.h.bf16 %v23
    %v34 = vunpack.c.l.bf16 %v24
    %v35 = vunpack.c.h.bf16 %v24
    %v36 = vunpack.c.l.bf16 %v25
    %v37 = vunpack.c.h.bf16 %v25
    %v38 = vunpack.c.l.bf16 %v26
    %v39 = vunpack.c.h.bf16 %v26
    %v40 = vunpack.c.l.bf16 %v27
    %v41 = vunpack.c.h.bf16 %v27
    %v42 = vunpack.c.l.bf16 %v28
    %v43 = vunpack.c.h.bf16 %v28
    %v44 = vunpack.c.l.bf16 %v29
    %v45 = vunpack.c.h.bf16 %v29
    %v46 = vld [vmem:[%s1] sm:$0xff]
    %v47 = vld [vmem:[%s1 + $0x8] sm:$0xff]
    %v48 = vld [vmem:[%s1 + $0x10] sm:$0xff]
    %v49 = vld [vmem:[%s1 + $0x18] sm:$0xff]
    %v50 = vld [vmem:[%s2] sm:$0xff]
    %v51 = vld [vmem:[%s2 + $0x8] sm:$0xff]
    %v52 = vld [vmem:[%s2 + $0x10] sm:$0xff]
    %v53 = vld [vmem:[%s2 + $0x18] sm:$0xff]
    %55 = vset.pattern.permute.xlu0 0
    %56 = vperm.xlu0 %55, %v46
    %v57 = vpop.permute.xlu0 %56
    %60 = vset.pattern.permute.xlu0 0
    %61 = vperm.xlu0 %60, %v47
    %v62 = vpop.permute.xlu0 %61
    %65 = vset.pattern.permute.xlu0 0
    %66 = vperm.xlu0 %65, %v48
    %v67 = vpop.permute.xlu0 %66
    %70 = vset.pattern.permute.xlu0 0
    %71 = vperm.xlu0 %70, %v49
    %v72 = vpop.permute.xlu0 %71
    %v90 = vlaneseq
    %v91 = vshrl.u32 %v90, 7
    %v92 = vsub.s32 0, %v91
    %v93 = vrot.slane %v30, %v92
    %v94 = vlaneseq
    %v95 = vshrl.u32 %v94, 7
    %v96 = vsub.s32 4, %v95
    %v97 = vrot.slane %v30, %v96
    %v98 = vlaneseq
    %v99 = vshrl.u32 %v98, 7
    %v100 = vsub.s32 0, %v99
    %v101 = vrot.slane %v31, %v100
    %v102 = vlaneseq
    %v103 = vshrl.u32 %v102, 7
    %v104 = vsub.s32 4, %v103
    %v105 = vrot.slane %v31, %v104
    %v106 = vlaneseq
    %v107 = vshrl.u32 %v106, 7
    %v108 = vsub.s32 0, %v107
    %v109 = vrot.slane %v32, %v108
    %v110 = vlaneseq
    %v111 = vshrl.u32 %v110, 7
    %v112 = vsub.s32 4, %v111
    %v113 = vrot.slane %v32, %v112
    %v114 = vlaneseq
    %v115 = vshrl.u32 %v114, 7
    %v116 = vsub.s32 0, %v115
    %v117 = vrot.slane %v33, %v116
    %v118 = vlaneseq
    %v119 = vshrl.u32 %v118, 7
    %v120 = vsub.s32 4, %v119
    %v121 = vrot.slane %v33, %v120
    %v122 = vlaneseq
    %v123 = vshrl.u32 %v122, 7
    %v124 = vsub.s32 0, %v123
    %v125 = vrot.slane %v34, %v124
    %v126 = vlaneseq
    %v127 = vshrl.u32 %v126, 7
    %v128 = vsub.s32 4, %v127
    %v129 = vrot.slane %v34, %v128
    %v130 = vlaneseq
    %v131 = vshrl.u32 %v130, 7
    %v132 = vsub.s32 0, %v131
    %v133 = vrot.slane %v35, %v132
    %v134 = vlaneseq
    %v135 = vshrl.u32 %v134, 7
    %v136 = vsub.s32 4, %v135
    %v137 = vrot.slane %v35, %v136
    %v138 = vlaneseq
    %v139 = vshrl.u32 %v138, 7
    %v140 = vsub.s32 0, %v139
    %v141 = vrot.slane %v36, %v140
    %v142 = vlaneseq
    %v143 = vshrl.u32 %v142, 7
    %v144 = vsub.s32 4, %v143
    %v145 = vrot.slane %v36, %v144
    %v146 = vlaneseq
    %v147 = vshrl.u32 %v146, 7
    %v148 = vsub.s32 0, %v147
    %v149 = vrot.slane %v37, %v148
    %v150 = vlaneseq
    %v151 = vshrl.u32 %v150, 7
    %v152 = vsub.s32 4, %v151
    %v153 = vrot.slane %v37, %v152
    %v154 = vlaneseq
    %v155 = vshrl.u32 %v154, 7
    %v156 = vsub.s32 0, %v155
    %v157 = vrot.slane %v38, %v156
    %v158 = vlaneseq
    %v159 = vshrl.u32 %v158, 7
    %v160 = vsub.s32 4, %v159
    %v161 = vrot.slane %v38, %v160
    %v162 = vlaneseq
    %v163 = vshrl.u32 %v162, 7
    %v164 = vsub.s32 0, %v163
    %v165 = vrot.slane %v39, %v164
    %v166 = vlaneseq
    %v167 = vshrl.u32 %v166, 7
    %v168 = vsub.s32 4, %v167
    %v169 = vrot.slane %v39, %v168
    %v170 = vlaneseq
    %v171 = vshrl.u32 %v170, 7
    %v172 = vsub.s32 0, %v171
    %v173 = vrot.slane %v40, %v172
    %v174 = vlaneseq
    %v175 = vshrl.u32 %v174, 7
    %v176 = vsub.s32 4, %v175
    %v177 = vrot.slane %v40, %v176
    %v178 = vlaneseq
    %v179 = vshrl.u32 %v178, 7
    %v180 = vsub.s32 0, %v179
    %v181 = vrot.slane %v41, %v180
    %v182 = vlaneseq
    %v183 = vshrl.u32 %v182, 7
    %v184 = vsub.s32 4, %v183
    %v185 = vrot.slane %v41, %v184
    %v186 = vlaneseq
    %v187 = vshrl.u32 %v186, 7
    %v188 = vsub.s32 0, %v187
    %v189 = vrot.slane %v42, %v188
    %v190 = vlaneseq
    %v191 = vshrl.u32 %v190, 7
    %v192 = vsub.s32 4, %v191
    %v193 = vrot.slane %v42, %v192
    %v194 = vlaneseq
    %v195 = vshrl.u32 %v194, 7
    %v196 = vsub.s32 0, %v195
    %v197 = vrot.slane %v43, %v196
    %v198 = vlaneseq
    %v199 = vshrl.u32 %v198, 7
    %v200 = vsub.s32 4, %v199
    %v201 = vrot.slane %v43, %v200
    %v202 = vlaneseq
    %v203 = vshrl.u32 %v202, 7
    %v204 = vsub.s32 0, %v203
    %v205 = vrot.slane %v44, %v204
    %v206 = vlaneseq
    %v207 = vshrl.u32 %v206, 7
    %v208 = vsub.s32 4, %v207
    %v209 = vrot.slane %v44, %v208
    %v210 = vlaneseq
    %v211 = vshrl.u32 %v210, 7
    %v212 = vsub.s32 0, %v211
    %v213 = vrot.slane %v45, %v212
    %v214 = vlaneseq
    %v215 = vshrl.u32 %v214, 7
    %v216 = vsub.s32 4, %v215
    %v217 = vrot.slane %v45, %v216
    %v250 = vlaneseq
    %v251 = vshrl.u32 %v250, 7
    %v252 = vsub.s32 0, %v251
    %v253 = vrot.slane %v93, %v252
    %v254 = vlaneseq
    %v255 = vshrl.u32 %v254, 7
    %v256 = vsub.s32 0, %v255
    %v257 = vrot.slane %v97, %v256
    %v258 = vlaneseq
    %v259 = vshrl.u32 %v258, 7
    %v260 = vsub.s32 0, %v259
    %v261 = vrot.slane %v101, %v260
    %v262 = vlaneseq
    %v263 = vshrl.u32 %v262, 7
    %v264 = vsub.s32 0, %v263
    %v265 = vrot.slane %v105, %v264
    %v266 = vlaneseq
    %v267 = vshrl.u32 %v266, 7
    %v268 = vsub.s32 0, %v267
    %v269 = vrot.slane %v109, %v268
    %v270 = vlaneseq
    %v271 = vshrl.u32 %v270, 7
    %v272 = vsub.s32 0, %v271
    %v273 = vrot.slane %v113, %v272
    %v274 = vlaneseq
    %v275 = vshrl.u32 %v274, 7
    %v276 = vsub.s32 0, %v275
    %v277 = vrot.slane %v117, %v276
    %v278 = vlaneseq
    %v279 = vshrl.u32 %v278, 7
    %v280 = vsub.s32 0, %v279
    %v281 = vrot.slane %v121, %v280
    %v282 = vlaneseq
    %v283 = vshrl.u32 %v282, 7
    %v284 = vsub.s32 0, %v283
    %v285 = vrot.slane %v125, %v284
    %v286 = vlaneseq
    %v287 = vshrl.u32 %v286, 7
    %v288 = vsub.s32 0, %v287
    %v289 = vrot.slane %v129, %v288
    %v290 = vlaneseq
    %v291 = vshrl.u32 %v290, 7
    %v292 = vsub.s32 0, %v291
    %v293 = vrot.slane %v133, %v292
    %v294 = vlaneseq
    %v295 = vshrl.u32 %v294, 7
    %v296 = vsub.s32 0, %v295
    %v297 = vrot.slane %v137, %v296
    %v298 = vlaneseq
    %v299 = vshrl.u32 %v298, 7
    %v300 = vsub.s32 0, %v299
    %v301 = vrot.slane %v141, %v300
    %v302 = vlaneseq
    %v303 = vshrl.u32 %v302, 7
    %v304 = vsub.s32 0, %v303
    %v305 = vrot.slane %v145, %v304
    %v306 = vlaneseq
    %v307 = vshrl.u32 %v306, 7
    %v308 = vsub.s32 0, %v307
    %v309 = vrot.slane %v149, %v308
    %v310 = vlaneseq
    %v311 = vshrl.u32 %v310, 7
    %v312 = vsub.s32 0, %v311
    %v313 = vrot.slane %v153, %v312
    %v314 = vlaneseq
    %v315 = vshrl.u32 %v314, 7
    %v316 = vsub.s32 0, %v315
    %v317 = vrot.slane %v157, %v316
    %v318 = vlaneseq
    %v319 = vshrl.u32 %v318, 7
    %v320 = vsub.s32 0, %v319
    %v321 = vrot.slane %v161, %v320
    %v322 = vlaneseq
    %v323 = vshrl.u32 %v322, 7
    %v324 = vsub.s32 0, %v323
    %v325 = vrot.slane %v165, %v324
    %v326 = vlaneseq
    %v327 = vshrl.u32 %v326, 7
    %v328 = vsub.s32 0, %v327
    %v329 = vrot.slane %v169, %v328
    %v330 = vlaneseq
    %v331 = vshrl.u32 %v330, 7
    %v332 = vsub.s32 0, %v331
    %v333 = vrot.slane %v173, %v332
    %v334 = vlaneseq
    %v335 = vshrl.u32 %v334, 7
    %v336 = vsub.s32 0, %v335
    %v337 = vrot.slane %v177, %v336
    %v338 = vlaneseq
    %v339 = vshrl.u32 %v338, 7
    %v340 = vsub.s32 0, %v339
    %v341 = vrot.slane %v181, %v340
    %v342 = vlaneseq
    %v343 = vshrl.u32 %v342, 7
    %v344 = vsub.s32 0, %v343
    %v345 = vrot.slane %v185, %v344
    %v346 = vlaneseq
    %v347 = vshrl.u32 %v346, 7
    %v348 = vsub.s32 0, %v347
    %v349 = vrot.slane %v189, %v348
    %v350 = vlaneseq
    %v351 = vshrl.u32 %v350, 7
    %v352 = vsub.s32 0, %v351
    %v353 = vrot.slane %v193, %v352
    %v354 = vlaneseq
    %v355 = vshrl.u32 %v354, 7
    %v356 = vsub.s32 0, %v355
    %v357 = vrot.slane %v197, %v356
    %v358 = vlaneseq
    %v359 = vshrl.u32 %v358, 7
    %v360 = vsub.s32 0, %v359
    %v361 = vrot.slane %v201, %v360
    %v362 = vlaneseq
    %v363 = vshrl.u32 %v362, 7
    %v364 = vsub.s32 0, %v363
    %v365 = vrot.slane %v205, %v364
    %v366 = vlaneseq
    %v367 = vshrl.u32 %v366, 7
    %v368 = vsub.s32 0, %v367
    %v369 = vrot.slane %v209, %v368
    %v370 = vlaneseq
    %v371 = vshrl.u32 %v370, 7
    %v372 = vsub.s32 0, %v371
    %v373 = vrot.slane %v213, %v372
    %v374 = vlaneseq
    %v375 = vshrl.u32 %v374, 7
    %v376 = vsub.s32 0, %v375
    %v377 = vrot.slane %v217, %v376
    %v378 = vmul.f32 %v57, %v253
    %v379 = vmul.f32 %v57, %v257
    %v380 = vmul.f32 %v57, %v261
    %v381 = vmul.f32 %v57, %v265
    %v382 = vmul.f32 %v57, %v269
    %v383 = vmul.f32 %v57, %v273
    %v384 = vmul.f32 %v57, %v277
    %v385 = vmul.f32 %v57, %v281
    %v386 = vmul.f32 %v57, %v285
    %v387 = vmul.f32 %v57, %v289
    %v388 = vmul.f32 %v57, %v293
    %v389 = vmul.f32 %v57, %v297
    %v390 = vmul.f32 %v57, %v301
    %v391 = vmul.f32 %v57, %v305
    %v392 = vmul.f32 %v57, %v309
    %v393 = vmul.f32 %v57, %v313
    %v394 = vmul.f32 %v57, %v317
    %v395 = vmul.f32 %v57, %v321
    %v396 = vmul.f32 %v57, %v325
    %v397 = vmul.f32 %v57, %v329
    %v398 = vmul.f32 %v57, %v333
    %v399 = vmul.f32 %v57, %v337
    %v400 = vmul.f32 %v57, %v341
    %v401 = vmul.f32 %v57, %v345
    %v402 = vmul.f32 %v57, %v349
    %v403 = vmul.f32 %v57, %v353
    %v404 = vmul.f32 %v57, %v357
    %v405 = vmul.f32 %v57, %v361
    %v406 = vmul.f32 %v57, %v365
    %v407 = vmul.f32 %v57, %v369
    %v408 = vmul.f32 %v57, %v373
    %v409 = vmul.f32 %v57, %v377
    %v410 = vmul.f32 %v62, %v253
    %v411 = vmul.f32 %v62, %v257
    %v412 = vmul.f32 %v62, %v261
    %v413 = vmul.f32 %v62, %v265
    %v414 = vmul.f32 %v62, %v269
    %v415 = vmul.f32 %v62, %v273
    %v416 = vmul.f32 %v62, %v277
    %v417 = vmul.f32 %v62, %v281
    %v418 = vmul.f32 %v62, %v285
    %v419 = vmul.f32 %v62, %v289
    %v420 = vmul.f32 %v62, %v293
    %v421 = vmul.f32 %v62, %v297
    %v422 = vmul.f32 %v62, %v301
    %v423 = vmul.f32 %v62, %v305
    %v424 = vmul.f32 %v62, %v309
    %v425 = vmul.f32 %v62, %v313
    %v426 = vmul.f32 %v62, %v317
    %v427 = vmul.f32 %v62, %v321
    %v428 = vmul.f32 %v62, %v325
    %v429 = vmul.f32 %v62, %v329
    %v430 = vmul.f32 %v62, %v333
    %v431 = vmul.f32 %v62, %v337
    %v432 = vmul.f32 %v62, %v341
    %v433 = vmul.f32 %v62, %v345
    %v434 = vmul.f32 %v62, %v349
    %v435 = vmul.f32 %v62, %v353
    %v436 = vmul.f32 %v62, %v357
    %v437 = vmul.f32 %v62, %v361
    %v438 = vmul.f32 %v62, %v365
    %v439 = vmul.f32 %v62, %v369
    %v440 = vmul.f32 %v62, %v373
    %v441 = vmul.f32 %v62, %v377
    %v442 = vmul.f32 %v67, %v253
    %v443 = vmul.f32 %v67, %v257
    %v444 = vmul.f32 %v67, %v261
    %v445 = vmul.f32 %v67, %v265
    %v446 = vmul.f32 %v67, %v269
    %v447 = vmul.f32 %v67, %v273
    %v448 = vmul.f32 %v67, %v277
    %v449 = vmul.f32 %v67, %v281
    %v450 = vmul.f32 %v67, %v285
    %v451 = vmul.f32 %v67, %v289
    %v452 = vmul.f32 %v67, %v293
    %v453 = vmul.f32 %v67, %v297
    %v454 = vmul.f32 %v67, %v301
    %v455 = vmul.f32 %v67, %v305
    %v456 = vmul.f32 %v67, %v309
    %v457 = vmul.f32 %v67, %v313
    %v458 = vmul.f32 %v67, %v317
    %v459 = vmul.f32 %v67, %v321
    %v460 = vmul.f32 %v67, %v325
    %v461 = vmul.f32 %v67, %v329
    %v462 = vmul.f32 %v67, %v333
    %v463 = vmul.f32 %v67, %v337
    %v464 = vmul.f32 %v67, %v341
    %v465 = vmul.f32 %v67, %v345
    %v466 = vmul.f32 %v67, %v349
    %v467 = vmul.f32 %v67, %v353
    %v468 = vmul.f32 %v67, %v357
    %v469 = vmul.f32 %v67, %v361
    %v470 = vmul.f32 %v67, %v365
    %v471 = vmul.f32 %v67, %v369
    %v472 = vmul.f32 %v67, %v373
    %v473 = vmul.f32 %v67, %v377
    %v474 = vmul.f32 %v72, %v253
    %v475 = vmul.f32 %v72, %v257
    %v476 = vmul.f32 %v72, %v261
    %v477 = vmul.f32 %v72, %v265
    %v478 = vmul.f32 %v72, %v269
    %v479 = vmul.f32 %v72, %v273
    %v480 = vmul.f32 %v72, %v277
    %v481 = vmul.f32 %v72, %v281
    %v482 = vmul.f32 %v72, %v285
    %v483 = vmul.f32 %v72, %v289
    %v484 = vmul.f32 %v72, %v293
    %v485 = vmul.f32 %v72, %v297
    %v486 = vmul.f32 %v72, %v301
    %v487 = vmul.f32 %v72, %v305
    %v488 = vmul.f32 %v72, %v309
    %v489 = vmul.f32 %v72, %v313
    %v490 = vmul.f32 %v72, %v317
    %v491 = vmul.f32 %v72, %v321
    %v492 = vmul.f32 %v72, %v325
    %v493 = vmul.f32 %v72, %v329
    %v494 = vmul.f32 %v72, %v333
    %v495 = vmul.f32 %v72, %v337
    %v496 = vmul.f32 %v72, %v341
    %v497 = vmul.f32 %v72, %v345
    %v498 = vmul.f32 %v72, %v349
    %v499 = vmul.f32 %v72, %v353
    %v500 = vmul.f32 %v72, %v357
    %v501 = vmul.f32 %v72, %v361
    %v502 = vmul.f32 %v72, %v365
    %v503 = vmul.f32 %v72, %v369
    %v504 = vmul.f32 %v72, %v373
    %v505 = vmul.f32 %v72, %v377
    %506 = vset.pattern.permute.xlu0 1
    %507 = vperm.xlu0 %506, %v46
    %v508 = vpop.permute.xlu0 %507
    %510 = vset.pattern.permute.xlu0 1
    %511 = vperm.xlu0 %510, %v47
    %v512 = vpop.permute.xlu0 %511
    %514 = vset.pattern.permute.xlu0 1
    %515 = vperm.xlu0 %514, %v48
    %v516 = vpop.permute.xlu0 %515
    %518 = vset.pattern.permute.xlu0 1
    %519 = vperm.xlu0 %518, %v49
    %v520 = vpop.permute.xlu0 %519
    %v522 = vlaneseq
    %v523 = vshrl.u32 %v522, 7
    %v524 = vsub.s32 1, %v523
    %v525 = vrot.slane %v30, %v524
    %v526 = vlaneseq
    %v527 = vshrl.u32 %v526, 7
    %v528 = vsub.s32 5, %v527
    %v529 = vrot.slane %v30, %v528
    %v530 = vlaneseq
    %v531 = vshrl.u32 %v530, 7
    %v532 = vsub.s32 1, %v531
    %v533 = vrot.slane %v31, %v532
    %v534 = vlaneseq
    %v535 = vshrl.u32 %v534, 7
    %v536 = vsub.s32 5, %v535
    %v537 = vrot.slane %v31, %v536
    %v538 = vlaneseq
    %v539 = vshrl.u32 %v538, 7
    %v540 = vsub.s32 1, %v539
    %v541 = vrot.slane %v32, %v540
    %v542 = vlaneseq
    %v543 = vshrl.u32 %v542, 7
    %v544 = vsub.s32 5, %v543
    %v545 = vrot.slane %v32, %v544
    %v546 = vlaneseq
    %v547 = vshrl.u32 %v546, 7
    %v548 = vsub.s32 1, %v547
    %v549 = vrot.slane %v33, %v548
    %v550 = vlaneseq
    %v551 = vshrl.u32 %v550, 7
    %v552 = vsub.s32 5, %v551
    %v553 = vrot.slane %v33, %v552
    %v554 = vlaneseq
    %v555 = vshrl.u32 %v554, 7
    %v556 = vsub.s32 1, %v555
    %v557 = vrot.slane %v34, %v556
    %v558 = vlaneseq
    %v559 = vshrl.u32 %v558, 7
    %v560 = vsub.s32 5, %v559
    %v561 = vrot.slane %v34, %v560
    %v562 = vlaneseq
    %v563 = vshrl.u32 %v562, 7
    %v564 = vsub.s32 1, %v563
    %v565 = vrot.slane %v35, %v564
    %v566 = vlaneseq
    %v567 = vshrl.u32 %v566, 7
    %v568 = vsub.s32 5, %v567
    %v569 = vrot.slane %v35, %v568
    %v570 = vlaneseq
    %v571 = vshrl.u32 %v570, 7
    %v572 = vsub.s32 1, %v571
    %v573 = vrot.slane %v36, %v572
    %v574 = vlaneseq
    %v575 = vshrl.u32 %v574, 7
    %v576 = vsub.s32 5, %v575
    %v577 = vrot.slane %v36, %v576
    %v578 = vlaneseq
    %v579 = vshrl.u32 %v578, 7
    %v580 = vsub.s32 1, %v579
    %v581 = vrot.slane %v37, %v580
    %v582 = vlaneseq
    %v583 = vshrl.u32 %v582, 7
    %v584 = vsub.s32 5, %v583
    %v585 = vrot.slane %v37, %v584
    %v586 = vlaneseq
    %v587 = vshrl.u32 %v586, 7
    %v588 = vsub.s32 1, %v587
    %v589 = vrot.slane %v38, %v588
    %v590 = vlaneseq
    %v591 = vshrl.u32 %v590, 7
    %v592 = vsub.s32 5, %v591
    %v593 = vrot.slane %v38, %v592
    %v594 = vlaneseq
    %v595 = vshrl.u32 %v594, 7
    %v596 = vsub.s32 1, %v595
    %v597 = vrot.slane %v39, %v596
    %v598 = vlaneseq
    %v599 = vshrl.u32 %v598, 7
    %v600 = vsub.s32 5, %v599
    %v601 = vrot.slane %v39, %v600
    %v602 = vlaneseq
    %v603 = vshrl.u32 %v602, 7
    %v604 = vsub.s32 1, %v603
    %v605 = vrot.slane %v40, %v604
    %v606 = vlaneseq
    %v607 = vshrl.u32 %v606, 7
    %v608 = vsub.s32 5, %v607
    %v609 = vrot.slane %v40, %v608
    %v610 = vlaneseq
    %v611 = vshrl.u32 %v610, 7
    %v612 = vsub.s32 1, %v611
    %v613 = vrot.slane %v41, %v612
    %v614 = vlaneseq
    %v615 = vshrl.u32 %v614, 7
    %v616 = vsub.s32 5, %v615
    %v617 = vrot.slane %v41, %v616
    %v618 = vlaneseq
    %v619 = vshrl.u32 %v618, 7
    %v620 = vsub.s32 1, %v619
    %v621 = vrot.slane %v42, %v620
    %v622 = vlaneseq
    %v623 = vshrl.u32 %v622, 7
    %v624 = vsub.s32 5, %v623
    %v625 = vrot.slane %v42, %v624
    %v626 = vlaneseq
    %v627 = vshrl.u32 %v626, 7
    %v628 = vsub.s32 1, %v627
    %v629 = vrot.slane %v43, %v628
    %v630 = vlaneseq
    %v631 = vshrl.u32 %v630, 7
    %v632 = vsub.s32 5, %v631
    %v633 = vrot.slane %v43, %v632
    %v634 = vlaneseq
    %v635 = vshrl.u32 %v634, 7
    %v636 = vsub.s32 1, %v635
    %v637 = vrot.slane %v44, %v636
    %v638 = vlaneseq
    %v639 = vshrl.u32 %v638, 7
    %v640 = vsub.s32 5, %v639
    %v641 = vrot.slane %v44, %v640
    %v642 = vlaneseq
    %v643 = vshrl.u32 %v642, 7
    %v644 = vsub.s32 1, %v643
    %v645 = vrot.slane %v45, %v644
    %v646 = vlaneseq
    %v647 = vshrl.u32 %v646, 7
    %v648 = vsub.s32 5, %v647
    %v649 = vrot.slane %v45, %v648
    %v682 = vlaneseq
    %v683 = vshrl.u32 %v682, 7
    %v684 = vsub.s32 1, %v683
    %v685 = vrot.slane %v525, %v684
    %v686 = vlaneseq
    %v687 = vshrl.u32 %v686, 7
    %v688 = vsub.s32 1, %v687
    %v689 = vrot.slane %v529, %v688
    %v690 = vlaneseq
    %v691 = vshrl.u32 %v690, 7
    %v692 = vsub.s32 1, %v691
    %v693 = vrot.slane %v533, %v692
    %v694 = vlaneseq
    %v695 = vshrl.u32 %v694, 7
    %v696 = vsub.s32 1, %v695
    %v697 = vrot.slane %v537, %v696
    %v698 = vlaneseq
    %v699 = vshrl.u32 %v698, 7
    %v700 = vsub.s32 1, %v699
    %v701 = vrot.slane %v541, %v700
    %v702 = vlaneseq
    %v703 = vshrl.u32 %v702, 7
    %v704 = vsub.s32 1, %v703
    %v705 = vrot.slane %v545, %v704
    %v706 = vlaneseq
    %v707 = vshrl.u32 %v706, 7
    %v708 = vsub.s32 1, %v707
    %v709 = vrot.slane %v549, %v708
    %v710 = vlaneseq
    %v711 = vshrl.u32 %v710, 7
    %v712 = vsub.s32 1, %v711
    %v713 = vrot.slane %v553, %v712
    %v714 = vlaneseq
    %v715 = vshrl.u32 %v714, 7
    %v716 = vsub.s32 1, %v715
    %v717 = vrot.slane %v557, %v716
    %v718 = vlaneseq
    %v719 = vshrl.u32 %v718, 7
    %v720 = vsub.s32 1, %v719
    %v721 = vrot.slane %v561, %v720
    %v722 = vlaneseq
    %v723 = vshrl.u32 %v722, 7
    %v724 = vsub.s32 1, %v723
    %v725 = vrot.slane %v565, %v724
    %v726 = vlaneseq
    %v727 = vshrl.u32 %v726, 7
    %v728 = vsub.s32 1, %v727
    %v729 = vrot.slane %v569, %v728
    %v730 = vlaneseq
    %v731 = vshrl.u32 %v730, 7
    %v732 = vsub.s32 1, %v731
    %v733 = vrot.slane %v573, %v732
    %v734 = vlaneseq
    %v735 = vshrl.u32 %v734, 7
    %v736 = vsub.s32 1, %v735
    %v737 = vrot.slane %v577, %v736
    %v738 = vlaneseq
    %v739 = vshrl.u32 %v738, 7
    %v740 = vsub.s32 1, %v739
    %v741 = vrot.slane %v581, %v740
    %v742 = vlaneseq
    %v743 = vshrl.u32 %v742, 7
    %v744 = vsub.s32 1, %v743
    %v745 = vrot.slane %v585, %v744
    %v746 = vlaneseq
    %v747 = vshrl.u32 %v746, 7
    %v748 = vsub.s32 1, %v747
    %v749 = vrot.slane %v589, %v748
    %v750 = vlaneseq
    %v751 = vshrl.u32 %v750, 7
    %v752 = vsub.s32 1, %v751
    %v753 = vrot.slane %v593, %v752
    %v754 = vlaneseq
    %v755 = vshrl.u32 %v754, 7
    %v756 = vsub.s32 1, %v755
    %v757 = vrot.slane %v597, %v756
    %v758 = vlaneseq
    %v759 = vshrl.u32 %v758, 7
    %v760 = vsub.s32 1, %v759
    %v761 = vrot.slane %v601, %v760
    %v762 = vlaneseq
    %v763 = vshrl.u32 %v762, 7
    %v764 = vsub.s32 1, %v763
    %v765 = vrot.slane %v605, %v764
    %v766 = vlaneseq
    %v767 = vshrl.u32 %v766, 7
    %v768 = vsub.s32 1, %v767
    %v769 = vrot.slane %v609, %v768
    %v770 = vlaneseq
    %v771 = vshrl.u32 %v770, 7
    %v772 = vsub.s32 1, %v771
    %v773 = vrot.slane %v613, %v772
    %v774 = vlaneseq
    %v775 = vshrl.u32 %v774, 7
    %v776 = vsub.s32 1, %v775
    %v777 = vrot.slane %v617, %v776
    %v778 = vlaneseq
    %v779 = vshrl.u32 %v778, 7
    %v780 = vsub.s32 1, %v779
    %v781 = vrot.slane %v621, %v780
    %v782 = vlaneseq
    %v783 = vshrl.u32 %v782, 7
    %v784 = vsub.s32 1, %v783
    %v785 = vrot.slane %v625, %v784
    %v786 = vlaneseq
    %v787 = vshrl.u32 %v786, 7
    %v788 = vsub.s32 1, %v787
    %v789 = vrot.slane %v629, %v788
    %v790 = vlaneseq
    %v791 = vshrl.u32 %v790, 7
    %v792 = vsub.s32 1, %v791
    %v793 = vrot.slane %v633, %v792
    %v794 = vlaneseq
    %v795 = vshrl.u32 %v794, 7
    %v796 = vsub.s32 1, %v795
    %v797 = vrot.slane %v637, %v796
    %v798 = vlaneseq
    %v799 = vshrl.u32 %v798, 7
    %v800 = vsub.s32 1, %v799
    %v801 = vrot.slane %v641, %v800
    %v802 = vlaneseq
    %v803 = vshrl.u32 %v802, 7
    %v804 = vsub.s32 1, %v803
    %v805 = vrot.slane %v645, %v804
    %v806 = vlaneseq
    %v807 = vshrl.u32 %v806, 7
    %v808 = vsub.s32 1, %v807
    %v809 = vrot.slane %v649, %v808
    %v810 = vmul.f32 %v508, %v685
    %v811 = vmul.f32 %v508, %v689
    %v812 = vmul.f32 %v508, %v693
    %v813 = vmul.f32 %v508, %v697
    %v814 = vmul.f32 %v508, %v701
    %v815 = vmul.f32 %v508, %v705
    %v816 = vmul.f32 %v508, %v709
    %v817 = vmul.f32 %v508, %v713
    %v818 = vmul.f32 %v508, %v717
    %v819 = vmul.f32 %v508, %v721
    %v820 = vmul.f32 %v508, %v725
    %v821 = vmul.f32 %v508, %v729
    %v822 = vmul.f32 %v508, %v733
    %v823 = vmul.f32 %v508, %v737
    %v824 = vmul.f32 %v508, %v741
    %v825 = vmul.f32 %v508, %v745
    %v826 = vmul.f32 %v508, %v749
    %v827 = vmul.f32 %v508, %v753
    %v828 = vmul.f32 %v508, %v757
    %v829 = vmul.f32 %v508, %v761
    %v830 = vmul.f32 %v508, %v765
    %v831 = vmul.f32 %v508, %v769
    %v832 = vmul.f32 %v508, %v773
    %v833 = vmul.f32 %v508, %v777
    %v834 = vmul.f32 %v508, %v781
    %v835 = vmul.f32 %v508, %v785
    %v836 = vmul.f32 %v508, %v789
    %v837 = vmul.f32 %v508, %v793
    %v838 = vmul.f32 %v508, %v797
    %v839 = vmul.f32 %v508, %v801
    %v840 = vmul.f32 %v508, %v805
    %v841 = vmul.f32 %v508, %v809
    %v842 = vmul.f32 %v512, %v685
    %v843 = vmul.f32 %v512, %v689
    %v844 = vmul.f32 %v512, %v693
    %v845 = vmul.f32 %v512, %v697
    %v846 = vmul.f32 %v512, %v701
    %v847 = vmul.f32 %v512, %v705
    %v848 = vmul.f32 %v512, %v709
    %v849 = vmul.f32 %v512, %v713
    %v850 = vmul.f32 %v512, %v717
    %v851 = vmul.f32 %v512, %v721
    %v852 = vmul.f32 %v512, %v725
    %v853 = vmul.f32 %v512, %v729
    %v854 = vmul.f32 %v512, %v733
    %v855 = vmul.f32 %v512, %v737
    %v856 = vmul.f32 %v512, %v741
    %v857 = vmul.f32 %v512, %v745
    %v858 = vmul.f32 %v512, %v749
    %v859 = vmul.f32 %v512, %v753
    %v860 = vmul.f32 %v512, %v757
    %v861 = vmul.f32 %v512, %v761
    %v862 = vmul.f32 %v512, %v765
    %v863 = vmul.f32 %v512, %v769
    %v864 = vmul.f32 %v512, %v773
    %v865 = vmul.f32 %v512, %v777
    %v866 = vmul.f32 %v512, %v781
    %v867 = vmul.f32 %v512, %v785
    %v868 = vmul.f32 %v512, %v789
    %v869 = vmul.f32 %v512, %v793
    %v870 = vmul.f32 %v512, %v797
    %v871 = vmul.f32 %v512, %v801
    %v872 = vmul.f32 %v512, %v805
    %v873 = vmul.f32 %v512, %v809
    %v874 = vmul.f32 %v516, %v685
    %v875 = vmul.f32 %v516, %v689
    %v876 = vmul.f32 %v516, %v693
    %v877 = vmul.f32 %v516, %v697
    %v878 = vmul.f32 %v516, %v701
    %v879 = vmul.f32 %v516, %v705
    %v880 = vmul.f32 %v516, %v709
    %v881 = vmul.f32 %v516, %v713
    %v882 = vmul.f32 %v516, %v717
    %v883 = vmul.f32 %v516, %v721
    %v884 = vmul.f32 %v516, %v725
    %v885 = vmul.f32 %v516, %v729
    %v886 = vmul.f32 %v516, %v733
    %v887 = vmul.f32 %v516, %v737
    %v888 = vmul.f32 %v516, %v741
    %v889 = vmul.f32 %v516, %v745
    %v890 = vmul.f32 %v516, %v749
    %v891 = vmul.f32 %v516, %v753
    %v892 = vmul.f32 %v516, %v757
    %v893 = vmul.f32 %v516, %v761
    %v894 = vmul.f32 %v516, %v765
    %v895 = vmul.f32 %v516, %v769
    %v896 = vmul.f32 %v516, %v773
    %v897 = vmul.f32 %v516, %v777
    %v898 = vmul.f32 %v516, %v781
    %v899 = vmul.f32 %v516, %v785
    %v900 = vmul.f32 %v516, %v789
    %v901 = vmul.f32 %v516, %v793
    %v902 = vmul.f32 %v516, %v797
    %v903 = vmul.f32 %v516, %v801
    %v904 = vmul.f32 %v516, %v805
    %v905 = vmul.f32 %v516, %v809
    %v906 = vmul.f32 %v520, %v685
    %v907 = vmul.f32 %v520, %v689
    %v908 = vmul.f32 %v520, %v693
    %v909 = vmul.f32 %v520, %v697
    %v910 = vmul.f32 %v520, %v701
    %v911 = vmul.f32 %v520, %v705
    %v912 = vmul.f32 %v520, %v709
    %v913 = vmul.f32 %v520, %v713
    %v914 = vmul.f32 %v520, %v717
    %v915 = vmul.f32 %v520, %v721
    %v916 = vmul.f32 %v520, %v725
    %v917 = vmul.f32 %v520, %v729
    %v918 = vmul.f32 %v520, %v733
    %v919 = vmul.f32 %v520, %v737
    %v920 = vmul.f32 %v520, %v741
    %v921 = vmul.f32 %v520, %v745
    %v922 = vmul.f32 %v520, %v749
    %v923 = vmul.f32 %v520, %v753
    %v924 = vmul.f32 %v520, %v757
    %v925 = vmul.f32 %v520, %v761
    %v926 = vmul.f32 %v520, %v765
    %v927 = vmul.f32 %v520, %v769
    %v928 = vmul.f32 %v520, %v773
    %v929 = vmul.f32 %v520, %v777
    %v930 = vmul.f32 %v520, %v781
    %v931 = vmul.f32 %v520, %v785
    %v932 = vmul.f32 %v520, %v789
    %v933 = vmul.f32 %v520, %v793
    %v934 = vmul.f32 %v520, %v797
    %v935 = vmul.f32 %v520, %v801
    %v936 = vmul.f32 %v520, %v805
    %v937 = vmul.f32 %v520, %v809
    %v938 = vadd.f32 %v378, %v810
    %v939 = vadd.f32 %v379, %v811
    %v940 = vadd.f32 %v380, %v812
    %v941 = vadd.f32 %v381, %v813
    %v942 = vadd.f32 %v382, %v814
    %v943 = vadd.f32 %v383, %v815
    %v944 = vadd.f32 %v384, %v816
    %v945 = vadd.f32 %v385, %v817
    %v946 = vadd.f32 %v386, %v818
    %v947 = vadd.f32 %v387, %v819
    %v948 = vadd.f32 %v388, %v820
    %v949 = vadd.f32 %v389, %v821
    %v950 = vadd.f32 %v390, %v822
    %v951 = vadd.f32 %v391, %v823
    %v952 = vadd.f32 %v392, %v824
    %v953 = vadd.f32 %v393, %v825
    %v954 = vadd.f32 %v394, %v826
    %v955 = vadd.f32 %v395, %v827
    %v956 = vadd.f32 %v396, %v828
    %v957 = vadd.f32 %v397, %v829
    %v958 = vadd.f32 %v398, %v830
    %v959 = vadd.f32 %v399, %v831
    %v960 = vadd.f32 %v400, %v832
    %v961 = vadd.f32 %v401, %v833
    %v962 = vadd.f32 %v402, %v834
    %v963 = vadd.f32 %v403, %v835
    %v964 = vadd.f32 %v404, %v836
    %v965 = vadd.f32 %v405, %v837
    %v966 = vadd.f32 %v406, %v838
    %v967 = vadd.f32 %v407, %v839
    %v968 = vadd.f32 %v408, %v840
    %v969 = vadd.f32 %v409, %v841
    %v970 = vadd.f32 %v410, %v842
    %v971 = vadd.f32 %v411, %v843
    %v972 = vadd.f32 %v412, %v844
    %v973 = vadd.f32 %v413, %v845
    %v974 = vadd.f32 %v414, %v846
    %v975 = vadd.f32 %v415, %v847
    %v976 = vadd.f32 %v416, %v848
    %v977 = vadd.f32 %v417, %v849
    %v978 = vadd.f32 %v418, %v850
    %v979 = vadd.f32 %v419, %v851
    %v980 = vadd.f32 %v420, %v852
    %v981 = vadd.f32 %v421, %v853
    %v982 = vadd.f32 %v422, %v854
    %v983 = vadd.f32 %v423, %v855
    %v984 = vadd.f32 %v424, %v856
    %v985 = vadd.f32 %v425, %v857
    %v986 = vadd.f32 %v426, %v858
    %v987 = vadd.f32 %v427, %v859
    %v988 = vadd.f32 %v428, %v860
    %v989 = vadd.f32 %v429, %v861
    %v990 = vadd.f32 %v430, %v862
    %v991 = vadd.f32 %v431, %v863
    %v992 = vadd.f32 %v432, %v864
    %v993 = vadd.f32 %v433, %v865
    %v994 = vadd.f32 %v434, %v866
    %v995 = vadd.f32 %v435, %v867
    %v996 = vadd.f32 %v436, %v868
    %v997 = vadd.f32 %v437, %v869
    %v998 = vadd.f32 %v438, %v870
    %v999 = vadd.f32 %v439, %v871
    %v1000 = vadd.f32 %v440, %v872
    %v1001 = vadd.f32 %v441, %v873
    %v1002 = vadd.f32 %v442, %v874
    %v1003 = vadd.f32 %v443, %v875
    %v1004 = vadd.f32 %v444, %v876
    %v1005 = vadd.f32 %v445, %v877
    %v1006 = vadd.f32 %v446, %v878
    %v1007 = vadd.f32 %v447, %v879
    %v1008 = vadd.f32 %v448, %v880
    %v1009 = vadd.f32 %v449, %v881
    %v1010 = vadd.f32 %v450, %v882
    %v1011 = vadd.f32 %v451, %v883
    %v1012 = vadd.f32 %v452, %v884
    %v1013 = vadd.f32 %v453, %v885
    %v1014 = vadd.f32 %v454, %v886
    %v1015 = vadd.f32 %v455, %v887
    %v1016 = vadd.f32 %v456, %v888
    %v1017 = vadd.f32 %v457, %v889
    %v1018 = vadd.f32 %v458, %v890
    %v1019 = vadd.f32 %v459, %v891
    %v1020 = vadd.f32 %v460, %v892
    %v1021 = vadd.f32 %v461, %v893
    %v1022 = vadd.f32 %v462, %v894
    %v1023 = vadd.f32 %v463, %v895
    %v1024 = vadd.f32 %v464, %v896
    %v1025 = vadd.f32 %v465, %v897
    %v1026 = vadd.f32 %v466, %v898
    %v1027 = vadd.f32 %v467, %v899
    %v1028 = vadd.f32 %v468, %v900
    %v1029 = vadd.f32 %v469, %v901
    %v1030 = vadd.f32 %v470, %v902
    %v1031 = vadd.f32 %v471, %v903
    %v1032 = vadd.f32 %v472, %v904
    %v1033 = vadd.f32 %v473, %v905
    %v1034 = vadd.f32 %v474, %v906
    %v1035 = vadd.f32 %v475, %v907
    %v1036 = vadd.f32 %v476, %v908
    %v1037 = vadd.f32 %v477, %v909
    %v1038 = vadd.f32 %v478, %v910
    %v1039 = vadd.f32 %v479, %v911
    %v1040 = vadd.f32 %v480, %v912
    %v1041 = vadd.f32 %v481, %v913
    %v1042 = vadd.f32 %v482, %v914
    %v1043 = vadd.f32 %v483, %v915
    %v1044 = vadd.f32 %v484, %v916
    %v1045 = vadd.f32 %v485, %v917
    %v1046 = vadd.f32 %v486, %v918
    %v1047 = vadd.f32 %v487, %v919
    %v1048 = vadd.f32 %v488, %v920
    %v1049 = vadd.f32 %v489, %v921
    %v1050 = vadd.f32 %v490, %v922
    %v1051 = vadd.f32 %v491, %v923
    %v1052 = vadd.f32 %v492, %v924
    %v1053 = vadd.f32 %v493, %v925
    %v1054 = vadd.f32 %v494, %v926
    %v1055 = vadd.f32 %v495, %v927
    %v1056 = vadd.f32 %v496, %v928
    %v1057 = vadd.f32 %v497, %v929
    %v1058 = vadd.f32 %v498, %v930
    %v1059 = vadd.f32 %v499, %v931
    %v1060 = vadd.f32 %v500, %v932
    %v1061 = vadd.f32 %v501, %v933
    %v1062 = vadd.f32 %v502, %v934
    %v1063 = vadd.f32 %v503, %v935
    %v1064 = vadd.f32 %v504, %v936
    %v1065 = vadd.f32 %v505, %v937
    %1067 = vset.pattern.permute.xlu0 0
    %1068 = vperm.xlu0 %1067, %v50
    %v1069 = vpop.permute.xlu0 %1068
    %1072 = vset.pattern.permute.xlu0 0
    %1073 = vperm.xlu0 %1072, %v51
    %v1074 = vpop.permute.xlu0 %1073
    %1077 = vset.pattern.permute.xlu0 0
    %1078 = vperm.xlu0 %1077, %v52
    %v1079 = vpop.permute.xlu0 %1078
    %1082 = vset.pattern.permute.xlu0 0
    %1083 = vperm.xlu0 %1082, %v53
    %v1084 = vpop.permute.xlu0 %1083
    %v1086 = vadd.f32 %v938, %v1069
    %v1087 = vadd.f32 %v939, %v1069
    %v1088 = vadd.f32 %v940, %v1069
    %v1089 = vadd.f32 %v941, %v1069
    %v1090 = vadd.f32 %v942, %v1069
    %v1091 = vadd.f32 %v943, %v1069
    %v1092 = vadd.f32 %v944, %v1069
    %v1093 = vadd.f32 %v945, %v1069
    %v1094 = vadd.f32 %v946, %v1069
    %v1095 = vadd.f32 %v947, %v1069
    %v1096 = vadd.f32 %v948, %v1069
    %v1097 = vadd.f32 %v949, %v1069
    %v1098 = vadd.f32 %v950, %v1069
    %v1099 = vadd.f32 %v951, %v1069
    %v1100 = vadd.f32 %v952, %v1069
    %v1101 = vadd.f32 %v953, %v1069
    %v1102 = vadd.f32 %v954, %v1069
    %v1103 = vadd.f32 %v955, %v1069
    %v1104 = vadd.f32 %v956, %v1069
    %v1105 = vadd.f32 %v957, %v1069
    %v1106 = vadd.f32 %v958, %v1069
    %v1107 = vadd.f32 %v959, %v1069
    %v1108 = vadd.f32 %v960, %v1069
    %v1109 = vadd.f32 %v961, %v1069
    %v1110 = vadd.f32 %v962, %v1069
    %v1111 = vadd.f32 %v963, %v1069
    %v1112 = vadd.f32 %v964, %v1069
    %v1113 = vadd.f32 %v965, %v1069
    %v1114 = vadd.f32 %v966, %v1069
    %v1115 = vadd.f32 %v967, %v1069
    %v1116 = vadd.f32 %v968, %v1069
    %v1117 = vadd.f32 %v969, %v1069
    %v1118 = vadd.f32 %v970, %v1074
    %v1119 = vadd.f32 %v971, %v1074
    %v1120 = vadd.f32 %v972, %v1074
    %v1121 = vadd.f32 %v973, %v1074
    %v1122 = vadd.f32 %v974, %v1074
    %v1123 = vadd.f32 %v975, %v1074
    %v1124 = vadd.f32 %v976, %v1074
    %v1125 = vadd.f32 %v977, %v1074
    %v1126 = vadd.f32 %v978, %v1074
    %v1127 = vadd.f32 %v979, %v1074
    %v1128 = vadd.f32 %v980, %v1074
    %v1129 = vadd.f32 %v981, %v1074
    %v1130 = vadd.f32 %v982, %v1074
    %v1131 = vadd.f32 %v983, %v1074
    %v1132 = vadd.f32 %v984, %v1074
    %v1133 = vadd.f32 %v985, %v1074
    %v1134 = vadd.f32 %v986, %v1074
    %v1135 = vadd.f32 %v987, %v1074
    %v1136 = vadd.f32 %v988, %v1074
    %v1137 = vadd.f32 %v989, %v1074
    %v1138 = vadd.f32 %v990, %v1074
    %v1139 = vadd.f32 %v991, %v1074
    %v1140 = vadd.f32 %v992, %v1074
    %v1141 = vadd.f32 %v993, %v1074
    %v1142 = vadd.f32 %v994, %v1074
    %v1143 = vadd.f32 %v995, %v1074
    %v1144 = vadd.f32 %v996, %v1074
    %v1145 = vadd.f32 %v997, %v1074
    %v1146 = vadd.f32 %v998, %v1074
    %v1147 = vadd.f32 %v999, %v1074
    %v1148 = vadd.f32 %v1000, %v1074
    %v1149 = vadd.f32 %v1001, %v1074
    %v1150 = vadd.f32 %v1002, %v1079
    %v1151 = vadd.f32 %v1003, %v1079
    %v1152 = vadd.f32 %v1004, %v1079
    %v1153 = vadd.f32 %v1005, %v1079
    %v1154 = vadd.f32 %v1006, %v1079
    %v1155 = vadd.f32 %v1007, %v1079
    %v1156 = vadd.f32 %v1008, %v1079
    %v1157 = vadd.f32 %v1009, %v1079
    %v1158 = vadd.f32 %v1010, %v1079
    %v1159 = vadd.f32 %v1011, %v1079
    %v1160 = vadd.f32 %v1012, %v1079
    %v1161 = vadd.f32 %v1013, %v1079
    %v1162 = vadd.f32 %v1014, %v1079
    %v1163 = vadd.f32 %v1015, %v1079
    %v1164 = vadd.f32 %v1016, %v1079
    %v1165 = vadd.f32 %v1017, %v1079
    %v1166 = vadd.f32 %v1018, %v1079
    %v1167 = vadd.f32 %v1019, %v1079
    %v1168 = vadd.f32 %v1020, %v1079
    %v1169 = vadd.f32 %v1021, %v1079
    %v1170 = vadd.f32 %v1022, %v1079
    %v1171 = vadd.f32 %v1023, %v1079
    %v1172 = vadd.f32 %v1024, %v1079
    %v1173 = vadd.f32 %v1025, %v1079
    %v1174 = vadd.f32 %v1026, %v1079
    %v1175 = vadd.f32 %v1027, %v1079
    %v1176 = vadd.f32 %v1028, %v1079
    %v1177 = vadd.f32 %v1029, %v1079
    %v1178 = vadd.f32 %v1030, %v1079
    %v1179 = vadd.f32 %v1031, %v1079
    %v1180 = vadd.f32 %v1032, %v1079
    %v1181 = vadd.f32 %v1033, %v1079
    %v1182 = vadd.f32 %v1034, %v1084
    %v1183 = vadd.f32 %v1035, %v1084
    %v1184 = vadd.f32 %v1036, %v1084
    %v1185 = vadd.f32 %v1037, %v1084
    %v1186 = vadd.f32 %v1038, %v1084
    %v1187 = vadd.f32 %v1039, %v1084
    %v1188 = vadd.f32 %v1040, %v1084
    %v1189 = vadd.f32 %v1041, %v1084
    %v1190 = vadd.f32 %v1042, %v1084
    %v1191 = vadd.f32 %v1043, %v1084
    %v1192 = vadd.f32 %v1044, %v1084
    %v1193 = vadd.f32 %v1045, %v1084
    %v1194 = vadd.f32 %v1046, %v1084
    %v1195 = vadd.f32 %v1047, %v1084
    %v1196 = vadd.f32 %v1048, %v1084
    %v1197 = vadd.f32 %v1049, %v1084
    %v1198 = vadd.f32 %v1050, %v1084
    %v1199 = vadd.f32 %v1051, %v1084
    %v1200 = vadd.f32 %v1052, %v1084
    %v1201 = vadd.f32 %v1053, %v1084
    %v1202 = vadd.f32 %v1054, %v1084
    %v1203 = vadd.f32 %v1055, %v1084
    %v1204 = vadd.f32 %v1056, %v1084
    %v1205 = vadd.f32 %v1057, %v1084
    %v1206 = vadd.f32 %v1058, %v1084
    %v1207 = vadd.f32 %v1059, %v1084
    %v1208 = vadd.f32 %v1060, %v1084
    %v1209 = vadd.f32 %v1061, %v1084
    %v1210 = vadd.f32 %v1062, %v1084
    %v1211 = vadd.f32 %v1063, %v1084
    %v1212 = vadd.f32 %v1064, %v1084
    %v1213 = vadd.f32 %v1065, %v1084
    %v1214 = vmax.f32 %v1086, 0.0
    %v1215 = vmax.f32 %v1087, 0.0
    %v1216 = vmax.f32 %v1088, 0.0
    %v1217 = vmax.f32 %v1089, 0.0
    %v1218 = vmax.f32 %v1090, 0.0
    %v1219 = vmax.f32 %v1091, 0.0
    %v1220 = vmax.f32 %v1092, 0.0
    %v1221 = vmax.f32 %v1093, 0.0
    %v1222 = vmax.f32 %v1094, 0.0
    %v1223 = vmax.f32 %v1095, 0.0
    %v1224 = vmax.f32 %v1096, 0.0
    %v1225 = vmax.f32 %v1097, 0.0
    %v1226 = vmax.f32 %v1098, 0.0
    %v1227 = vmax.f32 %v1099, 0.0
    %v1228 = vmax.f32 %v1100, 0.0
    %v1229 = vmax.f32 %v1101, 0.0
    %v1230 = vmax.f32 %v1102, 0.0
    %v1231 = vmax.f32 %v1103, 0.0
    %v1232 = vmax.f32 %v1104, 0.0
    %v1233 = vmax.f32 %v1105, 0.0
    %v1234 = vmax.f32 %v1106, 0.0
    %v1235 = vmax.f32 %v1107, 0.0
    %v1236 = vmax.f32 %v1108, 0.0
    %v1237 = vmax.f32 %v1109, 0.0
    %v1238 = vmax.f32 %v1110, 0.0
    %v1239 = vmax.f32 %v1111, 0.0
    %v1240 = vmax.f32 %v1112, 0.0
    %v1241 = vmax.f32 %v1113, 0.0
    %v1242 = vmax.f32 %v1114, 0.0
    %v1243 = vmax.f32 %v1115, 0.0
    %v1244 = vmax.f32 %v1116, 0.0
    %v1245 = vmax.f32 %v1117, 0.0
    %v1246 = vmax.f32 %v1118, 0.0
    %v1247 = vmax.f32 %v1119, 0.0
    %v1248 = vmax.f32 %v1120, 0.0
    %v1249 = vmax.f32 %v1121, 0.0
    %v1250 = vmax.f32 %v1122, 0.0
    %v1251 = vmax.f32 %v1123, 0.0
    %v1252 = vmax.f32 %v1124, 0.0
    %v1253 = vmax.f32 %v1125, 0.0
    %v1254 = vmax.f32 %v1126, 0.0
    %v1255 = vmax.f32 %v1127, 0.0
    %v1256 = vmax.f32 %v1128, 0.0
    %v1257 = vmax.f32 %v1129, 0.0
    %v1258 = vmax.f32 %v1130, 0.0
    %v1259 = vmax.f32 %v1131, 0.0
    %v1260 = vmax.f32 %v1132, 0.0
    %v1261 = vmax.f32 %v1133, 0.0
    %v1262 = vmax.f32 %v1134, 0.0
    %v1263 = vmax.f32 %v1135, 0.0
    %v1264 = vmax.f32 %v1136, 0.0
    %v1265 = vmax.f32 %v1137, 0.0
    %v1266 = vmax.f32 %v1138, 0.0
    %v1267 = vmax.f32 %v1139, 0.0
    %v1268 = vmax.f32 %v1140, 0.0
    %v1269 = vmax.f32 %v1141, 0.0
    %v1270 = vmax.f32 %v1142, 0.0
    %v1271 = vmax.f32 %v1143, 0.0
    %v1272 = vmax.f32 %v1144, 0.0
    %v1273 = vmax.f32 %v1145, 0.0
    %v1274 = vmax.f32 %v1146, 0.0
    %v1275 = vmax.f32 %v1147, 0.0
    %v1276 = vmax.f32 %v1148, 0.0
    %v1277 = vmax.f32 %v1149, 0.0
    %v1278 = vmax.f32 %v1150, 0.0
    %v1279 = vmax.f32 %v1151, 0.0
    %v1280 = vmax.f32 %v1152, 0.0
    %v1281 = vmax.f32 %v1153, 0.0
    %v1282 = vmax.f32 %v1154, 0.0
    %v1283 = vmax.f32 %v1155, 0.0
    %v1284 = vmax.f32 %v1156, 0.0
    %v1285 = vmax.f32 %v1157, 0.0
    %v1286 = vmax.f32 %v1158, 0.0
    %v1287 = vmax.f32 %v1159, 0.0
    %v1288 = vmax.f32 %v1160, 0.0
    %v1289 = vmax.f32 %v1161, 0.0
    %v1290 = vmax.f32 %v1162, 0.0
    %v1291 = vmax.f32 %v1163, 0.0
    %v1292 = vmax.f32 %v1164, 0.0
    %v1293 = vmax.f32 %v1165, 0.0
    %v1294 = vmax.f32 %v1166, 0.0
    %v1295 = vmax.f32 %v1167, 0.0
    %v1296 = vmax.f32 %v1168, 0.0
    %v1297 = vmax.f32 %v1169, 0.0
    %v1298 = vmax.f32 %v1170, 0.0
    %v1299 = vmax.f32 %v1171, 0.0
    %v1300 = vmax.f32 %v1172, 0.0
    %v1301 = vmax.f32 %v1173, 0.0
    %v1302 = vmax.f32 %v1174, 0.0
    %v1303 = vmax.f32 %v1175, 0.0
    %v1304 = vmax.f32 %v1176, 0.0
    %v1305 = vmax.f32 %v1177, 0.0
    %v1306 = vmax.f32 %v1178, 0.0
    %v1307 = vmax.f32 %v1179, 0.0
    %v1308 = vmax.f32 %v1180, 0.0
    %v1309 = vmax.f32 %v1181, 0.0
    %v1310 = vmax.f32 %v1182, 0.0
    %v1311 = vmax.f32 %v1183, 0.0
    %v1312 = vmax.f32 %v1184, 0.0
    %v1313 = vmax.f32 %v1185, 0.0
    %v1314 = vmax.f32 %v1186, 0.0
    %v1315 = vmax.f32 %v1187, 0.0
    %v1316 = vmax.f32 %v1188, 0.0
    %v1317 = vmax.f32 %v1189, 0.0
    %v1318 = vmax.f32 %v1190, 0.0
    %v1319 = vmax.f32 %v1191, 0.0
    %v1320 = vmax.f32 %v1192, 0.0
    %v1321 = vmax.f32 %v1193, 0.0
    %v1322 = vmax.f32 %v1194, 0.0
    %v1323 = vmax.f32 %v1195, 0.0
    %v1324 = vmax.f32 %v1196, 0.0
    %v1325 = vmax.f32 %v1197, 0.0
    %v1326 = vmax.f32 %v1198, 0.0
    %v1327 = vmax.f32 %v1199, 0.0
    %v1328 = vmax.f32 %v1200, 0.0
    %v1329 = vmax.f32 %v1201, 0.0
    %v1330 = vmax.f32 %v1202, 0.0
    %v1331 = vmax.f32 %v1203, 0.0
    %v1332 = vmax.f32 %v1204, 0.0
    %v1333 = vmax.f32 %v1205, 0.0
    %v1334 = vmax.f32 %v1206, 0.0
    %v1335 = vmax.f32 %v1207, 0.0
    %v1336 = vmax.f32 %v1208, 0.0
    %v1337 = vmax.f32 %v1209, 0.0
    %v1338 = vmax.f32 %v1210, 0.0
    %v1339 = vmax.f32 %v1211, 0.0
    %v1340 = vmax.f32 %v1212, 0.0
    %v1341 = vmax.f32 %v1213, 0.0
    %v1342 = vadd.f32 %v1214, 0.0
    %v1343 = vadd.f32 %v1215, 0.0
    %v1344 = vadd.f32 %v1216, 0.0
    %v1345 = vadd.f32 %v1217, 0.0
    %v1346 = vadd.f32 %v1218, 0.0
    %v1347 = vadd.f32 %v1219, 0.0
    %v1348 = vadd.f32 %v1220, 0.0
    %v1349 = vadd.f32 %v1221, 0.0
    %v1350 = vadd.f32 %v1222, 0.0
    %v1351 = vadd.f32 %v1223, 0.0
    %v1352 = vadd.f32 %v1224, 0.0
    %v1353 = vadd.f32 %v1225, 0.0
    %v1354 = vadd.f32 %v1226, 0.0
    %v1355 = vadd.f32 %v1227, 0.0
    %v1356 = vadd.f32 %v1228, 0.0
    %v1357 = vadd.f32 %v1229, 0.0
    %v1358 = vadd.f32 %v1230, 0.0
    %v1359 = vadd.f32 %v1231, 0.0
    %v1360 = vadd.f32 %v1232, 0.0
    %v1361 = vadd.f32 %v1233, 0.0
    %v1362 = vadd.f32 %v1234, 0.0
    %v1363 = vadd.f32 %v1235, 0.0
    %v1364 = vadd.f32 %v1236, 0.0
    %v1365 = vadd.f32 %v1237, 0.0
    %v1366 = vadd.f32 %v1238, 0.0
    %v1367 = vadd.f32 %v1239, 0.0
    %v1368 = vadd.f32 %v1240, 0.0
    %v1369 = vadd.f32 %v1241, 0.0
    %v1370 = vadd.f32 %v1242, 0.0
    %v1371 = vadd.f32 %v1243, 0.0
    %v1372 = vadd.f32 %v1244, 0.0
    %v1373 = vadd.f32 %v1245, 0.0
    %v1374 = vadd.f32 %v1246, 0.0
    %v1375 = vadd.f32 %v1247, 0.0
    %v1376 = vadd.f32 %v1248, 0.0
    %v1377 = vadd.f32 %v1249, 0.0
    %v1378 = vadd.f32 %v1250, 0.0
    %v1379 = vadd.f32 %v1251, 0.0
    %v1380 = vadd.f32 %v1252, 0.0
    %v1381 = vadd.f32 %v1253, 0.0
    %v1382 = vadd.f32 %v1254, 0.0
    %v1383 = vadd.f32 %v1255, 0.0
    %v1384 = vadd.f32 %v1256, 0.0
    %v1385 = vadd.f32 %v1257, 0.0
    %v1386 = vadd.f32 %v1258, 0.0
    %v1387 = vadd.f32 %v1259, 0.0
    %v1388 = vadd.f32 %v1260, 0.0
    %v1389 = vadd.f32 %v1261, 0.0
    %v1390 = vadd.f32 %v1262, 0.0
    %v1391 = vadd.f32 %v1263, 0.0
    %v1392 = vadd.f32 %v1264, 0.0
    %v1393 = vadd.f32 %v1265, 0.0
    %v1394 = vadd.f32 %v1266, 0.0
    %v1395 = vadd.f32 %v1267, 0.0
    %v1396 = vadd.f32 %v1268, 0.0
    %v1397 = vadd.f32 %v1269, 0.0
    %v1398 = vadd.f32 %v1270, 0.0
    %v1399 = vadd.f32 %v1271, 0.0
    %v1400 = vadd.f32 %v1272, 0.0
    %v1401 = vadd.f32 %v1273, 0.0
    %v1402 = vadd.f32 %v1274, 0.0
    %v1403 = vadd.f32 %v1275, 0.0
    %v1404 = vadd.f32 %v1276, 0.0
    %v1405 = vadd.f32 %v1277, 0.0
    %v1406 = vadd.f32 %v1278, 0.0
    %v1407 = vadd.f32 %v1279, 0.0
    %v1408 = vadd.f32 %v1280, 0.0
    %v1409 = vadd.f32 %v1281, 0.0
    %v1410 = vadd.f32 %v1282, 0.0
    %v1411 = vadd.f32 %v1283, 0.0
    %v1412 = vadd.f32 %v1284, 0.0
    %v1413 = vadd.f32 %v1285, 0.0
    %v1414 = vadd.f32 %v1286, 0.0
    %v1415 = vadd.f32 %v1287, 0.0
    %v1416 = vadd.f32 %v1288, 0.0
    %v1417 = vadd.f32 %v1289, 0.0
    %v1418 = vadd.f32 %v1290, 0.0
    %v1419 = vadd.f32 %v1291, 0.0
    %v1420 = vadd.f32 %v1292, 0.0
    %v1421 = vadd.f32 %v1293, 0.0
    %v1422 = vadd.f32 %v1294, 0.0
    %v1423 = vadd.f32 %v1295, 0.0
    %v1424 = vadd.f32 %v1296, 0.0
    %v1425 = vadd.f32 %v1297, 0.0
    %v1426 = vadd.f32 %v1298, 0.0
    %v1427 = vadd.f32 %v1299, 0.0
    %v1428 = vadd.f32 %v1300, 0.0
    %v1429 = vadd.f32 %v1301, 0.0
    %v1430 = vadd.f32 %v1302, 0.0
    %v1431 = vadd.f32 %v1303, 0.0
    %v1432 = vadd.f32 %v1304, 0.0
    %v1433 = vadd.f32 %v1305, 0.0
    %v1434 = vadd.f32 %v1306, 0.0
    %v1435 = vadd.f32 %v1307, 0.0
    %v1436 = vadd.f32 %v1308, 0.0
    %v1437 = vadd.f32 %v1309, 0.0
    %v1438 = vadd.f32 %v1310, 0.0
    %v1439 = vadd.f32 %v1311, 0.0
    %v1440 = vadd.f32 %v1312, 0.0
    %v1441 = vadd.f32 %v1313, 0.0
    %v1442 = vadd.f32 %v1314, 0.0
    %v1443 = vadd.f32 %v1315, 0.0
    %v1444 = vadd.f32 %v1316, 0.0
    %v1445 = vadd.f32 %v1317, 0.0
    %v1446 = vadd.f32 %v1318, 0.0
    %v1447 = vadd.f32 %v1319, 0.0
    %v1448 = vadd.f32 %v1320, 0.0
    %v1449 = vadd.f32 %v1321, 0.0
    %v1450 = vadd.f32 %v1322, 0.0
    %v1451 = vadd.f32 %v1323, 0.0
    %v1452 = vadd.f32 %v1324, 0.0
    %v1453 = vadd.f32 %v1325, 0.0
    %v1454 = vadd.f32 %v1326, 0.0
    %v1455 = vadd.f32 %v1327, 0.0
    %v1456 = vadd.f32 %v1328, 0.0
    %v1457 = vadd.f32 %v1329, 0.0
    %v1458 = vadd.f32 %v1330, 0.0
    %v1459 = vadd.f32 %v1331, 0.0
    %v1460 = vadd.f32 %v1332, 0.0
    %v1461 = vadd.f32 %v1333, 0.0
    %v1462 = vadd.f32 %v1334, 0.0
    %v1463 = vadd.f32 %v1335, 0.0
    %v1464 = vadd.f32 %v1336, 0.0
    %v1465 = vadd.f32 %v1337, 0.0
    %v1466 = vadd.f32 %v1338, 0.0
    %v1467 = vadd.f32 %v1339, 0.0
    %v1468 = vadd.f32 %v1340, 0.0
    %v1469 = vadd.f32 %v1341, 0.0
    %v1470 = vld [vmem:[%s0] sm:$0xaa]
    %v1471 = vld [vmem:[%s0 + $0x8] sm:$0xaa]
    %v1472 = vld [vmem:[%s0 + $0x10] sm:$0xaa]
    %v1473 = vld [vmem:[%s0 + $0x18] sm:$0xaa]
    %v1474 = vld [vmem:[%s0 + $0x20] sm:$0xaa]
    %v1475 = vld [vmem:[%s0 + $0x28] sm:$0xaa]
    %v1476 = vld [vmem:[%s0 + $0x30] sm:$0xaa]
    %v1477 = vld [vmem:[%s0 + $0x38] sm:$0xaa]
    %v1478 = vunpack.c.l.bf16 %v1470
    %v1479 = vunpack.c.h.bf16 %v1470
    %v1480 = vunpack.c.l.bf16 %v1471
    %v1481 = vunpack.c.h.bf16 %v1471
    %v1482 = vunpack.c.l.bf16 %v1472
    %v1483 = vunpack.c.h.bf16 %v1472
    %v1484 = vunpack.c.l.bf16 %v1473
    %v1485 = vunpack.c.h.bf16 %v1473
    %v1486 = vunpack.c.l.bf16 %v1474
    %v1487 = vunpack.c.h.bf16 %v1474
    %v1488 = vunpack.c.l.bf16 %v1475
    %v1489 = vunpack.c.h.bf16 %v1475
    %v1490 = vunpack.c.l.bf16 %v1476
    %v1491 = vunpack.c.h.bf16 %v1476
    %v1492 = vunpack.c.l.bf16 %v1477
    %v1493 = vunpack.c.h.bf16 %v1477
    %s1494 = scalar_lea.vmem %s1, 32
    %v1495 = vld [vmem:[%s1494] sm:$0xff]
    %v1496 = vld [vmem:[%s1494 + $0x8] sm:$0xff]
    %v1497 = vld [vmem:[%s1494 + $0x10] sm:$0xff]
    %v1498 = vld [vmem:[%s1494 + $0x18] sm:$0xff]
    %s1499 = scalar_lea.vmem %s2, 32
    %v1500 = vld [vmem:[%s1499] sm:$0xff]
    %v1501 = vld [vmem:[%s1499 + $0x8] sm:$0xff]
    %v1502 = vld [vmem:[%s1499 + $0x10] sm:$0xff]
    %v1503 = vld [vmem:[%s1499 + $0x18] sm:$0xff]
    %1505 = vset.pattern.permute.xlu0 0
    %1506 = vperm.xlu0 %1505, %v1495
    %v1507 = vpop.permute.xlu0 %1506
    %1510 = vset.pattern.permute.xlu0 0
    %1511 = vperm.xlu0 %1510, %v1496
    %v1512 = vpop.permute.xlu0 %1511
    %1515 = vset.pattern.permute.xlu0 0
    %1516 = vperm.xlu0 %1515, %v1497
    %v1517 = vpop.permute.xlu0 %1516
    %1520 = vset.pattern.permute.xlu0 0
    %1521 = vperm.xlu0 %1520, %v1498
    %v1522 = vpop.permute.xlu0 %1521
    %v1524 = vmul.f32 %v1507, %v253
    %v1525 = vmul.f32 %v1507, %v257
    %v1526 = vmul.f32 %v1507, %v261
    %v1527 = vmul.f32 %v1507, %v265
    %v1528 = vmul.f32 %v1507, %v269
    %v1529 = vmul.f32 %v1507, %v273
    %v1530 = vmul.f32 %v1507, %v277
    %v1531 = vmul.f32 %v1507, %v281
    %v1532 = vmul.f32 %v1507, %v285
    %v1533 = vmul.f32 %v1507, %v289
    %v1534 = vmul.f32 %v1507, %v293
    %v1535 = vmul.f32 %v1507, %v297
    %v1536 = vmul.f32 %v1507, %v301
    %v1537 = vmul.f32 %v1507, %v305
    %v1538 = vmul.f32 %v1507, %v309
    %v1539 = vmul.f32 %v1507, %v313
    %v1540 = vmul.f32 %v1507, %v317
    %v1541 = vmul.f32 %v1507, %v321
    %v1542 = vmul.f32 %v1507, %v325
    %v1543 = vmul.f32 %v1507, %v329
    %v1544 = vmul.f32 %v1507, %v333
    %v1545 = vmul.f32 %v1507, %v337
    %v1546 = vmul.f32 %v1507, %v341
    %v1547 = vmul.f32 %v1507, %v345
    %v1548 = vmul.f32 %v1507, %v349
    %v1549 = vmul.f32 %v1507, %v353
    %v1550 = vmul.f32 %v1507, %v357
    %v1551 = vmul.f32 %v1507, %v361
    %v1552 = vmul.f32 %v1507, %v365
    %v1553 = vmul.f32 %v1507, %v369
    %v1554 = vmul.f32 %v1507, %v373
    %v1555 = vmul.f32 %v1507, %v377
    %v1556 = vmul.f32 %v1512, %v253
    %v1557 = vmul.f32 %v1512, %v257
    %v1558 = vmul.f32 %v1512, %v261
    %v1559 = vmul.f32 %v1512, %v265
    %v1560 = vmul.f32 %v1512, %v269
    %v1561 = vmul.f32 %v1512, %v273
    %v1562 = vmul.f32 %v1512, %v277
    %v1563 = vmul.f32 %v1512, %v281
    %v1564 = vmul.f32 %v1512, %v285
    %v1565 = vmul.f32 %v1512, %v289
    %v1566 = vmul.f32 %v1512, %v293
    %v1567 = vmul.f32 %v1512, %v297
    %v1568 = vmul.f32 %v1512, %v301
    %v1569 = vmul.f32 %v1512, %v305
    %v1570 = vmul.f32 %v1512, %v309
    %v1571 = vmul.f32 %v1512, %v313
    %v1572 = vmul.f32 %v1512, %v317
    %v1573 = vmul.f32 %v1512, %v321
    %v1574 = vmul.f32 %v1512, %v325
    %v1575 = vmul.f32 %v1512, %v329
    %v1576 = vmul.f32 %v1512, %v333
    %v1577 = vmul.f32 %v1512, %v337
    %v1578 = vmul.f32 %v1512, %v341
    %v1579 = vmul.f32 %v1512, %v345
    %v1580 = vmul.f32 %v1512, %v349
    %v1581 = vmul.f32 %v1512, %v353
    %v1582 = vmul.f32 %v1512, %v357
    %v1583 = vmul.f32 %v1512, %v361
    %v1584 = vmul.f32 %v1512, %v365
    %v1585 = vmul.f32 %v1512, %v369
    %v1586 = vmul.f32 %v1512, %v373
    %v1587 = vmul.f32 %v1512, %v377
    %v1588 = vmul.f32 %v1517, %v253
    %v1589 = vmul.f32 %v1517, %v257
    %v1590 = vmul.f32 %v1517, %v261
    %v1591 = vmul.f32 %v1517, %v265
    %v1592 = vmul.f32 %v1517, %v269
    %v1593 = vmul.f32 %v1517, %v273
    %v1594 = vmul.f32 %v1517, %v277
    %v1595 = vmul.f32 %v1517, %v281
    %v1596 = vmul.f32 %v1517, %v285
    %v1597 = vmul.f32 %v1517, %v289
    %v1598 = vmul.f32 %v1517, %v293
    %v1599 = vmul.f32 %v1517, %v297
    %v1600 = vmul.f32 %v1517, %v301
    %v1601 = vmul.f32 %v1517, %v305
    %v1602 = vmul.f32 %v1517, %v309
    %v1603 = vmul.f32 %v1517, %v313
    %v1604 = vmul.f32 %v1517, %v317
    %v1605 = vmul.f32 %v1517, %v321
    %v1606 = vmul.f32 %v1517, %v325
    %v1607 = vmul.f32 %v1517, %v329
    %v1608 = vmul.f32 %v1517, %v333
    %v1609 = vmul.f32 %v1517, %v337
    %v1610 = vmul.f32 %v1517, %v341
    %v1611 = vmul.f32 %v1517, %v345
    %v1612 = vmul.f32 %v1517, %v349
    %v1613 = vmul.f32 %v1517, %v353
    %v1614 = vmul.f32 %v1517, %v357
    %v1615 = vmul.f32 %v1517, %v361
    %v1616 = vmul.f32 %v1517, %v365
    %v1617 = vmul.f32 %v1517, %v369
    %v1618 = vmul.f32 %v1517, %v373
    %v1619 = vmul.f32 %v1517, %v377
    %v1620 = vmul.f32 %v1522, %v253
    %v1621 = vmul.f32 %v1522, %v257
    %v1622 = vmul.f32 %v1522, %v261
    %v1623 = vmul.f32 %v1522, %v265
    %v1624 = vmul.f32 %v1522, %v269
    %v1625 = vmul.f32 %v1522, %v273
    %v1626 = vmul.f32 %v1522, %v277
    %v1627 = vmul.f32 %v1522, %v281
    %v1628 = vmul.f32 %v1522, %v285
    %v1629 = vmul.f32 %v1522, %v289
    %v1630 = vmul.f32 %v1522, %v293
    %v1631 = vmul.f32 %v1522, %v297
    %v1632 = vmul.f32 %v1522, %v301
    %v1633 = vmul.f32 %v1522, %v305
    %v1634 = vmul.f32 %v1522, %v309
    %v1635 = vmul.f32 %v1522, %v313
    %v1636 = vmul.f32 %v1522, %v317
    %v1637 = vmul.f32 %v1522, %v321
    %v1638 = vmul.f32 %v1522, %v325
    %v1639 = vmul.f32 %v1522, %v329
    %v1640 = vmul.f32 %v1522, %v333
    %v1641 = vmul.f32 %v1522, %v337
    %v1642 = vmul.f32 %v1522, %v341
    %v1643 = vmul.f32 %v1522, %v345
    %v1644 = vmul.f32 %v1522, %v349
    %v1645 = vmul.f32 %v1522, %v353
    %v1646 = vmul.f32 %v1522, %v357
    %v1647 = vmul.f32 %v1522, %v361
    %v1648 = vmul.f32 %v1522, %v365
    %v1649 = vmul.f32 %v1522, %v369
    %v1650 = vmul.f32 %v1522, %v373
    %v1651 = vmul.f32 %v1522, %v377
    %1652 = vset.pattern.permute.xlu0 1
    %1653 = vperm.xlu0 %1652, %v1495
    %v1654 = vpop.permute.xlu0 %1653
    %1656 = vset.pattern.permute.xlu0 1
    %1657 = vperm.xlu0 %1656, %v1496
    %v1658 = vpop.permute.xlu0 %1657
    %1660 = vset.pattern.permute.xlu0 1
    %1661 = vperm.xlu0 %1660, %v1497
    %v1662 = vpop.permute.xlu0 %1661
    %1664 = vset.pattern.permute.xlu0 1
    %1665 = vperm.xlu0 %1664, %v1498
    %v1666 = vpop.permute.xlu0 %1665
    %v1684 = vlaneseq
    %v1685 = vshrl.u32 %v1684, 7
    %v1686 = vsub.s32 2, %v1685
    %v1687 = vrot.slane %v1478, %v1686
    %v1688 = vlaneseq
    %v1689 = vshrl.u32 %v1688, 7
    %v1690 = vsub.s32 6, %v1689
    %v1691 = vrot.slane %v1478, %v1690
    %v1692 = vlaneseq
    %v1693 = vshrl.u32 %v1692, 7
    %v1694 = vsub.s32 2, %v1693
    %v1695 = vrot.slane %v1479, %v1694
    %v1696 = vlaneseq
    %v1697 = vshrl.u32 %v1696, 7
    %v1698 = vsub.s32 6, %v1697
    %v1699 = vrot.slane %v1479, %v1698
    %v1700 = vlaneseq
    %v1701 = vshrl.u32 %v1700, 7
    %v1702 = vsub.s32 2, %v1701
    %v1703 = vrot.slane %v1480, %v1702
    %v1704 = vlaneseq
    %v1705 = vshrl.u32 %v1704, 7
    %v1706 = vsub.s32 6, %v1705
    %v1707 = vrot.slane %v1480, %v1706
    %v1708 = vlaneseq
    %v1709 = vshrl.u32 %v1708, 7
    %v1710 = vsub.s32 2, %v1709
    %v1711 = vrot.slane %v1481, %v1710
    %v1712 = vlaneseq
    %v1713 = vshrl.u32 %v1712, 7
    %v1714 = vsub.s32 6, %v1713
    %v1715 = vrot.slane %v1481, %v1714
    %v1716 = vlaneseq
    %v1717 = vshrl.u32 %v1716, 7
    %v1718 = vsub.s32 2, %v1717
    %v1719 = vrot.slane %v1482, %v1718
    %v1720 = vlaneseq
    %v1721 = vshrl.u32 %v1720, 7
    %v1722 = vsub.s32 6, %v1721
    %v1723 = vrot.slane %v1482, %v1722
    %v1724 = vlaneseq
    %v1725 = vshrl.u32 %v1724, 7
    %v1726 = vsub.s32 2, %v1725
    %v1727 = vrot.slane %v1483, %v1726
    %v1728 = vlaneseq
    %v1729 = vshrl.u32 %v1728, 7
    %v1730 = vsub.s32 6, %v1729
    %v1731 = vrot.slane %v1483, %v1730
    %v1732 = vlaneseq
    %v1733 = vshrl.u32 %v1732, 7
    %v1734 = vsub.s32 2, %v1733
    %v1735 = vrot.slane %v1484, %v1734
    %v1736 = vlaneseq
    %v1737 = vshrl.u32 %v1736, 7
    %v1738 = vsub.s32 6, %v1737
    %v1739 = vrot.slane %v1484, %v1738
    %v1740 = vlaneseq
    %v1741 = vshrl.u32 %v1740, 7
    %v1742 = vsub.s32 2, %v1741
    %v1743 = vrot.slane %v1485, %v1742
    %v1744 = vlaneseq
    %v1745 = vshrl.u32 %v1744, 7
    %v1746 = vsub.s32 6, %v1745
    %v1747 = vrot.slane %v1485, %v1746
    %v1748 = vlaneseq
    %v1749 = vshrl.u32 %v1748, 7
    %v1750 = vsub.s32 2, %v1749
    %v1751 = vrot.slane %v1486, %v1750
    %v1752 = vlaneseq
    %v1753 = vshrl.u32 %v1752, 7
    %v1754 = vsub.s32 6, %v1753
    %v1755 = vrot.slane %v1486, %v1754
    %v1756 = vlaneseq
    %v1757 = vshrl.u32 %v1756, 7
    %v1758 = vsub.s32 2, %v1757
    %v1759 = vrot.slane %v1487, %v1758
    %v1760 = vlaneseq
    %v1761 = vshrl.u32 %v1760, 7
    %v1762 = vsub.s32 6, %v1761
    %v1763 = vrot.slane %v1487, %v1762
    %v1764 = vlaneseq
    %v1765 = vshrl.u32 %v1764, 7
    %v1766 = vsub.s32 2, %v1765
    %v1767 = vrot.slane %v1488, %v1766
    %v1768 = vlaneseq
    %v1769 = vshrl.u32 %v1768, 7
    %v1770 = vsub.s32 6, %v1769
    %v1771 = vrot.slane %v1488, %v1770
    %v1772 = vlaneseq
    %v1773 = vshrl.u32 %v1772, 7
    %v1774 = vsub.s32 2, %v1773
    %v1775 = vrot.slane %v1489, %v1774
    %v1776 = vlaneseq
    %v1777 = vshrl.u32 %v1776, 7
    %v1778 = vsub.s32 6, %v1777
    %v1779 = vrot.slane %v1489, %v1778
    %v1780 = vlaneseq
    %v1781 = vshrl.u32 %v1780, 7
    %v1782 = vsub.s32 2, %v1781
    %v1783 = vrot.slane %v1490, %v1782
    %v1784 = vlaneseq
    %v1785 = vshrl.u32 %v1784, 7
    %v1786 = vsub.s32 6, %v1785
    %v1787 = vrot.slane %v1490, %v1786
    %v1788 = vlaneseq
    %v1789 = vshrl.u32 %v1788, 7
    %v1790 = vsub.s32 2, %v1789
    %v1791 = vrot.slane %v1491, %v1790
    %v1792 = vlaneseq
    %v1793 = vshrl.u32 %v1792, 7
    %v1794 = vsub.s32 6, %v1793
    %v1795 = vrot.slane %v1491, %v1794
    %v1796 = vlaneseq
    %v1797 = vshrl.u32 %v1796, 7
    %v1798 = vsub.s32 2, %v1797
    %v1799 = vrot.slane %v1492, %v1798
    %v1800 = vlaneseq
    %v1801 = vshrl.u32 %v1800, 7
    %v1802 = vsub.s32 6, %v1801
    %v1803 = vrot.slane %v1492, %v1802
    %v1804 = vlaneseq
    %v1805 = vshrl.u32 %v1804, 7
    %v1806 = vsub.s32 2, %v1805
    %v1807 = vrot.slane %v1493, %v1806
    %v1808 = vlaneseq
    %v1809 = vshrl.u32 %v1808, 7
    %v1810 = vsub.s32 6, %v1809
    %v1811 = vrot.slane %v1493, %v1810
    %v1844 = vlaneseq
    %v1845 = vshrl.u32 %v1844, 7
    %v1846 = vsub.s32 2, %v1845
    %v1847 = vrot.slane %v1687, %v1846
    %v1848 = vlaneseq
    %v1849 = vshrl.u32 %v1848, 7
    %v1850 = vsub.s32 2, %v1849
    %v1851 = vrot.slane %v1691, %v1850
    %v1852 = vlaneseq
    %v1853 = vshrl.u32 %v1852, 7
    %v1854 = vsub.s32 2, %v1853
    %v1855 = vrot.slane %v1695, %v1854
    %v1856 = vlaneseq
    %v1857 = vshrl.u32 %v1856, 7
    %v1858 = vsub.s32 2, %v1857
    %v1859 = vrot.slane %v1699, %v1858
    %v1860 = vlaneseq
    %v1861 = vshrl.u32 %v1860, 7
    %v1862 = vsub.s32 2, %v1861
    %v1863 = vrot.slane %v1703, %v1862
    %v1864 = vlaneseq
    %v1865 = vshrl.u32 %v1864, 7
    %v1866 = vsub.s32 2, %v1865
    %v1867 = vrot.slane %v1707, %v1866
    %v1868 = vlaneseq
    %v1869 = vshrl.u32 %v1868, 7
    %v1870 = vsub.s32 2, %v1869
    %v1871 = vrot.slane %v1711, %v1870
    %v1872 = vlaneseq
    %v1873 = vshrl.u32 %v1872, 7
    %v1874 = vsub.s32 2, %v1873
    %v1875 = vrot.slane %v1715, %v1874
    %v1876 = vlaneseq
    %v1877 = vshrl.u32 %v1876, 7
    %v1878 = vsub.s32 2, %v1877
    %v1879 = vrot.slane %v1719, %v1878
    %v1880 = vlaneseq
    %v1881 = vshrl.u32 %v1880, 7
    %v1882 = vsub.s32 2, %v1881
    %v1883 = vrot.slane %v1723, %v1882
    %v1884 = vlaneseq
    %v1885 = vshrl.u32 %v1884, 7
    %v1886 = vsub.s32 2, %v1885
    %v1887 = vrot.slane %v1727, %v1886
    %v1888 = vlaneseq
    %v1889 = vshrl.u32 %v1888, 7
    %v1890 = vsub.s32 2, %v1889
    %v1891 = vrot.slane %v1731, %v1890
    %v1892 = vlaneseq
    %v1893 = vshrl.u32 %v1892, 7
    %v1894 = vsub.s32 2, %v1893
    %v1895 = vrot.slane %v1735, %v1894
    %v1896 = vlaneseq
    %v1897 = vshrl.u32 %v1896, 7
    %v1898 = vsub.s32 2, %v1897
    %v1899 = vrot.slane %v1739, %v1898
    %v1900 = vlaneseq
    %v1901 = vshrl.u32 %v1900, 7
    %v1902 = vsub.s32 2, %v1901
    %v1903 = vrot.slane %v1743, %v1902
    %v1904 = vlaneseq
    %v1905 = vshrl.u32 %v1904, 7
    %v1906 = vsub.s32 2, %v1905
    %v1907 = vrot.slane %v1747, %v1906
    %v1908 = vlaneseq
    %v1909 = vshrl.u32 %v1908, 7
    %v1910 = vsub.s32 2, %v1909
    %v1911 = vrot.slane %v1751, %v1910
    %v1912 = vlaneseq
    %v1913 = vshrl.u32 %v1912, 7
    %v1914 = vsub.s32 2, %v1913
    %v1915 = vrot.slane %v1755, %v1914
    %v1916 = vlaneseq
    %v1917 = vshrl.u32 %v1916, 7
    %v1918 = vsub.s32 2, %v1917
    %v1919 = vrot.slane %v1759, %v1918
    %v1920 = vlaneseq
    %v1921 = vshrl.u32 %v1920, 7
    %v1922 = vsub.s32 2, %v1921
    %v1923 = vrot.slane %v1763, %v1922
    %v1924 = vlaneseq
    %v1925 = vshrl.u32 %v1924, 7
    %v1926 = vsub.s32 2, %v1925
    %v1927 = vrot.slane %v1767, %v1926
    %v1928 = vlaneseq
    %v1929 = vshrl.u32 %v1928, 7
    %v1930 = vsub.s32 2, %v1929
    %v1931 = vrot.slane %v1771, %v1930
    %v1932 = vlaneseq
    %v1933 = vshrl.u32 %v1932, 7
    %v1934 = vsub.s32 2, %v1933
    %v1935 = vrot.slane %v1775, %v1934
    %v1936 = vlaneseq
    %v1937 = vshrl.u32 %v1936, 7
    %v1938 = vsub.s32 2, %v1937
    %v1939 = vrot.slane %v1779, %v1938
    %v1940 = vlaneseq
    %v1941 = vshrl.u32 %v1940, 7
    %v1942 = vsub.s32 2, %v1941
    %v1943 = vrot.slane %v1783, %v1942
    %v1944 = vlaneseq
    %v1945 = vshrl.u32 %v1944, 7
    %v1946 = vsub.s32 2, %v1945
    %v1947 = vrot.slane %v1787, %v1946
    %v1948 = vlaneseq
    %v1949 = vshrl.u32 %v1948, 7
    %v1950 = vsub.s32 2, %v1949
    %v1951 = vrot.slane %v1791, %v1950
    %v1952 = vlaneseq
    %v1953 = vshrl.u32 %v1952, 7
    %v1954 = vsub.s32 2, %v1953
    %v1955 = vrot.slane %v1795, %v1954
    %v1956 = vlaneseq
    %v1957 = vshrl.u32 %v1956, 7
    %v1958 = vsub.s32 2, %v1957
    %v1959 = vrot.slane %v1799, %v1958
    %v1960 = vlaneseq
    %v1961 = vshrl.u32 %v1960, 7
    %v1962 = vsub.s32 2, %v1961
    %v1963 = vrot.slane %v1803, %v1962
    %v1964 = vlaneseq
    %v1965 = vshrl.u32 %v1964, 7
    %v1966 = vsub.s32 2, %v1965
    %v1967 = vrot.slane %v1807, %v1966
    %v1968 = vlaneseq
    %v1969 = vshrl.u32 %v1968, 7
    %v1970 = vsub.s32 2, %v1969
    %v1971 = vrot.slane %v1811, %v1970
    %v1972 = vmul.f32 %v1654, %v1847
    %v1973 = vmul.f32 %v1654, %v1851
    %v1974 = vmul.f32 %v1654, %v1855
    %v1975 = vmul.f32 %v1654, %v1859
    %v1976 = vmul.f32 %v1654, %v1863
    %v1977 = vmul.f32 %v1654, %v1867
    %v1978 = vmul.f32 %v1654, %v1871
    %v1979 = vmul.f32 %v1654, %v1875
    %v1980 = vmul.f32 %v1654, %v1879
    %v1981 = vmul.f32 %v1654, %v1883
    %v1982 = vmul.f32 %v1654, %v1887
    %v1983 = vmul.f32 %v1654, %v1891
    %v1984 = vmul.f32 %v1654, %v1895
    %v1985 = vmul.f32 %v1654, %v1899
    %v1986 = vmul.f32 %v1654, %v1903
    %v1987 = vmul.f32 %v1654, %v1907
    %v1988 = vmul.f32 %v1654, %v1911
    %v1989 = vmul.f32 %v1654, %v1915
    %v1990 = vmul.f32 %v1654, %v1919
    %v1991 = vmul.f32 %v1654, %v1923
    %v1992 = vmul.f32 %v1654, %v1927
    %v1993 = vmul.f32 %v1654, %v1931
    %v1994 = vmul.f32 %v1654, %v1935
    %v1995 = vmul.f32 %v1654, %v1939
    %v1996 = vmul.f32 %v1654, %v1943
    %v1997 = vmul.f32 %v1654, %v1947
    %v1998 = vmul.f32 %v1654, %v1951
    %v1999 = vmul.f32 %v1654, %v1955
    %v2000 = vmul.f32 %v1654, %v1959
    %v2001 = vmul.f32 %v1654, %v1963
    %v2002 = vmul.f32 %v1654, %v1967
    %v2003 = vmul.f32 %v1654, %v1971
    %v2004 = vmul.f32 %v1658, %v1847
    %v2005 = vmul.f32 %v1658, %v1851
    %v2006 = vmul.f32 %v1658, %v1855
    %v2007 = vmul.f32 %v1658, %v1859
    %v2008 = vmul.f32 %v1658, %v1863
    %v2009 = vmul.f32 %v1658, %v1867
    %v2010 = vmul.f32 %v1658, %v1871
    %v2011 = vmul.f32 %v1658, %v1875
    %v2012 = vmul.f32 %v1658, %v1879
    %v2013 = vmul.f32 %v1658, %v1883
    %v2014 = vmul.f32 %v1658, %v1887
    %v2015 = vmul.f32 %v1658, %v1891
    %v2016 = vmul.f32 %v1658, %v1895
    %v2017 = vmul.f32 %v1658, %v1899
    %v2018 = vmul.f32 %v1658, %v1903
    %v2019 = vmul.f32 %v1658, %v1907
    %v2020 = vmul.f32 %v1658, %v1911
    %v2021 = vmul.f32 %v1658, %v1915
    %v2022 = vmul.f32 %v1658, %v1919
    %v2023 = vmul.f32 %v1658, %v1923
    %v2024 = vmul.f32 %v1658, %v1927
    %v2025 = vmul.f32 %v1658, %v1931
    %v2026 = vmul.f32 %v1658, %v1935
    %v2027 = vmul.f32 %v1658, %v1939
    %v2028 = vmul.f32 %v1658, %v1943
    %v2029 = vmul.f32 %v1658, %v1947
    %v2030 = vmul.f32 %v1658, %v1951
    %v2031 = vmul.f32 %v1658, %v1955
    %v2032 = vmul.f32 %v1658, %v1959
    %v2033 = vmul.f32 %v1658, %v1963
    %v2034 = vmul.f32 %v1658, %v1967
    %v2035 = vmul.f32 %v1658, %v1971
    %v2036 = vmul.f32 %v1662, %v1847
    %v2037 = vmul.f32 %v1662, %v1851
    %v2038 = vmul.f32 %v1662, %v1855
    %v2039 = vmul.f32 %v1662, %v1859
    %v2040 = vmul.f32 %v1662, %v1863
    %v2041 = vmul.f32 %v1662, %v1867
    %v2042 = vmul.f32 %v1662, %v1871
    %v2043 = vmul.f32 %v1662, %v1875
    %v2044 = vmul.f32 %v1662, %v1879
    %v2045 = vmul.f32 %v1662, %v1883
    %v2046 = vmul.f32 %v1662, %v1887
    %v2047 = vmul.f32 %v1662, %v1891
    %v2048 = vmul.f32 %v1662, %v1895
    %v2049 = vmul.f32 %v1662, %v1899
    %v2050 = vmul.f32 %v1662, %v1903
    %v2051 = vmul.f32 %v1662, %v1907
    %v2052 = vmul.f32 %v1662, %v1911
    %v2053 = vmul.f32 %v1662, %v1915
    %v2054 = vmul.f32 %v1662, %v1919
    %v2055 = vmul.f32 %v1662, %v1923
    %v2056 = vmul.f32 %v1662, %v1927
    %v2057 = vmul.f32 %v1662, %v1931
    %v2058 = vmul.f32 %v1662, %v1935
    %v2059 = vmul.f32 %v1662, %v1939
    %v2060 = vmul.f32 %v1662, %v1943
    %v2061 = vmul.f32 %v1662, %v1947
    %v2062 = vmul.f32 %v1662, %v1951
    %v2063 = vmul.f32 %v1662, %v1955
    %v2064 = vmul.f32 %v1662, %v1959
    %v2065 = vmul.f32 %v1662, %v1963
    %v2066 = vmul.f32 %v1662, %v1967
    %v2067 = vmul.f32 %v1662, %v1971
    %v2068 = vmul.f32 %v1666, %v1847
    %v2069 = vmul.f32 %v1666, %v1851
    %v2070 = vmul.f32 %v1666, %v1855
    %v2071 = vmul.f32 %v1666, %v1859
    %v2072 = vmul.f32 %v1666, %v1863
    %v2073 = vmul.f32 %v1666, %v1867
    %v2074 = vmul.f32 %v1666, %v1871
    %v2075 = vmul.f32 %v1666, %v1875
    %v2076 = vmul.f32 %v1666, %v1879
    %v2077 = vmul.f32 %v1666, %v1883
    %v2078 = vmul.f32 %v1666, %v1887
    %v2079 = vmul.f32 %v1666, %v1891
    %v2080 = vmul.f32 %v1666, %v1895
    %v2081 = vmul.f32 %v1666, %v1899
    %v2082 = vmul.f32 %v1666, %v1903
    %v2083 = vmul.f32 %v1666, %v1907
    %v2084 = vmul.f32 %v1666, %v1911
    %v2085 = vmul.f32 %v1666, %v1915
    %v2086 = vmul.f32 %v1666, %v1919
    %v2087 = vmul.f32 %v1666, %v1923
    %v2088 = vmul.f32 %v1666, %v1927
    %v2089 = vmul.f32 %v1666, %v1931
    %v2090 = vmul.f32 %v1666, %v1935
    %v2091 = vmul.f32 %v1666, %v1939
    %v2092 = vmul.f32 %v1666, %v1943
    %v2093 = vmul.f32 %v1666, %v1947
    %v2094 = vmul.f32 %v1666, %v1951
    %v2095 = vmul.f32 %v1666, %v1955
    %v2096 = vmul.f32 %v1666, %v1959
    %v2097 = vmul.f32 %v1666, %v1963
    %v2098 = vmul.f32 %v1666, %v1967
    %v2099 = vmul.f32 %v1666, %v1971
    %v2100 = vadd.f32 %v1524, %v1972
    %v2101 = vadd.f32 %v1525, %v1973
    %v2102 = vadd.f32 %v1526, %v1974
    %v2103 = vadd.f32 %v1527, %v1975
    %v2104 = vadd.f32 %v1528, %v1976
    %v2105 = vadd.f32 %v1529, %v1977
    %v2106 = vadd.f32 %v1530, %v1978
    %v2107 = vadd.f32 %v1531, %v1979
    %v2108 = vadd.f32 %v1532, %v1980
    %v2109 = vadd.f32 %v1533, %v1981
    %v2110 = vadd.f32 %v1534, %v1982
    %v2111 = vadd.f32 %v1535, %v1983
    %v2112 = vadd.f32 %v1536, %v1984
    %v2113 = vadd.f32 %v1537, %v1985
    %v2114 = vadd.f32 %v1538, %v1986
    %v2115 = vadd.f32 %v1539, %v1987
    %v2116 = vadd.f32 %v1540, %v1988
    %v2117 = vadd.f32 %v1541, %v1989
    %v2118 = vadd.f32 %v1542, %v1990
    %v2119 = vadd.f32 %v1543, %v1991
    %v2120 = vadd.f32 %v1544, %v1992
    %v2121 = vadd.f32 %v1545, %v1993
    %v2122 = vadd.f32 %v1546, %v1994
    %v2123 = vadd.f32 %v1547, %v1995
    %v2124 = vadd.f32 %v1548, %v1996
    %v2125 = vadd.f32 %v1549, %v1997
    %v2126 = vadd.f32 %v1550, %v1998
    %v2127 = vadd.f32 %v1551, %v1999
    %v2128 = vadd.f32 %v1552, %v2000
    %v2129 = vadd.f32 %v1553, %v2001
    %v2130 = vadd.f32 %v1554, %v2002
    %v2131 = vadd.f32 %v1555, %v2003
    %v2132 = vadd.f32 %v1556, %v2004
    %v2133 = vadd.f32 %v1557, %v2005
    %v2134 = vadd.f32 %v1558, %v2006
    %v2135 = vadd.f32 %v1559, %v2007
    %v2136 = vadd.f32 %v1560, %v2008
    %v2137 = vadd.f32 %v1561, %v2009
    %v2138 = vadd.f32 %v1562, %v2010
    %v2139 = vadd.f32 %v1563, %v2011
    %v2140 = vadd.f32 %v1564, %v2012
    %v2141 = vadd.f32 %v1565, %v2013
    %v2142 = vadd.f32 %v1566, %v2014
    %v2143 = vadd.f32 %v1567, %v2015
    %v2144 = vadd.f32 %v1568, %v2016
    %v2145 = vadd.f32 %v1569, %v2017
    %v2146 = vadd.f32 %v1570, %v2018
    %v2147 = vadd.f32 %v1571, %v2019
    %v2148 = vadd.f32 %v1572, %v2020
    %v2149 = vadd.f32 %v1573, %v2021
    %v2150 = vadd.f32 %v1574, %v2022
    %v2151 = vadd.f32 %v1575, %v2023
    %v2152 = vadd.f32 %v1576, %v2024
    %v2153 = vadd.f32 %v1577, %v2025
    %v2154 = vadd.f32 %v1578, %v2026
    %v2155 = vadd.f32 %v1579, %v2027
    %v2156 = vadd.f32 %v1580, %v2028
    %v2157 = vadd.f32 %v1581, %v2029
    %v2158 = vadd.f32 %v1582, %v2030
    %v2159 = vadd.f32 %v1583, %v2031
    %v2160 = vadd.f32 %v1584, %v2032
    %v2161 = vadd.f32 %v1585, %v2033
    %v2162 = vadd.f32 %v1586, %v2034
    %v2163 = vadd.f32 %v1587, %v2035
    %v2164 = vadd.f32 %v1588, %v2036
    %v2165 = vadd.f32 %v1589, %v2037
    %v2166 = vadd.f32 %v1590, %v2038
    %v2167 = vadd.f32 %v1591, %v2039
    %v2168 = vadd.f32 %v1592, %v2040
    %v2169 = vadd.f32 %v1593, %v2041
    %v2170 = vadd.f32 %v1594, %v2042
    %v2171 = vadd.f32 %v1595, %v2043
    %v2172 = vadd.f32 %v1596, %v2044
    %v2173 = vadd.f32 %v1597, %v2045
    %v2174 = vadd.f32 %v1598, %v2046
    %v2175 = vadd.f32 %v1599, %v2047
    %v2176 = vadd.f32 %v1600, %v2048
    %v2177 = vadd.f32 %v1601, %v2049
    %v2178 = vadd.f32 %v1602, %v2050
    %v2179 = vadd.f32 %v1603, %v2051
    %v2180 = vadd.f32 %v1604, %v2052
    %v2181 = vadd.f32 %v1605, %v2053
    %v2182 = vadd.f32 %v1606, %v2054
    %v2183 = vadd.f32 %v1607, %v2055
    %v2184 = vadd.f32 %v1608, %v2056
    %v2185 = vadd.f32 %v1609, %v2057
    %v2186 = vadd.f32 %v1610, %v2058
    %v2187 = vadd.f32 %v1611, %v2059
    %v2188 = vadd.f32 %v1612, %v2060
    %v2189 = vadd.f32 %v1613, %v2061
    %v2190 = vadd.f32 %v1614, %v2062
    %v2191 = vadd.f32 %v1615, %v2063
    %v2192 = vadd.f32 %v1616, %v2064
    %v2193 = vadd.f32 %v1617, %v2065
    %v2194 = vadd.f32 %v1618, %v2066
    %v2195 = vadd.f32 %v1619, %v2067
    %v2196 = vadd.f32 %v1620, %v2068
    %v2197 = vadd.f32 %v1621, %v2069
    %v2198 = vadd.f32 %v1622, %v2070
    %v2199 = vadd.f32 %v1623, %v2071
    %v2200 = vadd.f32 %v1624, %v2072
    %v2201 = vadd.f32 %v1625, %v2073
    %v2202 = vadd.f32 %v1626, %v2074
    %v2203 = vadd.f32 %v1627, %v2075
    %v2204 = vadd.f32 %v1628, %v2076
    %v2205 = vadd.f32 %v1629, %v2077
    %v2206 = vadd.f32 %v1630, %v2078
    %v2207 = vadd.f32 %v1631, %v2079
    %v2208 = vadd.f32 %v1632, %v2080
    %v2209 = vadd.f32 %v1633, %v2081
    %v2210 = vadd.f32 %v1634, %v2082
    %v2211 = vadd.f32 %v1635, %v2083
    %v2212 = vadd.f32 %v1636, %v2084
    %v2213 = vadd.f32 %v1637, %v2085
    %v2214 = vadd.f32 %v1638, %v2086
    %v2215 = vadd.f32 %v1639, %v2087
    %v2216 = vadd.f32 %v1640, %v2088
    %v2217 = vadd.f32 %v1641, %v2089
    %v2218 = vadd.f32 %v1642, %v2090
    %v2219 = vadd.f32 %v1643, %v2091
    %v2220 = vadd.f32 %v1644, %v2092
    %v2221 = vadd.f32 %v1645, %v2093
    %v2222 = vadd.f32 %v1646, %v2094
    %v2223 = vadd.f32 %v1647, %v2095
    %v2224 = vadd.f32 %v1648, %v2096
    %v2225 = vadd.f32 %v1649, %v2097
    %v2226 = vadd.f32 %v1650, %v2098
    %v2227 = vadd.f32 %v1651, %v2099
    %2229 = vset.pattern.permute.xlu0 0
    %2230 = vperm.xlu0 %2229, %v1500
    %v2231 = vpop.permute.xlu0 %2230
    %2234 = vset.pattern.permute.xlu0 0
    %2235 = vperm.xlu0 %2234, %v1501
    %v2236 = vpop.permute.xlu0 %2235
    %2239 = vset.pattern.permute.xlu0 0
    %2240 = vperm.xlu0 %2239, %v1502
    %v2241 = vpop.permute.xlu0 %2240
    %2244 = vset.pattern.permute.xlu0 0
    %2245 = vperm.xlu0 %2244, %v1503
    %v2246 = vpop.permute.xlu0 %2245
    %v2248 = vadd.f32 %v2100, %v2231
    %v2249 = vadd.f32 %v2101, %v2231
    %v2250 = vadd.f32 %v2102, %v2231
    %v2251 = vadd.f32 %v2103, %v2231
    %v2252 = vadd.f32 %v2104, %v2231
    %v2253 = vadd.f32 %v2105, %v2231
    %v2254 = vadd.f32 %v2106, %v2231
    %v2255 = vadd.f32 %v2107, %v2231
    %v2256 = vadd.f32 %v2108, %v2231
    %v2257 = vadd.f32 %v2109, %v2231
    %v2258 = vadd.f32 %v2110, %v2231
    %v2259 = vadd.f32 %v2111, %v2231
    %v2260 = vadd.f32 %v2112, %v2231
    %v2261 = vadd.f32 %v2113, %v2231
    %v2262 = vadd.f32 %v2114, %v2231
    %v2263 = vadd.f32 %v2115, %v2231
    %v2264 = vadd.f32 %v2116, %v2231
    %v2265 = vadd.f32 %v2117, %v2231
    %v2266 = vadd.f32 %v2118, %v2231
    %v2267 = vadd.f32 %v2119, %v2231
    %v2268 = vadd.f32 %v2120, %v2231
    %v2269 = vadd.f32 %v2121, %v2231
    %v2270 = vadd.f32 %v2122, %v2231
    %v2271 = vadd.f32 %v2123, %v2231
    %v2272 = vadd.f32 %v2124, %v2231
    %v2273 = vadd.f32 %v2125, %v2231
    %v2274 = vadd.f32 %v2126, %v2231
    %v2275 = vadd.f32 %v2127, %v2231
    %v2276 = vadd.f32 %v2128, %v2231
    %v2277 = vadd.f32 %v2129, %v2231
    %v2278 = vadd.f32 %v2130, %v2231
    %v2279 = vadd.f32 %v2131, %v2231
    %v2280 = vadd.f32 %v2132, %v2236
    %v2281 = vadd.f32 %v2133, %v2236
    %v2282 = vadd.f32 %v2134, %v2236
    %v2283 = vadd.f32 %v2135, %v2236
    %v2284 = vadd.f32 %v2136, %v2236
    %v2285 = vadd.f32 %v2137, %v2236
    %v2286 = vadd.f32 %v2138, %v2236
    %v2287 = vadd.f32 %v2139, %v2236
    %v2288 = vadd.f32 %v2140, %v2236
    %v2289 = vadd.f32 %v2141, %v2236
    %v2290 = vadd.f32 %v2142, %v2236
    %v2291 = vadd.f32 %v2143, %v2236
    %v2292 = vadd.f32 %v2144, %v2236
    %v2293 = vadd.f32 %v2145, %v2236
    %v2294 = vadd.f32 %v2146, %v2236
    %v2295 = vadd.f32 %v2147, %v2236
    %v2296 = vadd.f32 %v2148, %v2236
    %v2297 = vadd.f32 %v2149, %v2236
    %v2298 = vadd.f32 %v2150, %v2236
    %v2299 = vadd.f32 %v2151, %v2236
    %v2300 = vadd.f32 %v2152, %v2236
    %v2301 = vadd.f32 %v2153, %v2236
    %v2302 = vadd.f32 %v2154, %v2236
    %v2303 = vadd.f32 %v2155, %v2236
    %v2304 = vadd.f32 %v2156, %v2236
    %v2305 = vadd.f32 %v2157, %v2236
    %v2306 = vadd.f32 %v2158, %v2236
    %v2307 = vadd.f32 %v2159, %v2236
    %v2308 = vadd.f32 %v2160, %v2236
    %v2309 = vadd.f32 %v2161, %v2236
    %v2310 = vadd.f32 %v2162, %v2236
    %v2311 = vadd.f32 %v2163, %v2236
    %v2312 = vadd.f32 %v2164, %v2241
    %v2313 = vadd.f32 %v2165, %v2241
    %v2314 = vadd.f32 %v2166, %v2241
    %v2315 = vadd.f32 %v2167, %v2241
    %v2316 = vadd.f32 %v2168, %v2241
    %v2317 = vadd.f32 %v2169, %v2241
    %v2318 = vadd.f32 %v2170, %v2241
    %v2319 = vadd.f32 %v2171, %v2241
    %v2320 = vadd.f32 %v2172, %v2241
    %v2321 = vadd.f32 %v2173, %v2241
    %v2322 = vadd.f32 %v2174, %v2241
    %v2323 = vadd.f32 %v2175, %v2241
    %v2324 = vadd.f32 %v2176, %v2241
    %v2325 = vadd.f32 %v2177, %v2241
    %v2326 = vadd.f32 %v2178, %v2241
    %v2327 = vadd.f32 %v2179, %v2241
    %v2328 = vadd.f32 %v2180, %v2241
    %v2329 = vadd.f32 %v2181, %v2241
    %v2330 = vadd.f32 %v2182, %v2241
    %v2331 = vadd.f32 %v2183, %v2241
    %v2332 = vadd.f32 %v2184, %v2241
    %v2333 = vadd.f32 %v2185, %v2241
    %v2334 = vadd.f32 %v2186, %v2241
    %v2335 = vadd.f32 %v2187, %v2241
    %v2336 = vadd.f32 %v2188, %v2241
    %v2337 = vadd.f32 %v2189, %v2241
    %v2338 = vadd.f32 %v2190, %v2241
    %v2339 = vadd.f32 %v2191, %v2241
    %v2340 = vadd.f32 %v2192, %v2241
    %v2341 = vadd.f32 %v2193, %v2241
    %v2342 = vadd.f32 %v2194, %v2241
    %v2343 = vadd.f32 %v2195, %v2241
    %v2344 = vadd.f32 %v2196, %v2246
    %v2345 = vadd.f32 %v2197, %v2246
    %v2346 = vadd.f32 %v2198, %v2246
    %v2347 = vadd.f32 %v2199, %v2246
    %v2348 = vadd.f32 %v2200, %v2246
    %v2349 = vadd.f32 %v2201, %v2246
    %v2350 = vadd.f32 %v2202, %v2246
    %v2351 = vadd.f32 %v2203, %v2246
    %v2352 = vadd.f32 %v2204, %v2246
    %v2353 = vadd.f32 %v2205, %v2246
    %v2354 = vadd.f32 %v2206, %v2246
    %v2355 = vadd.f32 %v2207, %v2246
    %v2356 = vadd.f32 %v2208, %v2246
    %v2357 = vadd.f32 %v2209, %v2246
    %v2358 = vadd.f32 %v2210, %v2246
    %v2359 = vadd.f32 %v2211, %v2246
    %v2360 = vadd.f32 %v2212, %v2246
    %v2361 = vadd.f32 %v2213, %v2246
    %v2362 = vadd.f32 %v2214, %v2246
    %v2363 = vadd.f32 %v2215, %v2246
    %v2364 = vadd.f32 %v2216, %v2246
    %v2365 = vadd.f32 %v2217, %v2246
    %v2366 = vadd.f32 %v2218, %v2246
    %v2367 = vadd.f32 %v2219, %v2246
    %v2368 = vadd.f32 %v2220, %v2246
    %v2369 = vadd.f32 %v2221, %v2246
    %v2370 = vadd.f32 %v2222, %v2246
    %v2371 = vadd.f32 %v2223, %v2246
    %v2372 = vadd.f32 %v2224, %v2246
    %v2373 = vadd.f32 %v2225, %v2246
    %v2374 = vadd.f32 %v2226, %v2246
    %v2375 = vadd.f32 %v2227, %v2246
    %v2376 = vmax.f32 %v2248, 0.0
    %v2377 = vmax.f32 %v2249, 0.0
    %v2378 = vmax.f32 %v2250, 0.0
    %v2379 = vmax.f32 %v2251, 0.0
    %v2380 = vmax.f32 %v2252, 0.0
    %v2381 = vmax.f32 %v2253, 0.0
    %v2382 = vmax.f32 %v2254, 0.0
    %v2383 = vmax.f32 %v2255, 0.0
    %v2384 = vmax.f32 %v2256, 0.0
    %v2385 = vmax.f32 %v2257, 0.0
    %v2386 = vmax.f32 %v2258, 0.0
    %v2387 = vmax.f32 %v2259, 0.0
    %v2388 = vmax.f32 %v2260, 0.0
    %v2389 = vmax.f32 %v2261, 0.0
    %v2390 = vmax.f32 %v2262, 0.0
    %v2391 = vmax.f32 %v2263, 0.0
    %v2392 = vmax.f32 %v2264, 0.0
    %v2393 = vmax.f32 %v2265, 0.0
    %v2394 = vmax.f32 %v2266, 0.0
    %v2395 = vmax.f32 %v2267, 0.0
    %v2396 = vmax.f32 %v2268, 0.0
    %v2397 = vmax.f32 %v2269, 0.0
    %v2398 = vmax.f32 %v2270, 0.0
    %v2399 = vmax.f32 %v2271, 0.0
    %v2400 = vmax.f32 %v2272, 0.0
    %v2401 = vmax.f32 %v2273, 0.0
    %v2402 = vmax.f32 %v2274, 0.0
    %v2403 = vmax.f32 %v2275, 0.0
    %v2404 = vmax.f32 %v2276, 0.0
    %v2405 = vmax.f32 %v2277, 0.0
    %v2406 = vmax.f32 %v2278, 0.0
    %v2407 = vmax.f32 %v2279, 0.0
    %v2408 = vmax.f32 %v2280, 0.0
    %v2409 = vmax.f32 %v2281, 0.0
    %v2410 = vmax.f32 %v2282, 0.0
    %v2411 = vmax.f32 %v2283, 0.0
    %v2412 = vmax.f32 %v2284, 0.0
    %v2413 = vmax.f32 %v2285, 0.0
    %v2414 = vmax.f32 %v2286, 0.0
    %v2415 = vmax.f32 %v2287, 0.0
    %v2416 = vmax.f32 %v2288, 0.0
    %v2417 = vmax.f32 %v2289, 0.0
    %v2418 = vmax.f32 %v2290, 0.0
    %v2419 = vmax.f32 %v2291, 0.0
    %v2420 = vmax.f32 %v2292, 0.0
    %v2421 = vmax.f32 %v2293, 0.0
    %v2422 = vmax.f32 %v2294, 0.0
    %v2423 = vmax.f32 %v2295, 0.0
    %v2424 = vmax.f32 %v2296, 0.0
    %v2425 = vmax.f32 %v2297, 0.0
    %v2426 = vmax.f32 %v2298, 0.0
    %v2427 = vmax.f32 %v2299, 0.0
    %v2428 = vmax.f32 %v2300, 0.0
    %v2429 = vmax.f32 %v2301, 0.0
    %v2430 = vmax.f32 %v2302, 0.0
    %v2431 = vmax.f32 %v2303, 0.0
    %v2432 = vmax.f32 %v2304, 0.0
    %v2433 = vmax.f32 %v2305, 0.0
    %v2434 = vmax.f32 %v2306, 0.0
    %v2435 = vmax.f32 %v2307, 0.0
    %v2436 = vmax.f32 %v2308, 0.0
    %v2437 = vmax.f32 %v2309, 0.0
    %v2438 = vmax.f32 %v2310, 0.0
    %v2439 = vmax.f32 %v2311, 0.0
    %v2440 = vmax.f32 %v2312, 0.0
    %v2441 = vmax.f32 %v2313, 0.0
    %v2442 = vmax.f32 %v2314, 0.0
    %v2443 = vmax.f32 %v2315, 0.0
    %v2444 = vmax.f32 %v2316, 0.0
    %v2445 = vmax.f32 %v2317, 0.0
    %v2446 = vmax.f32 %v2318, 0.0
    %v2447 = vmax.f32 %v2319, 0.0
    %v2448 = vmax.f32 %v2320, 0.0
    %v2449 = vmax.f32 %v2321, 0.0
    %v2450 = vmax.f32 %v2322, 0.0
    %v2451 = vmax.f32 %v2323, 0.0
    %v2452 = vmax.f32 %v2324, 0.0
    %v2453 = vmax.f32 %v2325, 0.0
    %v2454 = vmax.f32 %v2326, 0.0
    %v2455 = vmax.f32 %v2327, 0.0
    %v2456 = vmax.f32 %v2328, 0.0
    %v2457 = vmax.f32 %v2329, 0.0
    %v2458 = vmax.f32 %v2330, 0.0
    %v2459 = vmax.f32 %v2331, 0.0
    %v2460 = vmax.f32 %v2332, 0.0
    %v2461 = vmax.f32 %v2333, 0.0
    %v2462 = vmax.f32 %v2334, 0.0
    %v2463 = vmax.f32 %v2335, 0.0
    %v2464 = vmax.f32 %v2336, 0.0
    %v2465 = vmax.f32 %v2337, 0.0
    %v2466 = vmax.f32 %v2338, 0.0
    %v2467 = vmax.f32 %v2339, 0.0
    %v2468 = vmax.f32 %v2340, 0.0
    %v2469 = vmax.f32 %v2341, 0.0
    %v2470 = vmax.f32 %v2342, 0.0
    %v2471 = vmax.f32 %v2343, 0.0
    %v2472 = vmax.f32 %v2344, 0.0
    %v2473 = vmax.f32 %v2345, 0.0
    %v2474 = vmax.f32 %v2346, 0.0
    %v2475 = vmax.f32 %v2347, 0.0
    %v2476 = vmax.f32 %v2348, 0.0
    %v2477 = vmax.f32 %v2349, 0.0
    %v2478 = vmax.f32 %v2350, 0.0
    %v2479 = vmax.f32 %v2351, 0.0
    %v2480 = vmax.f32 %v2352, 0.0
    %v2481 = vmax.f32 %v2353, 0.0
    %v2482 = vmax.f32 %v2354, 0.0
    %v2483 = vmax.f32 %v2355, 0.0
    %v2484 = vmax.f32 %v2356, 0.0
    %v2485 = vmax.f32 %v2357, 0.0
    %v2486 = vmax.f32 %v2358, 0.0
    %v2487 = vmax.f32 %v2359, 0.0
    %v2488 = vmax.f32 %v2360, 0.0
    %v2489 = vmax.f32 %v2361, 0.0
    %v2490 = vmax.f32 %v2362, 0.0
    %v2491 = vmax.f32 %v2363, 0.0
    %v2492 = vmax.f32 %v2364, 0.0
    %v2493 = vmax.f32 %v2365, 0.0
    %v2494 = vmax.f32 %v2366, 0.0
    %v2495 = vmax.f32 %v2367, 0.0
    %v2496 = vmax.f32 %v2368, 0.0
    %v2497 = vmax.f32 %v2369, 0.0
    %v2498 = vmax.f32 %v2370, 0.0
    %v2499 = vmax.f32 %v2371, 0.0
    %v2500 = vmax.f32 %v2372, 0.0
    %v2501 = vmax.f32 %v2373, 0.0
    %v2502 = vmax.f32 %v2374, 0.0
    %v2503 = vmax.f32 %v2375, 0.0
    %v2504 = vadd.f32 %v1342, %v2376
    %v2505 = vadd.f32 %v1343, %v2377
    %v2506 = vadd.f32 %v1344, %v2378
    %v2507 = vadd.f32 %v1345, %v2379
    %v2508 = vadd.f32 %v1346, %v2380
    %v2509 = vadd.f32 %v1347, %v2381
    %v2510 = vadd.f32 %v1348, %v2382
    %v2511 = vadd.f32 %v1349, %v2383
    %v2512 = vadd.f32 %v1350, %v2384
    %v2513 = vadd.f32 %v1351, %v2385
    %v2514 = vadd.f32 %v1352, %v2386
    %v2515 = vadd.f32 %v1353, %v2387
    %v2516 = vadd.f32 %v1354, %v2388
    %v2517 = vadd.f32 %v1355, %v2389
    %v2518 = vadd.f32 %v1356, %v2390
    %v2519 = vadd.f32 %v1357, %v2391
    %v2520 = vadd.f32 %v1358, %v2392
    %v2521 = vadd.f32 %v1359, %v2393
    %v2522 = vadd.f32 %v1360, %v2394
    %v2523 = vadd.f32 %v1361, %v2395
    %v2524 = vadd.f32 %v1362, %v2396
    %v2525 = vadd.f32 %v1363, %v2397
    %v2526 = vadd.f32 %v1364, %v2398
    %v2527 = vadd.f32 %v1365, %v2399
    %v2528 = vadd.f32 %v1366, %v2400
    %v2529 = vadd.f32 %v1367, %v2401
    %v2530 = vadd.f32 %v1368, %v2402
    %v2531 = vadd.f32 %v1369, %v2403
    %v2532 = vadd.f32 %v1370, %v2404
    %v2533 = vadd.f32 %v1371, %v2405
    %v2534 = vadd.f32 %v1372, %v2406
    %v2535 = vadd.f32 %v1373, %v2407
    %v2536 = vadd.f32 %v1374, %v2408
    %v2537 = vadd.f32 %v1375, %v2409
    %v2538 = vadd.f32 %v1376, %v2410
    %v2539 = vadd.f32 %v1377, %v2411
    %v2540 = vadd.f32 %v1378, %v2412
    %v2541 = vadd.f32 %v1379, %v2413
    %v2542 = vadd.f32 %v1380, %v2414
    %v2543 = vadd.f32 %v1381, %v2415
    %v2544 = vadd.f32 %v1382, %v2416
    %v2545 = vadd.f32 %v1383, %v2417
    %v2546 = vadd.f32 %v1384, %v2418
    %v2547 = vadd.f32 %v1385, %v2419
    %v2548 = vadd.f32 %v1386, %v2420
    %v2549 = vadd.f32 %v1387, %v2421
    %v2550 = vadd.f32 %v1388, %v2422
    %v2551 = vadd.f32 %v1389, %v2423
    %v2552 = vadd.f32 %v1390, %v2424
    %v2553 = vadd.f32 %v1391, %v2425
    %v2554 = vadd.f32 %v1392, %v2426
    %v2555 = vadd.f32 %v1393, %v2427
    %v2556 = vadd.f32 %v1394, %v2428
    %v2557 = vadd.f32 %v1395, %v2429
    %v2558 = vadd.f32 %v1396, %v2430
    %v2559 = vadd.f32 %v1397, %v2431
    %v2560 = vadd.f32 %v1398, %v2432
    %v2561 = vadd.f32 %v1399, %v2433
    %v2562 = vadd.f32 %v1400, %v2434
    %v2563 = vadd.f32 %v1401, %v2435
    %v2564 = vadd.f32 %v1402, %v2436
    %v2565 = vadd.f32 %v1403, %v2437
    %v2566 = vadd.f32 %v1404, %v2438
    %v2567 = vadd.f32 %v1405, %v2439
    %v2568 = vadd.f32 %v1406, %v2440
    %v2569 = vadd.f32 %v1407, %v2441
    %v2570 = vadd.f32 %v1408, %v2442
    %v2571 = vadd.f32 %v1409, %v2443
    %v2572 = vadd.f32 %v1410, %v2444
    %v2573 = vadd.f32 %v1411, %v2445
    %v2574 = vadd.f32 %v1412, %v2446
    %v2575 = vadd.f32 %v1413, %v2447
    %v2576 = vadd.f32 %v1414, %v2448
    %v2577 = vadd.f32 %v1415, %v2449
    %v2578 = vadd.f32 %v1416, %v2450
    %v2579 = vadd.f32 %v1417, %v2451
    %v2580 = vadd.f32 %v1418, %v2452
    %v2581 = vadd.f32 %v1419, %v2453
    %v2582 = vadd.f32 %v1420, %v2454
    %v2583 = vadd.f32 %v1421, %v2455
    %v2584 = vadd.f32 %v1422, %v2456
    %v2585 = vadd.f32 %v1423, %v2457
    %v2586 = vadd.f32 %v1424, %v2458
    %v2587 = vadd.f32 %v1425, %v2459
    %v2588 = vadd.f32 %v1426, %v2460
    %v2589 = vadd.f32 %v1427, %v2461
    %v2590 = vadd.f32 %v1428, %v2462
    %v2591 = vadd.f32 %v1429, %v2463
    %v2592 = vadd.f32 %v1430, %v2464
    %v2593 = vadd.f32 %v1431, %v2465
    %v2594 = vadd.f32 %v1432, %v2466
    %v2595 = vadd.f32 %v1433, %v2467
    %v2596 = vadd.f32 %v1434, %v2468
    %v2597 = vadd.f32 %v1435, %v2469
    %v2598 = vadd.f32 %v1436, %v2470
    %v2599 = vadd.f32 %v1437, %v2471
    %v2600 = vadd.f32 %v1438, %v2472
    %v2601 = vadd.f32 %v1439, %v2473
    %v2602 = vadd.f32 %v1440, %v2474
    %v2603 = vadd.f32 %v1441, %v2475
    %v2604 = vadd.f32 %v1442, %v2476
    %v2605 = vadd.f32 %v1443, %v2477
    %v2606 = vadd.f32 %v1444, %v2478
    %v2607 = vadd.f32 %v1445, %v2479
    %v2608 = vadd.f32 %v1446, %v2480
    %v2609 = vadd.f32 %v1447, %v2481
    %v2610 = vadd.f32 %v1448, %v2482
    %v2611 = vadd.f32 %v1449, %v2483
    %v2612 = vadd.f32 %v1450, %v2484
    %v2613 = vadd.f32 %v1451, %v2485
    %v2614 = vadd.f32 %v1452, %v2486
    %v2615 = vadd.f32 %v1453, %v2487
    %v2616 = vadd.f32 %v1454, %v2488
    %v2617 = vadd.f32 %v1455, %v2489
    %v2618 = vadd.f32 %v1456, %v2490
    %v2619 = vadd.f32 %v1457, %v2491
    %v2620 = vadd.f32 %v1458, %v2492
    %v2621 = vadd.f32 %v1459, %v2493
    %v2622 = vadd.f32 %v1460, %v2494
    %v2623 = vadd.f32 %v1461, %v2495
    %v2624 = vadd.f32 %v1462, %v2496
    %v2625 = vadd.f32 %v1463, %v2497
    %v2626 = vadd.f32 %v1464, %v2498
    %v2627 = vadd.f32 %v1465, %v2499
    %v2628 = vadd.f32 %v1466, %v2500
    %v2629 = vadd.f32 %v1467, %v2501
    %v2630 = vadd.f32 %v1468, %v2502
    %v2631 = vadd.f32 %v1469, %v2503
    %s2632 = scalar_lea.vmem %s1, 64
    %v2633 = vld [vmem:[%s2632] sm:$0xff]
    %v2634 = vld [vmem:[%s2632 + $0x8] sm:$0xff]
    %v2635 = vld [vmem:[%s2632 + $0x10] sm:$0xff]
    %v2636 = vld [vmem:[%s2632 + $0x18] sm:$0xff]
    %s2637 = scalar_lea.vmem %s2, 64
    %v2638 = vld [vmem:[%s2637] sm:$0xff]
    %v2639 = vld [vmem:[%s2637 + $0x8] sm:$0xff]
    %v2640 = vld [vmem:[%s2637 + $0x10] sm:$0xff]
    %v2641 = vld [vmem:[%s2637 + $0x18] sm:$0xff]
    %2643 = vset.pattern.permute.xlu0 0
    %2644 = vperm.xlu0 %2643, %v2633
    %v2645 = vpop.permute.xlu0 %2644
    %2648 = vset.pattern.permute.xlu0 0
    %2649 = vperm.xlu0 %2648, %v2634
    %v2650 = vpop.permute.xlu0 %2649
    %2653 = vset.pattern.permute.xlu0 0
    %2654 = vperm.xlu0 %2653, %v2635
    %v2655 = vpop.permute.xlu0 %2654
    %2658 = vset.pattern.permute.xlu0 0
    %2659 = vperm.xlu0 %2658, %v2636
    %v2660 = vpop.permute.xlu0 %2659
    %v2662 = vmul.f32 %v2645, %v253
    %v2663 = vmul.f32 %v2645, %v257
    %v2664 = vmul.f32 %v2645, %v261
    %v2665 = vmul.f32 %v2645, %v265
    %v2666 = vmul.f32 %v2645, %v269
    %v2667 = vmul.f32 %v2645, %v273
    %v2668 = vmul.f32 %v2645, %v277
    %v2669 = vmul.f32 %v2645, %v281
    %v2670 = vmul.f32 %v2645, %v285
    %v2671 = vmul.f32 %v2645, %v289
    %v2672 = vmul.f32 %v2645, %v293
    %v2673 = vmul.f32 %v2645, %v297
    %v2674 = vmul.f32 %v2645, %v301
    %v2675 = vmul.f32 %v2645, %v305
    %v2676 = vmul.f32 %v2645, %v309
    %v2677 = vmul.f32 %v2645, %v313
    %v2678 = vmul.f32 %v2645, %v317
    %v2679 = vmul.f32 %v2645, %v321
    %v2680 = vmul.f32 %v2645, %v325
    %v2681 = vmul.f32 %v2645, %v329
    %v2682 = vmul.f32 %v2645, %v333
    %v2683 = vmul.f32 %v2645, %v337
    %v2684 = vmul.f32 %v2645, %v341
    %v2685 = vmul.f32 %v2645, %v345
    %v2686 = vmul.f32 %v2645, %v349
    %v2687 = vmul.f32 %v2645, %v353
    %v2688 = vmul.f32 %v2645, %v357
    %v2689 = vmul.f32 %v2645, %v361
    %v2690 = vmul.f32 %v2645, %v365
    %v2691 = vmul.f32 %v2645, %v369
    %v2692 = vmul.f32 %v2645, %v373
    %v2693 = vmul.f32 %v2645, %v377
    %v2694 = vmul.f32 %v2650, %v253
    %v2695 = vmul.f32 %v2650, %v257
    %v2696 = vmul.f32 %v2650, %v261
    %v2697 = vmul.f32 %v2650, %v265
    %v2698 = vmul.f32 %v2650, %v269
    %v2699 = vmul.f32 %v2650, %v273
    %v2700 = vmul.f32 %v2650, %v277
    %v2701 = vmul.f32 %v2650, %v281
    %v2702 = vmul.f32 %v2650, %v285
    %v2703 = vmul.f32 %v2650, %v289
    %v2704 = vmul.f32 %v2650, %v293
    %v2705 = vmul.f32 %v2650, %v297
    %v2706 = vmul.f32 %v2650, %v301
    %v2707 = vmul.f32 %v2650, %v305
    %v2708 = vmul.f32 %v2650, %v309
    %v2709 = vmul.f32 %v2650, %v313
    %v2710 = vmul.f32 %v2650, %v317
    %v2711 = vmul.f32 %v2650, %v321
    %v2712 = vmul.f32 %v2650, %v325
    %v2713 = vmul.f32 %v2650, %v329
    %v2714 = vmul.f32 %v2650, %v333
    %v2715 = vmul.f32 %v2650, %v337
    %v2716 = vmul.f32 %v2650, %v341
    %v2717 = vmul.f32 %v2650, %v345
    %v2718 = vmul.f32 %v2650, %v349
    %v2719 = vmul.f32 %v2650, %v353
    %v2720 = vmul.f32 %v2650, %v357
    %v2721 = vmul.f32 %v2650, %v361
    %v2722 = vmul.f32 %v2650, %v365
    %v2723 = vmul.f32 %v2650, %v369
    %v2724 = vmul.f32 %v2650, %v373
    %v2725 = vmul.f32 %v2650, %v377
    %v2726 = vmul.f32 %v2655, %v253
    %v2727 = vmul.f32 %v2655, %v257
    %v2728 = vmul.f32 %v2655, %v261
    %v2729 = vmul.f32 %v2655, %v265
    %v2730 = vmul.f32 %v2655, %v269
    %v2731 = vmul.f32 %v2655, %v273
    %v2732 = vmul.f32 %v2655, %v277
    %v2733 = vmul.f32 %v2655, %v281
    %v2734 = vmul.f32 %v2655, %v285
    %v2735 = vmul.f32 %v2655, %v289
    %v2736 = vmul.f32 %v2655, %v293
    %v2737 = vmul.f32 %v2655, %v297
    %v2738 = vmul.f32 %v2655, %v301
    %v2739 = vmul.f32 %v2655, %v305
    %v2740 = vmul.f32 %v2655, %v309
    %v2741 = vmul.f32 %v2655, %v313
    %v2742 = vmul.f32 %v2655, %v317
    %v2743 = vmul.f32 %v2655, %v321
    %v2744 = vmul.f32 %v2655, %v325
    %v2745 = vmul.f32 %v2655, %v329
    %v2746 = vmul.f32 %v2655, %v333
    %v2747 = vmul.f32 %v2655, %v337
    %v2748 = vmul.f32 %v2655, %v341
    %v2749 = vmul.f32 %v2655, %v345
    %v2750 = vmul.f32 %v2655, %v349
    %v2751 = vmul.f32 %v2655, %v353
    %v2752 = vmul.f32 %v2655, %v357
    %v2753 = vmul.f32 %v2655, %v361
    %v2754 = vmul.f32 %v2655, %v365
    %v2755 = vmul.f32 %v2655, %v369
    %v2756 = vmul.f32 %v2655, %v373
    %v2757 = vmul.f32 %v2655, %v377
    %v2758 = vmul.f32 %v2660, %v253
    %v2759 = vmul.f32 %v2660, %v257
    %v2760 = vmul.f32 %v2660, %v261
    %v2761 = vmul.f32 %v2660, %v265
    %v2762 = vmul.f32 %v2660, %v269
    %v2763 = vmul.f32 %v2660, %v273
    %v2764 = vmul.f32 %v2660, %v277
    %v2765 = vmul.f32 %v2660, %v281
    %v2766 = vmul.f32 %v2660, %v285
    %v2767 = vmul.f32 %v2660, %v289
    %v2768 = vmul.f32 %v2660, %v293
    %v2769 = vmul.f32 %v2660, %v297
    %v2770 = vmul.f32 %v2660, %v301
    %v2771 = vmul.f32 %v2660, %v305
    %v2772 = vmul.f32 %v2660, %v309
    %v2773 = vmul.f32 %v2660, %v313
    %v2774 = vmul.f32 %v2660, %v317
    %v2775 = vmul.f32 %v2660, %v321
    %v2776 = vmul.f32 %v2660, %v325
    %v2777 = vmul.f32 %v2660, %v329
    %v2778 = vmul.f32 %v2660, %v333
    %v2779 = vmul.f32 %v2660, %v337
    %v2780 = vmul.f32 %v2660, %v341
    %v2781 = vmul.f32 %v2660, %v345
    %v2782 = vmul.f32 %v2660, %v349
    %v2783 = vmul.f32 %v2660, %v353
    %v2784 = vmul.f32 %v2660, %v357
    %v2785 = vmul.f32 %v2660, %v361
    %v2786 = vmul.f32 %v2660, %v365
    %v2787 = vmul.f32 %v2660, %v369
    %v2788 = vmul.f32 %v2660, %v373
    %v2789 = vmul.f32 %v2660, %v377
    %2790 = vset.pattern.permute.xlu0 1
    %2791 = vperm.xlu0 %2790, %v2633
    %v2792 = vpop.permute.xlu0 %2791
    %2794 = vset.pattern.permute.xlu0 1
    %2795 = vperm.xlu0 %2794, %v2634
    %v2796 = vpop.permute.xlu0 %2795
    %2798 = vset.pattern.permute.xlu0 1
    %2799 = vperm.xlu0 %2798, %v2635
    %v2800 = vpop.permute.xlu0 %2799
    %2802 = vset.pattern.permute.xlu0 1
    %2803 = vperm.xlu0 %2802, %v2636
    %v2804 = vpop.permute.xlu0 %2803
    %v2806 = vlaneseq
    %v2807 = vshrl.u32 %v2806, 7
    %v2808 = vsub.s32 3, %v2807
    %v2809 = vrot.slane %v1478, %v2808
    %v2810 = vlaneseq
    %v2811 = vshrl.u32 %v2810, 7
    %v2812 = vsub.s32 7, %v2811
    %v2813 = vrot.slane %v1478, %v2812
    %v2814 = vlaneseq
    %v2815 = vshrl.u32 %v2814, 7
    %v2816 = vsub.s32 3, %v2815
    %v2817 = vrot.slane %v1479, %v2816
    %v2818 = vlaneseq
    %v2819 = vshrl.u32 %v2818, 7
    %v2820 = vsub.s32 7, %v2819
    %v2821 = vrot.slane %v1479, %v2820
    %v2822 = vlaneseq
    %v2823 = vshrl.u32 %v2822, 7
    %v2824 = vsub.s32 3, %v2823
    %v2825 = vrot.slane %v1480, %v2824
    %v2826 = vlaneseq
    %v2827 = vshrl.u32 %v2826, 7
    %v2828 = vsub.s32 7, %v2827
    %v2829 = vrot.slane %v1480, %v2828
    %v2830 = vlaneseq
    %v2831 = vshrl.u32 %v2830, 7
    %v2832 = vsub.s32 3, %v2831
    %v2833 = vrot.slane %v1481, %v2832
    %v2834 = vlaneseq
    %v2835 = vshrl.u32 %v2834, 7
    %v2836 = vsub.s32 7, %v2835
    %v2837 = vrot.slane %v1481, %v2836
    %v2838 = vlaneseq
    %v2839 = vshrl.u32 %v2838, 7
    %v2840 = vsub.s32 3, %v2839
    %v2841 = vrot.slane %v1482, %v2840
    %v2842 = vlaneseq
    %v2843 = vshrl.u32 %v2842, 7
    %v2844 = vsub.s32 7, %v2843
    %v2845 = vrot.slane %v1482, %v2844
    %v2846 = vlaneseq
    %v2847 = vshrl.u32 %v2846, 7
    %v2848 = vsub.s32 3, %v2847
    %v2849 = vrot.slane %v1483, %v2848
    %v2850 = vlaneseq
    %v2851 = vshrl.u32 %v2850, 7
    %v2852 = vsub.s32 7, %v2851
    %v2853 = vrot.slane %v1483, %v2852
    %v2854 = vlaneseq
    %v2855 = vshrl.u32 %v2854, 7
    %v2856 = vsub.s32 3, %v2855
    %v2857 = vrot.slane %v1484, %v2856
    %v2858 = vlaneseq
    %v2859 = vshrl.u32 %v2858, 7
    %v2860 = vsub.s32 7, %v2859
    %v2861 = vrot.slane %v1484, %v2860
    %v2862 = vlaneseq
    %v2863 = vshrl.u32 %v2862, 7
    %v2864 = vsub.s32 3, %v2863
    %v2865 = vrot.slane %v1485, %v2864
    %v2866 = vlaneseq
    %v2867 = vshrl.u32 %v2866, 7
    %v2868 = vsub.s32 7, %v2867
    %v2869 = vrot.slane %v1485, %v2868
    %v2870 = vlaneseq
    %v2871 = vshrl.u32 %v2870, 7
    %v2872 = vsub.s32 3, %v2871
    %v2873 = vrot.slane %v1486, %v2872
    %v2874 = vlaneseq
    %v2875 = vshrl.u32 %v2874, 7
    %v2876 = vsub.s32 7, %v2875
    %v2877 = vrot.slane %v1486, %v2876
    %v2878 = vlaneseq
    %v2879 = vshrl.u32 %v2878, 7
    %v2880 = vsub.s32 3, %v2879
    %v2881 = vrot.slane %v1487, %v2880
    %v2882 = vlaneseq
    %v2883 = vshrl.u32 %v2882, 7
    %v2884 = vsub.s32 7, %v2883
    %v2885 = vrot.slane %v1487, %v2884
    %v2886 = vlaneseq
    %v2887 = vshrl.u32 %v2886, 7
    %v2888 = vsub.s32 3, %v2887
    %v2889 = vrot.slane %v1488, %v2888
    %v2890 = vlaneseq
    %v2891 = vshrl.u32 %v2890, 7
    %v2892 = vsub.s32 7, %v2891
    %v2893 = vrot.slane %v1488, %v2892
    %v2894 = vlaneseq
    %v2895 = vshrl.u32 %v2894, 7
    %v2896 = vsub.s32 3, %v2895
    %v2897 = vrot.slane %v1489, %v2896
    %v2898 = vlaneseq
    %v2899 = vshrl.u32 %v2898, 7
    %v2900 = vsub.s32 7, %v2899
    %v2901 = vrot.slane %v1489, %v2900
    %v2902 = vlaneseq
    %v2903 = vshrl.u32 %v2902, 7
    %v2904 = vsub.s32 3, %v2903
    %v2905 = vrot.slane %v1490, %v2904
    %v2906 = vlaneseq
    %v2907 = vshrl.u32 %v2906, 7
    %v2908 = vsub.s32 7, %v2907
    %v2909 = vrot.slane %v1490, %v2908
    %v2910 = vlaneseq
    %v2911 = vshrl.u32 %v2910, 7
    %v2912 = vsub.s32 3, %v2911
    %v2913 = vrot.slane %v1491, %v2912
    %v2914 = vlaneseq
    %v2915 = vshrl.u32 %v2914, 7
    %v2916 = vsub.s32 7, %v2915
    %v2917 = vrot.slane %v1491, %v2916
    %v2918 = vlaneseq
    %v2919 = vshrl.u32 %v2918, 7
    %v2920 = vsub.s32 3, %v2919
    %v2921 = vrot.slane %v1492, %v2920
    %v2922 = vlaneseq
    %v2923 = vshrl.u32 %v2922, 7
    %v2924 = vsub.s32 7, %v2923
    %v2925 = vrot.slane %v1492, %v2924
    %v2926 = vlaneseq
    %v2927 = vshrl.u32 %v2926, 7
    %v2928 = vsub.s32 3, %v2927
    %v2929 = vrot.slane %v1493, %v2928
    %v2930 = vlaneseq
    %v2931 = vshrl.u32 %v2930, 7
    %v2932 = vsub.s32 7, %v2931
    %v2933 = vrot.slane %v1493, %v2932
    %v2966 = vlaneseq
    %v2967 = vshrl.u32 %v2966, 7
    %v2968 = vsub.s32 3, %v2967
    %v2969 = vrot.slane %v2809, %v2968
    %v2970 = vlaneseq
    %v2971 = vshrl.u32 %v2970, 7
    %v2972 = vsub.s32 3, %v2971
    %v2973 = vrot.slane %v2813, %v2972
    %v2974 = vlaneseq
    %v2975 = vshrl.u32 %v2974, 7
    %v2976 = vsub.s32 3, %v2975
    %v2977 = vrot.slane %v2817, %v2976
    %v2978 = vlaneseq
    %v2979 = vshrl.u32 %v2978, 7
    %v2980 = vsub.s32 3, %v2979
    %v2981 = vrot.slane %v2821, %v2980
    %v2982 = vlaneseq
    %v2983 = vshrl.u32 %v2982, 7
    %v2984 = vsub.s32 3, %v2983
    %v2985 = vrot.slane %v2825, %v2984
    %v2986 = vlaneseq
    %v2987 = vshrl.u32 %v2986, 7
    %v2988 = vsub.s32 3, %v2987
    %v2989 = vrot.slane %v2829, %v2988
    %v2990 = vlaneseq
    %v2991 = vshrl.u32 %v2990, 7
    %v2992 = vsub.s32 3, %v2991
    %v2993 = vrot.slane %v2833, %v2992
    %v2994 = vlaneseq
    %v2995 = vshrl.u32 %v2994, 7
    %v2996 = vsub.s32 3, %v2995
    %v2997 = vrot.slane %v2837, %v2996
    %v2998 = vlaneseq
    %v2999 = vshrl.u32 %v2998, 7
    %v3000 = vsub.s32 3, %v2999
    %v3001 = vrot.slane %v2841, %v3000
    %v3002 = vlaneseq
    %v3003 = vshrl.u32 %v3002, 7
    %v3004 = vsub.s32 3, %v3003
    %v3005 = vrot.slane %v2845, %v3004
    %v3006 = vlaneseq
    %v3007 = vshrl.u32 %v3006, 7
    %v3008 = vsub.s32 3, %v3007
    %v3009 = vrot.slane %v2849, %v3008
    %v3010 = vlaneseq
    %v3011 = vshrl.u32 %v3010, 7
    %v3012 = vsub.s32 3, %v3011
    %v3013 = vrot.slane %v2853, %v3012
    %v3014 = vlaneseq
    %v3015 = vshrl.u32 %v3014, 7
    %v3016 = vsub.s32 3, %v3015
    %v3017 = vrot.slane %v2857, %v3016
    %v3018 = vlaneseq
    %v3019 = vshrl.u32 %v3018, 7
    %v3020 = vsub.s32 3, %v3019
    %v3021 = vrot.slane %v2861, %v3020
    %v3022 = vlaneseq
    %v3023 = vshrl.u32 %v3022, 7
    %v3024 = vsub.s32 3, %v3023
    %v3025 = vrot.slane %v2865, %v3024
    %v3026 = vlaneseq
    %v3027 = vshrl.u32 %v3026, 7
    %v3028 = vsub.s32 3, %v3027
    %v3029 = vrot.slane %v2869, %v3028
    %v3030 = vlaneseq
    %v3031 = vshrl.u32 %v3030, 7
    %v3032 = vsub.s32 3, %v3031
    %v3033 = vrot.slane %v2873, %v3032
    %v3034 = vlaneseq
    %v3035 = vshrl.u32 %v3034, 7
    %v3036 = vsub.s32 3, %v3035
    %v3037 = vrot.slane %v2877, %v3036
    %v3038 = vlaneseq
    %v3039 = vshrl.u32 %v3038, 7
    %v3040 = vsub.s32 3, %v3039
    %v3041 = vrot.slane %v2881, %v3040
    %v3042 = vlaneseq
    %v3043 = vshrl.u32 %v3042, 7
    %v3044 = vsub.s32 3, %v3043
    %v3045 = vrot.slane %v2885, %v3044
    %v3046 = vlaneseq
    %v3047 = vshrl.u32 %v3046, 7
    %v3048 = vsub.s32 3, %v3047
    %v3049 = vrot.slane %v2889, %v3048
    %v3050 = vlaneseq
    %v3051 = vshrl.u32 %v3050, 7
    %v3052 = vsub.s32 3, %v3051
    %v3053 = vrot.slane %v2893, %v3052
    %v3054 = vlaneseq
    %v3055 = vshrl.u32 %v3054, 7
    %v3056 = vsub.s32 3, %v3055
    %v3057 = vrot.slane %v2897, %v3056
    %v3058 = vlaneseq
    %v3059 = vshrl.u32 %v3058, 7
    %v3060 = vsub.s32 3, %v3059
    %v3061 = vrot.slane %v2901, %v3060
    %v3062 = vlaneseq
    %v3063 = vshrl.u32 %v3062, 7
    %v3064 = vsub.s32 3, %v3063
    %v3065 = vrot.slane %v2905, %v3064
    %v3066 = vlaneseq
    %v3067 = vshrl.u32 %v3066, 7
    %v3068 = vsub.s32 3, %v3067
    %v3069 = vrot.slane %v2909, %v3068
    %v3070 = vlaneseq
    %v3071 = vshrl.u32 %v3070, 7
    %v3072 = vsub.s32 3, %v3071
    %v3073 = vrot.slane %v2913, %v3072
    %v3074 = vlaneseq
    %v3075 = vshrl.u32 %v3074, 7
    %v3076 = vsub.s32 3, %v3075
    %v3077 = vrot.slane %v2917, %v3076
    %v3078 = vlaneseq
    %v3079 = vshrl.u32 %v3078, 7
    %v3080 = vsub.s32 3, %v3079
    %v3081 = vrot.slane %v2921, %v3080
    %v3082 = vlaneseq
    %v3083 = vshrl.u32 %v3082, 7
    %v3084 = vsub.s32 3, %v3083
    %v3085 = vrot.slane %v2925, %v3084
    %v3086 = vlaneseq
    %v3087 = vshrl.u32 %v3086, 7
    %v3088 = vsub.s32 3, %v3087
    %v3089 = vrot.slane %v2929, %v3088
    %v3090 = vlaneseq
    %v3091 = vshrl.u32 %v3090, 7
    %v3092 = vsub.s32 3, %v3091
    %v3093 = vrot.slane %v2933, %v3092
    %v3094 = vmul.f32 %v2792, %v2969
    %v3095 = vmul.f32 %v2792, %v2973
    %v3096 = vmul.f32 %v2792, %v2977
    %v3097 = vmul.f32 %v2792, %v2981
    %v3098 = vmul.f32 %v2792, %v2985
    %v3099 = vmul.f32 %v2792, %v2989
    %v3100 = vmul.f32 %v2792, %v2993
    %v3101 = vmul.f32 %v2792, %v2997
    %v3102 = vmul.f32 %v2792, %v3001
    %v3103 = vmul.f32 %v2792, %v3005
    %v3104 = vmul.f32 %v2792, %v3009
    %v3105 = vmul.f32 %v2792, %v3013
    %v3106 = vmul.f32 %v2792, %v3017
    %v3107 = vmul.f32 %v2792, %v3021
    %v3108 = vmul.f32 %v2792, %v3025
    %v3109 = vmul.f32 %v2792, %v3029
    %v3110 = vmul.f32 %v2792, %v3033
    %v3111 = vmul.f32 %v2792, %v3037
    %v3112 = vmul.f32 %v2792, %v3041
    %v3113 = vmul.f32 %v2792, %v3045
    %v3114 = vmul.f32 %v2792, %v3049
    %v3115 = vmul.f32 %v2792, %v3053
    %v3116 = vmul.f32 %v2792, %v3057
    %v3117 = vmul.f32 %v2792, %v3061
    %v3118 = vmul.f32 %v2792, %v3065
    %v3119 = vmul.f32 %v2792, %v3069
    %v3120 = vmul.f32 %v2792, %v3073
    %v3121 = vmul.f32 %v2792, %v3077
    %v3122 = vmul.f32 %v2792, %v3081
    %v3123 = vmul.f32 %v2792, %v3085
    %v3124 = vmul.f32 %v2792, %v3089
    %v3125 = vmul.f32 %v2792, %v3093
    %v3126 = vmul.f32 %v2796, %v2969
    %v3127 = vmul.f32 %v2796, %v2973
    %v3128 = vmul.f32 %v2796, %v2977
    %v3129 = vmul.f32 %v2796, %v2981
    %v3130 = vmul.f32 %v2796, %v2985
    %v3131 = vmul.f32 %v2796, %v2989
    %v3132 = vmul.f32 %v2796, %v2993
    %v3133 = vmul.f32 %v2796, %v2997
    %v3134 = vmul.f32 %v2796, %v3001
    %v3135 = vmul.f32 %v2796, %v3005
    %v3136 = vmul.f32 %v2796, %v3009
    %v3137 = vmul.f32 %v2796, %v3013
    %v3138 = vmul.f32 %v2796, %v3017
    %v3139 = vmul.f32 %v2796, %v3021
    %v3140 = vmul.f32 %v2796, %v3025
    %v3141 = vmul.f32 %v2796, %v3029
    %v3142 = vmul.f32 %v2796, %v3033
    %v3143 = vmul.f32 %v2796, %v3037
    %v3144 = vmul.f32 %v2796, %v3041
    %v3145 = vmul.f32 %v2796, %v3045
    %v3146 = vmul.f32 %v2796, %v3049
    %v3147 = vmul.f32 %v2796, %v3053
    %v3148 = vmul.f32 %v2796, %v3057
    %v3149 = vmul.f32 %v2796, %v3061
    %v3150 = vmul.f32 %v2796, %v3065
    %v3151 = vmul.f32 %v2796, %v3069
    %v3152 = vmul.f32 %v2796, %v3073
    %v3153 = vmul.f32 %v2796, %v3077
    %v3154 = vmul.f32 %v2796, %v3081
    %v3155 = vmul.f32 %v2796, %v3085
    %v3156 = vmul.f32 %v2796, %v3089
    %v3157 = vmul.f32 %v2796, %v3093
    %v3158 = vmul.f32 %v2800, %v2969
    %v3159 = vmul.f32 %v2800, %v2973
    %v3160 = vmul.f32 %v2800, %v2977
    %v3161 = vmul.f32 %v2800, %v2981
    %v3162 = vmul.f32 %v2800, %v2985
    %v3163 = vmul.f32 %v2800, %v2989
    %v3164 = vmul.f32 %v2800, %v2993
    %v3165 = vmul.f32 %v2800, %v2997
    %v3166 = vmul.f32 %v2800, %v3001
    %v3167 = vmul.f32 %v2800, %v3005
    %v3168 = vmul.f32 %v2800, %v3009
    %v3169 = vmul.f32 %v2800, %v3013
    %v3170 = vmul.f32 %v2800, %v3017
    %v3171 = vmul.f32 %v2800, %v3021
    %v3172 = vmul.f32 %v2800, %v3025
    %v3173 = vmul.f32 %v2800, %v3029
    %v3174 = vmul.f32 %v2800, %v3033
    %v3175 = vmul.f32 %v2800, %v3037
    %v3176 = vmul.f32 %v2800, %v3041
    %v3177 = vmul.f32 %v2800, %v3045
    %v3178 = vmul.f32 %v2800, %v3049
    %v3179 = vmul.f32 %v2800, %v3053
    %v3180 = vmul.f32 %v2800, %v3057
    %v3181 = vmul.f32 %v2800, %v3061
    %v3182 = vmul.f32 %v2800, %v3065
    %v3183 = vmul.f32 %v2800, %v3069
    %v3184 = vmul.f32 %v2800, %v3073
    %v3185 = vmul.f32 %v2800, %v3077
    %v3186 = vmul.f32 %v2800, %v3081
    %v3187 = vmul.f32 %v2800, %v3085
    %v3188 = vmul.f32 %v2800, %v3089
    %v3189 = vmul.f32 %v2800, %v3093
    %v3190 = vmul.f32 %v2804, %v2969
    %v3191 = vmul.f32 %v2804, %v2973
    %v3192 = vmul.f32 %v2804, %v2977
    %v3193 = vmul.f32 %v2804, %v2981
    %v3194 = vmul.f32 %v2804, %v2985
    %v3195 = vmul.f32 %v2804, %v2989
    %v3196 = vmul.f32 %v2804, %v2993
    %v3197 = vmul.f32 %v2804, %v2997
    %v3198 = vmul.f32 %v2804, %v3001
    %v3199 = vmul.f32 %v2804, %v3005
    %v3200 = vmul.f32 %v2804, %v3009
    %v3201 = vmul.f32 %v2804, %v3013
    %v3202 = vmul.f32 %v2804, %v3017
    %v3203 = vmul.f32 %v2804, %v3021
    %v3204 = vmul.f32 %v2804, %v3025
    %v3205 = vmul.f32 %v2804, %v3029
    %v3206 = vmul.f32 %v2804, %v3033
    %v3207 = vmul.f32 %v2804, %v3037
    %v3208 = vmul.f32 %v2804, %v3041
    %v3209 = vmul.f32 %v2804, %v3045
    %v3210 = vmul.f32 %v2804, %v3049
    %v3211 = vmul.f32 %v2804, %v3053
    %v3212 = vmul.f32 %v2804, %v3057
    %v3213 = vmul.f32 %v2804, %v3061
    %v3214 = vmul.f32 %v2804, %v3065
    %v3215 = vmul.f32 %v2804, %v3069
    %v3216 = vmul.f32 %v2804, %v3073
    %v3217 = vmul.f32 %v2804, %v3077
    %v3218 = vmul.f32 %v2804, %v3081
    %v3219 = vmul.f32 %v2804, %v3085
    %v3220 = vmul.f32 %v2804, %v3089
    %v3221 = vmul.f32 %v2804, %v3093
    %v3222 = vadd.f32 %v2662, %v3094
    %v3223 = vadd.f32 %v2663, %v3095
    %v3224 = vadd.f32 %v2664, %v3096
    %v3225 = vadd.f32 %v2665, %v3097
    %v3226 = vadd.f32 %v2666, %v3098
    %v3227 = vadd.f32 %v2667, %v3099
    %v3228 = vadd.f32 %v2668, %v3100
    %v3229 = vadd.f32 %v2669, %v3101
    %v3230 = vadd.f32 %v2670, %v3102
    %v3231 = vadd.f32 %v2671, %v3103
    %v3232 = vadd.f32 %v2672, %v3104
    %v3233 = vadd.f32 %v2673, %v3105
    %v3234 = vadd.f32 %v2674, %v3106
    %v3235 = vadd.f32 %v2675, %v3107
    %v3236 = vadd.f32 %v2676, %v3108
    %v3237 = vadd.f32 %v2677, %v3109
    %v3238 = vadd.f32 %v2678, %v3110
    %v3239 = vadd.f32 %v2679, %v3111
    %v3240 = vadd.f32 %v2680, %v3112
    %v3241 = vadd.f32 %v2681, %v3113
    %v3242 = vadd.f32 %v2682, %v3114
    %v3243 = vadd.f32 %v2683, %v3115
    %v3244 = vadd.f32 %v2684, %v3116
    %v3245 = vadd.f32 %v2685, %v3117
    %v3246 = vadd.f32 %v2686, %v3118
    %v3247 = vadd.f32 %v2687, %v3119
    %v3248 = vadd.f32 %v2688, %v3120
    %v3249 = vadd.f32 %v2689, %v3121
    %v3250 = vadd.f32 %v2690, %v3122
    %v3251 = vadd.f32 %v2691, %v3123
    %v3252 = vadd.f32 %v2692, %v3124
    %v3253 = vadd.f32 %v2693, %v3125
    %v3254 = vadd.f32 %v2694, %v3126
    %v3255 = vadd.f32 %v2695, %v3127
    %v3256 = vadd.f32 %v2696, %v3128
    %v3257 = vadd.f32 %v2697, %v3129
    %v3258 = vadd.f32 %v2698, %v3130
    %v3259 = vadd.f32 %v2699, %v3131
    %v3260 = vadd.f32 %v2700, %v3132
    %v3261 = vadd.f32 %v2701, %v3133
    %v3262 = vadd.f32 %v2702, %v3134
    %v3263 = vadd.f32 %v2703, %v3135
    %v3264 = vadd.f32 %v2704, %v3136
    %v3265 = vadd.f32 %v2705, %v3137
    %v3266 = vadd.f32 %v2706, %v3138
    %v3267 = vadd.f32 %v2707, %v3139
    %v3268 = vadd.f32 %v2708, %v3140
    %v3269 = vadd.f32 %v2709, %v3141
    %v3270 = vadd.f32 %v2710, %v3142
    %v3271 = vadd.f32 %v2711, %v3143
    %v3272 = vadd.f32 %v2712, %v3144
    %v3273 = vadd.f32 %v2713, %v3145
    %v3274 = vadd.f32 %v2714, %v3146
    %v3275 = vadd.f32 %v2715, %v3147
    %v3276 = vadd.f32 %v2716, %v3148
    %v3277 = vadd.f32 %v2717, %v3149
    %v3278 = vadd.f32 %v2718, %v3150
    %v3279 = vadd.f32 %v2719, %v3151
    %v3280 = vadd.f32 %v2720, %v3152
    %v3281 = vadd.f32 %v2721, %v3153
    %v3282 = vadd.f32 %v2722, %v3154
    %v3283 = vadd.f32 %v2723, %v3155
    %v3284 = vadd.f32 %v2724, %v3156
    %v3285 = vadd.f32 %v2725, %v3157
    %v3286 = vadd.f32 %v2726, %v3158
    %v3287 = vadd.f32 %v2727, %v3159
    %v3288 = vadd.f32 %v2728, %v3160
    %v3289 = vadd.f32 %v2729, %v3161
    %v3290 = vadd.f32 %v2730, %v3162
    %v3291 = vadd.f32 %v2731, %v3163
    %v3292 = vadd.f32 %v2732, %v3164
    %v3293 = vadd.f32 %v2733, %v3165
    %v3294 = vadd.f32 %v2734, %v3166
    %v3295 = vadd.f32 %v2735, %v3167
    %v3296 = vadd.f32 %v2736, %v3168
    %v3297 = vadd.f32 %v2737, %v3169
    %v3298 = vadd.f32 %v2738, %v3170
    %v3299 = vadd.f32 %v2739, %v3171
    %v3300 = vadd.f32 %v2740, %v3172
    %v3301 = vadd.f32 %v2741, %v3173
    %v3302 = vadd.f32 %v2742, %v3174
    %v3303 = vadd.f32 %v2743, %v3175
    %v3304 = vadd.f32 %v2744, %v3176
    %v3305 = vadd.f32 %v2745, %v3177
    %v3306 = vadd.f32 %v2746, %v3178
    %v3307 = vadd.f32 %v2747, %v3179
    %v3308 = vadd.f32 %v2748, %v3180
    %v3309 = vadd.f32 %v2749, %v3181
    %v3310 = vadd.f32 %v2750, %v3182
    %v3311 = vadd.f32 %v2751, %v3183
    %v3312 = vadd.f32 %v2752, %v3184
    %v3313 = vadd.f32 %v2753, %v3185
    %v3314 = vadd.f32 %v2754, %v3186
    %v3315 = vadd.f32 %v2755, %v3187
    %v3316 = vadd.f32 %v2756, %v3188
    %v3317 = vadd.f32 %v2757, %v3189
    %v3318 = vadd.f32 %v2758, %v3190
    %v3319 = vadd.f32 %v2759, %v3191
    %v3320 = vadd.f32 %v2760, %v3192
    %v3321 = vadd.f32 %v2761, %v3193
    %v3322 = vadd.f32 %v2762, %v3194
    %v3323 = vadd.f32 %v2763, %v3195
    %v3324 = vadd.f32 %v2764, %v3196
    %v3325 = vadd.f32 %v2765, %v3197
    %v3326 = vadd.f32 %v2766, %v3198
    %v3327 = vadd.f32 %v2767, %v3199
    %v3328 = vadd.f32 %v2768, %v3200
    %v3329 = vadd.f32 %v2769, %v3201
    %v3330 = vadd.f32 %v2770, %v3202
    %v3331 = vadd.f32 %v2771, %v3203
    %v3332 = vadd.f32 %v2772, %v3204
    %v3333 = vadd.f32 %v2773, %v3205
    %v3334 = vadd.f32 %v2774, %v3206
    %v3335 = vadd.f32 %v2775, %v3207
    %v3336 = vadd.f32 %v2776, %v3208
    %v3337 = vadd.f32 %v2777, %v3209
    %v3338 = vadd.f32 %v2778, %v3210
    %v3339 = vadd.f32 %v2779, %v3211
    %v3340 = vadd.f32 %v2780, %v3212
    %v3341 = vadd.f32 %v2781, %v3213
    %v3342 = vadd.f32 %v2782, %v3214
    %v3343 = vadd.f32 %v2783, %v3215
    %v3344 = vadd.f32 %v2784, %v3216
    %v3345 = vadd.f32 %v2785, %v3217
    %v3346 = vadd.f32 %v2786, %v3218
    %v3347 = vadd.f32 %v2787, %v3219
    %v3348 = vadd.f32 %v2788, %v3220
    %v3349 = vadd.f32 %v2789, %v3221
    %3351 = vset.pattern.permute.xlu0 0
    %3352 = vperm.xlu0 %3351, %v2638
    %v3353 = vpop.permute.xlu0 %3352
    %3356 = vset.pattern.permute.xlu0 0
    %3357 = vperm.xlu0 %3356, %v2639
    %v3358 = vpop.permute.xlu0 %3357
    %3361 = vset.pattern.permute.xlu0 0
    %3362 = vperm.xlu0 %3361, %v2640
    %v3363 = vpop.permute.xlu0 %3362
    %3366 = vset.pattern.permute.xlu0 0
    %3367 = vperm.xlu0 %3366, %v2641
    %v3368 = vpop.permute.xlu0 %3367
    %v3370 = vadd.f32 %v3222, %v3353
    %v3371 = vadd.f32 %v3223, %v3353
    %v3372 = vadd.f32 %v3224, %v3353
    %v3373 = vadd.f32 %v3225, %v3353
    %v3374 = vadd.f32 %v3226, %v3353
    %v3375 = vadd.f32 %v3227, %v3353
    %v3376 = vadd.f32 %v3228, %v3353
    %v3377 = vadd.f32 %v3229, %v3353
    %v3378 = vadd.f32 %v3230, %v3353
    %v3379 = vadd.f32 %v3231, %v3353
    %v3380 = vadd.f32 %v3232, %v3353
    %v3381 = vadd.f32 %v3233, %v3353
    %v3382 = vadd.f32 %v3234, %v3353
    %v3383 = vadd.f32 %v3235, %v3353
    %v3384 = vadd.f32 %v3236, %v3353
    %v3385 = vadd.f32 %v3237, %v3353
    %v3386 = vadd.f32 %v3238, %v3353
    %v3387 = vadd.f32 %v3239, %v3353
    %v3388 = vadd.f32 %v3240, %v3353
    %v3389 = vadd.f32 %v3241, %v3353
    %v3390 = vadd.f32 %v3242, %v3353
    %v3391 = vadd.f32 %v3243, %v3353
    %v3392 = vadd.f32 %v3244, %v3353
    %v3393 = vadd.f32 %v3245, %v3353
    %v3394 = vadd.f32 %v3246, %v3353
    %v3395 = vadd.f32 %v3247, %v3353
    %v3396 = vadd.f32 %v3248, %v3353
    %v3397 = vadd.f32 %v3249, %v3353
    %v3398 = vadd.f32 %v3250, %v3353
    %v3399 = vadd.f32 %v3251, %v3353
    %v3400 = vadd.f32 %v3252, %v3353
    %v3401 = vadd.f32 %v3253, %v3353
    %v3402 = vadd.f32 %v3254, %v3358
    %v3403 = vadd.f32 %v3255, %v3358
    %v3404 = vadd.f32 %v3256, %v3358
    %v3405 = vadd.f32 %v3257, %v3358
    %v3406 = vadd.f32 %v3258, %v3358
    %v3407 = vadd.f32 %v3259, %v3358
    %v3408 = vadd.f32 %v3260, %v3358
    %v3409 = vadd.f32 %v3261, %v3358
    %v3410 = vadd.f32 %v3262, %v3358
    %v3411 = vadd.f32 %v3263, %v3358
    %v3412 = vadd.f32 %v3264, %v3358
    %v3413 = vadd.f32 %v3265, %v3358
    %v3414 = vadd.f32 %v3266, %v3358
    %v3415 = vadd.f32 %v3267, %v3358
    %v3416 = vadd.f32 %v3268, %v3358
    %v3417 = vadd.f32 %v3269, %v3358
    %v3418 = vadd.f32 %v3270, %v3358
    %v3419 = vadd.f32 %v3271, %v3358
    %v3420 = vadd.f32 %v3272, %v3358
    %v3421 = vadd.f32 %v3273, %v3358
    %v3422 = vadd.f32 %v3274, %v3358
    %v3423 = vadd.f32 %v3275, %v3358
    %v3424 = vadd.f32 %v3276, %v3358
    %v3425 = vadd.f32 %v3277, %v3358
    %v3426 = vadd.f32 %v3278, %v3358
    %v3427 = vadd.f32 %v3279, %v3358
    %v3428 = vadd.f32 %v3280, %v3358
    %v3429 = vadd.f32 %v3281, %v3358
    %v3430 = vadd.f32 %v3282, %v3358
    %v3431 = vadd.f32 %v3283, %v3358
    %v3432 = vadd.f32 %v3284, %v3358
    %v3433 = vadd.f32 %v3285, %v3358
    %v3434 = vadd.f32 %v3286, %v3363
    %v3435 = vadd.f32 %v3287, %v3363
    %v3436 = vadd.f32 %v3288, %v3363
    %v3437 = vadd.f32 %v3289, %v3363
    %v3438 = vadd.f32 %v3290, %v3363
    %v3439 = vadd.f32 %v3291, %v3363
    %v3440 = vadd.f32 %v3292, %v3363
    %v3441 = vadd.f32 %v3293, %v3363
    %v3442 = vadd.f32 %v3294, %v3363
    %v3443 = vadd.f32 %v3295, %v3363
    %v3444 = vadd.f32 %v3296, %v3363
    %v3445 = vadd.f32 %v3297, %v3363
    %v3446 = vadd.f32 %v3298, %v3363
    %v3447 = vadd.f32 %v3299, %v3363
    %v3448 = vadd.f32 %v3300, %v3363
    %v3449 = vadd.f32 %v3301, %v3363
    %v3450 = vadd.f32 %v3302, %v3363
    %v3451 = vadd.f32 %v3303, %v3363
    %v3452 = vadd.f32 %v3304, %v3363
    %v3453 = vadd.f32 %v3305, %v3363
    %v3454 = vadd.f32 %v3306, %v3363
    %v3455 = vadd.f32 %v3307, %v3363
    %v3456 = vadd.f32 %v3308, %v3363
    %v3457 = vadd.f32 %v3309, %v3363
    %v3458 = vadd.f32 %v3310, %v3363
    %v3459 = vadd.f32 %v3311, %v3363
    %v3460 = vadd.f32 %v3312, %v3363
    %v3461 = vadd.f32 %v3313, %v3363
    %v3462 = vadd.f32 %v3314, %v3363
    %v3463 = vadd.f32 %v3315, %v3363
    %v3464 = vadd.f32 %v3316, %v3363
    %v3465 = vadd.f32 %v3317, %v3363
    %v3466 = vadd.f32 %v3318, %v3368
    %v3467 = vadd.f32 %v3319, %v3368
    %v3468 = vadd.f32 %v3320, %v3368
    %v3469 = vadd.f32 %v3321, %v3368
    %v3470 = vadd.f32 %v3322, %v3368
    %v3471 = vadd.f32 %v3323, %v3368
    %v3472 = vadd.f32 %v3324, %v3368
    %v3473 = vadd.f32 %v3325, %v3368
    %v3474 = vadd.f32 %v3326, %v3368
    %v3475 = vadd.f32 %v3327, %v3368
    %v3476 = vadd.f32 %v3328, %v3368
    %v3477 = vadd.f32 %v3329, %v3368
    %v3478 = vadd.f32 %v3330, %v3368
    %v3479 = vadd.f32 %v3331, %v3368
    %v3480 = vadd.f32 %v3332, %v3368
    %v3481 = vadd.f32 %v3333, %v3368
    %v3482 = vadd.f32 %v3334, %v3368
    %v3483 = vadd.f32 %v3335, %v3368
    %v3484 = vadd.f32 %v3336, %v3368
    %v3485 = vadd.f32 %v3337, %v3368
    %v3486 = vadd.f32 %v3338, %v3368
    %v3487 = vadd.f32 %v3339, %v3368
    %v3488 = vadd.f32 %v3340, %v3368
    %v3489 = vadd.f32 %v3341, %v3368
    %v3490 = vadd.f32 %v3342, %v3368
    %v3491 = vadd.f32 %v3343, %v3368
    %v3492 = vadd.f32 %v3344, %v3368
    %v3493 = vadd.f32 %v3345, %v3368
    %v3494 = vadd.f32 %v3346, %v3368
    %v3495 = vadd.f32 %v3347, %v3368
    %v3496 = vadd.f32 %v3348, %v3368
    %v3497 = vadd.f32 %v3349, %v3368
    %v3498 = vmax.f32 %v3370, 0.0
    %v3499 = vmax.f32 %v3371, 0.0
    %v3500 = vmax.f32 %v3372, 0.0
    %v3501 = vmax.f32 %v3373, 0.0
    %v3502 = vmax.f32 %v3374, 0.0
    %v3503 = vmax.f32 %v3375, 0.0
    %v3504 = vmax.f32 %v3376, 0.0
    %v3505 = vmax.f32 %v3377, 0.0
    %v3506 = vmax.f32 %v3378, 0.0
    %v3507 = vmax.f32 %v3379, 0.0
    %v3508 = vmax.f32 %v3380, 0.0
    %v3509 = vmax.f32 %v3381, 0.0
    %v3510 = vmax.f32 %v3382, 0.0
    %v3511 = vmax.f32 %v3383, 0.0
    %v3512 = vmax.f32 %v3384, 0.0
    %v3513 = vmax.f32 %v3385, 0.0
    %v3514 = vmax.f32 %v3386, 0.0
    %v3515 = vmax.f32 %v3387, 0.0
    %v3516 = vmax.f32 %v3388, 0.0
    %v3517 = vmax.f32 %v3389, 0.0
    %v3518 = vmax.f32 %v3390, 0.0
    %v3519 = vmax.f32 %v3391, 0.0
    %v3520 = vmax.f32 %v3392, 0.0
    %v3521 = vmax.f32 %v3393, 0.0
    %v3522 = vmax.f32 %v3394, 0.0
    %v3523 = vmax.f32 %v3395, 0.0
    %v3524 = vmax.f32 %v3396, 0.0
    %v3525 = vmax.f32 %v3397, 0.0
    %v3526 = vmax.f32 %v3398, 0.0
    %v3527 = vmax.f32 %v3399, 0.0
    %v3528 = vmax.f32 %v3400, 0.0
    %v3529 = vmax.f32 %v3401, 0.0
    %v3530 = vmax.f32 %v3402, 0.0
    %v3531 = vmax.f32 %v3403, 0.0
    %v3532 = vmax.f32 %v3404, 0.0
    %v3533 = vmax.f32 %v3405, 0.0
    %v3534 = vmax.f32 %v3406, 0.0
    %v3535 = vmax.f32 %v3407, 0.0
    %v3536 = vmax.f32 %v3408, 0.0
    %v3537 = vmax.f32 %v3409, 0.0
    %v3538 = vmax.f32 %v3410, 0.0
    %v3539 = vmax.f32 %v3411, 0.0
    %v3540 = vmax.f32 %v3412, 0.0
    %v3541 = vmax.f32 %v3413, 0.0
    %v3542 = vmax.f32 %v3414, 0.0
    %v3543 = vmax.f32 %v3415, 0.0
    %v3544 = vmax.f32 %v3416, 0.0
    %v3545 = vmax.f32 %v3417, 0.0
    %v3546 = vmax.f32 %v3418, 0.0
    %v3547 = vmax.f32 %v3419, 0.0
    %v3548 = vmax.f32 %v3420, 0.0
    %v3549 = vmax.f32 %v3421, 0.0
    %v3550 = vmax.f32 %v3422, 0.0
    %v3551 = vmax.f32 %v3423, 0.0
    %v3552 = vmax.f32 %v3424, 0.0
    %v3553 = vmax.f32 %v3425, 0.0
    %v3554 = vmax.f32 %v3426, 0.0
    %v3555 = vmax.f32 %v3427, 0.0
    %v3556 = vmax.f32 %v3428, 0.0
    %v3557 = vmax.f32 %v3429, 0.0
    %v3558 = vmax.f32 %v3430, 0.0
    %v3559 = vmax.f32 %v3431, 0.0
    %v3560 = vmax.f32 %v3432, 0.0
    %v3561 = vmax.f32 %v3433, 0.0
    %v3562 = vmax.f32 %v3434, 0.0
    %v3563 = vmax.f32 %v3435, 0.0
    %v3564 = vmax.f32 %v3436, 0.0
    %v3565 = vmax.f32 %v3437, 0.0
    %v3566 = vmax.f32 %v3438, 0.0
    %v3567 = vmax.f32 %v3439, 0.0
    %v3568 = vmax.f32 %v3440, 0.0
    %v3569 = vmax.f32 %v3441, 0.0
    %v3570 = vmax.f32 %v3442, 0.0
    %v3571 = vmax.f32 %v3443, 0.0
    %v3572 = vmax.f32 %v3444, 0.0
    %v3573 = vmax.f32 %v3445, 0.0
    %v3574 = vmax.f32 %v3446, 0.0
    %v3575 = vmax.f32 %v3447, 0.0
    %v3576 = vmax.f32 %v3448, 0.0
    %v3577 = vmax.f32 %v3449, 0.0
    %v3578 = vmax.f32 %v3450, 0.0
    %v3579 = vmax.f32 %v3451, 0.0
    %v3580 = vmax.f32 %v3452, 0.0
    %v3581 = vmax.f32 %v3453, 0.0
    %v3582 = vmax.f32 %v3454, 0.0
    %v3583 = vmax.f32 %v3455, 0.0
    %v3584 = vmax.f32 %v3456, 0.0
    %v3585 = vmax.f32 %v3457, 0.0
    %v3586 = vmax.f32 %v3458, 0.0
    %v3587 = vmax.f32 %v3459, 0.0
    %v3588 = vmax.f32 %v3460, 0.0
    %v3589 = vmax.f32 %v3461, 0.0
    %v3590 = vmax.f32 %v3462, 0.0
    %v3591 = vmax.f32 %v3463, 0.0
    %v3592 = vmax.f32 %v3464, 0.0
    %v3593 = vmax.f32 %v3465, 0.0
    %v3594 = vmax.f32 %v3466, 0.0
    %v3595 = vmax.f32 %v3467, 0.0
    %v3596 = vmax.f32 %v3468, 0.0
    %v3597 = vmax.f32 %v3469, 0.0
    %v3598 = vmax.f32 %v3470, 0.0
    %v3599 = vmax.f32 %v3471, 0.0
    %v3600 = vmax.f32 %v3472, 0.0
    %v3601 = vmax.f32 %v3473, 0.0
    %v3602 = vmax.f32 %v3474, 0.0
    %v3603 = vmax.f32 %v3475, 0.0
    %v3604 = vmax.f32 %v3476, 0.0
    %v3605 = vmax.f32 %v3477, 0.0
    %v3606 = vmax.f32 %v3478, 0.0
    %v3607 = vmax.f32 %v3479, 0.0
    %v3608 = vmax.f32 %v3480, 0.0
    %v3609 = vmax.f32 %v3481, 0.0
    %v3610 = vmax.f32 %v3482, 0.0
    %v3611 = vmax.f32 %v3483, 0.0
    %v3612 = vmax.f32 %v3484, 0.0
    %v3613 = vmax.f32 %v3485, 0.0
    %v3614 = vmax.f32 %v3486, 0.0
    %v3615 = vmax.f32 %v3487, 0.0
    %v3616 = vmax.f32 %v3488, 0.0
    %v3617 = vmax.f32 %v3489, 0.0
    %v3618 = vmax.f32 %v3490, 0.0
    %v3619 = vmax.f32 %v3491, 0.0
    %v3620 = vmax.f32 %v3492, 0.0
    %v3621 = vmax.f32 %v3493, 0.0
    %v3622 = vmax.f32 %v3494, 0.0
    %v3623 = vmax.f32 %v3495, 0.0
    %v3624 = vmax.f32 %v3496, 0.0
    %v3625 = vmax.f32 %v3497, 0.0
    %v3626 = vadd.f32 %v2504, %v3498
    %v3627 = vadd.f32 %v2505, %v3499
    %v3628 = vadd.f32 %v2506, %v3500
    %v3629 = vadd.f32 %v2507, %v3501
    %v3630 = vadd.f32 %v2508, %v3502
    %v3631 = vadd.f32 %v2509, %v3503
    %v3632 = vadd.f32 %v2510, %v3504
    %v3633 = vadd.f32 %v2511, %v3505
    %v3634 = vadd.f32 %v2512, %v3506
    %v3635 = vadd.f32 %v2513, %v3507
    %v3636 = vadd.f32 %v2514, %v3508
    %v3637 = vadd.f32 %v2515, %v3509
    %v3638 = vadd.f32 %v2516, %v3510
    %v3639 = vadd.f32 %v2517, %v3511
    %v3640 = vadd.f32 %v2518, %v3512
    %v3641 = vadd.f32 %v2519, %v3513
    %v3642 = vadd.f32 %v2520, %v3514
    %v3643 = vadd.f32 %v2521, %v3515
    %v3644 = vadd.f32 %v2522, %v3516
    %v3645 = vadd.f32 %v2523, %v3517
    %v3646 = vadd.f32 %v2524, %v3518
    %v3647 = vadd.f32 %v2525, %v3519
    %v3648 = vadd.f32 %v2526, %v3520
    %v3649 = vadd.f32 %v2527, %v3521
    %v3650 = vadd.f32 %v2528, %v3522
    %v3651 = vadd.f32 %v2529, %v3523
    %v3652 = vadd.f32 %v2530, %v3524
    %v3653 = vadd.f32 %v2531, %v3525
    %v3654 = vadd.f32 %v2532, %v3526
    %v3655 = vadd.f32 %v2533, %v3527
    %v3656 = vadd.f32 %v2534, %v3528
    %v3657 = vadd.f32 %v2535, %v3529
    %v3658 = vadd.f32 %v2536, %v3530
    %v3659 = vadd.f32 %v2537, %v3531
    %v3660 = vadd.f32 %v2538, %v3532
    %v3661 = vadd.f32 %v2539, %v3533
    %v3662 = vadd.f32 %v2540, %v3534
    %v3663 = vadd.f32 %v2541, %v3535
    %v3664 = vadd.f32 %v2542, %v3536
    %v3665 = vadd.f32 %v2543, %v3537
    %v3666 = vadd.f32 %v2544, %v3538
    %v3667 = vadd.f32 %v2545, %v3539
    %v3668 = vadd.f32 %v2546, %v3540
    %v3669 = vadd.f32 %v2547, %v3541
    %v3670 = vadd.f32 %v2548, %v3542
    %v3671 = vadd.f32 %v2549, %v3543
    %v3672 = vadd.f32 %v2550, %v3544
    %v3673 = vadd.f32 %v2551, %v3545
    %v3674 = vadd.f32 %v2552, %v3546
    %v3675 = vadd.f32 %v2553, %v3547
    %v3676 = vadd.f32 %v2554, %v3548
    %v3677 = vadd.f32 %v2555, %v3549
    %v3678 = vadd.f32 %v2556, %v3550
    %v3679 = vadd.f32 %v2557, %v3551
    %v3680 = vadd.f32 %v2558, %v3552
    %v3681 = vadd.f32 %v2559, %v3553
    %v3682 = vadd.f32 %v2560, %v3554
    %v3683 = vadd.f32 %v2561, %v3555
    %v3684 = vadd.f32 %v2562, %v3556
    %v3685 = vadd.f32 %v2563, %v3557
    %v3686 = vadd.f32 %v2564, %v3558
    %v3687 = vadd.f32 %v2565, %v3559
    %v3688 = vadd.f32 %v2566, %v3560
    %v3689 = vadd.f32 %v2567, %v3561
    %v3690 = vadd.f32 %v2568, %v3562
    %v3691 = vadd.f32 %v2569, %v3563
    %v3692 = vadd.f32 %v2570, %v3564
    %v3693 = vadd.f32 %v2571, %v3565
    %v3694 = vadd.f32 %v2572, %v3566
    %v3695 = vadd.f32 %v2573, %v3567
    %v3696 = vadd.f32 %v2574, %v3568
    %v3697 = vadd.f32 %v2575, %v3569
    %v3698 = vadd.f32 %v2576, %v3570
    %v3699 = vadd.f32 %v2577, %v3571
    %v3700 = vadd.f32 %v2578, %v3572
    %v3701 = vadd.f32 %v2579, %v3573
    %v3702 = vadd.f32 %v2580, %v3574
    %v3703 = vadd.f32 %v2581, %v3575
    %v3704 = vadd.f32 %v2582, %v3576
    %v3705 = vadd.f32 %v2583, %v3577
    %v3706 = vadd.f32 %v2584, %v3578
    %v3707 = vadd.f32 %v2585, %v3579
    %v3708 = vadd.f32 %v2586, %v3580
    %v3709 = vadd.f32 %v2587, %v3581
    %v3710 = vadd.f32 %v2588, %v3582
    %v3711 = vadd.f32 %v2589, %v3583
    %v3712 = vadd.f32 %v2590, %v3584
    %v3713 = vadd.f32 %v2591, %v3585
    %v3714 = vadd.f32 %v2592, %v3586
    %v3715 = vadd.f32 %v2593, %v3587
    %v3716 = vadd.f32 %v2594, %v3588
    %v3717 = vadd.f32 %v2595, %v3589
    %v3718 = vadd.f32 %v2596, %v3590
    %v3719 = vadd.f32 %v2597, %v3591
    %v3720 = vadd.f32 %v2598, %v3592
    %v3721 = vadd.f32 %v2599, %v3593
    %v3722 = vadd.f32 %v2600, %v3594
    %v3723 = vadd.f32 %v2601, %v3595
    %v3724 = vadd.f32 %v2602, %v3596
    %v3725 = vadd.f32 %v2603, %v3597
    %v3726 = vadd.f32 %v2604, %v3598
    %v3727 = vadd.f32 %v2605, %v3599
    %v3728 = vadd.f32 %v2606, %v3600
    %v3729 = vadd.f32 %v2607, %v3601
    %v3730 = vadd.f32 %v2608, %v3602
    %v3731 = vadd.f32 %v2609, %v3603
    %v3732 = vadd.f32 %v2610, %v3604
    %v3733 = vadd.f32 %v2611, %v3605
    %v3734 = vadd.f32 %v2612, %v3606
    %v3735 = vadd.f32 %v2613, %v3607
    %v3736 = vadd.f32 %v2614, %v3608
    %v3737 = vadd.f32 %v2615, %v3609
    %v3738 = vadd.f32 %v2616, %v3610
    %v3739 = vadd.f32 %v2617, %v3611
    %v3740 = vadd.f32 %v2618, %v3612
    %v3741 = vadd.f32 %v2619, %v3613
    %v3742 = vadd.f32 %v2620, %v3614
    %v3743 = vadd.f32 %v2621, %v3615
    %v3744 = vadd.f32 %v2622, %v3616
    %v3745 = vadd.f32 %v2623, %v3617
    %v3746 = vadd.f32 %v2624, %v3618
    %v3747 = vadd.f32 %v2625, %v3619
    %v3748 = vadd.f32 %v2626, %v3620
    %v3749 = vadd.f32 %v2627, %v3621
    %v3750 = vadd.f32 %v2628, %v3622
    %v3751 = vadd.f32 %v2629, %v3623
    %v3752 = vadd.f32 %v2630, %v3624
    %v3753 = vadd.f32 %v2631, %v3625
    %s3754 = scalar_lea.vmem %s1, 96
    %v3755 = vld [vmem:[%s3754] sm:$0xff]
    %v3756 = vld [vmem:[%s3754 + $0x8] sm:$0xff]
    %v3757 = vld [vmem:[%s3754 + $0x10] sm:$0xff]
    %v3758 = vld [vmem:[%s3754 + $0x18] sm:$0xff]
    %s3759 = scalar_lea.vmem %s2, 96
    %v3760 = vld [vmem:[%s3759] sm:$0xff]
    %v3761 = vld [vmem:[%s3759 + $0x8] sm:$0xff]
    %v3762 = vld [vmem:[%s3759 + $0x10] sm:$0xff]
    %v3763 = vld [vmem:[%s3759 + $0x18] sm:$0xff]
    %3765 = vset.pattern.permute.xlu0 0
    %3766 = vperm.xlu0 %3765, %v3755
    %v3767 = vpop.permute.xlu0 %3766
    %3770 = vset.pattern.permute.xlu0 0
    %3771 = vperm.xlu0 %3770, %v3756
    %v3772 = vpop.permute.xlu0 %3771
    %3775 = vset.pattern.permute.xlu0 0
    %3776 = vperm.xlu0 %3775, %v3757
    %v3777 = vpop.permute.xlu0 %3776
    %3780 = vset.pattern.permute.xlu0 0
    %3781 = vperm.xlu0 %3780, %v3758
    %v3782 = vpop.permute.xlu0 %3781
    %v3784 = vmul.f32 %v3767, %v685
    %v3785 = vmul.f32 %v3767, %v689
    %v3786 = vmul.f32 %v3767, %v693
    %v3787 = vmul.f32 %v3767, %v697
    %v3788 = vmul.f32 %v3767, %v701
    %v3789 = vmul.f32 %v3767, %v705
    %v3790 = vmul.f32 %v3767, %v709
    %v3791 = vmul.f32 %v3767, %v713
    %v3792 = vmul.f32 %v3767, %v717
    %v3793 = vmul.f32 %v3767, %v721
    %v3794 = vmul.f32 %v3767, %v725
    %v3795 = vmul.f32 %v3767, %v729
    %v3796 = vmul.f32 %v3767, %v733
    %v3797 = vmul.f32 %v3767, %v737
    %v3798 = vmul.f32 %v3767, %v741
    %v3799 = vmul.f32 %v3767, %v745
    %v3800 = vmul.f32 %v3767, %v749
    %v3801 = vmul.f32 %v3767, %v753
    %v3802 = vmul.f32 %v3767, %v757
    %v3803 = vmul.f32 %v3767, %v761
    %v3804 = vmul.f32 %v3767, %v765
    %v3805 = vmul.f32 %v3767, %v769
    %v3806 = vmul.f32 %v3767, %v773
    %v3807 = vmul.f32 %v3767, %v777
    %v3808 = vmul.f32 %v3767, %v781
    %v3809 = vmul.f32 %v3767, %v785
    %v3810 = vmul.f32 %v3767, %v789
    %v3811 = vmul.f32 %v3767, %v793
    %v3812 = vmul.f32 %v3767, %v797
    %v3813 = vmul.f32 %v3767, %v801
    %v3814 = vmul.f32 %v3767, %v805
    %v3815 = vmul.f32 %v3767, %v809
    %v3816 = vmul.f32 %v3772, %v685
    %v3817 = vmul.f32 %v3772, %v689
    %v3818 = vmul.f32 %v3772, %v693
    %v3819 = vmul.f32 %v3772, %v697
    %v3820 = vmul.f32 %v3772, %v701
    %v3821 = vmul.f32 %v3772, %v705
    %v3822 = vmul.f32 %v3772, %v709
    %v3823 = vmul.f32 %v3772, %v713
    %v3824 = vmul.f32 %v3772, %v717
    %v3825 = vmul.f32 %v3772, %v721
    %v3826 = vmul.f32 %v3772, %v725
    %v3827 = vmul.f32 %v3772, %v729
    %v3828 = vmul.f32 %v3772, %v733
    %v3829 = vmul.f32 %v3772, %v737
    %v3830 = vmul.f32 %v3772, %v741
    %v3831 = vmul.f32 %v3772, %v745
    %v3832 = vmul.f32 %v3772, %v749
    %v3833 = vmul.f32 %v3772, %v753
    %v3834 = vmul.f32 %v3772, %v757
    %v3835 = vmul.f32 %v3772, %v761
    %v3836 = vmul.f32 %v3772, %v765
    %v3837 = vmul.f32 %v3772, %v769
    %v3838 = vmul.f32 %v3772, %v773
    %v3839 = vmul.f32 %v3772, %v777
    %v3840 = vmul.f32 %v3772, %v781
    %v3841 = vmul.f32 %v3772, %v785
    %v3842 = vmul.f32 %v3772, %v789
    %v3843 = vmul.f32 %v3772, %v793
    %v3844 = vmul.f32 %v3772, %v797
    %v3845 = vmul.f32 %v3772, %v801
    %v3846 = vmul.f32 %v3772, %v805
    %v3847 = vmul.f32 %v3772, %v809
    %v3848 = vmul.f32 %v3777, %v685
    %v3849 = vmul.f32 %v3777, %v689
    %v3850 = vmul.f32 %v3777, %v693
    %v3851 = vmul.f32 %v3777, %v697
    %v3852 = vmul.f32 %v3777, %v701
    %v3853 = vmul.f32 %v3777, %v705
    %v3854 = vmul.f32 %v3777, %v709
    %v3855 = vmul.f32 %v3777, %v713
    %v3856 = vmul.f32 %v3777, %v717
    %v3857 = vmul.f32 %v3777, %v721
    %v3858 = vmul.f32 %v3777, %v725
    %v3859 = vmul.f32 %v3777, %v729
    %v3860 = vmul.f32 %v3777, %v733
    %v3861 = vmul.f32 %v3777, %v737
    %v3862 = vmul.f32 %v3777, %v741
    %v3863 = vmul.f32 %v3777, %v745
    %v3864 = vmul.f32 %v3777, %v749
    %v3865 = vmul.f32 %v3777, %v753
    %v3866 = vmul.f32 %v3777, %v757
    %v3867 = vmul.f32 %v3777, %v761
    %v3868 = vmul.f32 %v3777, %v765
    %v3869 = vmul.f32 %v3777, %v769
    %v3870 = vmul.f32 %v3777, %v773
    %v3871 = vmul.f32 %v3777, %v777
    %v3872 = vmul.f32 %v3777, %v781
    %v3873 = vmul.f32 %v3777, %v785
    %v3874 = vmul.f32 %v3777, %v789
    %v3875 = vmul.f32 %v3777, %v793
    %v3876 = vmul.f32 %v3777, %v797
    %v3877 = vmul.f32 %v3777, %v801
    %v3878 = vmul.f32 %v3777, %v805
    %v3879 = vmul.f32 %v3777, %v809
    %v3880 = vmul.f32 %v3782, %v685
    %v3881 = vmul.f32 %v3782, %v689
    %v3882 = vmul.f32 %v3782, %v693
    %v3883 = vmul.f32 %v3782, %v697
    %v3884 = vmul.f32 %v3782, %v701
    %v3885 = vmul.f32 %v3782, %v705
    %v3886 = vmul.f32 %v3782, %v709
    %v3887 = vmul.f32 %v3782, %v713
    %v3888 = vmul.f32 %v3782, %v717
    %v3889 = vmul.f32 %v3782, %v721
    %v3890 = vmul.f32 %v3782, %v725
    %v3891 = vmul.f32 %v3782, %v729
    %v3892 = vmul.f32 %v3782, %v733
    %v3893 = vmul.f32 %v3782, %v737
    %v3894 = vmul.f32 %v3782, %v741
    %v3895 = vmul.f32 %v3782, %v745
    %v3896 = vmul.f32 %v3782, %v749
    %v3897 = vmul.f32 %v3782, %v753
    %v3898 = vmul.f32 %v3782, %v757
    %v3899 = vmul.f32 %v3782, %v761
    %v3900 = vmul.f32 %v3782, %v765
    %v3901 = vmul.f32 %v3782, %v769
    %v3902 = vmul.f32 %v3782, %v773
    %v3903 = vmul.f32 %v3782, %v777
    %v3904 = vmul.f32 %v3782, %v781
    %v3905 = vmul.f32 %v3782, %v785
    %v3906 = vmul.f32 %v3782, %v789
    %v3907 = vmul.f32 %v3782, %v793
    %v3908 = vmul.f32 %v3782, %v797
    %v3909 = vmul.f32 %v3782, %v801
    %v3910 = vmul.f32 %v3782, %v805
    %v3911 = vmul.f32 %v3782, %v809
    %3912 = vset.pattern.permute.xlu0 1
    %3913 = vperm.xlu0 %3912, %v3755
    %v3914 = vpop.permute.xlu0 %3913
    %3916 = vset.pattern.permute.xlu0 1
    %3917 = vperm.xlu0 %3916, %v3756
    %v3918 = vpop.permute.xlu0 %3917
    %3920 = vset.pattern.permute.xlu0 1
    %3921 = vperm.xlu0 %3920, %v3757
    %v3922 = vpop.permute.xlu0 %3921
    %3924 = vset.pattern.permute.xlu0 1
    %3925 = vperm.xlu0 %3924, %v3758
    %v3926 = vpop.permute.xlu0 %3925
    %v3928 = vmul.f32 %v3914, %v1847
    %v3929 = vmul.f32 %v3914, %v1851
    %v3930 = vmul.f32 %v3914, %v1855
    %v3931 = vmul.f32 %v3914, %v1859
    %v3932 = vmul.f32 %v3914, %v1863
    %v3933 = vmul.f32 %v3914, %v1867
    %v3934 = vmul.f32 %v3914, %v1871
    %v3935 = vmul.f32 %v3914, %v1875
    %v3936 = vmul.f32 %v3914, %v1879
    %v3937 = vmul.f32 %v3914, %v1883
    %v3938 = vmul.f32 %v3914, %v1887
    %v3939 = vmul.f32 %v3914, %v1891
    %v3940 = vmul.f32 %v3914, %v1895
    %v3941 = vmul.f32 %v3914, %v1899
    %v3942 = vmul.f32 %v3914, %v1903
    %v3943 = vmul.f32 %v3914, %v1907
    %v3944 = vmul.f32 %v3914, %v1911
    %v3945 = vmul.f32 %v3914, %v1915
    %v3946 = vmul.f32 %v3914, %v1919
    %v3947 = vmul.f32 %v3914, %v1923
    %v3948 = vmul.f32 %v3914, %v1927
    %v3949 = vmul.f32 %v3914, %v1931
    %v3950 = vmul.f32 %v3914, %v1935
    %v3951 = vmul.f32 %v3914, %v1939
    %v3952 = vmul.f32 %v3914, %v1943
    %v3953 = vmul.f32 %v3914, %v1947
    %v3954 = vmul.f32 %v3914, %v1951
    %v3955 = vmul.f32 %v3914, %v1955
    %v3956 = vmul.f32 %v3914, %v1959
    %v3957 = vmul.f32 %v3914, %v1963
    %v3958 = vmul.f32 %v3914, %v1967
    %v3959 = vmul.f32 %v3914, %v1971
    %v3960 = vmul.f32 %v3918, %v1847
    %v3961 = vmul.f32 %v3918, %v1851
    %v3962 = vmul.f32 %v3918, %v1855
    %v3963 = vmul.f32 %v3918, %v1859
    %v3964 = vmul.f32 %v3918, %v1863
    %v3965 = vmul.f32 %v3918, %v1867
    %v3966 = vmul.f32 %v3918, %v1871
    %v3967 = vmul.f32 %v3918, %v1875
    %v3968 = vmul.f32 %v3918, %v1879
    %v3969 = vmul.f32 %v3918, %v1883
    %v3970 = vmul.f32 %v3918, %v1887
    %v3971 = vmul.f32 %v3918, %v1891
    %v3972 = vmul.f32 %v3918, %v1895
    %v3973 = vmul.f32 %v3918, %v1899
    %v3974 = vmul.f32 %v3918, %v1903
    %v3975 = vmul.f32 %v3918, %v1907
    %v3976 = vmul.f32 %v3918, %v1911
    %v3977 = vmul.f32 %v3918, %v1915
    %v3978 = vmul.f32 %v3918, %v1919
    %v3979 = vmul.f32 %v3918, %v1923
    %v3980 = vmul.f32 %v3918, %v1927
    %v3981 = vmul.f32 %v3918, %v1931
    %v3982 = vmul.f32 %v3918, %v1935
    %v3983 = vmul.f32 %v3918, %v1939
    %v3984 = vmul.f32 %v3918, %v1943
    %v3985 = vmul.f32 %v3918, %v1947
    %v3986 = vmul.f32 %v3918, %v1951
    %v3987 = vmul.f32 %v3918, %v1955
    %v3988 = vmul.f32 %v3918, %v1959
    %v3989 = vmul.f32 %v3918, %v1963
    %v3990 = vmul.f32 %v3918, %v1967
    %v3991 = vmul.f32 %v3918, %v1971
    %v3992 = vmul.f32 %v3922, %v1847
    %v3993 = vmul.f32 %v3922, %v1851
    %v3994 = vmul.f32 %v3922, %v1855
    %v3995 = vmul.f32 %v3922, %v1859
    %v3996 = vmul.f32 %v3922, %v1863
    %v3997 = vmul.f32 %v3922, %v1867
    %v3998 = vmul.f32 %v3922, %v1871
    %v3999 = vmul.f32 %v3922, %v1875
    %v4000 = vmul.f32 %v3922, %v1879
    %v4001 = vmul.f32 %v3922, %v1883
    %v4002 = vmul.f32 %v3922, %v1887
    %v4003 = vmul.f32 %v3922, %v1891
    %v4004 = vmul.f32 %v3922, %v1895
    %v4005 = vmul.f32 %v3922, %v1899
    %v4006 = vmul.f32 %v3922, %v1903
    %v4007 = vmul.f32 %v3922, %v1907
    %v4008 = vmul.f32 %v3922, %v1911
    %v4009 = vmul.f32 %v3922, %v1915
    %v4010 = vmul.f32 %v3922, %v1919
    %v4011 = vmul.f32 %v3922, %v1923
    %v4012 = vmul.f32 %v3922, %v1927
    %v4013 = vmul.f32 %v3922, %v1931
    %v4014 = vmul.f32 %v3922, %v1935
    %v4015 = vmul.f32 %v3922, %v1939
    %v4016 = vmul.f32 %v3922, %v1943
    %v4017 = vmul.f32 %v3922, %v1947
    %v4018 = vmul.f32 %v3922, %v1951
    %v4019 = vmul.f32 %v3922, %v1955
    %v4020 = vmul.f32 %v3922, %v1959
    %v4021 = vmul.f32 %v3922, %v1963
    %v4022 = vmul.f32 %v3922, %v1967
    %v4023 = vmul.f32 %v3922, %v1971
    %v4024 = vmul.f32 %v3926, %v1847
    %v4025 = vmul.f32 %v3926, %v1851
    %v4026 = vmul.f32 %v3926, %v1855
    %v4027 = vmul.f32 %v3926, %v1859
    %v4028 = vmul.f32 %v3926, %v1863
    %v4029 = vmul.f32 %v3926, %v1867
    %v4030 = vmul.f32 %v3926, %v1871
    %v4031 = vmul.f32 %v3926, %v1875
    %v4032 = vmul.f32 %v3926, %v1879
    %v4033 = vmul.f32 %v3926, %v1883
    %v4034 = vmul.f32 %v3926, %v1887
    %v4035 = vmul.f32 %v3926, %v1891
    %v4036 = vmul.f32 %v3926, %v1895
    %v4037 = vmul.f32 %v3926, %v1899
    %v4038 = vmul.f32 %v3926, %v1903
    %v4039 = vmul.f32 %v3926, %v1907
    %v4040 = vmul.f32 %v3926, %v1911
    %v4041 = vmul.f32 %v3926, %v1915
    %v4042 = vmul.f32 %v3926, %v1919
    %v4043 = vmul.f32 %v3926, %v1923
    %v4044 = vmul.f32 %v3926, %v1927
    %v4045 = vmul.f32 %v3926, %v1931
    %v4046 = vmul.f32 %v3926, %v1935
    %v4047 = vmul.f32 %v3926, %v1939
    %v4048 = vmul.f32 %v3926, %v1943
    %v4049 = vmul.f32 %v3926, %v1947
    %v4050 = vmul.f32 %v3926, %v1951
    %v4051 = vmul.f32 %v3926, %v1955
    %v4052 = vmul.f32 %v3926, %v1959
    %v4053 = vmul.f32 %v3926, %v1963
    %v4054 = vmul.f32 %v3926, %v1967
    %v4055 = vmul.f32 %v3926, %v1971
    %v4056 = vadd.f32 %v3784, %v3928
    %v4057 = vadd.f32 %v3785, %v3929
    %v4058 = vadd.f32 %v3786, %v3930
    %v4059 = vadd.f32 %v3787, %v3931
    %v4060 = vadd.f32 %v3788, %v3932
    %v4061 = vadd.f32 %v3789, %v3933
    %v4062 = vadd.f32 %v3790, %v3934
    %v4063 = vadd.f32 %v3791, %v3935
    %v4064 = vadd.f32 %v3792, %v3936
    %v4065 = vadd.f32 %v3793, %v3937
    %v4066 = vadd.f32 %v3794, %v3938
    %v4067 = vadd.f32 %v3795, %v3939
    %v4068 = vadd.f32 %v3796, %v3940
    %v4069 = vadd.f32 %v3797, %v3941
    %v4070 = vadd.f32 %v3798, %v3942
    %v4071 = vadd.f32 %v3799, %v3943
    %v4072 = vadd.f32 %v3800, %v3944
    %v4073 = vadd.f32 %v3801, %v3945
    %v4074 = vadd.f32 %v3802, %v3946
    %v4075 = vadd.f32 %v3803, %v3947
    %v4076 = vadd.f32 %v3804, %v3948
    %v4077 = vadd.f32 %v3805, %v3949
    %v4078 = vadd.f32 %v3806, %v3950
    %v4079 = vadd.f32 %v3807, %v3951
    %v4080 = vadd.f32 %v3808, %v3952
    %v4081 = vadd.f32 %v3809, %v3953
    %v4082 = vadd.f32 %v3810, %v3954
    %v4083 = vadd.f32 %v3811, %v3955
    %v4084 = vadd.f32 %v3812, %v3956
    %v4085 = vadd.f32 %v3813, %v3957
    %v4086 = vadd.f32 %v3814, %v3958
    %v4087 = vadd.f32 %v3815, %v3959
    %v4088 = vadd.f32 %v3816, %v3960
    %v4089 = vadd.f32 %v3817, %v3961
    %v4090 = vadd.f32 %v3818, %v3962
    %v4091 = vadd.f32 %v3819, %v3963
    %v4092 = vadd.f32 %v3820, %v3964
    %v4093 = vadd.f32 %v3821, %v3965
    %v4094 = vadd.f32 %v3822, %v3966
    %v4095 = vadd.f32 %v3823, %v3967
    %v4096 = vadd.f32 %v3824, %v3968
    %v4097 = vadd.f32 %v3825, %v3969
    %v4098 = vadd.f32 %v3826, %v3970
    %v4099 = vadd.f32 %v3827, %v3971
    %v4100 = vadd.f32 %v3828, %v3972
    %v4101 = vadd.f32 %v3829, %v3973
    %v4102 = vadd.f32 %v3830, %v3974
    %v4103 = vadd.f32 %v3831, %v3975
    %v4104 = vadd.f32 %v3832, %v3976
    %v4105 = vadd.f32 %v3833, %v3977
    %v4106 = vadd.f32 %v3834, %v3978
    %v4107 = vadd.f32 %v3835, %v3979
    %v4108 = vadd.f32 %v3836, %v3980
    %v4109 = vadd.f32 %v3837, %v3981
    %v4110 = vadd.f32 %v3838, %v3982
    %v4111 = vadd.f32 %v3839, %v3983
    %v4112 = vadd.f32 %v3840, %v3984
    %v4113 = vadd.f32 %v3841, %v3985
    %v4114 = vadd.f32 %v3842, %v3986
    %v4115 = vadd.f32 %v3843, %v3987
    %v4116 = vadd.f32 %v3844, %v3988
    %v4117 = vadd.f32 %v3845, %v3989
    %v4118 = vadd.f32 %v3846, %v3990
    %v4119 = vadd.f32 %v3847, %v3991
    %v4120 = vadd.f32 %v3848, %v3992
    %v4121 = vadd.f32 %v3849, %v3993
    %v4122 = vadd.f32 %v3850, %v3994
    %v4123 = vadd.f32 %v3851, %v3995
    %v4124 = vadd.f32 %v3852, %v3996
    %v4125 = vadd.f32 %v3853, %v3997
    %v4126 = vadd.f32 %v3854, %v3998
    %v4127 = vadd.f32 %v3855, %v3999
    %v4128 = vadd.f32 %v3856, %v4000
    %v4129 = vadd.f32 %v3857, %v4001
    %v4130 = vadd.f32 %v3858, %v4002
    %v4131 = vadd.f32 %v3859, %v4003
    %v4132 = vadd.f32 %v3860, %v4004
    %v4133 = vadd.f32 %v3861, %v4005
    %v4134 = vadd.f32 %v3862, %v4006
    %v4135 = vadd.f32 %v3863, %v4007
    %v4136 = vadd.f32 %v3864, %v4008
    %v4137 = vadd.f32 %v3865, %v4009
    %v4138 = vadd.f32 %v3866, %v4010
    %v4139 = vadd.f32 %v3867, %v4011
    %v4140 = vadd.f32 %v3868, %v4012
    %v4141 = vadd.f32 %v3869, %v4013
    %v4142 = vadd.f32 %v3870, %v4014
    %v4143 = vadd.f32 %v3871, %v4015
    %v4144 = vadd.f32 %v3872, %v4016
    %v4145 = vadd.f32 %v3873, %v4017
    %v4146 = vadd.f32 %v3874, %v4018
    %v4147 = vadd.f32 %v3875, %v4019
    %v4148 = vadd.f32 %v3876, %v4020
    %v4149 = vadd.f32 %v3877, %v4021
    %v4150 = vadd.f32 %v3878, %v4022
    %v4151 = vadd.f32 %v3879, %v4023
    %v4152 = vadd.f32 %v3880, %v4024
    %v4153 = vadd.f32 %v3881, %v4025
    %v4154 = vadd.f32 %v3882, %v4026
    %v4155 = vadd.f32 %v3883, %v4027
    %v4156 = vadd.f32 %v3884, %v4028
    %v4157 = vadd.f32 %v3885, %v4029
    %v4158 = vadd.f32 %v3886, %v4030
    %v4159 = vadd.f32 %v3887, %v4031
    %v4160 = vadd.f32 %v3888, %v4032
    %v4161 = vadd.f32 %v3889, %v4033
    %v4162 = vadd.f32 %v3890, %v4034
    %v4163 = vadd.f32 %v3891, %v4035
    %v4164 = vadd.f32 %v3892, %v4036
    %v4165 = vadd.f32 %v3893, %v4037
    %v4166 = vadd.f32 %v3894, %v4038
    %v4167 = vadd.f32 %v3895, %v4039
    %v4168 = vadd.f32 %v3896, %v4040
    %v4169 = vadd.f32 %v3897, %v4041
    %v4170 = vadd.f32 %v3898, %v4042
    %v4171 = vadd.f32 %v3899, %v4043
    %v4172 = vadd.f32 %v3900, %v4044
    %v4173 = vadd.f32 %v3901, %v4045
    %v4174 = vadd.f32 %v3902, %v4046
    %v4175 = vadd.f32 %v3903, %v4047
    %v4176 = vadd.f32 %v3904, %v4048
    %v4177 = vadd.f32 %v3905, %v4049
    %v4178 = vadd.f32 %v3906, %v4050
    %v4179 = vadd.f32 %v3907, %v4051
    %v4180 = vadd.f32 %v3908, %v4052
    %v4181 = vadd.f32 %v3909, %v4053
    %v4182 = vadd.f32 %v3910, %v4054
    %v4183 = vadd.f32 %v3911, %v4055
    %4185 = vset.pattern.permute.xlu0 0
    %4186 = vperm.xlu0 %4185, %v3760
    %v4187 = vpop.permute.xlu0 %4186
    %4190 = vset.pattern.permute.xlu0 0
    %4191 = vperm.xlu0 %4190, %v3761
    %v4192 = vpop.permute.xlu0 %4191
    %4195 = vset.pattern.permute.xlu0 0
    %4196 = vperm.xlu0 %4195, %v3762
    %v4197 = vpop.permute.xlu0 %4196
    %4200 = vset.pattern.permute.xlu0 0
    %4201 = vperm.xlu0 %4200, %v3763
    %v4202 = vpop.permute.xlu0 %4201
    %v4204 = vadd.f32 %v4056, %v4187
    %v4205 = vadd.f32 %v4057, %v4187
    %v4206 = vadd.f32 %v4058, %v4187
    %v4207 = vadd.f32 %v4059, %v4187
    %v4208 = vadd.f32 %v4060, %v4187
    %v4209 = vadd.f32 %v4061, %v4187
    %v4210 = vadd.f32 %v4062, %v4187
    %v4211 = vadd.f32 %v4063, %v4187
    %v4212 = vadd.f32 %v4064, %v4187
    %v4213 = vadd.f32 %v4065, %v4187
    %v4214 = vadd.f32 %v4066, %v4187
    %v4215 = vadd.f32 %v4067, %v4187
    %v4216 = vadd.f32 %v4068, %v4187
    %v4217 = vadd.f32 %v4069, %v4187
    %v4218 = vadd.f32 %v4070, %v4187
    %v4219 = vadd.f32 %v4071, %v4187
    %v4220 = vadd.f32 %v4072, %v4187
    %v4221 = vadd.f32 %v4073, %v4187
    %v4222 = vadd.f32 %v4074, %v4187
    %v4223 = vadd.f32 %v4075, %v4187
    %v4224 = vadd.f32 %v4076, %v4187
    %v4225 = vadd.f32 %v4077, %v4187
    %v4226 = vadd.f32 %v4078, %v4187
    %v4227 = vadd.f32 %v4079, %v4187
    %v4228 = vadd.f32 %v4080, %v4187
    %v4229 = vadd.f32 %v4081, %v4187
    %v4230 = vadd.f32 %v4082, %v4187
    %v4231 = vadd.f32 %v4083, %v4187
    %v4232 = vadd.f32 %v4084, %v4187
    %v4233 = vadd.f32 %v4085, %v4187
    %v4234 = vadd.f32 %v4086, %v4187
    %v4235 = vadd.f32 %v4087, %v4187
    %v4236 = vadd.f32 %v4088, %v4192
    %v4237 = vadd.f32 %v4089, %v4192
    %v4238 = vadd.f32 %v4090, %v4192
    %v4239 = vadd.f32 %v4091, %v4192
    %v4240 = vadd.f32 %v4092, %v4192
    %v4241 = vadd.f32 %v4093, %v4192
    %v4242 = vadd.f32 %v4094, %v4192
    %v4243 = vadd.f32 %v4095, %v4192
    %v4244 = vadd.f32 %v4096, %v4192
    %v4245 = vadd.f32 %v4097, %v4192
    %v4246 = vadd.f32 %v4098, %v4192
    %v4247 = vadd.f32 %v4099, %v4192
    %v4248 = vadd.f32 %v4100, %v4192
    %v4249 = vadd.f32 %v4101, %v4192
    %v4250 = vadd.f32 %v4102, %v4192
    %v4251 = vadd.f32 %v4103, %v4192
    %v4252 = vadd.f32 %v4104, %v4192
    %v4253 = vadd.f32 %v4105, %v4192
    %v4254 = vadd.f32 %v4106, %v4192
    %v4255 = vadd.f32 %v4107, %v4192
    %v4256 = vadd.f32 %v4108, %v4192
    %v4257 = vadd.f32 %v4109, %v4192
    %v4258 = vadd.f32 %v4110, %v4192
    %v4259 = vadd.f32 %v4111, %v4192
    %v4260 = vadd.f32 %v4112, %v4192
    %v4261 = vadd.f32 %v4113, %v4192
    %v4262 = vadd.f32 %v4114, %v4192
    %v4263 = vadd.f32 %v4115, %v4192
    %v4264 = vadd.f32 %v4116, %v4192
    %v4265 = vadd.f32 %v4117, %v4192
    %v4266 = vadd.f32 %v4118, %v4192
    %v4267 = vadd.f32 %v4119, %v4192
    %v4268 = vadd.f32 %v4120, %v4197
    %v4269 = vadd.f32 %v4121, %v4197
    %v4270 = vadd.f32 %v4122, %v4197
    %v4271 = vadd.f32 %v4123, %v4197
    %v4272 = vadd.f32 %v4124, %v4197
    %v4273 = vadd.f32 %v4125, %v4197
    %v4274 = vadd.f32 %v4126, %v4197
    %v4275 = vadd.f32 %v4127, %v4197
    %v4276 = vadd.f32 %v4128, %v4197
    %v4277 = vadd.f32 %v4129, %v4197
    %v4278 = vadd.f32 %v4130, %v4197
    %v4279 = vadd.f32 %v4131, %v4197
    %v4280 = vadd.f32 %v4132, %v4197
    %v4281 = vadd.f32 %v4133, %v4197
    %v4282 = vadd.f32 %v4134, %v4197
    %v4283 = vadd.f32 %v4135, %v4197
    %v4284 = vadd.f32 %v4136, %v4197
    %v4285 = vadd.f32 %v4137, %v4197
    %v4286 = vadd.f32 %v4138, %v4197
    %v4287 = vadd.f32 %v4139, %v4197
    %v4288 = vadd.f32 %v4140, %v4197
    %v4289 = vadd.f32 %v4141, %v4197
    %v4290 = vadd.f32 %v4142, %v4197
    %v4291 = vadd.f32 %v4143, %v4197
    %v4292 = vadd.f32 %v4144, %v4197
    %v4293 = vadd.f32 %v4145, %v4197
    %v4294 = vadd.f32 %v4146, %v4197
    %v4295 = vadd.f32 %v4147, %v4197
    %v4296 = vadd.f32 %v4148, %v4197
    %v4297 = vadd.f32 %v4149, %v4197
    %v4298 = vadd.f32 %v4150, %v4197
    %v4299 = vadd.f32 %v4151, %v4197
    %v4300 = vadd.f32 %v4152, %v4202
    %v4301 = vadd.f32 %v4153, %v4202
    %v4302 = vadd.f32 %v4154, %v4202
    %v4303 = vadd.f32 %v4155, %v4202
    %v4304 = vadd.f32 %v4156, %v4202
    %v4305 = vadd.f32 %v4157, %v4202
    %v4306 = vadd.f32 %v4158, %v4202
    %v4307 = vadd.f32 %v4159, %v4202
    %v4308 = vadd.f32 %v4160, %v4202
    %v4309 = vadd.f32 %v4161, %v4202
    %v4310 = vadd.f32 %v4162, %v4202
    %v4311 = vadd.f32 %v4163, %v4202
    %v4312 = vadd.f32 %v4164, %v4202
    %v4313 = vadd.f32 %v4165, %v4202
    %v4314 = vadd.f32 %v4166, %v4202
    %v4315 = vadd.f32 %v4167, %v4202
    %v4316 = vadd.f32 %v4168, %v4202
    %v4317 = vadd.f32 %v4169, %v4202
    %v4318 = vadd.f32 %v4170, %v4202
    %v4319 = vadd.f32 %v4171, %v4202
    %v4320 = vadd.f32 %v4172, %v4202
    %v4321 = vadd.f32 %v4173, %v4202
    %v4322 = vadd.f32 %v4174, %v4202
    %v4323 = vadd.f32 %v4175, %v4202
    %v4324 = vadd.f32 %v4176, %v4202
    %v4325 = vadd.f32 %v4177, %v4202
    %v4326 = vadd.f32 %v4178, %v4202
    %v4327 = vadd.f32 %v4179, %v4202
    %v4328 = vadd.f32 %v4180, %v4202
    %v4329 = vadd.f32 %v4181, %v4202
    %v4330 = vadd.f32 %v4182, %v4202
    %v4331 = vadd.f32 %v4183, %v4202
    %v4332 = vmax.f32 %v4204, 0.0
    %v4333 = vmax.f32 %v4205, 0.0
    %v4334 = vmax.f32 %v4206, 0.0
    %v4335 = vmax.f32 %v4207, 0.0
    %v4336 = vmax.f32 %v4208, 0.0
    %v4337 = vmax.f32 %v4209, 0.0
    %v4338 = vmax.f32 %v4210, 0.0
    %v4339 = vmax.f32 %v4211, 0.0
    %v4340 = vmax.f32 %v4212, 0.0
    %v4341 = vmax.f32 %v4213, 0.0
    %v4342 = vmax.f32 %v4214, 0.0
    %v4343 = vmax.f32 %v4215, 0.0
    %v4344 = vmax.f32 %v4216, 0.0
    %v4345 = vmax.f32 %v4217, 0.0
    %v4346 = vmax.f32 %v4218, 0.0
    %v4347 = vmax.f32 %v4219, 0.0
    %v4348 = vmax.f32 %v4220, 0.0
    %v4349 = vmax.f32 %v4221, 0.0
    %v4350 = vmax.f32 %v4222, 0.0
    %v4351 = vmax.f32 %v4223, 0.0
    %v4352 = vmax.f32 %v4224, 0.0
    %v4353 = vmax.f32 %v4225, 0.0
    %v4354 = vmax.f32 %v4226, 0.0
    %v4355 = vmax.f32 %v4227, 0.0
    %v4356 = vmax.f32 %v4228, 0.0
    %v4357 = vmax.f32 %v4229, 0.0
    %v4358 = vmax.f32 %v4230, 0.0
    %v4359 = vmax.f32 %v4231, 0.0
    %v4360 = vmax.f32 %v4232, 0.0
    %v4361 = vmax.f32 %v4233, 0.0
    %v4362 = vmax.f32 %v4234, 0.0
    %v4363 = vmax.f32 %v4235, 0.0
    %v4364 = vmax.f32 %v4236, 0.0
    %v4365 = vmax.f32 %v4237, 0.0
    %v4366 = vmax.f32 %v4238, 0.0
    %v4367 = vmax.f32 %v4239, 0.0
    %v4368 = vmax.f32 %v4240, 0.0
    %v4369 = vmax.f32 %v4241, 0.0
    %v4370 = vmax.f32 %v4242, 0.0
    %v4371 = vmax.f32 %v4243, 0.0
    %v4372 = vmax.f32 %v4244, 0.0
    %v4373 = vmax.f32 %v4245, 0.0
    %v4374 = vmax.f32 %v4246, 0.0
    %v4375 = vmax.f32 %v4247, 0.0
    %v4376 = vmax.f32 %v4248, 0.0
    %v4377 = vmax.f32 %v4249, 0.0
    %v4378 = vmax.f32 %v4250, 0.0
    %v4379 = vmax.f32 %v4251, 0.0
    %v4380 = vmax.f32 %v4252, 0.0
    %v4381 = vmax.f32 %v4253, 0.0
    %v4382 = vmax.f32 %v4254, 0.0
    %v4383 = vmax.f32 %v4255, 0.0
    %v4384 = vmax.f32 %v4256, 0.0
    %v4385 = vmax.f32 %v4257, 0.0
    %v4386 = vmax.f32 %v4258, 0.0
    %v4387 = vmax.f32 %v4259, 0.0
    %v4388 = vmax.f32 %v4260, 0.0
    %v4389 = vmax.f32 %v4261, 0.0
    %v4390 = vmax.f32 %v4262, 0.0
    %v4391 = vmax.f32 %v4263, 0.0
    %v4392 = vmax.f32 %v4264, 0.0
    %v4393 = vmax.f32 %v4265, 0.0
    %v4394 = vmax.f32 %v4266, 0.0
    %v4395 = vmax.f32 %v4267, 0.0
    %v4396 = vmax.f32 %v4268, 0.0
    %v4397 = vmax.f32 %v4269, 0.0
    %v4398 = vmax.f32 %v4270, 0.0
    %v4399 = vmax.f32 %v4271, 0.0
    %v4400 = vmax.f32 %v4272, 0.0
    %v4401 = vmax.f32 %v4273, 0.0
    %v4402 = vmax.f32 %v4274, 0.0
    %v4403 = vmax.f32 %v4275, 0.0
    %v4404 = vmax.f32 %v4276, 0.0
    %v4405 = vmax.f32 %v4277, 0.0
    %v4406 = vmax.f32 %v4278, 0.0
    %v4407 = vmax.f32 %v4279, 0.0
    %v4408 = vmax.f32 %v4280, 0.0
    %v4409 = vmax.f32 %v4281, 0.0
    %v4410 = vmax.f32 %v4282, 0.0
    %v4411 = vmax.f32 %v4283, 0.0
    %v4412 = vmax.f32 %v4284, 0.0
    %v4413 = vmax.f32 %v4285, 0.0
    %v4414 = vmax.f32 %v4286, 0.0
    %v4415 = vmax.f32 %v4287, 0.0
    %v4416 = vmax.f32 %v4288, 0.0
    %v4417 = vmax.f32 %v4289, 0.0
    %v4418 = vmax.f32 %v4290, 0.0
    %v4419 = vmax.f32 %v4291, 0.0
    %v4420 = vmax.f32 %v4292, 0.0
    %v4421 = vmax.f32 %v4293, 0.0
    %v4422 = vmax.f32 %v4294, 0.0
    %v4423 = vmax.f32 %v4295, 0.0
    %v4424 = vmax.f32 %v4296, 0.0
    %v4425 = vmax.f32 %v4297, 0.0
    %v4426 = vmax.f32 %v4298, 0.0
    %v4427 = vmax.f32 %v4299, 0.0
    %v4428 = vmax.f32 %v4300, 0.0
    %v4429 = vmax.f32 %v4301, 0.0
    %v4430 = vmax.f32 %v4302, 0.0
    %v4431 = vmax.f32 %v4303, 0.0
    %v4432 = vmax.f32 %v4304, 0.0
    %v4433 = vmax.f32 %v4305, 0.0
    %v4434 = vmax.f32 %v4306, 0.0
    %v4435 = vmax.f32 %v4307, 0.0
    %v4436 = vmax.f32 %v4308, 0.0
    %v4437 = vmax.f32 %v4309, 0.0
    %v4438 = vmax.f32 %v4310, 0.0
    %v4439 = vmax.f32 %v4311, 0.0
    %v4440 = vmax.f32 %v4312, 0.0
    %v4441 = vmax.f32 %v4313, 0.0
    %v4442 = vmax.f32 %v4314, 0.0
    %v4443 = vmax.f32 %v4315, 0.0
    %v4444 = vmax.f32 %v4316, 0.0
    %v4445 = vmax.f32 %v4317, 0.0
    %v4446 = vmax.f32 %v4318, 0.0
    %v4447 = vmax.f32 %v4319, 0.0
    %v4448 = vmax.f32 %v4320, 0.0
    %v4449 = vmax.f32 %v4321, 0.0
    %v4450 = vmax.f32 %v4322, 0.0
    %v4451 = vmax.f32 %v4323, 0.0
    %v4452 = vmax.f32 %v4324, 0.0
    %v4453 = vmax.f32 %v4325, 0.0
    %v4454 = vmax.f32 %v4326, 0.0
    %v4455 = vmax.f32 %v4327, 0.0
    %v4456 = vmax.f32 %v4328, 0.0
    %v4457 = vmax.f32 %v4329, 0.0
    %v4458 = vmax.f32 %v4330, 0.0
    %v4459 = vmax.f32 %v4331, 0.0
    %v4460 = vadd.f32 %v3626, %v4332
    %v4461 = vadd.f32 %v3627, %v4333
    %v4462 = vadd.f32 %v3628, %v4334
    %v4463 = vadd.f32 %v3629, %v4335
    %v4464 = vadd.f32 %v3630, %v4336
    %v4465 = vadd.f32 %v3631, %v4337
    %v4466 = vadd.f32 %v3632, %v4338
    %v4467 = vadd.f32 %v3633, %v4339
    %v4468 = vadd.f32 %v3634, %v4340
    %v4469 = vadd.f32 %v3635, %v4341
    %v4470 = vadd.f32 %v3636, %v4342
    %v4471 = vadd.f32 %v3637, %v4343
    %v4472 = vadd.f32 %v3638, %v4344
    %v4473 = vadd.f32 %v3639, %v4345
    %v4474 = vadd.f32 %v3640, %v4346
    %v4475 = vadd.f32 %v3641, %v4347
    %v4476 = vadd.f32 %v3642, %v4348
    %v4477 = vadd.f32 %v3643, %v4349
    %v4478 = vadd.f32 %v3644, %v4350
    %v4479 = vadd.f32 %v3645, %v4351
    %v4480 = vadd.f32 %v3646, %v4352
    %v4481 = vadd.f32 %v3647, %v4353
    %v4482 = vadd.f32 %v3648, %v4354
    %v4483 = vadd.f32 %v3649, %v4355
    %v4484 = vadd.f32 %v3650, %v4356
    %v4485 = vadd.f32 %v3651, %v4357
    %v4486 = vadd.f32 %v3652, %v4358
    %v4487 = vadd.f32 %v3653, %v4359
    %v4488 = vadd.f32 %v3654, %v4360
    %v4489 = vadd.f32 %v3655, %v4361
    %v4490 = vadd.f32 %v3656, %v4362
    %v4491 = vadd.f32 %v3657, %v4363
    %v4492 = vadd.f32 %v3658, %v4364
    %v4493 = vadd.f32 %v3659, %v4365
    %v4494 = vadd.f32 %v3660, %v4366
    %v4495 = vadd.f32 %v3661, %v4367
    %v4496 = vadd.f32 %v3662, %v4368
    %v4497 = vadd.f32 %v3663, %v4369
    %v4498 = vadd.f32 %v3664, %v4370
    %v4499 = vadd.f32 %v3665, %v4371
    %v4500 = vadd.f32 %v3666, %v4372
    %v4501 = vadd.f32 %v3667, %v4373
    %v4502 = vadd.f32 %v3668, %v4374
    %v4503 = vadd.f32 %v3669, %v4375
    %v4504 = vadd.f32 %v3670, %v4376
    %v4505 = vadd.f32 %v3671, %v4377
    %v4506 = vadd.f32 %v3672, %v4378
    %v4507 = vadd.f32 %v3673, %v4379
    %v4508 = vadd.f32 %v3674, %v4380
    %v4509 = vadd.f32 %v3675, %v4381
    %v4510 = vadd.f32 %v3676, %v4382
    %v4511 = vadd.f32 %v3677, %v4383
    %v4512 = vadd.f32 %v3678, %v4384
    %v4513 = vadd.f32 %v3679, %v4385
    %v4514 = vadd.f32 %v3680, %v4386
    %v4515 = vadd.f32 %v3681, %v4387
    %v4516 = vadd.f32 %v3682, %v4388
    %v4517 = vadd.f32 %v3683, %v4389
    %v4518 = vadd.f32 %v3684, %v4390
    %v4519 = vadd.f32 %v3685, %v4391
    %v4520 = vadd.f32 %v3686, %v4392
    %v4521 = vadd.f32 %v3687, %v4393
    %v4522 = vadd.f32 %v3688, %v4394
    %v4523 = vadd.f32 %v3689, %v4395
    %v4524 = vadd.f32 %v3690, %v4396
    %v4525 = vadd.f32 %v3691, %v4397
    %v4526 = vadd.f32 %v3692, %v4398
    %v4527 = vadd.f32 %v3693, %v4399
    %v4528 = vadd.f32 %v3694, %v4400
    %v4529 = vadd.f32 %v3695, %v4401
    %v4530 = vadd.f32 %v3696, %v4402
    %v4531 = vadd.f32 %v3697, %v4403
    %v4532 = vadd.f32 %v3698, %v4404
    %v4533 = vadd.f32 %v3699, %v4405
    %v4534 = vadd.f32 %v3700, %v4406
    %v4535 = vadd.f32 %v3701, %v4407
    %v4536 = vadd.f32 %v3702, %v4408
    %v4537 = vadd.f32 %v3703, %v4409
    %v4538 = vadd.f32 %v3704, %v4410
    %v4539 = vadd.f32 %v3705, %v4411
    %v4540 = vadd.f32 %v3706, %v4412
    %v4541 = vadd.f32 %v3707, %v4413
    %v4542 = vadd.f32 %v3708, %v4414
    %v4543 = vadd.f32 %v3709, %v4415
    %v4544 = vadd.f32 %v3710, %v4416
    %v4545 = vadd.f32 %v3711, %v4417
    %v4546 = vadd.f32 %v3712, %v4418
    %v4547 = vadd.f32 %v3713, %v4419
    %v4548 = vadd.f32 %v3714, %v4420
    %v4549 = vadd.f32 %v3715, %v4421
    %v4550 = vadd.f32 %v3716, %v4422
    %v4551 = vadd.f32 %v3717, %v4423
    %v4552 = vadd.f32 %v3718, %v4424
    %v4553 = vadd.f32 %v3719, %v4425
    %v4554 = vadd.f32 %v3720, %v4426
    %v4555 = vadd.f32 %v3721, %v4427
    %v4556 = vadd.f32 %v3722, %v4428
    %v4557 = vadd.f32 %v3723, %v4429
    %v4558 = vadd.f32 %v3724, %v4430
    %v4559 = vadd.f32 %v3725, %v4431
    %v4560 = vadd.f32 %v3726, %v4432
    %v4561 = vadd.f32 %v3727, %v4433
    %v4562 = vadd.f32 %v3728, %v4434
    %v4563 = vadd.f32 %v3729, %v4435
    %v4564 = vadd.f32 %v3730, %v4436
    %v4565 = vadd.f32 %v3731, %v4437
    %v4566 = vadd.f32 %v3732, %v4438
    %v4567 = vadd.f32 %v3733, %v4439
    %v4568 = vadd.f32 %v3734, %v4440
    %v4569 = vadd.f32 %v3735, %v4441
    %v4570 = vadd.f32 %v3736, %v4442
    %v4571 = vadd.f32 %v3737, %v4443
    %v4572 = vadd.f32 %v3738, %v4444
    %v4573 = vadd.f32 %v3739, %v4445
    %v4574 = vadd.f32 %v3740, %v4446
    %v4575 = vadd.f32 %v3741, %v4447
    %v4576 = vadd.f32 %v3742, %v4448
    %v4577 = vadd.f32 %v3743, %v4449
    %v4578 = vadd.f32 %v3744, %v4450
    %v4579 = vadd.f32 %v3745, %v4451
    %v4580 = vadd.f32 %v3746, %v4452
    %v4581 = vadd.f32 %v3747, %v4453
    %v4582 = vadd.f32 %v3748, %v4454
    %v4583 = vadd.f32 %v3749, %v4455
    %v4584 = vadd.f32 %v3750, %v4456
    %v4585 = vadd.f32 %v3751, %v4457
    %v4586 = vadd.f32 %v3752, %v4458
    %v4587 = vadd.f32 %v3753, %v4459
    %s4588 = scalar_lea.vmem %s1, 128
    %v4589 = vld [vmem:[%s4588] sm:$0xff]
    %v4590 = vld [vmem:[%s4588 + $0x8] sm:$0xff]
    %v4591 = vld [vmem:[%s4588 + $0x10] sm:$0xff]
    %v4592 = vld [vmem:[%s4588 + $0x18] sm:$0xff]
    %s4593 = scalar_lea.vmem %s2, 128
    %v4594 = vld [vmem:[%s4593] sm:$0xff]
    %v4595 = vld [vmem:[%s4593 + $0x8] sm:$0xff]
    %v4596 = vld [vmem:[%s4593 + $0x10] sm:$0xff]
    %v4597 = vld [vmem:[%s4593 + $0x18] sm:$0xff]
    %4599 = vset.pattern.permute.xlu0 0
    %4600 = vperm.xlu0 %4599, %v4589
    %v4601 = vpop.permute.xlu0 %4600
    %4604 = vset.pattern.permute.xlu0 0
    %4605 = vperm.xlu0 %4604, %v4590
    %v4606 = vpop.permute.xlu0 %4605
    %4609 = vset.pattern.permute.xlu0 0
    %4610 = vperm.xlu0 %4609, %v4591
    %v4611 = vpop.permute.xlu0 %4610
    %4614 = vset.pattern.permute.xlu0 0
    %4615 = vperm.xlu0 %4614, %v4592
    %v4616 = vpop.permute.xlu0 %4615
    %v4618 = vmul.f32 %v4601, %v685
    %v4619 = vmul.f32 %v4601, %v689
    %v4620 = vmul.f32 %v4601, %v693
    %v4621 = vmul.f32 %v4601, %v697
    %v4622 = vmul.f32 %v4601, %v701
    %v4623 = vmul.f32 %v4601, %v705
    %v4624 = vmul.f32 %v4601, %v709
    %v4625 = vmul.f32 %v4601, %v713
    %v4626 = vmul.f32 %v4601, %v717
    %v4627 = vmul.f32 %v4601, %v721
    %v4628 = vmul.f32 %v4601, %v725
    %v4629 = vmul.f32 %v4601, %v729
    %v4630 = vmul.f32 %v4601, %v733
    %v4631 = vmul.f32 %v4601, %v737
    %v4632 = vmul.f32 %v4601, %v741
    %v4633 = vmul.f32 %v4601, %v745
    %v4634 = vmul.f32 %v4601, %v749
    %v4635 = vmul.f32 %v4601, %v753
    %v4636 = vmul.f32 %v4601, %v757
    %v4637 = vmul.f32 %v4601, %v761
    %v4638 = vmul.f32 %v4601, %v765
    %v4639 = vmul.f32 %v4601, %v769
    %v4640 = vmul.f32 %v4601, %v773
    %v4641 = vmul.f32 %v4601, %v777
    %v4642 = vmul.f32 %v4601, %v781
    %v4643 = vmul.f32 %v4601, %v785
    %v4644 = vmul.f32 %v4601, %v789
    %v4645 = vmul.f32 %v4601, %v793
    %v4646 = vmul.f32 %v4601, %v797
    %v4647 = vmul.f32 %v4601, %v801
    %v4648 = vmul.f32 %v4601, %v805
    %v4649 = vmul.f32 %v4601, %v809
    %v4650 = vmul.f32 %v4606, %v685
    %v4651 = vmul.f32 %v4606, %v689
    %v4652 = vmul.f32 %v4606, %v693
    %v4653 = vmul.f32 %v4606, %v697
    %v4654 = vmul.f32 %v4606, %v701
    %v4655 = vmul.f32 %v4606, %v705
    %v4656 = vmul.f32 %v4606, %v709
    %v4657 = vmul.f32 %v4606, %v713
    %v4658 = vmul.f32 %v4606, %v717
    %v4659 = vmul.f32 %v4606, %v721
    %v4660 = vmul.f32 %v4606, %v725
    %v4661 = vmul.f32 %v4606, %v729
    %v4662 = vmul.f32 %v4606, %v733
    %v4663 = vmul.f32 %v4606, %v737
    %v4664 = vmul.f32 %v4606, %v741
    %v4665 = vmul.f32 %v4606, %v745
    %v4666 = vmul.f32 %v4606, %v749
    %v4667 = vmul.f32 %v4606, %v753
    %v4668 = vmul.f32 %v4606, %v757
    %v4669 = vmul.f32 %v4606, %v761
    %v4670 = vmul.f32 %v4606, %v765
    %v4671 = vmul.f32 %v4606, %v769
    %v4672 = vmul.f32 %v4606, %v773
    %v4673 = vmul.f32 %v4606, %v777
    %v4674 = vmul.f32 %v4606, %v781
    %v4675 = vmul.f32 %v4606, %v785
    %v4676 = vmul.f32 %v4606, %v789
    %v4677 = vmul.f32 %v4606, %v793
    %v4678 = vmul.f32 %v4606, %v797
    %v4679 = vmul.f32 %v4606, %v801
    %v4680 = vmul.f32 %v4606, %v805
    %v4681 = vmul.f32 %v4606, %v809
    %v4682 = vmul.f32 %v4611, %v685
    %v4683 = vmul.f32 %v4611, %v689
    %v4684 = vmul.f32 %v4611, %v693
    %v4685 = vmul.f32 %v4611, %v697
    %v4686 = vmul.f32 %v4611, %v701
    %v4687 = vmul.f32 %v4611, %v705
    %v4688 = vmul.f32 %v4611, %v709
    %v4689 = vmul.f32 %v4611, %v713
    %v4690 = vmul.f32 %v4611, %v717
    %v4691 = vmul.f32 %v4611, %v721
    %v4692 = vmul.f32 %v4611, %v725
    %v4693 = vmul.f32 %v4611, %v729
    %v4694 = vmul.f32 %v4611, %v733
    %v4695 = vmul.f32 %v4611, %v737
    %v4696 = vmul.f32 %v4611, %v741
    %v4697 = vmul.f32 %v4611, %v745
    %v4698 = vmul.f32 %v4611, %v749
    %v4699 = vmul.f32 %v4611, %v753
    %v4700 = vmul.f32 %v4611, %v757
    %v4701 = vmul.f32 %v4611, %v761
    %v4702 = vmul.f32 %v4611, %v765
    %v4703 = vmul.f32 %v4611, %v769
    %v4704 = vmul.f32 %v4611, %v773
    %v4705 = vmul.f32 %v4611, %v777
    %v4706 = vmul.f32 %v4611, %v781
    %v4707 = vmul.f32 %v4611, %v785
    %v4708 = vmul.f32 %v4611, %v789
    %v4709 = vmul.f32 %v4611, %v793
    %v4710 = vmul.f32 %v4611, %v797
    %v4711 = vmul.f32 %v4611, %v801
    %v4712 = vmul.f32 %v4611, %v805
    %v4713 = vmul.f32 %v4611, %v809
    %v4714 = vmul.f32 %v4616, %v685
    %v4715 = vmul.f32 %v4616, %v689
    %v4716 = vmul.f32 %v4616, %v693
    %v4717 = vmul.f32 %v4616, %v697
    %v4718 = vmul.f32 %v4616, %v701
    %v4719 = vmul.f32 %v4616, %v705
    %v4720 = vmul.f32 %v4616, %v709
    %v4721 = vmul.f32 %v4616, %v713
    %v4722 = vmul.f32 %v4616, %v717
    %v4723 = vmul.f32 %v4616, %v721
    %v4724 = vmul.f32 %v4616, %v725
    %v4725 = vmul.f32 %v4616, %v729
    %v4726 = vmul.f32 %v4616, %v733
    %v4727 = vmul.f32 %v4616, %v737
    %v4728 = vmul.f32 %v4616, %v741
    %v4729 = vmul.f32 %v4616, %v745
    %v4730 = vmul.f32 %v4616, %v749
    %v4731 = vmul.f32 %v4616, %v753
    %v4732 = vmul.f32 %v4616, %v757
    %v4733 = vmul.f32 %v4616, %v761
    %v4734 = vmul.f32 %v4616, %v765
    %v4735 = vmul.f32 %v4616, %v769
    %v4736 = vmul.f32 %v4616, %v773
    %v4737 = vmul.f32 %v4616, %v777
    %v4738 = vmul.f32 %v4616, %v781
    %v4739 = vmul.f32 %v4616, %v785
    %v4740 = vmul.f32 %v4616, %v789
    %v4741 = vmul.f32 %v4616, %v793
    %v4742 = vmul.f32 %v4616, %v797
    %v4743 = vmul.f32 %v4616, %v801
    %v4744 = vmul.f32 %v4616, %v805
    %v4745 = vmul.f32 %v4616, %v809
    %4746 = vset.pattern.permute.xlu0 1
    %4747 = vperm.xlu0 %4746, %v4589
    %v4748 = vpop.permute.xlu0 %4747
    %4750 = vset.pattern.permute.xlu0 1
    %4751 = vperm.xlu0 %4750, %v4590
    %v4752 = vpop.permute.xlu0 %4751
    %4754 = vset.pattern.permute.xlu0 1
    %4755 = vperm.xlu0 %4754, %v4591
    %v4756 = vpop.permute.xlu0 %4755
    %4758 = vset.pattern.permute.xlu0 1
    %4759 = vperm.xlu0 %4758, %v4592
    %v4760 = vpop.permute.xlu0 %4759
    %v4762 = vmul.f32 %v4748, %v2969
    %v4763 = vmul.f32 %v4748, %v2973
    %v4764 = vmul.f32 %v4748, %v2977
    %v4765 = vmul.f32 %v4748, %v2981
    %v4766 = vmul.f32 %v4748, %v2985
    %v4767 = vmul.f32 %v4748, %v2989
    %v4768 = vmul.f32 %v4748, %v2993
    %v4769 = vmul.f32 %v4748, %v2997
    %v4770 = vmul.f32 %v4748, %v3001
    %v4771 = vmul.f32 %v4748, %v3005
    %v4772 = vmul.f32 %v4748, %v3009
    %v4773 = vmul.f32 %v4748, %v3013
    %v4774 = vmul.f32 %v4748, %v3017
    %v4775 = vmul.f32 %v4748, %v3021
    %v4776 = vmul.f32 %v4748, %v3025
    %v4777 = vmul.f32 %v4748, %v3029
    %v4778 = vmul.f32 %v4748, %v3033
    %v4779 = vmul.f32 %v4748, %v3037
    %v4780 = vmul.f32 %v4748, %v3041
    %v4781 = vmul.f32 %v4748, %v3045
    %v4782 = vmul.f32 %v4748, %v3049
    %v4783 = vmul.f32 %v4748, %v3053
    %v4784 = vmul.f32 %v4748, %v3057
    %v4785 = vmul.f32 %v4748, %v3061
    %v4786 = vmul.f32 %v4748, %v3065
    %v4787 = vmul.f32 %v4748, %v3069
    %v4788 = vmul.f32 %v4748, %v3073
    %v4789 = vmul.f32 %v4748, %v3077
    %v4790 = vmul.f32 %v4748, %v3081
    %v4791 = vmul.f32 %v4748, %v3085
    %v4792 = vmul.f32 %v4748, %v3089
    %v4793 = vmul.f32 %v4748, %v3093
    %v4794 = vmul.f32 %v4752, %v2969
    %v4795 = vmul.f32 %v4752, %v2973
    %v4796 = vmul.f32 %v4752, %v2977
    %v4797 = vmul.f32 %v4752, %v2981
    %v4798 = vmul.f32 %v4752, %v2985
    %v4799 = vmul.f32 %v4752, %v2989
    %v4800 = vmul.f32 %v4752, %v2993
    %v4801 = vmul.f32 %v4752, %v2997
    %v4802 = vmul.f32 %v4752, %v3001
    %v4803 = vmul.f32 %v4752, %v3005
    %v4804 = vmul.f32 %v4752, %v3009
    %v4805 = vmul.f32 %v4752, %v3013
    %v4806 = vmul.f32 %v4752, %v3017
    %v4807 = vmul.f32 %v4752, %v3021
    %v4808 = vmul.f32 %v4752, %v3025
    %v4809 = vmul.f32 %v4752, %v3029
    %v4810 = vmul.f32 %v4752, %v3033
    %v4811 = vmul.f32 %v4752, %v3037
    %v4812 = vmul.f32 %v4752, %v3041
    %v4813 = vmul.f32 %v4752, %v3045
    %v4814 = vmul.f32 %v4752, %v3049
    %v4815 = vmul.f32 %v4752, %v3053
    %v4816 = vmul.f32 %v4752, %v3057
    %v4817 = vmul.f32 %v4752, %v3061
    %v4818 = vmul.f32 %v4752, %v3065
    %v4819 = vmul.f32 %v4752, %v3069
    %v4820 = vmul.f32 %v4752, %v3073
    %v4821 = vmul.f32 %v4752, %v3077
    %v4822 = vmul.f32 %v4752, %v3081
    %v4823 = vmul.f32 %v4752, %v3085
    %v4824 = vmul.f32 %v4752, %v3089
    %v4825 = vmul.f32 %v4752, %v3093
    %v4826 = vmul.f32 %v4756, %v2969
    %v4827 = vmul.f32 %v4756, %v2973
    %v4828 = vmul.f32 %v4756, %v2977
    %v4829 = vmul.f32 %v4756, %v2981
    %v4830 = vmul.f32 %v4756, %v2985
    %v4831 = vmul.f32 %v4756, %v2989
    %v4832 = vmul.f32 %v4756, %v2993
    %v4833 = vmul.f32 %v4756, %v2997
    %v4834 = vmul.f32 %v4756, %v3001
    %v4835 = vmul.f32 %v4756, %v3005
    %v4836 = vmul.f32 %v4756, %v3009
    %v4837 = vmul.f32 %v4756, %v3013
    %v4838 = vmul.f32 %v4756, %v3017
    %v4839 = vmul.f32 %v4756, %v3021
    %v4840 = vmul.f32 %v4756, %v3025
    %v4841 = vmul.f32 %v4756, %v3029
    %v4842 = vmul.f32 %v4756, %v3033
    %v4843 = vmul.f32 %v4756, %v3037
    %v4844 = vmul.f32 %v4756, %v3041
    %v4845 = vmul.f32 %v4756, %v3045
    %v4846 = vmul.f32 %v4756, %v3049
    %v4847 = vmul.f32 %v4756, %v3053
    %v4848 = vmul.f32 %v4756, %v3057
    %v4849 = vmul.f32 %v4756, %v3061
    %v4850 = vmul.f32 %v4756, %v3065
    %v4851 = vmul.f32 %v4756, %v3069
    %v4852 = vmul.f32 %v4756, %v3073
    %v4853 = vmul.f32 %v4756, %v3077
    %v4854 = vmul.f32 %v4756, %v3081
    %v4855 = vmul.f32 %v4756, %v3085
    %v4856 = vmul.f32 %v4756, %v3089
    %v4857 = vmul.f32 %v4756, %v3093
    %v4858 = vmul.f32 %v4760, %v2969
    %v4859 = vmul.f32 %v4760, %v2973
    %v4860 = vmul.f32 %v4760, %v2977
    %v4861 = vmul.f32 %v4760, %v2981
    %v4862 = vmul.f32 %v4760, %v2985
    %v4863 = vmul.f32 %v4760, %v2989
    %v4864 = vmul.f32 %v4760, %v2993
    %v4865 = vmul.f32 %v4760, %v2997
    %v4866 = vmul.f32 %v4760, %v3001
    %v4867 = vmul.f32 %v4760, %v3005
    %v4868 = vmul.f32 %v4760, %v3009
    %v4869 = vmul.f32 %v4760, %v3013
    %v4870 = vmul.f32 %v4760, %v3017
    %v4871 = vmul.f32 %v4760, %v3021
    %v4872 = vmul.f32 %v4760, %v3025
    %v4873 = vmul.f32 %v4760, %v3029
    %v4874 = vmul.f32 %v4760, %v3033
    %v4875 = vmul.f32 %v4760, %v3037
    %v4876 = vmul.f32 %v4760, %v3041
    %v4877 = vmul.f32 %v4760, %v3045
    %v4878 = vmul.f32 %v4760, %v3049
    %v4879 = vmul.f32 %v4760, %v3053
    %v4880 = vmul.f32 %v4760, %v3057
    %v4881 = vmul.f32 %v4760, %v3061
    %v4882 = vmul.f32 %v4760, %v3065
    %v4883 = vmul.f32 %v4760, %v3069
    %v4884 = vmul.f32 %v4760, %v3073
    %v4885 = vmul.f32 %v4760, %v3077
    %v4886 = vmul.f32 %v4760, %v3081
    %v4887 = vmul.f32 %v4760, %v3085
    %v4888 = vmul.f32 %v4760, %v3089
    %v4889 = vmul.f32 %v4760, %v3093
    %v4890 = vadd.f32 %v4618, %v4762
    %v4891 = vadd.f32 %v4619, %v4763
    %v4892 = vadd.f32 %v4620, %v4764
    %v4893 = vadd.f32 %v4621, %v4765
    %v4894 = vadd.f32 %v4622, %v4766
    %v4895 = vadd.f32 %v4623, %v4767
    %v4896 = vadd.f32 %v4624, %v4768
    %v4897 = vadd.f32 %v4625, %v4769
    %v4898 = vadd.f32 %v4626, %v4770
    %v4899 = vadd.f32 %v4627, %v4771
    %v4900 = vadd.f32 %v4628, %v4772
    %v4901 = vadd.f32 %v4629, %v4773
    %v4902 = vadd.f32 %v4630, %v4774
    %v4903 = vadd.f32 %v4631, %v4775
    %v4904 = vadd.f32 %v4632, %v4776
    %v4905 = vadd.f32 %v4633, %v4777
    %v4906 = vadd.f32 %v4634, %v4778
    %v4907 = vadd.f32 %v4635, %v4779
    %v4908 = vadd.f32 %v4636, %v4780
    %v4909 = vadd.f32 %v4637, %v4781
    %v4910 = vadd.f32 %v4638, %v4782
    %v4911 = vadd.f32 %v4639, %v4783
    %v4912 = vadd.f32 %v4640, %v4784
    %v4913 = vadd.f32 %v4641, %v4785
    %v4914 = vadd.f32 %v4642, %v4786
    %v4915 = vadd.f32 %v4643, %v4787
    %v4916 = vadd.f32 %v4644, %v4788
    %v4917 = vadd.f32 %v4645, %v4789
    %v4918 = vadd.f32 %v4646, %v4790
    %v4919 = vadd.f32 %v4647, %v4791
    %v4920 = vadd.f32 %v4648, %v4792
    %v4921 = vadd.f32 %v4649, %v4793
    %v4922 = vadd.f32 %v4650, %v4794
    %v4923 = vadd.f32 %v4651, %v4795
    %v4924 = vadd.f32 %v4652, %v4796
    %v4925 = vadd.f32 %v4653, %v4797
    %v4926 = vadd.f32 %v4654, %v4798
    %v4927 = vadd.f32 %v4655, %v4799
    %v4928 = vadd.f32 %v4656, %v4800
    %v4929 = vadd.f32 %v4657, %v4801
    %v4930 = vadd.f32 %v4658, %v4802
    %v4931 = vadd.f32 %v4659, %v4803
    %v4932 = vadd.f32 %v4660, %v4804
    %v4933 = vadd.f32 %v4661, %v4805
    %v4934 = vadd.f32 %v4662, %v4806
    %v4935 = vadd.f32 %v4663, %v4807
    %v4936 = vadd.f32 %v4664, %v4808
    %v4937 = vadd.f32 %v4665, %v4809
    %v4938 = vadd.f32 %v4666, %v4810
    %v4939 = vadd.f32 %v4667, %v4811
    %v4940 = vadd.f32 %v4668, %v4812
    %v4941 = vadd.f32 %v4669, %v4813
    %v4942 = vadd.f32 %v4670, %v4814
    %v4943 = vadd.f32 %v4671, %v4815
    %v4944 = vadd.f32 %v4672, %v4816
    %v4945 = vadd.f32 %v4673, %v4817
    %v4946 = vadd.f32 %v4674, %v4818
    %v4947 = vadd.f32 %v4675, %v4819
    %v4948 = vadd.f32 %v4676, %v4820
    %v4949 = vadd.f32 %v4677, %v4821
    %v4950 = vadd.f32 %v4678, %v4822
    %v4951 = vadd.f32 %v4679, %v4823
    %v4952 = vadd.f32 %v4680, %v4824
    %v4953 = vadd.f32 %v4681, %v4825
    %v4954 = vadd.f32 %v4682, %v4826
    %v4955 = vadd.f32 %v4683, %v4827
    %v4956 = vadd.f32 %v4684, %v4828
    %v4957 = vadd.f32 %v4685, %v4829
    %v4958 = vadd.f32 %v4686, %v4830
    %v4959 = vadd.f32 %v4687, %v4831
    %v4960 = vadd.f32 %v4688, %v4832
    %v4961 = vadd.f32 %v4689, %v4833
    %v4962 = vadd.f32 %v4690, %v4834
    %v4963 = vadd.f32 %v4691, %v4835
    %v4964 = vadd.f32 %v4692, %v4836
    %v4965 = vadd.f32 %v4693, %v4837
    %v4966 = vadd.f32 %v4694, %v4838
    %v4967 = vadd.f32 %v4695, %v4839
    %v4968 = vadd.f32 %v4696, %v4840
    %v4969 = vadd.f32 %v4697, %v4841
    %v4970 = vadd.f32 %v4698, %v4842
    %v4971 = vadd.f32 %v4699, %v4843
    %v4972 = vadd.f32 %v4700, %v4844
    %v4973 = vadd.f32 %v4701, %v4845
    %v4974 = vadd.f32 %v4702, %v4846
    %v4975 = vadd.f32 %v4703, %v4847
    %v4976 = vadd.f32 %v4704, %v4848
    %v4977 = vadd.f32 %v4705, %v4849
    %v4978 = vadd.f32 %v4706, %v4850
    %v4979 = vadd.f32 %v4707, %v4851
    %v4980 = vadd.f32 %v4708, %v4852
    %v4981 = vadd.f32 %v4709, %v4853
    %v4982 = vadd.f32 %v4710, %v4854
    %v4983 = vadd.f32 %v4711, %v4855
    %v4984 = vadd.f32 %v4712, %v4856
    %v4985 = vadd.f32 %v4713, %v4857
    %v4986 = vadd.f32 %v4714, %v4858
    %v4987 = vadd.f32 %v4715, %v4859
    %v4988 = vadd.f32 %v4716, %v4860
    %v4989 = vadd.f32 %v4717, %v4861
    %v4990 = vadd.f32 %v4718, %v4862
    %v4991 = vadd.f32 %v4719, %v4863
    %v4992 = vadd.f32 %v4720, %v4864
    %v4993 = vadd.f32 %v4721, %v4865
    %v4994 = vadd.f32 %v4722, %v4866
    %v4995 = vadd.f32 %v4723, %v4867
    %v4996 = vadd.f32 %v4724, %v4868
    %v4997 = vadd.f32 %v4725, %v4869
    %v4998 = vadd.f32 %v4726, %v4870
    %v4999 = vadd.f32 %v4727, %v4871
    %v5000 = vadd.f32 %v4728, %v4872
    %v5001 = vadd.f32 %v4729, %v4873
    %v5002 = vadd.f32 %v4730, %v4874
    %v5003 = vadd.f32 %v4731, %v4875
    %v5004 = vadd.f32 %v4732, %v4876
    %v5005 = vadd.f32 %v4733, %v4877
    %v5006 = vadd.f32 %v4734, %v4878
    %v5007 = vadd.f32 %v4735, %v4879
    %v5008 = vadd.f32 %v4736, %v4880
    %v5009 = vadd.f32 %v4737, %v4881
    %v5010 = vadd.f32 %v4738, %v4882
    %v5011 = vadd.f32 %v4739, %v4883
    %v5012 = vadd.f32 %v4740, %v4884
    %v5013 = vadd.f32 %v4741, %v4885
    %v5014 = vadd.f32 %v4742, %v4886
    %v5015 = vadd.f32 %v4743, %v4887
    %v5016 = vadd.f32 %v4744, %v4888
    %v5017 = vadd.f32 %v4745, %v4889
    %5019 = vset.pattern.permute.xlu0 0
    %5020 = vperm.xlu0 %5019, %v4594
    %v5021 = vpop.permute.xlu0 %5020
    %5024 = vset.pattern.permute.xlu0 0
    %5025 = vperm.xlu0 %5024, %v4595
    %v5026 = vpop.permute.xlu0 %5025
    %5029 = vset.pattern.permute.xlu0 0
    %5030 = vperm.xlu0 %5029, %v4596
    %v5031 = vpop.permute.xlu0 %5030
    %5034 = vset.pattern.permute.xlu0 0
    %5035 = vperm.xlu0 %5034, %v4597
    %v5036 = vpop.permute.xlu0 %5035
    %v5038 = vadd.f32 %v4890, %v5021
    %v5039 = vadd.f32 %v4891, %v5021
    %v5040 = vadd.f32 %v4892, %v5021
    %v5041 = vadd.f32 %v4893, %v5021
    %v5042 = vadd.f32 %v4894, %v5021
    %v5043 = vadd.f32 %v4895, %v5021
    %v5044 = vadd.f32 %v4896, %v5021
    %v5045 = vadd.f32 %v4897, %v5021
    %v5046 = vadd.f32 %v4898, %v5021
    %v5047 = vadd.f32 %v4899, %v5021
    %v5048 = vadd.f32 %v4900, %v5021
    %v5049 = vadd.f32 %v4901, %v5021
    %v5050 = vadd.f32 %v4902, %v5021
    %v5051 = vadd.f32 %v4903, %v5021
    %v5052 = vadd.f32 %v4904, %v5021
    %v5053 = vadd.f32 %v4905, %v5021
    %v5054 = vadd.f32 %v4906, %v5021
    %v5055 = vadd.f32 %v4907, %v5021
    %v5056 = vadd.f32 %v4908, %v5021
    %v5057 = vadd.f32 %v4909, %v5021
    %v5058 = vadd.f32 %v4910, %v5021
    %v5059 = vadd.f32 %v4911, %v5021
    %v5060 = vadd.f32 %v4912, %v5021
    %v5061 = vadd.f32 %v4913, %v5021
    %v5062 = vadd.f32 %v4914, %v5021
    %v5063 = vadd.f32 %v4915, %v5021
    %v5064 = vadd.f32 %v4916, %v5021
    %v5065 = vadd.f32 %v4917, %v5021
    %v5066 = vadd.f32 %v4918, %v5021
    %v5067 = vadd.f32 %v4919, %v5021
    %v5068 = vadd.f32 %v4920, %v5021
    %v5069 = vadd.f32 %v4921, %v5021
    %v5070 = vadd.f32 %v4922, %v5026
    %v5071 = vadd.f32 %v4923, %v5026
    %v5072 = vadd.f32 %v4924, %v5026
    %v5073 = vadd.f32 %v4925, %v5026
    %v5074 = vadd.f32 %v4926, %v5026
    %v5075 = vadd.f32 %v4927, %v5026
    %v5076 = vadd.f32 %v4928, %v5026
    %v5077 = vadd.f32 %v4929, %v5026
    %v5078 = vadd.f32 %v4930, %v5026
    %v5079 = vadd.f32 %v4931, %v5026
    %v5080 = vadd.f32 %v4932, %v5026
    %v5081 = vadd.f32 %v4933, %v5026
    %v5082 = vadd.f32 %v4934, %v5026
    %v5083 = vadd.f32 %v4935, %v5026
    %v5084 = vadd.f32 %v4936, %v5026
    %v5085 = vadd.f32 %v4937, %v5026
    %v5086 = vadd.f32 %v4938, %v5026
    %v5087 = vadd.f32 %v4939, %v5026
    %v5088 = vadd.f32 %v4940, %v5026
    %v5089 = vadd.f32 %v4941, %v5026
    %v5090 = vadd.f32 %v4942, %v5026
    %v5091 = vadd.f32 %v4943, %v5026
    %v5092 = vadd.f32 %v4944, %v5026
    %v5093 = vadd.f32 %v4945, %v5026
    %v5094 = vadd.f32 %v4946, %v5026
    %v5095 = vadd.f32 %v4947, %v5026
    %v5096 = vadd.f32 %v4948, %v5026
    %v5097 = vadd.f32 %v4949, %v5026
    %v5098 = vadd.f32 %v4950, %v5026
    %v5099 = vadd.f32 %v4951, %v5026
    %v5100 = vadd.f32 %v4952, %v5026
    %v5101 = vadd.f32 %v4953, %v5026
    %v5102 = vadd.f32 %v4954, %v5031
    %v5103 = vadd.f32 %v4955, %v5031
    %v5104 = vadd.f32 %v4956, %v5031
    %v5105 = vadd.f32 %v4957, %v5031
    %v5106 = vadd.f32 %v4958, %v5031
    %v5107 = vadd.f32 %v4959, %v5031
    %v5108 = vadd.f32 %v4960, %v5031
    %v5109 = vadd.f32 %v4961, %v5031
    %v5110 = vadd.f32 %v4962, %v5031
    %v5111 = vadd.f32 %v4963, %v5031
    %v5112 = vadd.f32 %v4964, %v5031
    %v5113 = vadd.f32 %v4965, %v5031
    %v5114 = vadd.f32 %v4966, %v5031
    %v5115 = vadd.f32 %v4967, %v5031
    %v5116 = vadd.f32 %v4968, %v5031
    %v5117 = vadd.f32 %v4969, %v5031
    %v5118 = vadd.f32 %v4970, %v5031
    %v5119 = vadd.f32 %v4971, %v5031
    %v5120 = vadd.f32 %v4972, %v5031
    %v5121 = vadd.f32 %v4973, %v5031
    %v5122 = vadd.f32 %v4974, %v5031
    %v5123 = vadd.f32 %v4975, %v5031
    %v5124 = vadd.f32 %v4976, %v5031
    %v5125 = vadd.f32 %v4977, %v5031
    %v5126 = vadd.f32 %v4978, %v5031
    %v5127 = vadd.f32 %v4979, %v5031
    %v5128 = vadd.f32 %v4980, %v5031
    %v5129 = vadd.f32 %v4981, %v5031
    %v5130 = vadd.f32 %v4982, %v5031
    %v5131 = vadd.f32 %v4983, %v5031
    %v5132 = vadd.f32 %v4984, %v5031
    %v5133 = vadd.f32 %v4985, %v5031
    %v5134 = vadd.f32 %v4986, %v5036
    %v5135 = vadd.f32 %v4987, %v5036
    %v5136 = vadd.f32 %v4988, %v5036
    %v5137 = vadd.f32 %v4989, %v5036
    %v5138 = vadd.f32 %v4990, %v5036
    %v5139 = vadd.f32 %v4991, %v5036
    %v5140 = vadd.f32 %v4992, %v5036
    %v5141 = vadd.f32 %v4993, %v5036
    %v5142 = vadd.f32 %v4994, %v5036
    %v5143 = vadd.f32 %v4995, %v5036
    %v5144 = vadd.f32 %v4996, %v5036
    %v5145 = vadd.f32 %v4997, %v5036
    %v5146 = vadd.f32 %v4998, %v5036
    %v5147 = vadd.f32 %v4999, %v5036
    %v5148 = vadd.f32 %v5000, %v5036
    %v5149 = vadd.f32 %v5001, %v5036
    %v5150 = vadd.f32 %v5002, %v5036
    %v5151 = vadd.f32 %v5003, %v5036
    %v5152 = vadd.f32 %v5004, %v5036
    %v5153 = vadd.f32 %v5005, %v5036
    %v5154 = vadd.f32 %v5006, %v5036
    %v5155 = vadd.f32 %v5007, %v5036
    %v5156 = vadd.f32 %v5008, %v5036
    %v5157 = vadd.f32 %v5009, %v5036
    %v5158 = vadd.f32 %v5010, %v5036
    %v5159 = vadd.f32 %v5011, %v5036
    %v5160 = vadd.f32 %v5012, %v5036
    %v5161 = vadd.f32 %v5013, %v5036
    %v5162 = vadd.f32 %v5014, %v5036
    %v5163 = vadd.f32 %v5015, %v5036
    %v5164 = vadd.f32 %v5016, %v5036
    %v5165 = vadd.f32 %v5017, %v5036
    %v5166 = vmax.f32 %v5038, 0.0
    %v5167 = vmax.f32 %v5039, 0.0
    %v5168 = vmax.f32 %v5040, 0.0
    %v5169 = vmax.f32 %v5041, 0.0
    %v5170 = vmax.f32 %v5042, 0.0
    %v5171 = vmax.f32 %v5043, 0.0
    %v5172 = vmax.f32 %v5044, 0.0
    %v5173 = vmax.f32 %v5045, 0.0
    %v5174 = vmax.f32 %v5046, 0.0
    %v5175 = vmax.f32 %v5047, 0.0
    %v5176 = vmax.f32 %v5048, 0.0
    %v5177 = vmax.f32 %v5049, 0.0
    %v5178 = vmax.f32 %v5050, 0.0
    %v5179 = vmax.f32 %v5051, 0.0
    %v5180 = vmax.f32 %v5052, 0.0
    %v5181 = vmax.f32 %v5053, 0.0
    %v5182 = vmax.f32 %v5054, 0.0
    %v5183 = vmax.f32 %v5055, 0.0
    %v5184 = vmax.f32 %v5056, 0.0
    %v5185 = vmax.f32 %v5057, 0.0
    %v5186 = vmax.f32 %v5058, 0.0
    %v5187 = vmax.f32 %v5059, 0.0
    %v5188 = vmax.f32 %v5060, 0.0
    %v5189 = vmax.f32 %v5061, 0.0
    %v5190 = vmax.f32 %v5062, 0.0
    %v5191 = vmax.f32 %v5063, 0.0
    %v5192 = vmax.f32 %v5064, 0.0
    %v5193 = vmax.f32 %v5065, 0.0
    %v5194 = vmax.f32 %v5066, 0.0
    %v5195 = vmax.f32 %v5067, 0.0
    %v5196 = vmax.f32 %v5068, 0.0
    %v5197 = vmax.f32 %v5069, 0.0
    %v5198 = vmax.f32 %v5070, 0.0
    %v5199 = vmax.f32 %v5071, 0.0
    %v5200 = vmax.f32 %v5072, 0.0
    %v5201 = vmax.f32 %v5073, 0.0
    %v5202 = vmax.f32 %v5074, 0.0
    %v5203 = vmax.f32 %v5075, 0.0
    %v5204 = vmax.f32 %v5076, 0.0
    %v5205 = vmax.f32 %v5077, 0.0
    %v5206 = vmax.f32 %v5078, 0.0
    %v5207 = vmax.f32 %v5079, 0.0
    %v5208 = vmax.f32 %v5080, 0.0
    %v5209 = vmax.f32 %v5081, 0.0
    %v5210 = vmax.f32 %v5082, 0.0
    %v5211 = vmax.f32 %v5083, 0.0
    %v5212 = vmax.f32 %v5084, 0.0
    %v5213 = vmax.f32 %v5085, 0.0
    %v5214 = vmax.f32 %v5086, 0.0
    %v5215 = vmax.f32 %v5087, 0.0
    %v5216 = vmax.f32 %v5088, 0.0
    %v5217 = vmax.f32 %v5089, 0.0
    %v5218 = vmax.f32 %v5090, 0.0
    %v5219 = vmax.f32 %v5091, 0.0
    %v5220 = vmax.f32 %v5092, 0.0
    %v5221 = vmax.f32 %v5093, 0.0
    %v5222 = vmax.f32 %v5094, 0.0
    %v5223 = vmax.f32 %v5095, 0.0
    %v5224 = vmax.f32 %v5096, 0.0
    %v5225 = vmax.f32 %v5097, 0.0
    %v5226 = vmax.f32 %v5098, 0.0
    %v5227 = vmax.f32 %v5099, 0.0
    %v5228 = vmax.f32 %v5100, 0.0
    %v5229 = vmax.f32 %v5101, 0.0
    %v5230 = vmax.f32 %v5102, 0.0
    %v5231 = vmax.f32 %v5103, 0.0
    %v5232 = vmax.f32 %v5104, 0.0
    %v5233 = vmax.f32 %v5105, 0.0
    %v5234 = vmax.f32 %v5106, 0.0
    %v5235 = vmax.f32 %v5107, 0.0
    %v5236 = vmax.f32 %v5108, 0.0
    %v5237 = vmax.f32 %v5109, 0.0
    %v5238 = vmax.f32 %v5110, 0.0
    %v5239 = vmax.f32 %v5111, 0.0
    %v5240 = vmax.f32 %v5112, 0.0
    %v5241 = vmax.f32 %v5113, 0.0
    %v5242 = vmax.f32 %v5114, 0.0
    %v5243 = vmax.f32 %v5115, 0.0
    %v5244 = vmax.f32 %v5116, 0.0
    %v5245 = vmax.f32 %v5117, 0.0
    %v5246 = vmax.f32 %v5118, 0.0
    %v5247 = vmax.f32 %v5119, 0.0
    %v5248 = vmax.f32 %v5120, 0.0
    %v5249 = vmax.f32 %v5121, 0.0
    %v5250 = vmax.f32 %v5122, 0.0
    %v5251 = vmax.f32 %v5123, 0.0
    %v5252 = vmax.f32 %v5124, 0.0
    %v5253 = vmax.f32 %v5125, 0.0
    %v5254 = vmax.f32 %v5126, 0.0
    %v5255 = vmax.f32 %v5127, 0.0
    %v5256 = vmax.f32 %v5128, 0.0
    %v5257 = vmax.f32 %v5129, 0.0
    %v5258 = vmax.f32 %v5130, 0.0
    %v5259 = vmax.f32 %v5131, 0.0
    %v5260 = vmax.f32 %v5132, 0.0
    %v5261 = vmax.f32 %v5133, 0.0
    %v5262 = vmax.f32 %v5134, 0.0
    %v5263 = vmax.f32 %v5135, 0.0
    %v5264 = vmax.f32 %v5136, 0.0
    %v5265 = vmax.f32 %v5137, 0.0
    %v5266 = vmax.f32 %v5138, 0.0
    %v5267 = vmax.f32 %v5139, 0.0
    %v5268 = vmax.f32 %v5140, 0.0
    %v5269 = vmax.f32 %v5141, 0.0
    %v5270 = vmax.f32 %v5142, 0.0
    %v5271 = vmax.f32 %v5143, 0.0
    %v5272 = vmax.f32 %v5144, 0.0
    %v5273 = vmax.f32 %v5145, 0.0
    %v5274 = vmax.f32 %v5146, 0.0
    %v5275 = vmax.f32 %v5147, 0.0
    %v5276 = vmax.f32 %v5148, 0.0
    %v5277 = vmax.f32 %v5149, 0.0
    %v5278 = vmax.f32 %v5150, 0.0
    %v5279 = vmax.f32 %v5151, 0.0
    %v5280 = vmax.f32 %v5152, 0.0
    %v5281 = vmax.f32 %v5153, 0.0
    %v5282 = vmax.f32 %v5154, 0.0
    %v5283 = vmax.f32 %v5155, 0.0
    %v5284 = vmax.f32 %v5156, 0.0
    %v5285 = vmax.f32 %v5157, 0.0
    %v5286 = vmax.f32 %v5158, 0.0
    %v5287 = vmax.f32 %v5159, 0.0
    %v5288 = vmax.f32 %v5160, 0.0
    %v5289 = vmax.f32 %v5161, 0.0
    %v5290 = vmax.f32 %v5162, 0.0
    %v5291 = vmax.f32 %v5163, 0.0
    %v5292 = vmax.f32 %v5164, 0.0
    %v5293 = vmax.f32 %v5165, 0.0
    %v5294 = vadd.f32 %v4460, %v5166
    %v5295 = vadd.f32 %v4461, %v5167
    %v5296 = vadd.f32 %v4462, %v5168
    %v5297 = vadd.f32 %v4463, %v5169
    %v5298 = vadd.f32 %v4464, %v5170
    %v5299 = vadd.f32 %v4465, %v5171
    %v5300 = vadd.f32 %v4466, %v5172
    %v5301 = vadd.f32 %v4467, %v5173
    %v5302 = vadd.f32 %v4468, %v5174
    %v5303 = vadd.f32 %v4469, %v5175
    %v5304 = vadd.f32 %v4470, %v5176
    %v5305 = vadd.f32 %v4471, %v5177
    %v5306 = vadd.f32 %v4472, %v5178
    %v5307 = vadd.f32 %v4473, %v5179
    %v5308 = vadd.f32 %v4474, %v5180
    %v5309 = vadd.f32 %v4475, %v5181
    %v5310 = vadd.f32 %v4476, %v5182
    %v5311 = vadd.f32 %v4477, %v5183
    %v5312 = vadd.f32 %v4478, %v5184
    %v5313 = vadd.f32 %v4479, %v5185
    %v5314 = vadd.f32 %v4480, %v5186
    %v5315 = vadd.f32 %v4481, %v5187
    %v5316 = vadd.f32 %v4482, %v5188
    %v5317 = vadd.f32 %v4483, %v5189
    %v5318 = vadd.f32 %v4484, %v5190
    %v5319 = vadd.f32 %v4485, %v5191
    %v5320 = vadd.f32 %v4486, %v5192
    %v5321 = vadd.f32 %v4487, %v5193
    %v5322 = vadd.f32 %v4488, %v5194
    %v5323 = vadd.f32 %v4489, %v5195
    %v5324 = vadd.f32 %v4490, %v5196
    %v5325 = vadd.f32 %v4491, %v5197
    %v5326 = vadd.f32 %v4492, %v5198
    %v5327 = vadd.f32 %v4493, %v5199
    %v5328 = vadd.f32 %v4494, %v5200
    %v5329 = vadd.f32 %v4495, %v5201
    %v5330 = vadd.f32 %v4496, %v5202
    %v5331 = vadd.f32 %v4497, %v5203
    %v5332 = vadd.f32 %v4498, %v5204
    %v5333 = vadd.f32 %v4499, %v5205
    %v5334 = vadd.f32 %v4500, %v5206
    %v5335 = vadd.f32 %v4501, %v5207
    %v5336 = vadd.f32 %v4502, %v5208
    %v5337 = vadd.f32 %v4503, %v5209
    %v5338 = vadd.f32 %v4504, %v5210
    %v5339 = vadd.f32 %v4505, %v5211
    %v5340 = vadd.f32 %v4506, %v5212
    %v5341 = vadd.f32 %v4507, %v5213
    %v5342 = vadd.f32 %v4508, %v5214
    %v5343 = vadd.f32 %v4509, %v5215
    %v5344 = vadd.f32 %v4510, %v5216
    %v5345 = vadd.f32 %v4511, %v5217
    %v5346 = vadd.f32 %v4512, %v5218
    %v5347 = vadd.f32 %v4513, %v5219
    %v5348 = vadd.f32 %v4514, %v5220
    %v5349 = vadd.f32 %v4515, %v5221
    %v5350 = vadd.f32 %v4516, %v5222
    %v5351 = vadd.f32 %v4517, %v5223
    %v5352 = vadd.f32 %v4518, %v5224
    %v5353 = vadd.f32 %v4519, %v5225
    %v5354 = vadd.f32 %v4520, %v5226
    %v5355 = vadd.f32 %v4521, %v5227
    %v5356 = vadd.f32 %v4522, %v5228
    %v5357 = vadd.f32 %v4523, %v5229
    %v5358 = vadd.f32 %v4524, %v5230
    %v5359 = vadd.f32 %v4525, %v5231
    %v5360 = vadd.f32 %v4526, %v5232
    %v5361 = vadd.f32 %v4527, %v5233
    %v5362 = vadd.f32 %v4528, %v5234
    %v5363 = vadd.f32 %v4529, %v5235
    %v5364 = vadd.f32 %v4530, %v5236
    %v5365 = vadd.f32 %v4531, %v5237
    %v5366 = vadd.f32 %v4532, %v5238
    %v5367 = vadd.f32 %v4533, %v5239
    %v5368 = vadd.f32 %v4534, %v5240
    %v5369 = vadd.f32 %v4535, %v5241
    %v5370 = vadd.f32 %v4536, %v5242
    %v5371 = vadd.f32 %v4537, %v5243
    %v5372 = vadd.f32 %v4538, %v5244
    %v5373 = vadd.f32 %v4539, %v5245
    %v5374 = vadd.f32 %v4540, %v5246
    %v5375 = vadd.f32 %v4541, %v5247
    %v5376 = vadd.f32 %v4542, %v5248
    %v5377 = vadd.f32 %v4543, %v5249
    %v5378 = vadd.f32 %v4544, %v5250
    %v5379 = vadd.f32 %v4545, %v5251
    %v5380 = vadd.f32 %v4546, %v5252
    %v5381 = vadd.f32 %v4547, %v5253
    %v5382 = vadd.f32 %v4548, %v5254
    %v5383 = vadd.f32 %v4549, %v5255
    %v5384 = vadd.f32 %v4550, %v5256
    %v5385 = vadd.f32 %v4551, %v5257
    %v5386 = vadd.f32 %v4552, %v5258
    %v5387 = vadd.f32 %v4553, %v5259
    %v5388 = vadd.f32 %v4554, %v5260
    %v5389 = vadd.f32 %v4555, %v5261
    %v5390 = vadd.f32 %v4556, %v5262
    %v5391 = vadd.f32 %v4557, %v5263
    %v5392 = vadd.f32 %v4558, %v5264
    %v5393 = vadd.f32 %v4559, %v5265
    %v5394 = vadd.f32 %v4560, %v5266
    %v5395 = vadd.f32 %v4561, %v5267
    %v5396 = vadd.f32 %v4562, %v5268
    %v5397 = vadd.f32 %v4563, %v5269
    %v5398 = vadd.f32 %v4564, %v5270
    %v5399 = vadd.f32 %v4565, %v5271
    %v5400 = vadd.f32 %v4566, %v5272
    %v5401 = vadd.f32 %v4567, %v5273
    %v5402 = vadd.f32 %v4568, %v5274
    %v5403 = vadd.f32 %v4569, %v5275
    %v5404 = vadd.f32 %v4570, %v5276
    %v5405 = vadd.f32 %v4571, %v5277
    %v5406 = vadd.f32 %v4572, %v5278
    %v5407 = vadd.f32 %v4573, %v5279
    %v5408 = vadd.f32 %v4574, %v5280
    %v5409 = vadd.f32 %v4575, %v5281
    %v5410 = vadd.f32 %v4576, %v5282
    %v5411 = vadd.f32 %v4577, %v5283
    %v5412 = vadd.f32 %v4578, %v5284
    %v5413 = vadd.f32 %v4579, %v5285
    %v5414 = vadd.f32 %v4580, %v5286
    %v5415 = vadd.f32 %v4581, %v5287
    %v5416 = vadd.f32 %v4582, %v5288
    %v5417 = vadd.f32 %v4583, %v5289
    %v5418 = vadd.f32 %v4584, %v5290
    %v5419 = vadd.f32 %v4585, %v5291
    %v5420 = vadd.f32 %v4586, %v5292
    %v5421 = vadd.f32 %v4587, %v5293
    %s5422 = scalar_lea.vmem %s1, 160
    %v5423 = vld [vmem:[%s5422] sm:$0xff]
    %v5424 = vld [vmem:[%s5422 + $0x8] sm:$0xff]
    %v5425 = vld [vmem:[%s5422 + $0x10] sm:$0xff]
    %v5426 = vld [vmem:[%s5422 + $0x18] sm:$0xff]
    %s5427 = scalar_lea.vmem %s2, 160
    %v5428 = vld [vmem:[%s5427] sm:$0xff]
    %v5429 = vld [vmem:[%s5427 + $0x8] sm:$0xff]
    %v5430 = vld [vmem:[%s5427 + $0x10] sm:$0xff]
    %v5431 = vld [vmem:[%s5427 + $0x18] sm:$0xff]
    %5433 = vset.pattern.permute.xlu0 0
    %5434 = vperm.xlu0 %5433, %v5423
    %v5435 = vpop.permute.xlu0 %5434
    %5438 = vset.pattern.permute.xlu0 0
    %5439 = vperm.xlu0 %5438, %v5424
    %v5440 = vpop.permute.xlu0 %5439
    %5443 = vset.pattern.permute.xlu0 0
    %5444 = vperm.xlu0 %5443, %v5425
    %v5445 = vpop.permute.xlu0 %5444
    %5448 = vset.pattern.permute.xlu0 0
    %5449 = vperm.xlu0 %5448, %v5426
    %v5450 = vpop.permute.xlu0 %5449
    %v5452 = vmul.f32 %v5435, %v1847
    %v5453 = vmul.f32 %v5435, %v1851
    %v5454 = vmul.f32 %v5435, %v1855
    %v5455 = vmul.f32 %v5435, %v1859
    %v5456 = vmul.f32 %v5435, %v1863
    %v5457 = vmul.f32 %v5435, %v1867
    %v5458 = vmul.f32 %v5435, %v1871
    %v5459 = vmul.f32 %v5435, %v1875
    %v5460 = vmul.f32 %v5435, %v1879
    %v5461 = vmul.f32 %v5435, %v1883
    %v5462 = vmul.f32 %v5435, %v1887
    %v5463 = vmul.f32 %v5435, %v1891
    %v5464 = vmul.f32 %v5435, %v1895
    %v5465 = vmul.f32 %v5435, %v1899
    %v5466 = vmul.f32 %v5435, %v1903
    %v5467 = vmul.f32 %v5435, %v1907
    %v5468 = vmul.f32 %v5435, %v1911
    %v5469 = vmul.f32 %v5435, %v1915
    %v5470 = vmul.f32 %v5435, %v1919
    %v5471 = vmul.f32 %v5435, %v1923
    %v5472 = vmul.f32 %v5435, %v1927
    %v5473 = vmul.f32 %v5435, %v1931
    %v5474 = vmul.f32 %v5435, %v1935
    %v5475 = vmul.f32 %v5435, %v1939
    %v5476 = vmul.f32 %v5435, %v1943
    %v5477 = vmul.f32 %v5435, %v1947
    %v5478 = vmul.f32 %v5435, %v1951
    %v5479 = vmul.f32 %v5435, %v1955
    %v5480 = vmul.f32 %v5435, %v1959
    %v5481 = vmul.f32 %v5435, %v1963
    %v5482 = vmul.f32 %v5435, %v1967
    %v5483 = vmul.f32 %v5435, %v1971
    %v5484 = vmul.f32 %v5440, %v1847
    %v5485 = vmul.f32 %v5440, %v1851
    %v5486 = vmul.f32 %v5440, %v1855
    %v5487 = vmul.f32 %v5440, %v1859
    %v5488 = vmul.f32 %v5440, %v1863
    %v5489 = vmul.f32 %v5440, %v1867
    %v5490 = vmul.f32 %v5440, %v1871
    %v5491 = vmul.f32 %v5440, %v1875
    %v5492 = vmul.f32 %v5440, %v1879
    %v5493 = vmul.f32 %v5440, %v1883
    %v5494 = vmul.f32 %v5440, %v1887
    %v5495 = vmul.f32 %v5440, %v1891
    %v5496 = vmul.f32 %v5440, %v1895
    %v5497 = vmul.f32 %v5440, %v1899
    %v5498 = vmul.f32 %v5440, %v1903
    %v5499 = vmul.f32 %v5440, %v1907
    %v5500 = vmul.f32 %v5440, %v1911
    %v5501 = vmul.f32 %v5440, %v1915
    %v5502 = vmul.f32 %v5440, %v1919
    %v5503 = vmul.f32 %v5440, %v1923
    %v5504 = vmul.f32 %v5440, %v1927
    %v5505 = vmul.f32 %v5440, %v1931
    %v5506 = vmul.f32 %v5440, %v1935
    %v5507 = vmul.f32 %v5440, %v1939
    %v5508 = vmul.f32 %v5440, %v1943
    %v5509 = vmul.f32 %v5440, %v1947
    %v5510 = vmul.f32 %v5440, %v1951
    %v5511 = vmul.f32 %v5440, %v1955
    %v5512 = vmul.f32 %v5440, %v1959
    %v5513 = vmul.f32 %v5440, %v1963
    %v5514 = vmul.f32 %v5440, %v1967
    %v5515 = vmul.f32 %v5440, %v1971
    %v5516 = vmul.f32 %v5445, %v1847
    %v5517 = vmul.f32 %v5445, %v1851
    %v5518 = vmul.f32 %v5445, %v1855
    %v5519 = vmul.f32 %v5445, %v1859
    %v5520 = vmul.f32 %v5445, %v1863
    %v5521 = vmul.f32 %v5445, %v1867
    %v5522 = vmul.f32 %v5445, %v1871
    %v5523 = vmul.f32 %v5445, %v1875
    %v5524 = vmul.f32 %v5445, %v1879
    %v5525 = vmul.f32 %v5445, %v1883
    %v5526 = vmul.f32 %v5445, %v1887
    %v5527 = vmul.f32 %v5445, %v1891
    %v5528 = vmul.f32 %v5445, %v1895
    %v5529 = vmul.f32 %v5445, %v1899
    %v5530 = vmul.f32 %v5445, %v1903
    %v5531 = vmul.f32 %v5445, %v1907
    %v5532 = vmul.f32 %v5445, %v1911
    %v5533 = vmul.f32 %v5445, %v1915
    %v5534 = vmul.f32 %v5445, %v1919
    %v5535 = vmul.f32 %v5445, %v1923
    %v5536 = vmul.f32 %v5445, %v1927
    %v5537 = vmul.f32 %v5445, %v1931
    %v5538 = vmul.f32 %v5445, %v1935
    %v5539 = vmul.f32 %v5445, %v1939
    %v5540 = vmul.f32 %v5445, %v1943
    %v5541 = vmul.f32 %v5445, %v1947
    %v5542 = vmul.f32 %v5445, %v1951
    %v5543 = vmul.f32 %v5445, %v1955
    %v5544 = vmul.f32 %v5445, %v1959
    %v5545 = vmul.f32 %v5445, %v1963
    %v5546 = vmul.f32 %v5445, %v1967
    %v5547 = vmul.f32 %v5445, %v1971
    %v5548 = vmul.f32 %v5450, %v1847
    %v5549 = vmul.f32 %v5450, %v1851
    %v5550 = vmul.f32 %v5450, %v1855
    %v5551 = vmul.f32 %v5450, %v1859
    %v5552 = vmul.f32 %v5450, %v1863
    %v5553 = vmul.f32 %v5450, %v1867
    %v5554 = vmul.f32 %v5450, %v1871
    %v5555 = vmul.f32 %v5450, %v1875
    %v5556 = vmul.f32 %v5450, %v1879
    %v5557 = vmul.f32 %v5450, %v1883
    %v5558 = vmul.f32 %v5450, %v1887
    %v5559 = vmul.f32 %v5450, %v1891
    %v5560 = vmul.f32 %v5450, %v1895
    %v5561 = vmul.f32 %v5450, %v1899
    %v5562 = vmul.f32 %v5450, %v1903
    %v5563 = vmul.f32 %v5450, %v1907
    %v5564 = vmul.f32 %v5450, %v1911
    %v5565 = vmul.f32 %v5450, %v1915
    %v5566 = vmul.f32 %v5450, %v1919
    %v5567 = vmul.f32 %v5450, %v1923
    %v5568 = vmul.f32 %v5450, %v1927
    %v5569 = vmul.f32 %v5450, %v1931
    %v5570 = vmul.f32 %v5450, %v1935
    %v5571 = vmul.f32 %v5450, %v1939
    %v5572 = vmul.f32 %v5450, %v1943
    %v5573 = vmul.f32 %v5450, %v1947
    %v5574 = vmul.f32 %v5450, %v1951
    %v5575 = vmul.f32 %v5450, %v1955
    %v5576 = vmul.f32 %v5450, %v1959
    %v5577 = vmul.f32 %v5450, %v1963
    %v5578 = vmul.f32 %v5450, %v1967
    %v5579 = vmul.f32 %v5450, %v1971
    %5580 = vset.pattern.permute.xlu0 1
    %5581 = vperm.xlu0 %5580, %v5423
    %v5582 = vpop.permute.xlu0 %5581
    %5584 = vset.pattern.permute.xlu0 1
    %5585 = vperm.xlu0 %5584, %v5424
    %v5586 = vpop.permute.xlu0 %5585
    %5588 = vset.pattern.permute.xlu0 1
    %5589 = vperm.xlu0 %5588, %v5425
    %v5590 = vpop.permute.xlu0 %5589
    %5592 = vset.pattern.permute.xlu0 1
    %5593 = vperm.xlu0 %5592, %v5426
    %v5594 = vpop.permute.xlu0 %5593
    %v5596 = vmul.f32 %v5582, %v2969
    %v5597 = vmul.f32 %v5582, %v2973
    %v5598 = vmul.f32 %v5582, %v2977
    %v5599 = vmul.f32 %v5582, %v2981
    %v5600 = vmul.f32 %v5582, %v2985
    %v5601 = vmul.f32 %v5582, %v2989
    %v5602 = vmul.f32 %v5582, %v2993
    %v5603 = vmul.f32 %v5582, %v2997
    %v5604 = vmul.f32 %v5582, %v3001
    %v5605 = vmul.f32 %v5582, %v3005
    %v5606 = vmul.f32 %v5582, %v3009
    %v5607 = vmul.f32 %v5582, %v3013
    %v5608 = vmul.f32 %v5582, %v3017
    %v5609 = vmul.f32 %v5582, %v3021
    %v5610 = vmul.f32 %v5582, %v3025
    %v5611 = vmul.f32 %v5582, %v3029
    %v5612 = vmul.f32 %v5582, %v3033
    %v5613 = vmul.f32 %v5582, %v3037
    %v5614 = vmul.f32 %v5582, %v3041
    %v5615 = vmul.f32 %v5582, %v3045
    %v5616 = vmul.f32 %v5582, %v3049
    %v5617 = vmul.f32 %v5582, %v3053
    %v5618 = vmul.f32 %v5582, %v3057
    %v5619 = vmul.f32 %v5582, %v3061
    %v5620 = vmul.f32 %v5582, %v3065
    %v5621 = vmul.f32 %v5582, %v3069
    %v5622 = vmul.f32 %v5582, %v3073
    %v5623 = vmul.f32 %v5582, %v3077
    %v5624 = vmul.f32 %v5582, %v3081
    %v5625 = vmul.f32 %v5582, %v3085
    %v5626 = vmul.f32 %v5582, %v3089
    %v5627 = vmul.f32 %v5582, %v3093
    %v5628 = vmul.f32 %v5586, %v2969
    %v5629 = vmul.f32 %v5586, %v2973
    %v5630 = vmul.f32 %v5586, %v2977
    %v5631 = vmul.f32 %v5586, %v2981
    %v5632 = vmul.f32 %v5586, %v2985
    %v5633 = vmul.f32 %v5586, %v2989
    %v5634 = vmul.f32 %v5586, %v2993
    %v5635 = vmul.f32 %v5586, %v2997
    %v5636 = vmul.f32 %v5586, %v3001
    %v5637 = vmul.f32 %v5586, %v3005
    %v5638 = vmul.f32 %v5586, %v3009
    %v5639 = vmul.f32 %v5586, %v3013
    %v5640 = vmul.f32 %v5586, %v3017
    %v5641 = vmul.f32 %v5586, %v3021
    %v5642 = vmul.f32 %v5586, %v3025
    %v5643 = vmul.f32 %v5586, %v3029
    %v5644 = vmul.f32 %v5586, %v3033
    %v5645 = vmul.f32 %v5586, %v3037
    %v5646 = vmul.f32 %v5586, %v3041
    %v5647 = vmul.f32 %v5586, %v3045
    %v5648 = vmul.f32 %v5586, %v3049
    %v5649 = vmul.f32 %v5586, %v3053
    %v5650 = vmul.f32 %v5586, %v3057
    %v5651 = vmul.f32 %v5586, %v3061
    %v5652 = vmul.f32 %v5586, %v3065
    %v5653 = vmul.f32 %v5586, %v3069
    %v5654 = vmul.f32 %v5586, %v3073
    %v5655 = vmul.f32 %v5586, %v3077
    %v5656 = vmul.f32 %v5586, %v3081
    %v5657 = vmul.f32 %v5586, %v3085
    %v5658 = vmul.f32 %v5586, %v3089
    %v5659 = vmul.f32 %v5586, %v3093
    %v5660 = vmul.f32 %v5590, %v2969
    %v5661 = vmul.f32 %v5590, %v2973
    %v5662 = vmul.f32 %v5590, %v2977
    %v5663 = vmul.f32 %v5590, %v2981
    %v5664 = vmul.f32 %v5590, %v2985
    %v5665 = vmul.f32 %v5590, %v2989
    %v5666 = vmul.f32 %v5590, %v2993
    %v5667 = vmul.f32 %v5590, %v2997
    %v5668 = vmul.f32 %v5590, %v3001
    %v5669 = vmul.f32 %v5590, %v3005
    %v5670 = vmul.f32 %v5590, %v3009
    %v5671 = vmul.f32 %v5590, %v3013
    %v5672 = vmul.f32 %v5590, %v3017
    %v5673 = vmul.f32 %v5590, %v3021
    %v5674 = vmul.f32 %v5590, %v3025
    %v5675 = vmul.f32 %v5590, %v3029
    %v5676 = vmul.f32 %v5590, %v3033
    %v5677 = vmul.f32 %v5590, %v3037
    %v5678 = vmul.f32 %v5590, %v3041
    %v5679 = vmul.f32 %v5590, %v3045
    %v5680 = vmul.f32 %v5590, %v3049
    %v5681 = vmul.f32 %v5590, %v3053
    %v5682 = vmul.f32 %v5590, %v3057
    %v5683 = vmul.f32 %v5590, %v3061
    %v5684 = vmul.f32 %v5590, %v3065
    %v5685 = vmul.f32 %v5590, %v3069
    %v5686 = vmul.f32 %v5590, %v3073
    %v5687 = vmul.f32 %v5590, %v3077
    %v5688 = vmul.f32 %v5590, %v3081
    %v5689 = vmul.f32 %v5590, %v3085
    %v5690 = vmul.f32 %v5590, %v3089
    %v5691 = vmul.f32 %v5590, %v3093
    %v5692 = vmul.f32 %v5594, %v2969
    %v5693 = vmul.f32 %v5594, %v2973
    %v5694 = vmul.f32 %v5594, %v2977
    %v5695 = vmul.f32 %v5594, %v2981
    %v5696 = vmul.f32 %v5594, %v2985
    %v5697 = vmul.f32 %v5594, %v2989
    %v5698 = vmul.f32 %v5594, %v2993
    %v5699 = vmul.f32 %v5594, %v2997
    %v5700 = vmul.f32 %v5594, %v3001
    %v5701 = vmul.f32 %v5594, %v3005
    %v5702 = vmul.f32 %v5594, %v3009
    %v5703 = vmul.f32 %v5594, %v3013
    %v5704 = vmul.f32 %v5594, %v3017
    %v5705 = vmul.f32 %v5594, %v3021
    %v5706 = vmul.f32 %v5594, %v3025
    %v5707 = vmul.f32 %v5594, %v3029
    %v5708 = vmul.f32 %v5594, %v3033
    %v5709 = vmul.f32 %v5594, %v3037
    %v5710 = vmul.f32 %v5594, %v3041
    %v5711 = vmul.f32 %v5594, %v3045
    %v5712 = vmul.f32 %v5594, %v3049
    %v5713 = vmul.f32 %v5594, %v3053
    %v5714 = vmul.f32 %v5594, %v3057
    %v5715 = vmul.f32 %v5594, %v3061
    %v5716 = vmul.f32 %v5594, %v3065
    %v5717 = vmul.f32 %v5594, %v3069
    %v5718 = vmul.f32 %v5594, %v3073
    %v5719 = vmul.f32 %v5594, %v3077
    %v5720 = vmul.f32 %v5594, %v3081
    %v5721 = vmul.f32 %v5594, %v3085
    %v5722 = vmul.f32 %v5594, %v3089
    %v5723 = vmul.f32 %v5594, %v3093
    %v5724 = vadd.f32 %v5452, %v5596
    %v5725 = vadd.f32 %v5453, %v5597
    %v5726 = vadd.f32 %v5454, %v5598
    %v5727 = vadd.f32 %v5455, %v5599
    %v5728 = vadd.f32 %v5456, %v5600
    %v5729 = vadd.f32 %v5457, %v5601
    %v5730 = vadd.f32 %v5458, %v5602
    %v5731 = vadd.f32 %v5459, %v5603
    %v5732 = vadd.f32 %v5460, %v5604
    %v5733 = vadd.f32 %v5461, %v5605
    %v5734 = vadd.f32 %v5462, %v5606
    %v5735 = vadd.f32 %v5463, %v5607
    %v5736 = vadd.f32 %v5464, %v5608
    %v5737 = vadd.f32 %v5465, %v5609
    %v5738 = vadd.f32 %v5466, %v5610
    %v5739 = vadd.f32 %v5467, %v5611
    %v5740 = vadd.f32 %v5468, %v5612
    %v5741 = vadd.f32 %v5469, %v5613
    %v5742 = vadd.f32 %v5470, %v5614
    %v5743 = vadd.f32 %v5471, %v5615
    %v5744 = vadd.f32 %v5472, %v5616
    %v5745 = vadd.f32 %v5473, %v5617
    %v5746 = vadd.f32 %v5474, %v5618
    %v5747 = vadd.f32 %v5475, %v5619
    %v5748 = vadd.f32 %v5476, %v5620
    %v5749 = vadd.f32 %v5477, %v5621
    %v5750 = vadd.f32 %v5478, %v5622
    %v5751 = vadd.f32 %v5479, %v5623
    %v5752 = vadd.f32 %v5480, %v5624
    %v5753 = vadd.f32 %v5481, %v5625
    %v5754 = vadd.f32 %v5482, %v5626
    %v5755 = vadd.f32 %v5483, %v5627
    %v5756 = vadd.f32 %v5484, %v5628
    %v5757 = vadd.f32 %v5485, %v5629
    %v5758 = vadd.f32 %v5486, %v5630
    %v5759 = vadd.f32 %v5487, %v5631
    %v5760 = vadd.f32 %v5488, %v5632
    %v5761 = vadd.f32 %v5489, %v5633
    %v5762 = vadd.f32 %v5490, %v5634
    %v5763 = vadd.f32 %v5491, %v5635
    %v5764 = vadd.f32 %v5492, %v5636
    %v5765 = vadd.f32 %v5493, %v5637
    %v5766 = vadd.f32 %v5494, %v5638
    %v5767 = vadd.f32 %v5495, %v5639
    %v5768 = vadd.f32 %v5496, %v5640
    %v5769 = vadd.f32 %v5497, %v5641
    %v5770 = vadd.f32 %v5498, %v5642
    %v5771 = vadd.f32 %v5499, %v5643
    %v5772 = vadd.f32 %v5500, %v5644
    %v5773 = vadd.f32 %v5501, %v5645
    %v5774 = vadd.f32 %v5502, %v5646
    %v5775 = vadd.f32 %v5503, %v5647
    %v5776 = vadd.f32 %v5504, %v5648
    %v5777 = vadd.f32 %v5505, %v5649
    %v5778 = vadd.f32 %v5506, %v5650
    %v5779 = vadd.f32 %v5507, %v5651
    %v5780 = vadd.f32 %v5508, %v5652
    %v5781 = vadd.f32 %v5509, %v5653
    %v5782 = vadd.f32 %v5510, %v5654
    %v5783 = vadd.f32 %v5511, %v5655
    %v5784 = vadd.f32 %v5512, %v5656
    %v5785 = vadd.f32 %v5513, %v5657
    %v5786 = vadd.f32 %v5514, %v5658
    %v5787 = vadd.f32 %v5515, %v5659
    %v5788 = vadd.f32 %v5516, %v5660
    %v5789 = vadd.f32 %v5517, %v5661
    %v5790 = vadd.f32 %v5518, %v5662
    %v5791 = vadd.f32 %v5519, %v5663
    %v5792 = vadd.f32 %v5520, %v5664
    %v5793 = vadd.f32 %v5521, %v5665
    %v5794 = vadd.f32 %v5522, %v5666
    %v5795 = vadd.f32 %v5523, %v5667
    %v5796 = vadd.f32 %v5524, %v5668
    %v5797 = vadd.f32 %v5525, %v5669
    %v5798 = vadd.f32 %v5526, %v5670
    %v5799 = vadd.f32 %v5527, %v5671
    %v5800 = vadd.f32 %v5528, %v5672
    %v5801 = vadd.f32 %v5529, %v5673
    %v5802 = vadd.f32 %v5530, %v5674
    %v5803 = vadd.f32 %v5531, %v5675
    %v5804 = vadd.f32 %v5532, %v5676
    %v5805 = vadd.f32 %v5533, %v5677
    %v5806 = vadd.f32 %v5534, %v5678
    %v5807 = vadd.f32 %v5535, %v5679
    %v5808 = vadd.f32 %v5536, %v5680
    %v5809 = vadd.f32 %v5537, %v5681
    %v5810 = vadd.f32 %v5538, %v5682
    %v5811 = vadd.f32 %v5539, %v5683
    %v5812 = vadd.f32 %v5540, %v5684
    %v5813 = vadd.f32 %v5541, %v5685
    %v5814 = vadd.f32 %v5542, %v5686
    %v5815 = vadd.f32 %v5543, %v5687
    %v5816 = vadd.f32 %v5544, %v5688
    %v5817 = vadd.f32 %v5545, %v5689
    %v5818 = vadd.f32 %v5546, %v5690
    %v5819 = vadd.f32 %v5547, %v5691
    %v5820 = vadd.f32 %v5548, %v5692
    %v5821 = vadd.f32 %v5549, %v5693
    %v5822 = vadd.f32 %v5550, %v5694
    %v5823 = vadd.f32 %v5551, %v5695
    %v5824 = vadd.f32 %v5552, %v5696
    %v5825 = vadd.f32 %v5553, %v5697
    %v5826 = vadd.f32 %v5554, %v5698
    %v5827 = vadd.f32 %v5555, %v5699
    %v5828 = vadd.f32 %v5556, %v5700
    %v5829 = vadd.f32 %v5557, %v5701
    %v5830 = vadd.f32 %v5558, %v5702
    %v5831 = vadd.f32 %v5559, %v5703
    %v5832 = vadd.f32 %v5560, %v5704
    %v5833 = vadd.f32 %v5561, %v5705
    %v5834 = vadd.f32 %v5562, %v5706
    %v5835 = vadd.f32 %v5563, %v5707
    %v5836 = vadd.f32 %v5564, %v5708
    %v5837 = vadd.f32 %v5565, %v5709
    %v5838 = vadd.f32 %v5566, %v5710
    %v5839 = vadd.f32 %v5567, %v5711
    %v5840 = vadd.f32 %v5568, %v5712
    %v5841 = vadd.f32 %v5569, %v5713
    %v5842 = vadd.f32 %v5570, %v5714
    %v5843 = vadd.f32 %v5571, %v5715
    %v5844 = vadd.f32 %v5572, %v5716
    %v5845 = vadd.f32 %v5573, %v5717
    %v5846 = vadd.f32 %v5574, %v5718
    %v5847 = vadd.f32 %v5575, %v5719
    %v5848 = vadd.f32 %v5576, %v5720
    %v5849 = vadd.f32 %v5577, %v5721
    %v5850 = vadd.f32 %v5578, %v5722
    %v5851 = vadd.f32 %v5579, %v5723
    %5853 = vset.pattern.permute.xlu0 0
    %5854 = vperm.xlu0 %5853, %v5428
    %v5855 = vpop.permute.xlu0 %5854
    %5858 = vset.pattern.permute.xlu0 0
    %5859 = vperm.xlu0 %5858, %v5429
    %v5860 = vpop.permute.xlu0 %5859
    %5863 = vset.pattern.permute.xlu0 0
    %5864 = vperm.xlu0 %5863, %v5430
    %v5865 = vpop.permute.xlu0 %5864
    %5868 = vset.pattern.permute.xlu0 0
    %5869 = vperm.xlu0 %5868, %v5431
    %v5870 = vpop.permute.xlu0 %5869
    %v5872 = vadd.f32 %v5724, %v5855
    %v5873 = vadd.f32 %v5725, %v5855
    %v5874 = vadd.f32 %v5726, %v5855
    %v5875 = vadd.f32 %v5727, %v5855
    %v5876 = vadd.f32 %v5728, %v5855
    %v5877 = vadd.f32 %v5729, %v5855
    %v5878 = vadd.f32 %v5730, %v5855
    %v5879 = vadd.f32 %v5731, %v5855
    %v5880 = vadd.f32 %v5732, %v5855
    %v5881 = vadd.f32 %v5733, %v5855
    %v5882 = vadd.f32 %v5734, %v5855
    %v5883 = vadd.f32 %v5735, %v5855
    %v5884 = vadd.f32 %v5736, %v5855
    %v5885 = vadd.f32 %v5737, %v5855
    %v5886 = vadd.f32 %v5738, %v5855
    %v5887 = vadd.f32 %v5739, %v5855
    %v5888 = vadd.f32 %v5740, %v5855
    %v5889 = vadd.f32 %v5741, %v5855
    %v5890 = vadd.f32 %v5742, %v5855
    %v5891 = vadd.f32 %v5743, %v5855
    %v5892 = vadd.f32 %v5744, %v5855
    %v5893 = vadd.f32 %v5745, %v5855
    %v5894 = vadd.f32 %v5746, %v5855
    %v5895 = vadd.f32 %v5747, %v5855
    %v5896 = vadd.f32 %v5748, %v5855
    %v5897 = vadd.f32 %v5749, %v5855
    %v5898 = vadd.f32 %v5750, %v5855
    %v5899 = vadd.f32 %v5751, %v5855
    %v5900 = vadd.f32 %v5752, %v5855
    %v5901 = vadd.f32 %v5753, %v5855
    %v5902 = vadd.f32 %v5754, %v5855
    %v5903 = vadd.f32 %v5755, %v5855
    %v5904 = vadd.f32 %v5756, %v5860
    %v5905 = vadd.f32 %v5757, %v5860
    %v5906 = vadd.f32 %v5758, %v5860
    %v5907 = vadd.f32 %v5759, %v5860
    %v5908 = vadd.f32 %v5760, %v5860
    %v5909 = vadd.f32 %v5761, %v5860
    %v5910 = vadd.f32 %v5762, %v5860
    %v5911 = vadd.f32 %v5763, %v5860
    %v5912 = vadd.f32 %v5764, %v5860
    %v5913 = vadd.f32 %v5765, %v5860
    %v5914 = vadd.f32 %v5766, %v5860
    %v5915 = vadd.f32 %v5767, %v5860
    %v5916 = vadd.f32 %v5768, %v5860
    %v5917 = vadd.f32 %v5769, %v5860
    %v5918 = vadd.f32 %v5770, %v5860
    %v5919 = vadd.f32 %v5771, %v5860
    %v5920 = vadd.f32 %v5772, %v5860
    %v5921 = vadd.f32 %v5773, %v5860
    %v5922 = vadd.f32 %v5774, %v5860
    %v5923 = vadd.f32 %v5775, %v5860
    %v5924 = vadd.f32 %v5776, %v5860
    %v5925 = vadd.f32 %v5777, %v5860
    %v5926 = vadd.f32 %v5778, %v5860
    %v5927 = vadd.f32 %v5779, %v5860
    %v5928 = vadd.f32 %v5780, %v5860
    %v5929 = vadd.f32 %v5781, %v5860
    %v5930 = vadd.f32 %v5782, %v5860
    %v5931 = vadd.f32 %v5783, %v5860
    %v5932 = vadd.f32 %v5784, %v5860
    %v5933 = vadd.f32 %v5785, %v5860
    %v5934 = vadd.f32 %v5786, %v5860
    %v5935 = vadd.f32 %v5787, %v5860
    %v5936 = vadd.f32 %v5788, %v5865
    %v5937 = vadd.f32 %v5789, %v5865
    %v5938 = vadd.f32 %v5790, %v5865
    %v5939 = vadd.f32 %v5791, %v5865
    %v5940 = vadd.f32 %v5792, %v5865
    %v5941 = vadd.f32 %v5793, %v5865
    %v5942 = vadd.f32 %v5794, %v5865
    %v5943 = vadd.f32 %v5795, %v5865
    %v5944 = vadd.f32 %v5796, %v5865
    %v5945 = vadd.f32 %v5797, %v5865
    %v5946 = vadd.f32 %v5798, %v5865
    %v5947 = vadd.f32 %v5799, %v5865
    %v5948 = vadd.f32 %v5800, %v5865
    %v5949 = vadd.f32 %v5801, %v5865
    %v5950 = vadd.f32 %v5802, %v5865
    %v5951 = vadd.f32 %v5803, %v5865
    %v5952 = vadd.f32 %v5804, %v5865
    %v5953 = vadd.f32 %v5805, %v5865
    %v5954 = vadd.f32 %v5806, %v5865
    %v5955 = vadd.f32 %v5807, %v5865
    %v5956 = vadd.f32 %v5808, %v5865
    %v5957 = vadd.f32 %v5809, %v5865
    %v5958 = vadd.f32 %v5810, %v5865
    %v5959 = vadd.f32 %v5811, %v5865
    %v5960 = vadd.f32 %v5812, %v5865
    %v5961 = vadd.f32 %v5813, %v5865
    %v5962 = vadd.f32 %v5814, %v5865
    %v5963 = vadd.f32 %v5815, %v5865
    %v5964 = vadd.f32 %v5816, %v5865
    %v5965 = vadd.f32 %v5817, %v5865
    %v5966 = vadd.f32 %v5818, %v5865
    %v5967 = vadd.f32 %v5819, %v5865
    %v5968 = vadd.f32 %v5820, %v5870
    %v5969 = vadd.f32 %v5821, %v5870
    %v5970 = vadd.f32 %v5822, %v5870
    %v5971 = vadd.f32 %v5823, %v5870
    %v5972 = vadd.f32 %v5824, %v5870
    %v5973 = vadd.f32 %v5825, %v5870
    %v5974 = vadd.f32 %v5826, %v5870
    %v5975 = vadd.f32 %v5827, %v5870
    %v5976 = vadd.f32 %v5828, %v5870
    %v5977 = vadd.f32 %v5829, %v5870
    %v5978 = vadd.f32 %v5830, %v5870
    %v5979 = vadd.f32 %v5831, %v5870
    %v5980 = vadd.f32 %v5832, %v5870
    %v5981 = vadd.f32 %v5833, %v5870
    %v5982 = vadd.f32 %v5834, %v5870
    %v5983 = vadd.f32 %v5835, %v5870
    %v5984 = vadd.f32 %v5836, %v5870
    %v5985 = vadd.f32 %v5837, %v5870
    %v5986 = vadd.f32 %v5838, %v5870
    %v5987 = vadd.f32 %v5839, %v5870
    %v5988 = vadd.f32 %v5840, %v5870
    %v5989 = vadd.f32 %v5841, %v5870
    %v5990 = vadd.f32 %v5842, %v5870
    %v5991 = vadd.f32 %v5843, %v5870
    %v5992 = vadd.f32 %v5844, %v5870
    %v5993 = vadd.f32 %v5845, %v5870
    %v5994 = vadd.f32 %v5846, %v5870
    %v5995 = vadd.f32 %v5847, %v5870
    %v5996 = vadd.f32 %v5848, %v5870
    %v5997 = vadd.f32 %v5849, %v5870
    %v5998 = vadd.f32 %v5850, %v5870
    %v5999 = vadd.f32 %v5851, %v5870
    %v6000 = vmax.f32 %v5872, 0.0
    %v6001 = vmax.f32 %v5873, 0.0
    %v6002 = vmax.f32 %v5874, 0.0
    %v6003 = vmax.f32 %v5875, 0.0
    %v6004 = vmax.f32 %v5876, 0.0
    %v6005 = vmax.f32 %v5877, 0.0
    %v6006 = vmax.f32 %v5878, 0.0
    %v6007 = vmax.f32 %v5879, 0.0
    %v6008 = vmax.f32 %v5880, 0.0
    %v6009 = vmax.f32 %v5881, 0.0
    %v6010 = vmax.f32 %v5882, 0.0
    %v6011 = vmax.f32 %v5883, 0.0
    %v6012 = vmax.f32 %v5884, 0.0
    %v6013 = vmax.f32 %v5885, 0.0
    %v6014 = vmax.f32 %v5886, 0.0
    %v6015 = vmax.f32 %v5887, 0.0
    %v6016 = vmax.f32 %v5888, 0.0
    %v6017 = vmax.f32 %v5889, 0.0
    %v6018 = vmax.f32 %v5890, 0.0
    %v6019 = vmax.f32 %v5891, 0.0
    %v6020 = vmax.f32 %v5892, 0.0
    %v6021 = vmax.f32 %v5893, 0.0
    %v6022 = vmax.f32 %v5894, 0.0
    %v6023 = vmax.f32 %v5895, 0.0
    %v6024 = vmax.f32 %v5896, 0.0
    %v6025 = vmax.f32 %v5897, 0.0
    %v6026 = vmax.f32 %v5898, 0.0
    %v6027 = vmax.f32 %v5899, 0.0
    %v6028 = vmax.f32 %v5900, 0.0
    %v6029 = vmax.f32 %v5901, 0.0
    %v6030 = vmax.f32 %v5902, 0.0
    %v6031 = vmax.f32 %v5903, 0.0
    %v6032 = vmax.f32 %v5904, 0.0
    %v6033 = vmax.f32 %v5905, 0.0
    %v6034 = vmax.f32 %v5906, 0.0
    %v6035 = vmax.f32 %v5907, 0.0
    %v6036 = vmax.f32 %v5908, 0.0
    %v6037 = vmax.f32 %v5909, 0.0
    %v6038 = vmax.f32 %v5910, 0.0
    %v6039 = vmax.f32 %v5911, 0.0
    %v6040 = vmax.f32 %v5912, 0.0
    %v6041 = vmax.f32 %v5913, 0.0
    %v6042 = vmax.f32 %v5914, 0.0
    %v6043 = vmax.f32 %v5915, 0.0
    %v6044 = vmax.f32 %v5916, 0.0
    %v6045 = vmax.f32 %v5917, 0.0
    %v6046 = vmax.f32 %v5918, 0.0
    %v6047 = vmax.f32 %v5919, 0.0
    %v6048 = vmax.f32 %v5920, 0.0
    %v6049 = vmax.f32 %v5921, 0.0
    %v6050 = vmax.f32 %v5922, 0.0
    %v6051 = vmax.f32 %v5923, 0.0
    %v6052 = vmax.f32 %v5924, 0.0
    %v6053 = vmax.f32 %v5925, 0.0
    %v6054 = vmax.f32 %v5926, 0.0
    %v6055 = vmax.f32 %v5927, 0.0
    %v6056 = vmax.f32 %v5928, 0.0
    %v6057 = vmax.f32 %v5929, 0.0
    %v6058 = vmax.f32 %v5930, 0.0
    %v6059 = vmax.f32 %v5931, 0.0
    %v6060 = vmax.f32 %v5932, 0.0
    %v6061 = vmax.f32 %v5933, 0.0
    %v6062 = vmax.f32 %v5934, 0.0
    %v6063 = vmax.f32 %v5935, 0.0
    %v6064 = vmax.f32 %v5936, 0.0
    %v6065 = vmax.f32 %v5937, 0.0
    %v6066 = vmax.f32 %v5938, 0.0
    %v6067 = vmax.f32 %v5939, 0.0
    %v6068 = vmax.f32 %v5940, 0.0
    %v6069 = vmax.f32 %v5941, 0.0
    %v6070 = vmax.f32 %v5942, 0.0
    %v6071 = vmax.f32 %v5943, 0.0
    %v6072 = vmax.f32 %v5944, 0.0
    %v6073 = vmax.f32 %v5945, 0.0
    %v6074 = vmax.f32 %v5946, 0.0
    %v6075 = vmax.f32 %v5947, 0.0
    %v6076 = vmax.f32 %v5948, 0.0
    %v6077 = vmax.f32 %v5949, 0.0
    %v6078 = vmax.f32 %v5950, 0.0
    %v6079 = vmax.f32 %v5951, 0.0
    %v6080 = vmax.f32 %v5952, 0.0
    %v6081 = vmax.f32 %v5953, 0.0
    %v6082 = vmax.f32 %v5954, 0.0
    %v6083 = vmax.f32 %v5955, 0.0
    %v6084 = vmax.f32 %v5956, 0.0
    %v6085 = vmax.f32 %v5957, 0.0
    %v6086 = vmax.f32 %v5958, 0.0
    %v6087 = vmax.f32 %v5959, 0.0
    %v6088 = vmax.f32 %v5960, 0.0
    %v6089 = vmax.f32 %v5961, 0.0
    %v6090 = vmax.f32 %v5962, 0.0
    %v6091 = vmax.f32 %v5963, 0.0
    %v6092 = vmax.f32 %v5964, 0.0
    %v6093 = vmax.f32 %v5965, 0.0
    %v6094 = vmax.f32 %v5966, 0.0
    %v6095 = vmax.f32 %v5967, 0.0
    %v6096 = vmax.f32 %v5968, 0.0
    %v6097 = vmax.f32 %v5969, 0.0
    %v6098 = vmax.f32 %v5970, 0.0
    %v6099 = vmax.f32 %v5971, 0.0
    %v6100 = vmax.f32 %v5972, 0.0
    %v6101 = vmax.f32 %v5973, 0.0
    %v6102 = vmax.f32 %v5974, 0.0
    %v6103 = vmax.f32 %v5975, 0.0
    %v6104 = vmax.f32 %v5976, 0.0
    %v6105 = vmax.f32 %v5977, 0.0
    %v6106 = vmax.f32 %v5978, 0.0
    %v6107 = vmax.f32 %v5979, 0.0
    %v6108 = vmax.f32 %v5980, 0.0
    %v6109 = vmax.f32 %v5981, 0.0
    %v6110 = vmax.f32 %v5982, 0.0
    %v6111 = vmax.f32 %v5983, 0.0
    %v6112 = vmax.f32 %v5984, 0.0
    %v6113 = vmax.f32 %v5985, 0.0
    %v6114 = vmax.f32 %v5986, 0.0
    %v6115 = vmax.f32 %v5987, 0.0
    %v6116 = vmax.f32 %v5988, 0.0
    %v6117 = vmax.f32 %v5989, 0.0
    %v6118 = vmax.f32 %v5990, 0.0
    %v6119 = vmax.f32 %v5991, 0.0
    %v6120 = vmax.f32 %v5992, 0.0
    %v6121 = vmax.f32 %v5993, 0.0
    %v6122 = vmax.f32 %v5994, 0.0
    %v6123 = vmax.f32 %v5995, 0.0
    %v6124 = vmax.f32 %v5996, 0.0
    %v6125 = vmax.f32 %v5997, 0.0
    %v6126 = vmax.f32 %v5998, 0.0
    %v6127 = vmax.f32 %v5999, 0.0
    %v6128 = vadd.f32 %v5294, %v6000
    %v6129 = vadd.f32 %v5295, %v6001
    %v6130 = vadd.f32 %v5296, %v6002
    %v6131 = vadd.f32 %v5297, %v6003
    %v6132 = vadd.f32 %v5298, %v6004
    %v6133 = vadd.f32 %v5299, %v6005
    %v6134 = vadd.f32 %v5300, %v6006
    %v6135 = vadd.f32 %v5301, %v6007
    %v6136 = vadd.f32 %v5302, %v6008
    %v6137 = vadd.f32 %v5303, %v6009
    %v6138 = vadd.f32 %v5304, %v6010
    %v6139 = vadd.f32 %v5305, %v6011
    %v6140 = vadd.f32 %v5306, %v6012
    %v6141 = vadd.f32 %v5307, %v6013
    %v6142 = vadd.f32 %v5308, %v6014
    %v6143 = vadd.f32 %v5309, %v6015
    %v6144 = vadd.f32 %v5310, %v6016
    %v6145 = vadd.f32 %v5311, %v6017
    %v6146 = vadd.f32 %v5312, %v6018
    %v6147 = vadd.f32 %v5313, %v6019
    %v6148 = vadd.f32 %v5314, %v6020
    %v6149 = vadd.f32 %v5315, %v6021
    %v6150 = vadd.f32 %v5316, %v6022
    %v6151 = vadd.f32 %v5317, %v6023
    %v6152 = vadd.f32 %v5318, %v6024
    %v6153 = vadd.f32 %v5319, %v6025
    %v6154 = vadd.f32 %v5320, %v6026
    %v6155 = vadd.f32 %v5321, %v6027
    %v6156 = vadd.f32 %v5322, %v6028
    %v6157 = vadd.f32 %v5323, %v6029
    %v6158 = vadd.f32 %v5324, %v6030
    %v6159 = vadd.f32 %v5325, %v6031
    %v6160 = vadd.f32 %v5326, %v6032
    %v6161 = vadd.f32 %v5327, %v6033
    %v6162 = vadd.f32 %v5328, %v6034
    %v6163 = vadd.f32 %v5329, %v6035
    %v6164 = vadd.f32 %v5330, %v6036
    %v6165 = vadd.f32 %v5331, %v6037
    %v6166 = vadd.f32 %v5332, %v6038
    %v6167 = vadd.f32 %v5333, %v6039
    %v6168 = vadd.f32 %v5334, %v6040
    %v6169 = vadd.f32 %v5335, %v6041
    %v6170 = vadd.f32 %v5336, %v6042
    %v6171 = vadd.f32 %v5337, %v6043
    %v6172 = vadd.f32 %v5338, %v6044
    %v6173 = vadd.f32 %v5339, %v6045
    %v6174 = vadd.f32 %v5340, %v6046
    %v6175 = vadd.f32 %v5341, %v6047
    %v6176 = vadd.f32 %v5342, %v6048
    %v6177 = vadd.f32 %v5343, %v6049
    %v6178 = vadd.f32 %v5344, %v6050
    %v6179 = vadd.f32 %v5345, %v6051
    %v6180 = vadd.f32 %v5346, %v6052
    %v6181 = vadd.f32 %v5347, %v6053
    %v6182 = vadd.f32 %v5348, %v6054
    %v6183 = vadd.f32 %v5349, %v6055
    %v6184 = vadd.f32 %v5350, %v6056
    %v6185 = vadd.f32 %v5351, %v6057
    %v6186 = vadd.f32 %v5352, %v6058
    %v6187 = vadd.f32 %v5353, %v6059
    %v6188 = vadd.f32 %v5354, %v6060
    %v6189 = vadd.f32 %v5355, %v6061
    %v6190 = vadd.f32 %v5356, %v6062
    %v6191 = vadd.f32 %v5357, %v6063
    %v6192 = vadd.f32 %v5358, %v6064
    %v6193 = vadd.f32 %v5359, %v6065
    %v6194 = vadd.f32 %v5360, %v6066
    %v6195 = vadd.f32 %v5361, %v6067
    %v6196 = vadd.f32 %v5362, %v6068
    %v6197 = vadd.f32 %v5363, %v6069
    %v6198 = vadd.f32 %v5364, %v6070
    %v6199 = vadd.f32 %v5365, %v6071
    %v6200 = vadd.f32 %v5366, %v6072
    %v6201 = vadd.f32 %v5367, %v6073
    %v6202 = vadd.f32 %v5368, %v6074
    %v6203 = vadd.f32 %v5369, %v6075
    %v6204 = vadd.f32 %v5370, %v6076
    %v6205 = vadd.f32 %v5371, %v6077
    %v6206 = vadd.f32 %v5372, %v6078
    %v6207 = vadd.f32 %v5373, %v6079
    %v6208 = vadd.f32 %v5374, %v6080
    %v6209 = vadd.f32 %v5375, %v6081
    %v6210 = vadd.f32 %v5376, %v6082
    %v6211 = vadd.f32 %v5377, %v6083
    %v6212 = vadd.f32 %v5378, %v6084
    %v6213 = vadd.f32 %v5379, %v6085
    %v6214 = vadd.f32 %v5380, %v6086
    %v6215 = vadd.f32 %v5381, %v6087
    %v6216 = vadd.f32 %v5382, %v6088
    %v6217 = vadd.f32 %v5383, %v6089
    %v6218 = vadd.f32 %v5384, %v6090
    %v6219 = vadd.f32 %v5385, %v6091
    %v6220 = vadd.f32 %v5386, %v6092
    %v6221 = vadd.f32 %v5387, %v6093
    %v6222 = vadd.f32 %v5388, %v6094
    %v6223 = vadd.f32 %v5389, %v6095
    %v6224 = vadd.f32 %v5390, %v6096
    %v6225 = vadd.f32 %v5391, %v6097
    %v6226 = vadd.f32 %v5392, %v6098
    %v6227 = vadd.f32 %v5393, %v6099
    %v6228 = vadd.f32 %v5394, %v6100
    %v6229 = vadd.f32 %v5395, %v6101
    %v6230 = vadd.f32 %v5396, %v6102
    %v6231 = vadd.f32 %v5397, %v6103
    %v6232 = vadd.f32 %v5398, %v6104
    %v6233 = vadd.f32 %v5399, %v6105
    %v6234 = vadd.f32 %v5400, %v6106
    %v6235 = vadd.f32 %v5401, %v6107
    %v6236 = vadd.f32 %v5402, %v6108
    %v6237 = vadd.f32 %v5403, %v6109
    %v6238 = vadd.f32 %v5404, %v6110
    %v6239 = vadd.f32 %v5405, %v6111
    %v6240 = vadd.f32 %v5406, %v6112
    %v6241 = vadd.f32 %v5407, %v6113
    %v6242 = vadd.f32 %v5408, %v6114
    %v6243 = vadd.f32 %v5409, %v6115
    %v6244 = vadd.f32 %v5410, %v6116
    %v6245 = vadd.f32 %v5411, %v6117
    %v6246 = vadd.f32 %v5412, %v6118
    %v6247 = vadd.f32 %v5413, %v6119
    %v6248 = vadd.f32 %v5414, %v6120
    %v6249 = vadd.f32 %v5415, %v6121
    %v6250 = vadd.f32 %v5416, %v6122
    %v6251 = vadd.f32 %v5417, %v6123
    %v6252 = vadd.f32 %v5418, %v6124
    %v6253 = vadd.f32 %v5419, %v6125
    %v6254 = vadd.f32 %v5420, %v6126
    %v6255 = vadd.f32 %v5421, %v6127
    %v6256 = vld [vmem:[%s3] sm:$0xf]
    %v6257 = vpack.c.bf16 %v6160, %v6128
    %v6258 = vpack.c.bf16 %v6161, %v6129
    %v6259 = vpack.c.bf16 %v6162, %v6130
    %v6260 = vpack.c.bf16 %v6163, %v6131
    %v6261 = vpack.c.bf16 %v6164, %v6132
    %v6262 = vpack.c.bf16 %v6165, %v6133
    %v6263 = vpack.c.bf16 %v6166, %v6134
    %v6264 = vpack.c.bf16 %v6167, %v6135
    %v6265 = vpack.c.bf16 %v6168, %v6136
    %v6266 = vpack.c.bf16 %v6169, %v6137
    %v6267 = vpack.c.bf16 %v6170, %v6138
    %v6268 = vpack.c.bf16 %v6171, %v6139
    %v6269 = vpack.c.bf16 %v6172, %v6140
    %v6270 = vpack.c.bf16 %v6173, %v6141
    %v6271 = vpack.c.bf16 %v6174, %v6142
    %v6272 = vpack.c.bf16 %v6175, %v6143
    %v6273 = vpack.c.bf16 %v6176, %v6144
    %v6274 = vpack.c.bf16 %v6177, %v6145
    %v6275 = vpack.c.bf16 %v6178, %v6146
    %v6276 = vpack.c.bf16 %v6179, %v6147
    %v6277 = vpack.c.bf16 %v6180, %v6148
    %v6278 = vpack.c.bf16 %v6181, %v6149
    %v6279 = vpack.c.bf16 %v6182, %v6150
    %v6280 = vpack.c.bf16 %v6183, %v6151
    %v6281 = vpack.c.bf16 %v6184, %v6152
    %v6282 = vpack.c.bf16 %v6185, %v6153
    %v6283 = vpack.c.bf16 %v6186, %v6154
    %v6284 = vpack.c.bf16 %v6187, %v6155
    %v6285 = vpack.c.bf16 %v6188, %v6156
    %v6286 = vpack.c.bf16 %v6189, %v6157
    %v6287 = vpack.c.bf16 %v6190, %v6158
    %v6288 = vpack.c.bf16 %v6191, %v6159
    %v6289 = vpack.c.bf16 %v6224, %v6192
    %v6290 = vpack.c.bf16 %v6225, %v6193
    %v6291 = vpack.c.bf16 %v6226, %v6194
    %v6292 = vpack.c.bf16 %v6227, %v6195
    %v6293 = vpack.c.bf16 %v6228, %v6196
    %v6294 = vpack.c.bf16 %v6229, %v6197
    %v6295 = vpack.c.bf16 %v6230, %v6198
    %v6296 = vpack.c.bf16 %v6231, %v6199
    %v6297 = vpack.c.bf16 %v6232, %v6200
    %v6298 = vpack.c.bf16 %v6233, %v6201
    %v6299 = vpack.c.bf16 %v6234, %v6202
    %v6300 = vpack.c.bf16 %v6235, %v6203
    %v6301 = vpack.c.bf16 %v6236, %v6204
    %v6302 = vpack.c.bf16 %v6237, %v6205
    %v6303 = vpack.c.bf16 %v6238, %v6206
    %v6304 = vpack.c.bf16 %v6239, %v6207
    %v6305 = vpack.c.bf16 %v6240, %v6208
    %v6306 = vpack.c.bf16 %v6241, %v6209
    %v6307 = vpack.c.bf16 %v6242, %v6210
    %v6308 = vpack.c.bf16 %v6243, %v6211
    %v6309 = vpack.c.bf16 %v6244, %v6212
    %v6310 = vpack.c.bf16 %v6245, %v6213
    %v6311 = vpack.c.bf16 %v6246, %v6214
    %v6312 = vpack.c.bf16 %v6247, %v6215
    %v6313 = vpack.c.bf16 %v6248, %v6216
    %v6314 = vpack.c.bf16 %v6249, %v6217
    %v6315 = vpack.c.bf16 %v6250, %v6218
    %v6316 = vpack.c.bf16 %v6251, %v6219
    %v6317 = vpack.c.bf16 %v6252, %v6220
    %v6318 = vpack.c.bf16 %v6253, %v6221
    %v6319 = vpack.c.bf16 %v6254, %v6222
    %v6320 = vpack.c.bf16 %v6255, %v6223
    %vm6321 = vcmask 261120
    %v6323 = vsel %vm6321, %v6256, 0
    %6325 = vmatprep.subr.bf16.mxu0 %v6258
    %6326 = vmatpush1.bf16.msra.mxu0 %v6257
    %6327 = vmatprep.subr.bf16.mxu0 %v6290
    %6328 = vmatpush1.bf16.msra.mxu0 %v6289
    %6329 = vmatprep.subr.bf16.mxu0 0
    %6330 = vmatpush1.bf16.msra.mxu0 0
    %6331 = vmatprep.subr.bf16.mxu0 0
    %6332 = vmatpush1.bf16.msra.mxu0 0
    %6333 = vmatprep.subr.bf16.mxu0 0
    %6334 = vmatpush1.bf16.msra.mxu0 0
    %6335 = vmatprep.subr.bf16.mxu0 0
    %6336 = vmatpush1.bf16.msra.mxu0 0
    %6337 = vmatprep.subr.bf16.mxu0 0
    %6338 = vmatpush1.bf16.msra.mxu0 0
    %6339 = vmatprep.subr.bf16.mxu0 0
    %6340 = vmatpush1.bf16.msra.mxu0 0
    %6341 = vmatprep.subr.bf16.mxu0 0
    %6342 = vmatpush1.bf16.msra.mxu0 0
    %6343 = vmatprep.subr.bf16.mxu0 0
    %6344 = vmatpush1.bf16.msra.mxu0 0
    %6345 = vmatprep.subr.bf16.mxu0 0
    %6346 = vmatpush1.bf16.msra.mxu0 0
    %6347 = vmatprep.subr.bf16.mxu0 0
    %6348 = vmatpush1.bf16.msra.mxu0 0
    %6349 = vmatprep.subr.bf16.mxu0 0
    %6350 = vmatpush1.bf16.msra.mxu0 0
    %6351 = vmatprep.subr.bf16.mxu0 0
    %6352 = vmatpush1.bf16.msra.mxu0 0
    %6353 = vmatprep.subr.bf16.mxu0 0
    %6354 = vmatpush1.bf16.msra.mxu0 0
    %6355 = vmatprep.subr.bf16.mxu0 0
    %6356 = vmatpush1.bf16.msra.mxu0 0
    %6357 = vmatprep.mubr.bf16.mxu0 0
    %6358 = vmatmul.mubr.bf16.gmra.mrb[0].mxu0 %v6323
    %v6359 = vpop.f32.mrb[0].mxu0
    %v6360 = vadd.f32 0.0, %v6359
    %v6361 = vpop.f32.mrb[0].mxu0
    %v6362 = vadd.f32 0.0, %v6361
    %v6363 = vpop.f32.mrb[0].mxu0
    %v6364 = vpop.f32.mrb[0].mxu0
    %6365 = vdwg.mxu0
    %6366 = vmatprep.subr.bf16.mxu0 %v6260
    %6367 = vmatpush1.bf16.msra.mxu0 %v6259
    %6368 = vmatprep.subr.bf16.mxu0 %v6292
    %6369 = vmatpush1.bf16.msra.mxu0 %v6291
    %6370 = vmatprep.subr.bf16.mxu0 0
    %6371 = vmatpush1.bf16.msra.mxu0 0
    %6372 = vmatprep.subr.bf16.mxu0 0
    %6373 = vmatpush1.bf16.msra.mxu0 0
    %6374 = vmatprep.subr.bf16.mxu0 0
    %6375 = vmatpush1.bf16.msra.mxu0 0
    %6376 = vmatprep.subr.bf16.mxu0 0
    %6377 = vmatpush1.bf16.msra.mxu0 0
    %6378 = vmatprep.subr.bf16.mxu0 0
    %6379 = vmatpush1.bf16.msra.mxu0 0
    %6380 = vmatprep.subr.bf16.mxu0 0
    %6381 = vmatpush1.bf16.msra.mxu0 0
    %6382 = vmatprep.subr.bf16.mxu0 0
    %6383 = vmatpush1.bf16.msra.mxu0 0
    %6384 = vmatprep.subr.bf16.mxu0 0
    %6385 = vmatpush1.bf16.msra.mxu0 0
    %6386 = vmatprep.subr.bf16.mxu0 0
    %6387 = vmatpush1.bf16.msra.mxu0 0
    %6388 = vmatprep.subr.bf16.mxu0 0
    %6389 = vmatpush1.bf16.msra.mxu0 0
    %6390 = vmatprep.subr.bf16.mxu0 0
    %6391 = vmatpush1.bf16.msra.mxu0 0
    %6392 = vmatprep.subr.bf16.mxu0 0
    %6393 = vmatpush1.bf16.msra.mxu0 0
    %6394 = vmatprep.subr.bf16.mxu0 0
    %6395 = vmatpush1.bf16.msra.mxu0 0
    %6396 = vmatprep.subr.bf16.mxu0 0
    %6397 = vmatpush1.bf16.msra.mxu0 0
    %6398 = vmatprep.mubr.bf16.mxu0 0
    %6399 = vmatmul.mubr.bf16.gmra.mrb[0].mxu0 %v6323
    %v6400 = vpop.f32.mrb[0].mxu0
    %v6401 = vadd.f32 0.0, %v6400
    %v6402 = vpop.f32.mrb[0].mxu0
    %v6403 = vadd.f32 0.0, %v6402
    %v6404 = vpop.f32.mrb[0].mxu0
    %v6405 = vpop.f32.mrb[0].mxu0
    %6406 = vdwg.mxu0
    %6407 = vmatprep.subr.bf16.mxu0 %v6262
    %6408 = vmatpush1.bf16.msra.mxu0 %v6261
    %6409 = vmatprep.subr.bf16.mxu0 %v6294
    %6410 = vmatpush1.bf16.msra.mxu0 %v6293
    %6411 = vmatprep.subr.bf16.mxu0 0
    %6412 = vmatpush1.bf16.msra.mxu0 0
    %6413 = vmatprep.subr.bf16.mxu0 0
    %6414 = vmatpush1.bf16.msra.mxu0 0
    %6415 = vmatprep.subr.bf16.mxu0 0
    %6416 = vmatpush1.bf16.msra.mxu0 0
    %6417 = vmatprep.subr.bf16.mxu0 0
    %6418 = vmatpush1.bf16.msra.mxu0 0
    %6419 = vmatprep.subr.bf16.mxu0 0
    %6420 = vmatpush1.bf16.msra.mxu0 0
    %6421 = vmatprep.subr.bf16.mxu0 0
    %6422 = vmatpush1.bf16.msra.mxu0 0
    %6423 = vmatprep.subr.bf16.mxu0 0
    %6424 = vmatpush1.bf16.msra.mxu0 0
    %6425 = vmatprep.subr.bf16.mxu0 0
    %6426 = vmatpush1.bf16.msra.mxu0 0
    %6427 = vmatprep.subr.bf16.mxu0 0
    %6428 = vmatpush1.bf16.msra.mxu0 0
    %6429 = vmatprep.subr.bf16.mxu0 0
    %6430 = vmatpush1.bf16.msra.mxu0 0
    %6431 = vmatprep.subr.bf16.mxu0 0
    %6432 = vmatpush1.bf16.msra.mxu0 0
    %6433 = vmatprep.subr.bf16.mxu0 0
    %6434 = vmatpush1.bf16.msra.mxu0 0
    %6435 = vmatprep.subr.bf16.mxu0 0
    %6436 = vmatpush1.bf16.msra.mxu0 0
    %6437 = vmatprep.subr.bf16.mxu0 0
    %6438 = vmatpush1.bf16.msra.mxu0 0
    %6439 = vmatprep.mubr.bf16.mxu0 0
    %6440 = vmatmul.mubr.bf16.gmra.mrb[0].mxu0 %v6323
    %v6441 = vpop.f32.mrb[0].mxu0
    %v6442 = vadd.f32 0.0, %v6441
    %v6443 = vpop.f32.mrb[0].mxu0
    %v6444 = vadd.f32 0.0, %v6443
    %v6445 = vpop.f32.mrb[0].mxu0
    %v6446 = vpop.f32.mrb[0].mxu0
    %6447 = vdwg.mxu0
    %6448 = vmatprep.subr.bf16.mxu0 %v6264
    %6449 = vmatpush1.bf16.msra.mxu0 %v6263
    %6450 = vmatprep.subr.bf16.mxu0 %v6296
    %6451 = vmatpush1.bf16.msra.mxu0 %v6295
    %6452 = vmatprep.subr.bf16.mxu0 0
    %6453 = vmatpush1.bf16.msra.mxu0 0
    %6454 = vmatprep.subr.bf16.mxu0 0
    %6455 = vmatpush1.bf16.msra.mxu0 0
    %6456 = vmatprep.subr.bf16.mxu0 0
    %6457 = vmatpush1.bf16.msra.mxu0 0
    %6458 = vmatprep.subr.bf16.mxu0 0
    %6459 = vmatpush1.bf16.msra.mxu0 0
    %6460 = vmatprep.subr.bf16.mxu0 0
    %6461 = vmatpush1.bf16.msra.mxu0 0
    %6462 = vmatprep.subr.bf16.mxu0 0
    %6463 = vmatpush1.bf16.msra.mxu0 0
    %6464 = vmatprep.subr.bf16.mxu0 0
    %6465 = vmatpush1.bf16.msra.mxu0 0
    %6466 = vmatprep.subr.bf16.mxu0 0
    %6467 = vmatpush1.bf16.msra.mxu0 0
    %6468 = vmatprep.subr.bf16.mxu0 0
    %6469 = vmatpush1.bf16.msra.mxu0 0
    %6470 = vmatprep.subr.bf16.mxu0 0
    %6471 = vmatpush1.bf16.msra.mxu0 0
    %6472 = vmatprep.subr.bf16.mxu0 0
    %6473 = vmatpush1.bf16.msra.mxu0 0
    %6474 = vmatprep.subr.bf16.mxu0 0
    %6475 = vmatpush1.bf16.msra.mxu0 0
    %6476 = vmatprep.subr.bf16.mxu0 0
    %6477 = vmatpush1.bf16.msra.mxu0 0
    %6478 = vmatprep.subr.bf16.mxu0 0
    %6479 = vmatpush1.bf16.msra.mxu0 0
    %6480 = vmatprep.mubr.bf16.mxu0 0
    %6481 = vmatmul.mubr.bf16.gmra.mrb[0].mxu0 %v6323
    %v6482 = vpop.f32.mrb[0].mxu0
    %v6483 = vadd.f32 0.0, %v6482
    %v6484 = vpop.f32.mrb[0].mxu0
    %v6485 = vadd.f32 0.0, %v6484
    %v6486 = vpop.f32.mrb[0].mxu0
    %v6487 = vpop.f32.mrb[0].mxu0
    %6488 = vdwg.mxu0
    %6489 = vmatprep.subr.bf16.mxu0 %v6266
    %6490 = vmatpush1.bf16.msra.mxu0 %v6265
    %6491 = vmatprep.subr.bf16.mxu0 %v6298
    %6492 = vmatpush1.bf16.msra.mxu0 %v6297
    %6493 = vmatprep.subr.bf16.mxu0 0
    %6494 = vmatpush1.bf16.msra.mxu0 0
    %6495 = vmatprep.subr.bf16.mxu0 0
    %6496 = vmatpush1.bf16.msra.mxu0 0
    %6497 = vmatprep.subr.bf16.mxu0 0
    %6498 = vmatpush1.bf16.msra.mxu0 0
    %6499 = vmatprep.subr.bf16.mxu0 0
    %6500 = vmatpush1.bf16.msra.mxu0 0
    %6501 = vmatprep.subr.bf16.mxu0 0
    %6502 = vmatpush1.bf16.msra.mxu0 0
    %6503 = vmatprep.subr.bf16.mxu0 0
    %6504 = vmatpush1.bf16.msra.mxu0 0
    %6505 = vmatprep.subr.bf16.mxu0 0
    %6506 = vmatpush1.bf16.msra.mxu0 0
    %6507 = vmatprep.subr.bf16.mxu0 0
    %6508 = vmatpush1.bf16.msra.mxu0 0
    %6509 = vmatprep.subr.bf16.mxu0 0
    %6510 = vmatpush1.bf16.msra.mxu0 0
    %6511 = vmatprep.subr.bf16.mxu0 0
    %6512 = vmatpush1.bf16.msra.mxu0 0
    %6513 = vmatprep.subr.bf16.mxu0 0
    %6514 = vmatpush1.bf16.msra.mxu0 0
    %6515 = vmatprep.subr.bf16.mxu0 0
    %6516 = vmatpush1.bf16.msra.mxu0 0
    %6517 = vmatprep.subr.bf16.mxu0 0
    %6518 = vmatpush1.bf16.msra.mxu0 0
    %6519 = vmatprep.subr.bf16.mxu0 0
    %6520 = vmatpush1.bf16.msra.mxu0 0
    %6521 = vmatprep.mubr.bf16.mxu0 0
    %6522 = vmatmul.mubr.bf16.gmra.mrb[0].mxu0 %v6323
    %v6523 = vpop.f32.mrb[0].mxu0
    %v6524 = vadd.f32 0.0, %v6523
    %v6525 = vpop.f32.mrb[0].mxu0
    %v6526 = vadd.f32 0.0, %v6525
    %v6527 = vpop.f32.mrb[0].mxu0
    %v6528 = vpop.f32.mrb[0].mxu0
    %6529 = vdwg.mxu0
    %6530 = vmatprep.subr.bf16.mxu0 %v6268
    %6531 = vmatpush1.bf16.msra.mxu0 %v6267
    %6532 = vmatprep.subr.bf16.mxu0 %v6300
    %6533 = vmatpush1.bf16.msra.mxu0 %v6299
    %6534 = vmatprep.subr.bf16.mxu0 0
    %6535 = vmatpush1.bf16.msra.mxu0 0
    %6536 = vmatprep.subr.bf16.mxu0 0
    %6537 = vmatpush1.bf16.msra.mxu0 0
    %6538 = vmatprep.subr.bf16.mxu0 0
    %6539 = vmatpush1.bf16.msra.mxu0 0
    %6540 = vmatprep.subr.bf16.mxu0 0
    %6541 = vmatpush1.bf16.msra.mxu0 0
    %6542 = vmatprep.subr.bf16.mxu0 0
    %6543 = vmatpush1.bf16.msra.mxu0 0
    %6544 = vmatprep.subr.bf16.mxu0 0
    %6545 = vmatpush1.bf16.msra.mxu0 0
    %6546 = vmatprep.subr.bf16.mxu0 0
    %6547 = vmatpush1.bf16.msra.mxu0 0
    %6548 = vmatprep.subr.bf16.mxu0 0
    %6549 = vmatpush1.bf16.msra.mxu0 0
    %6550 = vmatprep.subr.bf16.mxu0 0
    %6551 = vmatpush1.bf16.msra.mxu0 0
    %6552 = vmatprep.subr.bf16.mxu0 0
    %6553 = vmatpush1.bf16.msra.mxu0 0
    %6554 = vmatprep.subr.bf16.mxu0 0
    %6555 = vmatpush1.bf16.msra.mxu0 0
    %6556 = vmatprep.subr.bf16.mxu0 0
    %6557 = vmatpush1.bf16.msra.mxu0 0
    %6558 = vmatprep.subr.bf16.mxu0 0
    %6559 = vmatpush1.bf16.msra.mxu0 0
    %6560 = vmatprep.subr.bf16.mxu0 0
    %6561 = vmatpush1.bf16.msra.mxu0 0
    %6562 = vmatprep.mubr.bf16.mxu0 0
    %6563 = vmatmul.mubr.bf16.gmra.mrb[0].mxu0 %v6323
    %v6564 = vpop.f32.mrb[0].mxu0
    %v6565 = vadd.f32 0.0, %v6564
    %v6566 = vpop.f32.mrb[0].mxu0
    %v6567 = vadd.f32 0.0, %v6566
    %v6568 = vpop.f32.mrb[0].mxu0
    %v6569 = vpop.f32.mrb[0].mxu0
    %6570 = vdwg.mxu0
    %6571 = vmatprep.subr.bf16.mxu0 %v6270
    %6572 = vmatpush1.bf16.msra.mxu0 %v6269
    %6573 = vmatprep.subr.bf16.mxu0 %v6302
    %6574 = vmatpush1.bf16.msra.mxu0 %v6301
    %6575 = vmatprep.subr.bf16.mxu0 0
    %6576 = vmatpush1.bf16.msra.mxu0 0
    %6577 = vmatprep.subr.bf16.mxu0 0
    %6578 = vmatpush1.bf16.msra.mxu0 0
    %6579 = vmatprep.subr.bf16.mxu0 0
    %6580 = vmatpush1.bf16.msra.mxu0 0
    %6581 = vmatprep.subr.bf16.mxu0 0
    %6582 = vmatpush1.bf16.msra.mxu0 0
    %6583 = vmatprep.subr.bf16.mxu0 0
    %6584 = vmatpush1.bf16.msra.mxu0 0
    %6585 = vmatprep.subr.bf16.mxu0 0
    %6586 = vmatpush1.bf16.msra.mxu0 0
    %6587 = vmatprep.subr.bf16.mxu0 0
    %6588 = vmatpush1.bf16.msra.mxu0 0
    %6589 = vmatprep.subr.bf16.mxu0 0
    %6590 = vmatpush1.bf16.msra.mxu0 0
    %6591 = vmatprep.subr.bf16.mxu0 0
    %6592 = vmatpush1.bf16.msra.mxu0 0
    %6593 = vmatprep.subr.bf16.mxu0 0
    %6594 = vmatpush1.bf16.msra.mxu0 0
    %6595 = vmatprep.subr.bf16.mxu0 0
    %6596 = vmatpush1.bf16.msra.mxu0 0
    %6597 = vmatprep.subr.bf16.mxu0 0
    %6598 = vmatpush1.bf16.msra.mxu0 0
    %6599 = vmatprep.subr.bf16.mxu0 0
    %6600 = vmatpush1.bf16.msra.mxu0 0
    %6601 = vmatprep.subr.bf16.mxu0 0
    %6602 = vmatpush1.bf16.msra.mxu0 0
    %6603 = vmatprep.mubr.bf16.mxu0 0
    %6604 = vmatmul.mubr.bf16.gmra.mrb[0].mxu0 %v6323
    %v6605 = vpop.f32.mrb[0].mxu0
    %v6606 = vadd.f32 0.0, %v6605
    %v6607 = vpop.f32.mrb[0].mxu0
    %v6608 = vadd.f32 0.0, %v6607
    %v6609 = vpop.f32.mrb[0].mxu0
    %v6610 = vpop.f32.mrb[0].mxu0
    %6611 = vdwg.mxu0
    %6612 = vmatprep.subr.bf16.mxu0 %v6272
    %6613 = vmatpush1.bf16.msra.mxu0 %v6271
    %6614 = vmatprep.subr.bf16.mxu0 %v6304
    %6615 = vmatpush1.bf16.msra.mxu0 %v6303
    %6616 = vmatprep.subr.bf16.mxu0 0
    %6617 = vmatpush1.bf16.msra.mxu0 0
    %6618 = vmatprep.subr.bf16.mxu0 0
    %6619 = vmatpush1.bf16.msra.mxu0 0
    %6620 = vmatprep.subr.bf16.mxu0 0
    %6621 = vmatpush1.bf16.msra.mxu0 0
    %6622 = vmatprep.subr.bf16.mxu0 0
    %6623 = vmatpush1.bf16.msra.mxu0 0
    %6624 = vmatprep.subr.bf16.mxu0 0
    %6625 = vmatpush1.bf16.msra.mxu0 0
    %6626 = vmatprep.subr.bf16.mxu0 0
    %6627 = vmatpush1.bf16.msra.mxu0 0
    %6628 = vmatprep.subr.bf16.mxu0 0
    %6629 = vmatpush1.bf16.msra.mxu0 0
    %6630 = vmatprep.subr.bf16.mxu0 0
    %6631 = vmatpush1.bf16.msra.mxu0 0
    %6632 = vmatprep.subr.bf16.mxu0 0
    %6633 = vmatpush1.bf16.msra.mxu0 0
    %6634 = vmatprep.subr.bf16.mxu0 0
    %6635 = vmatpush1.bf16.msra.mxu0 0
    %6636 = vmatprep.subr.bf16.mxu0 0
    %6637 = vmatpush1.bf16.msra.mxu0 0
    %6638 = vmatprep.subr.bf16.mxu0 0
    %6639 = vmatpush1.bf16.msra.mxu0 0
    %6640 = vmatprep.subr.bf16.mxu0 0
    %6641 = vmatpush1.bf16.msra.mxu0 0
    %6642 = vmatprep.subr.bf16.mxu0 0
    %6643 = vmatpush1.bf16.msra.mxu0 0
    %6644 = vmatprep.mubr.bf16.mxu0 0
    %6645 = vmatmul.mubr.bf16.gmra.mrb[0].mxu0 %v6323
    %v6646 = vpop.f32.mrb[0].mxu0
    %v6647 = vadd.f32 0.0, %v6646
    %v6648 = vpop.f32.mrb[0].mxu0
    %v6649 = vadd.f32 0.0, %v6648
    %v6650 = vpop.f32.mrb[0].mxu0
    %v6651 = vpop.f32.mrb[0].mxu0
    %6652 = vdwg.mxu0
    %6653 = vmatprep.subr.bf16.mxu0 %v6274
    %6654 = vmatpush1.bf16.msra.mxu0 %v6273
    %6655 = vmatprep.subr.bf16.mxu0 %v6306
    %6656 = vmatpush1.bf16.msra.mxu0 %v6305
    %6657 = vmatprep.subr.bf16.mxu0 0
    %6658 = vmatpush1.bf16.msra.mxu0 0
    %6659 = vmatprep.subr.bf16.mxu0 0
    %6660 = vmatpush1.bf16.msra.mxu0 0
    %6661 = vmatprep.subr.bf16.mxu0 0
    %6662 = vmatpush1.bf16.msra.mxu0 0
    %6663 = vmatprep.subr.bf16.mxu0 0
    %6664 = vmatpush1.bf16.msra.mxu0 0
    %6665 = vmatprep.subr.bf16.mxu0 0
    %6666 = vmatpush1.bf16.msra.mxu0 0
    %6667 = vmatprep.subr.bf16.mxu0 0
    %6668 = vmatpush1.bf16.msra.mxu0 0
    %6669 = vmatprep.subr.bf16.mxu0 0
    %6670 = vmatpush1.bf16.msra.mxu0 0
    %6671 = vmatprep.subr.bf16.mxu0 0
    %6672 = vmatpush1.bf16.msra.mxu0 0
    %6673 = vmatprep.subr.bf16.mxu0 0
    %6674 = vmatpush1.bf16.msra.mxu0 0
    %6675 = vmatprep.subr.bf16.mxu0 0
    %6676 = vmatpush1.bf16.msra.mxu0 0
    %6677 = vmatprep.subr.bf16.mxu0 0
    %6678 = vmatpush1.bf16.msra.mxu0 0
    %6679 = vmatprep.subr.bf16.mxu0 0
    %6680 = vmatpush1.bf16.msra.mxu0 0
    %6681 = vmatprep.subr.bf16.mxu0 0
    %6682 = vmatpush1.bf16.msra.mxu0 0
    %6683 = vmatprep.subr.bf16.mxu0 0
    %6684 = vmatpush1.bf16.msra.mxu0 0
    %6685 = vmatprep.mubr.bf16.mxu0 0
    %6686 = vmatmul.mubr.bf16.gmra.mrb[0].mxu0 %v6323
    %v6687 = vpop.f32.mrb[0].mxu0
    %v6688 = vadd.f32 0.0, %v6687
    %v6689 = vpop.f32.mrb[0].mxu0
    %v6690 = vadd.f32 0.0, %v6689
    %v6691 = vpop.f32.mrb[0].mxu0
    %v6692 = vpop.f32.mrb[0].mxu0
    %6693 = vdwg.mxu0
    %6694 = vmatprep.subr.bf16.mxu0 %v6276
    %6695 = vmatpush1.bf16.msra.mxu0 %v6275
    %6696 = vmatprep.subr.bf16.mxu0 %v6308
    %6697 = vmatpush1.bf16.msra.mxu0 %v6307
    %6698 = vmatprep.subr.bf16.mxu0 0
    %6699 = vmatpush1.bf16.msra.mxu0 0
    %6700 = vmatprep.subr.bf16.mxu0 0
    %6701 = vmatpush1.bf16.msra.mxu0 0
    %6702 = vmatprep.subr.bf16.mxu0 0
    %6703 = vmatpush1.bf16.msra.mxu0 0
    %6704 = vmatprep.subr.bf16.mxu0 0
    %6705 = vmatpush1.bf16.msra.mxu0 0
    %6706 = vmatprep.subr.bf16.mxu0 0
    %6707 = vmatpush1.bf16.msra.mxu0 0
    %6708 = vmatprep.subr.bf16.mxu0 0
    %6709 = vmatpush1.bf16.msra.mxu0 0
    %6710 = vmatprep.subr.bf16.mxu0 0
    %6711 = vmatpush1.bf16.msra.mxu0 0
    %6712 = vmatprep.subr.bf16.mxu0 0
    %6713 = vmatpush1.bf16.msra.mxu0 0
    %6714 = vmatprep.subr.bf16.mxu0 0
    %6715 = vmatpush1.bf16.msra.mxu0 0
    %6716 = vmatprep.subr.bf16.mxu0 0
    %6717 = vmatpush1.bf16.msra.mxu0 0
    %6718 = vmatprep.subr.bf16.mxu0 0
    %6719 = vmatpush1.bf16.msra.mxu0 0
    %6720 = vmatprep.subr.bf16.mxu0 0
    %6721 = vmatpush1.bf16.msra.mxu0 0
    %6722 = vmatprep.subr.bf16.mxu0 0
    %6723 = vmatpush1.bf16.msra.mxu0 0
    %6724 = vmatprep.subr.bf16.mxu0 0
    %6725 = vmatpush1.bf16.msra.mxu0 0
    %6726 = vmatprep.mubr.bf16.mxu0 0
    %6727 = vmatmul.mubr.bf16.gmra.mrb[0].mxu0 %v6323
    %v6728 = vpop.f32.mrb[0].mxu0
    %v6729 = vadd.f32 0.0, %v6728
    %v6730 = vpop.f32.mrb[0].mxu0
    %v6731 = vadd.f32 0.0, %v6730
    %v6732 = vpop.f32.mrb[0].mxu0
    %v6733 = vpop.f32.mrb[0].mxu0
    %6734 = vdwg.mxu0
    %6735 = vmatprep.subr.bf16.mxu0 %v6278
    %6736 = vmatpush1.bf16.msra.mxu0 %v6277
    %6737 = vmatprep.subr.bf16.mxu0 %v6310
    %6738 = vmatpush1.bf16.msra.mxu0 %v6309
    %6739 = vmatprep.subr.bf16.mxu0 0
    %6740 = vmatpush1.bf16.msra.mxu0 0
    %6741 = vmatprep.subr.bf16.mxu0 0
    %6742 = vmatpush1.bf16.msra.mxu0 0
    %6743 = vmatprep.subr.bf16.mxu0 0
    %6744 = vmatpush1.bf16.msra.mxu0 0
    %6745 = vmatprep.subr.bf16.mxu0 0
    %6746 = vmatpush1.bf16.msra.mxu0 0
    %6747 = vmatprep.subr.bf16.mxu0 0
    %6748 = vmatpush1.bf16.msra.mxu0 0
    %6749 = vmatprep.subr.bf16.mxu0 0
    %6750 = vmatpush1.bf16.msra.mxu0 0
    %6751 = vmatprep.subr.bf16.mxu0 0
    %6752 = vmatpush1.bf16.msra.mxu0 0
    %6753 = vmatprep.subr.bf16.mxu0 0
    %6754 = vmatpush1.bf16.msra.mxu0 0
    %6755 = vmatprep.subr.bf16.mxu0 0
    %6756 = vmatpush1.bf16.msra.mxu0 0
    %6757 = vmatprep.subr.bf16.mxu0 0
    %6758 = vmatpush1.bf16.msra.mxu0 0
    %6759 = vmatprep.subr.bf16.mxu0 0
    %6760 = vmatpush1.bf16.msra.mxu0 0
    %6761 = vmatprep.subr.bf16.mxu0 0
    %6762 = vmatpush1.bf16.msra.mxu0 0
    %6763 = vmatprep.subr.bf16.mxu0 0
    %6764 = vmatpush1.bf16.msra.mxu0 0
    %6765 = vmatprep.subr.bf16.mxu0 0
    %6766 = vmatpush1.bf16.msra.mxu0 0
    %6767 = vmatprep.mubr.bf16.mxu0 0
    %6768 = vmatmul.mubr.bf16.gmra.mrb[0].mxu0 %v6323
    %v6769 = vpop.f32.mrb[0].mxu0
    %v6770 = vadd.f32 0.0, %v6769
    %v6771 = vpop.f32.mrb[0].mxu0
    %v6772 = vadd.f32 0.0, %v6771
    %v6773 = vpop.f32.mrb[0].mxu0
    %v6774 = vpop.f32.mrb[0].mxu0
    %6775 = vdwg.mxu0
    %6776 = vmatprep.subr.bf16.mxu0 %v6280
    %6777 = vmatpush1.bf16.msra.mxu0 %v6279
    %6778 = vmatprep.subr.bf16.mxu0 %v6312
    %6779 = vmatpush1.bf16.msra.mxu0 %v6311
    %6780 = vmatprep.subr.bf16.mxu0 0
    %6781 = vmatpush1.bf16.msra.mxu0 0
    %6782 = vmatprep.subr.bf16.mxu0 0
    %6783 = vmatpush1.bf16.msra.mxu0 0
    %6784 = vmatprep.subr.bf16.mxu0 0
    %6785 = vmatpush1.bf16.msra.mxu0 0
    %6786 = vmatprep.subr.bf16.mxu0 0
    %6787 = vmatpush1.bf16.msra.mxu0 0
    %6788 = vmatprep.subr.bf16.mxu0 0
    %6789 = vmatpush1.bf16.msra.mxu0 0
    %6790 = vmatprep.subr.bf16.mxu0 0
    %6791 = vmatpush1.bf16.msra.mxu0 0
    %6792 = vmatprep.subr.bf16.mxu0 0
    %6793 = vmatpush1.bf16.msra.mxu0 0
    %6794 = vmatprep.subr.bf16.mxu0 0
    %6795 = vmatpush1.bf16.msra.mxu0 0
    %6796 = vmatprep.subr.bf16.mxu0 0
    %6797 = vmatpush1.bf16.msra.mxu0 0
    %6798 = vmatprep.subr.bf16.mxu0 0
    %6799 = vmatpush1.bf16.msra.mxu0 0
    %6800 = vmatprep.subr.bf16.mxu0 0
    %6801 = vmatpush1.bf16.msra.mxu0 0
    %6802 = vmatprep.subr.bf16.mxu0 0
    %6803 = vmatpush1.bf16.msra.mxu0 0
    %6804 = vmatprep.subr.bf16.mxu0 0
    %6805 = vmatpush1.bf16.msra.mxu0 0
    %6806 = vmatprep.subr.bf16.mxu0 0
    %6807 = vmatpush1.bf16.msra.mxu0 0
    %6808 = vmatprep.mubr.bf16.mxu0 0
    %6809 = vmatmul.mubr.bf16.gmra.mrb[0].mxu0 %v6323
    %v6810 = vpop.f32.mrb[0].mxu0
    %v6811 = vadd.f32 0.0, %v6810
    %v6812 = vpop.f32.mrb[0].mxu0
    %v6813 = vadd.f32 0.0, %v6812
    %v6814 = vpop.f32.mrb[0].mxu0
    %v6815 = vpop.f32.mrb[0].mxu0
    %6816 = vdwg.mxu0
    %6817 = vmatprep.subr.bf16.mxu0 %v6282
    %6818 = vmatpush1.bf16.msra.mxu0 %v6281
    %6819 = vmatprep.subr.bf16.mxu0 %v6314
    %6820 = vmatpush1.bf16.msra.mxu0 %v6313
    %6821 = vmatprep.subr.bf16.mxu0 0
    %6822 = vmatpush1.bf16.msra.mxu0 0
    %6823 = vmatprep.subr.bf16.mxu0 0
    %6824 = vmatpush1.bf16.msra.mxu0 0
    %6825 = vmatprep.subr.bf16.mxu0 0
    %6826 = vmatpush1.bf16.msra.mxu0 0
    %6827 = vmatprep.subr.bf16.mxu0 0
    %6828 = vmatpush1.bf16.msra.mxu0 0
    %6829 = vmatprep.subr.bf16.mxu0 0
    %6830 = vmatpush1.bf16.msra.mxu0 0
    %6831 = vmatprep.subr.bf16.mxu0 0
    %6832 = vmatpush1.bf16.msra.mxu0 0
    %6833 = vmatprep.subr.bf16.mxu0 0
    %6834 = vmatpush1.bf16.msra.mxu0 0
    %6835 = vmatprep.subr.bf16.mxu0 0
    %6836 = vmatpush1.bf16.msra.mxu0 0
    %6837 = vmatprep.subr.bf16.mxu0 0
    %6838 = vmatpush1.bf16.msra.mxu0 0
    %6839 = vmatprep.subr.bf16.mxu0 0
    %6840 = vmatpush1.bf16.msra.mxu0 0
    %6841 = vmatprep.subr.bf16.mxu0 0
    %6842 = vmatpush1.bf16.msra.mxu0 0
    %6843 = vmatprep.subr.bf16.mxu0 0
    %6844 = vmatpush1.bf16.msra.mxu0 0
    %6845 = vmatprep.subr.bf16.mxu0 0
    %6846 = vmatpush1.bf16.msra.mxu0 0
    %6847 = vmatprep.subr.bf16.mxu0 0
    %6848 = vmatpush1.bf16.msra.mxu0 0
    %6849 = vmatprep.mubr.bf16.mxu0 0
    %6850 = vmatmul.mubr.bf16.gmra.mrb[0].mxu0 %v6323
    %v6851 = vpop.f32.mrb[0].mxu0
    %v6852 = vadd.f32 0.0, %v6851
    %v6853 = vpop.f32.mrb[0].mxu0
    %v6854 = vadd.f32 0.0, %v6853
    %v6855 = vpop.f32.mrb[0].mxu0
    %v6856 = vpop.f32.mrb[0].mxu0
    %6857 = vdwg.mxu0
    %6858 = vmatprep.subr.bf16.mxu0 %v6284
    %6859 = vmatpush1.bf16.msra.mxu0 %v6283
    %6860 = vmatprep.subr.bf16.mxu0 %v6316
    %6861 = vmatpush1.bf16.msra.mxu0 %v6315
    %6862 = vmatprep.subr.bf16.mxu0 0
    %6863 = vmatpush1.bf16.msra.mxu0 0
    %6864 = vmatprep.subr.bf16.mxu0 0
    %6865 = vmatpush1.bf16.msra.mxu0 0
    %6866 = vmatprep.subr.bf16.mxu0 0
    %6867 = vmatpush1.bf16.msra.mxu0 0
    %6868 = vmatprep.subr.bf16.mxu0 0
    %6869 = vmatpush1.bf16.msra.mxu0 0
    %6870 = vmatprep.subr.bf16.mxu0 0
    %6871 = vmatpush1.bf16.msra.mxu0 0
    %6872 = vmatprep.subr.bf16.mxu0 0
    %6873 = vmatpush1.bf16.msra.mxu0 0
    %6874 = vmatprep.subr.bf16.mxu0 0
    %6875 = vmatpush1.bf16.msra.mxu0 0
    %6876 = vmatprep.subr.bf16.mxu0 0
    %6877 = vmatpush1.bf16.msra.mxu0 0
    %6878 = vmatprep.subr.bf16.mxu0 0
    %6879 = vmatpush1.bf16.msra.mxu0 0
    %6880 = vmatprep.subr.bf16.mxu0 0
    %6881 = vmatpush1.bf16.msra.mxu0 0
    %6882 = vmatprep.subr.bf16.mxu0 0
    %6883 = vmatpush1.bf16.msra.mxu0 0
    %6884 = vmatprep.subr.bf16.mxu0 0
    %6885 = vmatpush1.bf16.msra.mxu0 0
    %6886 = vmatprep.subr.bf16.mxu0 0
    %6887 = vmatpush1.bf16.msra.mxu0 0
    %6888 = vmatprep.subr.bf16.mxu0 0
    %6889 = vmatpush1.bf16.msra.mxu0 0
    %6890 = vmatprep.mubr.bf16.mxu0 0
    %6891 = vmatmul.mubr.bf16.gmra.mrb[0].mxu0 %v6323
    %v6892 = vpop.f32.mrb[0].mxu0
    %v6893 = vadd.f32 0.0, %v6892
    %v6894 = vpop.f32.mrb[0].mxu0
    %v6895 = vadd.f32 0.0, %v6894
    %v6896 = vpop.f32.mrb[0].mxu0
    %v6897 = vpop.f32.mrb[0].mxu0
    %6898 = vdwg.mxu0
    %6899 = vmatprep.subr.bf16.mxu0 %v6286
    %6900 = vmatpush1.bf16.msra.mxu0 %v6285
    %6901 = vmatprep.subr.bf16.mxu0 %v6318
    %6902 = vmatpush1.bf16.msra.mxu0 %v6317
    %6903 = vmatprep.subr.bf16.mxu0 0
    %6904 = vmatpush1.bf16.msra.mxu0 0
    %6905 = vmatprep.subr.bf16.mxu0 0
    %6906 = vmatpush1.bf16.msra.mxu0 0
    %6907 = vmatprep.subr.bf16.mxu0 0
    %6908 = vmatpush1.bf16.msra.mxu0 0
    %6909 = vmatprep.subr.bf16.mxu0 0
    %6910 = vmatpush1.bf16.msra.mxu0 0
    %6911 = vmatprep.subr.bf16.mxu0 0
    %6912 = vmatpush1.bf16.msra.mxu0 0
    %6913 = vmatprep.subr.bf16.mxu0 0
    %6914 = vmatpush1.bf16.msra.mxu0 0
    %6915 = vmatprep.subr.bf16.mxu0 0
    %6916 = vmatpush1.bf16.msra.mxu0 0
    %6917 = vmatprep.subr.bf16.mxu0 0
    %6918 = vmatpush1.bf16.msra.mxu0 0
    %6919 = vmatprep.subr.bf16.mxu0 0
    %6920 = vmatpush1.bf16.msra.mxu0 0
    %6921 = vmatprep.subr.bf16.mxu0 0
    %6922 = vmatpush1.bf16.msra.mxu0 0
    %6923 = vmatprep.subr.bf16.mxu0 0
    %6924 = vmatpush1.bf16.msra.mxu0 0
    %6925 = vmatprep.subr.bf16.mxu0 0
    %6926 = vmatpush1.bf16.msra.mxu0 0
    %6927 = vmatprep.subr.bf16.mxu0 0
    %6928 = vmatpush1.bf16.msra.mxu0 0
    %6929 = vmatprep.subr.bf16.mxu0 0
    %6930 = vmatpush1.bf16.msra.mxu0 0
    %6931 = vmatprep.mubr.bf16.mxu0 0
    %6932 = vmatmul.mubr.bf16.gmra.mrb[0].mxu0 %v6323
    %v6933 = vpop.f32.mrb[0].mxu0
    %v6934 = vadd.f32 0.0, %v6933
    %v6935 = vpop.f32.mrb[0].mxu0
    %v6936 = vadd.f32 0.0, %v6935
    %v6937 = vpop.f32.mrb[0].mxu0
    %v6938 = vpop.f32.mrb[0].mxu0
    %6939 = vdwg.mxu0
    %6940 = vmatprep.subr.bf16.mxu0 %v6288
    %6941 = vmatpush1.bf16.msra.mxu0 %v6287
    %6942 = vmatprep.subr.bf16.mxu0 %v6320
    %6943 = vmatpush1.bf16.msra.mxu0 %v6319
    %6944 = vmatprep.subr.bf16.mxu0 0
    %6945 = vmatpush1.bf16.msra.mxu0 0
    %6946 = vmatprep.subr.bf16.mxu0 0
    %6947 = vmatpush1.bf16.msra.mxu0 0
    %6948 = vmatprep.subr.bf16.mxu0 0
    %6949 = vmatpush1.bf16.msra.mxu0 0
    %6950 = vmatprep.subr.bf16.mxu0 0
    %6951 = vmatpush1.bf16.msra.mxu0 0
    %6952 = vmatprep.subr.bf16.mxu0 0
    %6953 = vmatpush1.bf16.msra.mxu0 0
    %6954 = vmatprep.subr.bf16.mxu0 0
    %6955 = vmatpush1.bf16.msra.mxu0 0
    %6956 = vmatprep.subr.bf16.mxu0 0
    %6957 = vmatpush1.bf16.msra.mxu0 0
    %6958 = vmatprep.subr.bf16.mxu0 0
    %6959 = vmatpush1.bf16.msra.mxu0 0
    %6960 = vmatprep.subr.bf16.mxu0 0
    %6961 = vmatpush1.bf16.msra.mxu0 0
    %6962 = vmatprep.subr.bf16.mxu0 0
    %6963 = vmatpush1.bf16.msra.mxu0 0
    %6964 = vmatprep.subr.bf16.mxu0 0
    %6965 = vmatpush1.bf16.msra.mxu0 0
    %6966 = vmatprep.subr.bf16.mxu0 0
    %6967 = vmatpush1.bf16.msra.mxu0 0
    %6968 = vmatprep.subr.bf16.mxu0 0
    %6969 = vmatpush1.bf16.msra.mxu0 0
    %6970 = vmatprep.subr.bf16.mxu0 0
    %6971 = vmatpush1.bf16.msra.mxu0 0
    %6972 = vmatprep.mubr.bf16.mxu0 0
    %6973 = vmatmul.mubr.bf16.gmra.mrb[0].mxu0 %v6323
    %v6974 = vpop.f32.mrb[0].mxu0
    %v6975 = vadd.f32 0.0, %v6974
    %v6976 = vpop.f32.mrb[0].mxu0
    %v6977 = vadd.f32 0.0, %v6976
    %v6978 = vpop.f32.mrb[0].mxu0
    %v6979 = vpop.f32.mrb[0].mxu0
    %6980 = vdwg.mxu0
    %v6981 = vld [vmem:[%s4] sm:$0x7]
    %6983 = vset.pattern.permute.xlu0 0
    %6984 = vperm.xlu0 %6983, %v6981
    %v6985 = vpop.permute.xlu0 %6984
    %v6987 = vadd.f32 %v6360, %v6985
    %v6988 = vadd.f32 %v6362, %v6985
    %v6989 = vadd.f32 %v6401, %v6985
    %v6990 = vadd.f32 %v6403, %v6985
    %v6991 = vadd.f32 %v6442, %v6985
    %v6992 = vadd.f32 %v6444, %v6985
    %v6993 = vadd.f32 %v6483, %v6985
    %v6994 = vadd.f32 %v6485, %v6985
    %v6995 = vadd.f32 %v6524, %v6985
    %v6996 = vadd.f32 %v6526, %v6985
    %v6997 = vadd.f32 %v6565, %v6985
    %v6998 = vadd.f32 %v6567, %v6985
    %v6999 = vadd.f32 %v6606, %v6985
    %v7000 = vadd.f32 %v6608, %v6985
    %v7001 = vadd.f32 %v6647, %v6985
    %v7002 = vadd.f32 %v6649, %v6985
    %v7003 = vadd.f32 %v6688, %v6985
    %v7004 = vadd.f32 %v6690, %v6985
    %v7005 = vadd.f32 %v6729, %v6985
    %v7006 = vadd.f32 %v6731, %v6985
    %v7007 = vadd.f32 %v6770, %v6985
    %v7008 = vadd.f32 %v6772, %v6985
    %v7009 = vadd.f32 %v6811, %v6985
    %v7010 = vadd.f32 %v6813, %v6985
    %v7011 = vadd.f32 %v6852, %v6985
    %v7012 = vadd.f32 %v6854, %v6985
    %v7013 = vadd.f32 %v6893, %v6985
    %v7014 = vadd.f32 %v6895, %v6985
    %v7015 = vadd.f32 %v6934, %v6985
    %v7016 = vadd.f32 %v6936, %v6985
    %v7017 = vadd.f32 %v6975, %v6985
    %v7018 = vadd.f32 %v6977, %v6985
    %v7051 = vcombine.low %v6987, %v6988
    %v7052 = vcombine.low %v6989, %v6990
    %v7053 = vcombine.low %v6991, %v6992
    %v7054 = vcombine.low %v6993, %v6994
    %v7055 = vcombine.low %v6995, %v6996
    %v7056 = vcombine.low %v6997, %v6998
    %v7057 = vcombine.low %v6999, %v7000
    %v7058 = vcombine.low %v7001, %v7002
    %v7059 = vcombine.low %v7003, %v7004
    %v7060 = vcombine.low %v7005, %v7006
    %v7061 = vcombine.low %v7007, %v7008
    %v7062 = vcombine.low %v7009, %v7010
    %v7063 = vcombine.low %v7011, %v7012
    %v7064 = vcombine.low %v7013, %v7014
    %v7065 = vcombine.low %v7015, %v7016
    %v7066 = vcombine.low %v7017, %v7018
    %7083 = vst [vmem:[#allocation2] sm:$0x77] %v7051
    %7084 = vst [vmem:[#allocation2 + $0x8] sm:$0x77] %v7052
    %7085 = vst [vmem:[#allocation2 + $0x10] sm:$0x77] %v7053
    %7086 = vst [vmem:[#allocation2 + $0x18] sm:$0x77] %v7054
    %7087 = vst [vmem:[#allocation2 + $0x20] sm:$0x77] %v7055
    %7088 = vst [vmem:[#allocation2 + $0x28] sm:$0x77] %v7056
    %7089 = vst [vmem:[#allocation2 + $0x30] sm:$0x77] %v7057
    %7090 = vst [vmem:[#allocation2 + $0x38] sm:$0x77] %v7058
    %7091 = vst [vmem:[#allocation2 + $0x40] sm:$0x77] %v7059
    %7092 = vst [vmem:[#allocation2 + $0x48] sm:$0x77] %v7060
    %7093 = vst [vmem:[#allocation2 + $0x50] sm:$0x77] %v7061
    %7094 = vst [vmem:[#allocation2 + $0x58] sm:$0x77] %v7062
    %7095 = vst [vmem:[#allocation2 + $0x60] sm:$0x77] %v7063
    %7096 = vst [vmem:[#allocation2 + $0x68] sm:$0x77] %v7064
    %7097 = vst [vmem:[#allocation2 + $0x70] sm:$0x77] %v7065
    %7098 = vst [vmem:[#allocation2 + $0x78] sm:$0x77] %v7066
    // Predicated region
    $region22: #{tpu_custom_call.1} parent=1 // pred_check
      _
    $region23: #{tpu_custom_call.1} parent=1 // pred_check_branch
      %7100 = sbr.rel (0) target = $region25
    $region24: #{tpu_custom_call.1} parent=1 // pred_region
      %s7102 = ssub.s32 2048, 2048
      %7103 = vsyncadd [#allocation3], %s7102
      %s7105 = sshll.u32 [#allocation2], 4
      %s7106 = int_to_ptr.vmem [resolvable:$true] %s7105
      %7108 = dma.vmem_to_hbm [thread:$0]  %s7106, 2048, %s5, [#allocation3]
    $region25: #{tpu_custom_call.1} parent=1 // pred_fallthru
      _
    // Predicated region
    $region26: #{tpu_custom_call.1} parent=1 // pred_check
      _
    $region27: #{tpu_custom_call.1} parent=1 // pred_check_branch
      %7110 = sbr.rel (0) target = $region29
    $region28: #{tpu_custom_call.1} parent=1 // pred_region
      %7111 = dma.done [#allocation3], 2048
    $region29: #{tpu_custom_call.1} parent=1 // pred_fallthru
      _
    %7112 = vsyncpa [#allocation3], 1

</llo_original>
